<compile_context>
chip_gen: v6e
topology: v6e:2x2x1
jax: 0.10.0
libtpu: 0.0.40
codegen_flags: <defaults>
</compile_context>

<pallas_src>
import functools

import jax
import jax.numpy as jnp
from jax.experimental import pallas as pl
from jax.experimental.pallas import tpu as pltpu

RRELU_SLOPE = (1.0 / 8.0 + 1.0 / 3.0) / 2.0  # F.rrelu eval-mode negative slope
BN_EPS = 1e-5


def _round_up(v, m):
    return ((v + m - 1) // m) * m


# ----------------------------------------------------------------------------
# Fused Pallas kernel
# ----------------------------------------------------------------------------
def _res_up_kernel(x_ref, mask_ref, w1_ref, w2p_ref, w3p_ref,
                   g1_ref, be1_ref, g2_ref, be2_ref, b3_ref,
                   o_ref,
                   cols_ref, c1_ref, h1c_ref, c2_ref,
                   *, H, W, base):
    N = x_ref.shape[0]
    Cmid = w1_ref.shape[0]
    Cout = w2p_ref.shape[1]
    Wg = W + 2                       # width of one zero-padded row
    Lc = H * Wg                      # "core band" = rows 1..H of the padded grid
    mask = mask_ref[...]             # (1, Lc): 1.0 on real pixels, 0.0 on pad cols
    cnt1 = float(N * H * W)          # BN1 population (low-res)
    cnt2 = float(N * 4 * H * W)      # BN2 population (= N * 2H * 2W)

    def conv_flat(src_ref, n, wflat, offs):
        # src_ref[n]: (Ci, B) canonical flat padded image with zero borders.
        # im2col columns are pure lane-shifted slices; one matmul, output is
        # (Cout, Lc) with the flattened spatial axis lane-dense.
        ci = src_ref.shape[1]
        for t, off in enumerate(offs):
            cols_ref[t * ci:(t + 1) * ci, :] = (
                src_ref[n, :, base + off:base + off + Lc])
        k = len(offs) * ci
        return jnp.dot(wflat, cols_ref[0:k, :],
                       preferred_element_type=jnp.float32)

    conv1_offs = [(dy - 1) * Wg + (dx - 1) for dy in range(3) for dx in range(3)]

    def phase_offs(py, px):
        # taps of (3x3 conv o nearest-2x upsample) collapsed onto the low-res grid
        av = [-1, 0] if py == 0 else [0, 1]
        bv = [-1, 0] if px == 0 else [0, 1]
        return [a * Wg + b for a in av for b in bv]

    # canonical h1 buffer needs zero pad rows/cols + guards
    h1c_ref[...] = jnp.zeros_like(h1c_ref)

    # -------- conv1 over the batch (bias b1 dropped: cancelled by BN1) --------
    s1 = jnp.zeros((Cmid, 1), jnp.float32)
    for n in range(N):
        c1 = conv_flat(x_ref, n, w1_ref[...], conv1_offs)          # (Cmid, Lc)
        c1_ref[n] = c1
        s1 = s1 + jnp.sum(c1 * mask, axis=1, keepdims=True)
    mean1 = s1 / cnt1

    # -------- BN1 biased batch variance (exact second pass) --------
    v1 = jnp.zeros((Cmid, 1), jnp.float32)
    for n in range(N):
        d = (c1_ref[n] - mean1) * mask
        v1 = v1 + jnp.sum(d * d, axis=1, keepdims=True)
    scale1 = jax.lax.rsqrt(v1 / cnt1 + BN_EPS) * g1_ref[...]

    # -------- BN1 + rrelu, write canonical zero-bordered h1 --------
    for n in range(N):
        h = (c1_ref[n] - mean1) * scale1 + be1_ref[...]
        h = jnp.where(h >= 0.0, h, h * RRELU_SLOPE)
        h1c_ref[n, :, base:base + Lc] = h * mask

    # -------- conv2 as 4 polyphase convs (bias b2 dropped: cancelled by BN2) --
    s2 = jnp.zeros((Cout, 1), jnp.float32)
    for n in range(N):
        for p in range(4):
            c2 = conv_flat(h1c_ref, n, w2p_ref[p], phase_offs(p // 2, p % 2))
            c2_ref[n, p] = c2
            s2 = s2 + jnp.sum(c2 * mask, axis=1, keepdims=True)
    mean2 = s2 / cnt2

    # -------- BN2 biased batch variance --------
    v2 = jnp.zeros((Cout, 1), jnp.float32)
    for n in range(N):
        for p in range(4):
            d = (c2_ref[n, p] - mean2) * mask
            v2 = v2 + jnp.sum(d * d, axis=1, keepdims=True)
    scale2 = jax.lax.rsqrt(v2 / cnt2 + BN_EPS) * g2_ref[...]

    # -------- BN2 + polyphase skip conv (conv3 of upsampled x) + add + rrelu --
    for n in range(N):
        for p in range(4):
            skip = conv_flat(x_ref, n, w3p_ref[p],
                             phase_offs(p // 2, p % 2)) + b3_ref[...]
            y = (c2_ref[n, p] - mean2) * scale2 + be2_ref[...] + skip
            y = jnp.where(y >= 0.0, y, y * RRELU_SLOPE)
            o_ref[n, p] = y


# ----------------------------------------------------------------------------
# Wrapper
# ----------------------------------------------------------------------------
def _phase_weights(w, py, px):
    """Collapse a 3x3 HWIO kernel into the 2x2 polyphase kernel for phase
    (py, px) of (conv3x3 o nearest-2x-upsample). Returns (Cout, 4*Cin) with
    tap order matching _res_up_kernel.phase_offs."""
    v = [w[0], w[1] + w[2]] if py == 0 else [w[0] + w[1], w[2]]
    taps = []
    for vp in v:                                   # vp: (3, Ci, Co), axis0 = dx
        taps.extend([vp[0], vp[1] + vp[2]] if px == 0 else [vp[0] + vp[1], vp[2]])
    wt = jnp.stack(taps, axis=0)                   # (4, Ci, Co)
    return jnp.transpose(wt, (2, 0, 1)).reshape(wt.shape[2], 4 * wt.shape[1])


@jax.jit
def res_up_forward(x, params):
    """Fused Pallas ResUp forward. x: (N, Cin, H, W) NCHW. scale fixed at 2."""
    # TODO(synk): only scale=2 is implemented (polyphase decomposition); other
    # integer scales would need scale**2 phases.
    N, Cin, H, W = x.shape
    Cmid = params["w1"].shape[-1]
    Cout = params["w2"].shape[-1]
    Wg = W + 2
    Lc = H * Wg
    base = _round_up(Wg + W + 3, 128)              # lane-aligned core-band start
    B = _round_up(base + (H + 1) * Wg + W + 3, 128)

    # canonical flat input: zero buffer holding the (H+2, W+2) zero-padded image
    # row-major at lanes [base - Wg, base - Wg + (H+2)*Wg)
    xp = jnp.pad(x, ((0, 0), (0, 0), (1, 1), (1, 1))).astype(jnp.float32)
    xp = xp.reshape(N, Cin, (H + 2) * Wg)
    x_canon = jnp.zeros((N, Cin, B), jnp.float32)
    x_canon = jax.lax.dynamic_update_slice(x_canon, xp, (0, 0, base - Wg))

    # 1.0 on real pixels of the core band, 0.0 on the 2 pad columns of each row
    col = jnp.arange(Lc, dtype=jnp.int32) % Wg
    mask = ((col >= 1) & (col <= W)).astype(jnp.float32).reshape(1, Lc)

    # weight preprocessing (tiny, host/XLA side, fused under jit)
    w1f = jnp.transpose(params["w1"], (3, 0, 1, 2)).reshape(Cmid, 9 * Cin)
    w2p = jnp.stack([_phase_weights(params["w2"], p // 2, p % 2)
                     for p in range(4)], axis=0)              # (4, Cout, 4*Cmid)
    w3p = jnp.stack([_phase_weights(params["w3"], p // 2, p % 2)
                     for p in range(4)], axis=0)              # (4, Cout, 4*Cin)
    g1 = params["g1"].reshape(Cmid, 1)
    be1 = params["be1"].reshape(Cmid, 1)
    g2 = params["g2"].reshape(Cout, 1)
    be2 = params["be2"].reshape(Cout, 1)
    b3 = params["b3"].reshape(Cout, 1)
    # NOTE: b1 / b2 are intentionally unused: a per-channel constant added
    # before a training-mode BatchNorm is exactly removed by the mean subtraction.

    kmax = max(9 * Cin, 4 * Cmid, 4 * Cin)

    def full(shape):
        return pl.BlockSpec(shape, lambda i, s=shape: (0,) * len(s))

    out_ph = pl.pallas_call(
        functools.partial(_res_up_kernel, H=H, W=W, base=base),
        out_shape=jax.ShapeDtypeStruct((N, 4, Cout, Lc), jnp.float32),
        grid=(1,),
        in_specs=[
            full((N, Cin, B)), full((1, Lc)),
            full((Cmid, 9 * Cin)), full((4, Cout, 4 * Cmid)),
            full((4, Cout, 4 * Cin)),
            full((Cmid, 1)), full((Cmid, 1)),
            full((Cout, 1)), full((Cout, 1)), full((Cout, 1)),
        ],
        out_specs=full((N, 4, Cout, Lc)),
        scratch_shapes=[
            pltpu.VMEM((kmax, Lc), jnp.float32),        # im2col columns
            pltpu.VMEM((N, Cmid, Lc), jnp.float32),     # conv1 output pre-BN
            pltpu.VMEM((N, Cmid, B), jnp.float32),      # canonical h1 buffers
            pltpu.VMEM((N, 4, Cout, Lc), jnp.float32),  # conv2 phases pre-BN
        ],
        compiler_params=pltpu.CompilerParams(
            dimension_semantics=("arbitrary",)),
    )(x_canon, mask, w1f, w2p, w3p, g1, be1, g2, be2, b3)

    # (N, 4 phases, Cout, H*(W+2)) -> (N, Cout, 2H, 2W): drop pad columns and
    # interleave the polyphase outputs (one tiny XLA transpose of the output).
    out = out_ph.reshape(N, 2, 2, Cout, H, Wg)[..., 1:W + 1]
    out = out.transpose(0, 3, 4, 1, 5, 2).reshape(N, Cout, 2 * H, 2 * W)
    return out


# ----------------------------------------------------------------------------
# Pure-JAX reference (for verification)
# ----------------------------------------------------------------------------
def _ref_conv(x, w, b):
    y = jax.lax.conv_general_dilated(
        x, w, window_strides=(1, 1), padding="SAME",
        dimension_numbers=("NCHW", "HWIO", "NCHW"))
    return y + b.reshape(1, -1, 1, 1)


def _ref_bn(x, gamma, beta):
    mean = jnp.mean(x, axis=(0, 2, 3), keepdims=True)
    var = jnp.mean((x - mean) ** 2, axis=(0, 2, 3), keepdims=True)
    return ((x - mean) * jax.lax.rsqrt(var + BN_EPS)
            * gamma.reshape(1, -1, 1, 1) + beta.reshape(1, -1, 1, 1))


def _ref_rrelu(x):
    return jnp.where(x >= 0.0, x, x * RRELU_SLOPE)


def _ref_upsample(x, scale=2):
    x = jnp.repeat(x, scale, axis=2)
    return jnp.repeat(x, scale, axis=3)


def res_up_reference(x, params):
    skip = _ref_conv(_ref_upsample(x), params["w3"], params["b3"])
    h = _ref_rrelu(_ref_bn(_ref_conv(x, params["w1"], params["b1"]),
                           params["g1"], params["be1"]))
    h = _ref_upsample(h)
    h = _ref_bn(_ref_conv(h, params["w2"], params["b2"]),
                params["g2"], params["be2"])
    return _ref_rrelu(h + skip)


# ----------------------------------------------------------------------------
if __name__ == "__main__":
    # N=2, channel_in=4, channel_out=8, spatial 16x16, scale=2 -> (2, 8, 32, 32)
    N, Cin, Cout, H, W = 2, 4, 8, 16, 16
    Cmid = Cout // 2

    key = jax.random.PRNGKey(0)
    ks = jax.random.split(key, 11)
    params = {
        "w1": jax.random.normal(ks[0], (3, 3, Cin, Cmid), jnp.float32) * 0.1,
        "b1": jax.random.normal(ks[1], (Cmid,), jnp.float32) * 0.1,
        "g1": 1.0 + 0.1 * jax.random.normal(ks[2], (Cmid,), jnp.float32),
        "be1": 0.1 * jax.random.normal(ks[3], (Cmid,), jnp.float32),
        "w2": jax.random.normal(ks[4], (3, 3, Cmid, Cout), jnp.float32) * 0.1,
        "b2": jax.random.normal(ks[5], (Cout,), jnp.float32) * 0.1,
        "g2": 1.0 + 0.1 * jax.random.normal(ks[6], (Cout,), jnp.float32),
        "be2": 0.1 * jax.random.normal(ks[7], (Cout,), jnp.float32),
        "w3": jax.random.normal(ks[8], (3, 3, Cin, Cout), jnp.float32) * 0.1,
        "b3": jax.random.normal(ks[9], (Cout,), jnp.float32) * 0.1,
    }
    x = jax.random.normal(ks[10], (N, Cin, H, W), jnp.float32)

    out = jax.block_until_ready(res_up_forward(x, params))
    assert out.shape == (N, Cout, 2 * H, 2 * W), out.shape

    ref = jax.block_until_ready(res_up_reference(x, params))
    max_err = float(jnp.max(jnp.abs(out - ref)))
    assert jnp.allclose(out, ref, atol=2e-3, rtol=2e-3), max_err

    print("KERNEL_OK")
</pallas_src>

<mosaic_0001>
module attributes {stable_mosaic.version = 11 : i64} {
  func.func @_res_up_kernel(%arg0: i32, %arg1: memref<2x4x512xf32, #tpu.memory_space<vmem>>, %arg2: memref<1x288xf32, #tpu.memory_space<vmem>>, %arg3: memref<4x36xf32, #tpu.memory_space<vmem>>, %arg4: memref<4x8x16xf32, #tpu.memory_space<vmem>>, %arg5: memref<4x8x16xf32, #tpu.memory_space<vmem>>, %arg6: memref<4x1xf32, #tpu.memory_space<vmem>>, %arg7: memref<4x1xf32, #tpu.memory_space<vmem>>, %arg8: memref<8x1xf32, #tpu.memory_space<vmem>>, %arg9: memref<8x1xf32, #tpu.memory_space<vmem>>, %arg10: memref<8x1xf32, #tpu.memory_space<vmem>>, %arg11: memref<2x4x8x288xf32, #tpu.memory_space<vmem>>, %arg12: memref<36x288xf32, #tpu.memory_space<vmem>>, %arg13: memref<2x4x288xf32, #tpu.memory_space<vmem>>, %arg14: memref<2x4x512xf32, #tpu.memory_space<vmem>>, %arg15: memref<2x4x8x288xf32, #tpu.memory_space<vmem>>) attributes {dimension_semantics = [#tpu.dimension_semantics<arbitrary>], iteration_bounds = array<i64: 1>, scalar_prefetch = 0 : i64, scratch_operands = 4 : i64, tpu.core_type = #tpu.core_type<tc>, window_params = [{pipeline_mode = #tpu.pipeline_mode<synchronous>, transform_indices = @transform_0, window_bounds = array<i64: 2, 4, 512>}, {pipeline_mode = #tpu.pipeline_mode<synchronous>, transform_indices = @transform_1, window_bounds = array<i64: 1, 288>}, {pipeline_mode = #tpu.pipeline_mode<synchronous>, transform_indices = @transform_2, window_bounds = array<i64: 4, 36>}, {pipeline_mode = #tpu.pipeline_mode<synchronous>, transform_indices = @transform_3, window_bounds = array<i64: 4, 8, 16>}, {pipeline_mode = #tpu.pipeline_mode<synchronous>, transform_indices = @transform_4, window_bounds = array<i64: 4, 8, 16>}, {pipeline_mode = #tpu.pipeline_mode<synchronous>, transform_indices = @transform_5, window_bounds = array<i64: 4, 1>}, {pipeline_mode = #tpu.pipeline_mode<synchronous>, transform_indices = @transform_6, window_bounds = array<i64: 4, 1>}, {pipeline_mode = #tpu.pipeline_mode<synchronous>, transform_indices = @transform_7, window_bounds = array<i64: 8, 1>}, {pipeline_mode = #tpu.pipeline_mode<synchronous>, transform_indices = @transform_8, window_bounds = array<i64: 8, 1>}, {pipeline_mode = #tpu.pipeline_mode<synchronous>, transform_indices = @transform_9, window_bounds = array<i64: 8, 1>}, {pipeline_mode = #tpu.pipeline_mode<synchronous>, transform_indices = @transform_10, window_bounds = array<i64: 2, 4, 8, 288>}]} {
    %c0 = arith.constant 0 : index
    %c0_0 = arith.constant 0 : index
    %0 = vector.load %arg2[%c0, %c0_0] : memref<1x288xf32, #tpu.memory_space<vmem>>, vector<1x288xf32>
    %cst = arith.constant 0.000000e+00 : f32
    %1 = vector.broadcast %cst : f32 to vector<2x4x512xf32>
    %c0_1 = arith.constant 0 : index
    %c0_2 = arith.constant 0 : index
    %c0_3 = arith.constant 0 : index
    %2 = vector.load %arg14[%c0_1, %c0_2, %c0_3] : memref<2x4x512xf32, #tpu.memory_space<vmem>>, vector<2x4x512xf32>
    tpu.vector_store %arg14[%c0_1, %c0_2, %c0_3], %1 {strides = array<i32>} : memref<2x4x512xf32, #tpu.memory_space<vmem>>, vector<2x4x512xf32>,
    %cst_4 = arith.constant 0.000000e+00 : f32
    %3 = vector.broadcast %cst_4 : f32 to vector<4x1xf32>
    %c0_5 = arith.constant 0 : index
    %c0_6 = arith.constant 0 : index
    %4 = vector.load %arg3[%c0_5, %c0_6] : memref<4x36xf32, #tpu.memory_space<vmem>>, vector<4x36xf32>
    %c0_7 = arith.constant 0 : index
    %c0_8 = arith.constant 0 : index
    %c109 = arith.constant 109 : index
    %5 = vector.load %arg1[%c0_7, %c0_8, %c109] : memref<2x4x512xf32, #tpu.memory_space<vmem>>, vector<1x4x288xf32>
    %6 = vector.shape_cast %5 : vector<1x4x288xf32> to vector<4x288xf32>
    %c0_9 = arith.constant 0 : index
    %c0_10 = arith.constant 0 : index
    %7 = vector.load %arg12[%c0_9, %c0_10] : memref<36x288xf32, #tpu.memory_space<vmem>>, vector<4x288xf32>
    tpu.vector_store %arg12[%c0_9, %c0_10], %6 {strides = array<i32>} : memref<36x288xf32, #tpu.memory_space<vmem>>, vector<4x288xf32>,
    %c0_11 = arith.constant 0 : index
    %c0_12 = arith.constant 0 : index
    %c110 = arith.constant 110 : index
    %8 = vector.load %arg1[%c0_11, %c0_12, %c110] : memref<2x4x512xf32, #tpu.memory_space<vmem>>, vector<1x4x288xf32>
    %9 = vector.shape_cast %8 : vector<1x4x288xf32> to vector<4x288xf32>
    %c4 = arith.constant 4 : index
    %c0_13 = arith.constant 0 : index
    %10 = vector.load %arg12[%c4, %c0_13] : memref<36x288xf32, #tpu.memory_space<vmem>>, vector<4x288xf32>
    tpu.vector_store %arg12[%c4, %c0_13], %9 {strides = array<i32>} : memref<36x288xf32, #tpu.memory_space<vmem>>, vector<4x288xf32>,
    %c0_14 = arith.constant 0 : index
    %c0_15 = arith.constant 0 : index
    %c111 = arith.constant 111 : index
    %11 = vector.load %arg1[%c0_14, %c0_15, %c111] : memref<2x4x512xf32, #tpu.memory_space<vmem>>, vector<1x4x288xf32>
    %12 = vector.shape_cast %11 : vector<1x4x288xf32> to vector<4x288xf32>
    %c8 = arith.constant 8 : index
    %c0_16 = arith.constant 0 : index
    %13 = vector.load %arg12[%c8, %c0_16] : memref<36x288xf32, #tpu.memory_space<vmem>>, vector<4x288xf32>
    tpu.vector_store %arg12[%c8, %c0_16], %12 {strides = array<i32>} : memref<36x288xf32, #tpu.memory_space<vmem>>, vector<4x288xf32>,
    %c0_17 = arith.constant 0 : index
    %c0_18 = arith.constant 0 : index
    %c127 = arith.constant 127 : index
    %14 = vector.load %arg1[%c0_17, %c0_18, %c127] : memref<2x4x512xf32, #tpu.memory_space<vmem>>, vector<1x4x288xf32>
    %15 = vector.shape_cast %14 : vector<1x4x288xf32> to vector<4x288xf32>
    %c12 = arith.constant 12 : index
    %c0_19 = arith.constant 0 : index
    %16 = vector.load %arg12[%c12, %c0_19] : memref<36x288xf32, #tpu.memory_space<vmem>>, vector<4x288xf32>
    tpu.vector_store %arg12[%c12, %c0_19], %15 {strides = array<i32>} : memref<36x288xf32, #tpu.memory_space<vmem>>, vector<4x288xf32>,
    %c0_20 = arith.constant 0 : index
    %c0_21 = arith.constant 0 : index
    %c128 = arith.constant 128 : index
    %17 = vector.load %arg1[%c0_20, %c0_21, %c128] : memref<2x4x512xf32, #tpu.memory_space<vmem>>, vector<1x4x288xf32>
    %18 = vector.shape_cast %17 : vector<1x4x288xf32> to vector<4x288xf32>
    %c16 = arith.constant 16 : index
    %c0_22 = arith.constant 0 : index
    %19 = vector.load %arg12[%c16, %c0_22] : memref<36x288xf32, #tpu.memory_space<vmem>>, vector<4x288xf32>
    tpu.vector_store %arg12[%c16, %c0_22], %18 {strides = array<i32>} : memref<36x288xf32, #tpu.memory_space<vmem>>, vector<4x288xf32>,
    %c0_23 = arith.constant 0 : index
    %c0_24 = arith.constant 0 : index
    %c129 = arith.constant 129 : index
    %20 = vector.load %arg1[%c0_23, %c0_24, %c129] : memref<2x4x512xf32, #tpu.memory_space<vmem>>, vector<1x4x288xf32>
    %21 = vector.shape_cast %20 : vector<1x4x288xf32> to vector<4x288xf32>
    %c20 = arith.constant 20 : index
    %c0_25 = arith.constant 0 : index
    %22 = vector.load %arg12[%c20, %c0_25] : memref<36x288xf32, #tpu.memory_space<vmem>>, vector<4x288xf32>
    tpu.vector_store %arg12[%c20, %c0_25], %21 {strides = array<i32>} : memref<36x288xf32, #tpu.memory_space<vmem>>, vector<4x288xf32>,
    %c0_26 = arith.constant 0 : index
    %c0_27 = arith.constant 0 : index
    %c145 = arith.constant 145 : index
    %23 = vector.load %arg1[%c0_26, %c0_27, %c145] : memref<2x4x512xf32, #tpu.memory_space<vmem>>, vector<1x4x288xf32>
    %24 = vector.shape_cast %23 : vector<1x4x288xf32> to vector<4x288xf32>
    %c24 = arith.constant 24 : index
    %c0_28 = arith.constant 0 : index
    %25 = vector.load %arg12[%c24, %c0_28] : memref<36x288xf32, #tpu.memory_space<vmem>>, vector<4x288xf32>
    tpu.vector_store %arg12[%c24, %c0_28], %24 {strides = array<i32>} : memref<36x288xf32, #tpu.memory_space<vmem>>, vector<4x288xf32>,
    %c0_29 = arith.constant 0 : index
    %c0_30 = arith.constant 0 : index
    %c146 = arith.constant 146 : index
    %26 = vector.load %arg1[%c0_29, %c0_30, %c146] : memref<2x4x512xf32, #tpu.memory_space<vmem>>, vector<1x4x288xf32>
    %27 = vector.shape_cast %26 : vector<1x4x288xf32> to vector<4x288xf32>
    %c28 = arith.constant 28 : index
    %c0_31 = arith.constant 0 : index
    %28 = vector.load %arg12[%c28, %c0_31] : memref<36x288xf32, #tpu.memory_space<vmem>>, vector<4x288xf32>
    tpu.vector_store %arg12[%c28, %c0_31], %27 {strides = array<i32>} : memref<36x288xf32, #tpu.memory_space<vmem>>, vector<4x288xf32>,
    %c0_32 = arith.constant 0 : index
    %c0_33 = arith.constant 0 : index
    %c147 = arith.constant 147 : index
    %29 = vector.load %arg1[%c0_32, %c0_33, %c147] : memref<2x4x512xf32, #tpu.memory_space<vmem>>, vector<1x4x288xf32>
    %30 = vector.shape_cast %29 : vector<1x4x288xf32> to vector<4x288xf32>
    %c32 = arith.constant 32 : index
    %c0_34 = arith.constant 0 : index
    %31 = vector.load %arg12[%c32, %c0_34] : memref<36x288xf32, #tpu.memory_space<vmem>>, vector<4x288xf32>
    tpu.vector_store %arg12[%c32, %c0_34], %30 {strides = array<i32>} : memref<36x288xf32, #tpu.memory_space<vmem>>, vector<4x288xf32>,
    %c0_35 = arith.constant 0 : index
    %c0_36 = arith.constant 0 : index
    %32 = vector.load %arg12[%c0_35, %c0_36] : memref<36x288xf32, #tpu.memory_space<vmem>>, vector<36x288xf32>
    %cst_37 = arith.constant dense<0.000000e+00> : vector<4x288xf32>
    %33 = tpu.matmul %4, %32, %cst_37 {dimension_numbers = #tpu.dot_dimension_numbers<[1], [0], [0], [1], [0, 0, 1, 1], [], []>} : vector<4x36xf32>, vector<36x288xf32>, vector<4x288xf32> -> vector<4x288xf32>
    %c0_38 = arith.constant 0 : index
    %c0_39 = arith.constant 0 : index
    %c0_40 = arith.constant 0 : index
    %34 = vector.load %arg13[%c0_38, %c0_39, %c0_40] : memref<2x4x288xf32, #tpu.memory_space<vmem>>, vector<1x4x288xf32>
    %35 = vector.shape_cast %34 : vector<1x4x288xf32> to vector<4x288xf32>
    %36 = vector.shape_cast %33 : vector<4x288xf32> to vector<1x4x288xf32>
    tpu.vector_store %arg13[%c0_38, %c0_39, %c0_40], %36 {strides = array<i32>} : memref<2x4x288xf32, #tpu.memory_space<vmem>>, vector<1x4x288xf32>,
    %37 = vector.broadcast %0 : vector<1x288xf32> to vector<4x288xf32>
    %38 = arith.mulf %33, %37 : vector<4x288xf32>
    %cst_41 = arith.constant dense<0.000000e+00> : vector<4xf32>
    %39 = vector.multi_reduction <add>, %38, %cst_41 [1] : vector<4x288xf32> to vector<4xf32>
    %40 = vector.shape_cast %39 : vector<4xf32> to vector<4x1xf32>
    %41 = arith.addf %3, %40 : vector<4x1xf32>
    %c0_42 = arith.constant 0 : index
    %c0_43 = arith.constant 0 : index
    %42 = vector.load %arg3[%c0_42, %c0_43] : memref<4x36xf32, #tpu.memory_space<vmem>>, vector<4x36xf32>
    %c1 = arith.constant 1 : index
    %c0_44 = arith.constant 0 : index
    %c109_45 = arith.constant 109 : index
    %43 = vector.load %arg1[%c1, %c0_44, %c109_45] : memref<2x4x512xf32, #tpu.memory_space<vmem>>, vector<1x4x288xf32>
    %44 = vector.shape_cast %43 : vector<1x4x288xf32> to vector<4x288xf32>
    %c0_46 = arith.constant 0 : index
    %c0_47 = arith.constant 0 : index
    %45 = vector.load %arg12[%c0_46, %c0_47] : memref<36x288xf32, #tpu.memory_space<vmem>>, vector<4x288xf32>
    tpu.vector_store %arg12[%c0_46, %c0_47], %44 {strides = array<i32>} : memref<36x288xf32, #tpu.memory_space<vmem>>, vector<4x288xf32>,
    %c1_48 = arith.constant 1 : index
    %c0_49 = arith.constant 0 : index
    %c110_50 = arith.constant 110 : index
    %46 = vector.load %arg1[%c1_48, %c0_49, %c110_50] : memref<2x4x512xf32, #tpu.memory_space<vmem>>, vector<1x4x288xf32>
    %47 = vector.shape_cast %46 : vector<1x4x288xf32> to vector<4x288xf32>
    %c4_51 = arith.constant 4 : index
    %c0_52 = arith.constant 0 : index
    %48 = vector.load %arg12[%c4_51, %c0_52] : memref<36x288xf32, #tpu.memory_space<vmem>>, vector<4x288xf32>
    tpu.vector_store %arg12[%c4_51, %c0_52], %47 {strides = array<i32>} : memref<36x288xf32, #tpu.memory_space<vmem>>, vector<4x288xf32>,
    %c1_53 = arith.constant 1 : index
    %c0_54 = arith.constant 0 : index
    %c111_55 = arith.constant 111 : index
    %49 = vector.load %arg1[%c1_53, %c0_54, %c111_55] : memref<2x4x512xf32, #tpu.memory_space<vmem>>, vector<1x4x288xf32>
    %50 = vector.shape_cast %49 : vector<1x4x288xf32> to vector<4x288xf32>
    %c8_56 = arith.constant 8 : index
    %c0_57 = arith.constant 0 : index
    %51 = vector.load %arg12[%c8_56, %c0_57] : memref<36x288xf32, #tpu.memory_space<vmem>>, vector<4x288xf32>
    tpu.vector_store %arg12[%c8_56, %c0_57], %50 {strides = array<i32>} : memref<36x288xf32, #tpu.memory_space<vmem>>, vector<4x288xf32>,
    %c1_58 = arith.constant 1 : index
    %c0_59 = arith.constant 0 : index
    %c127_60 = arith.constant 127 : index
    %52 = vector.load %arg1[%c1_58, %c0_59, %c127_60] : memref<2x4x512xf32, #tpu.memory_space<vmem>>, vector<1x4x288xf32>
    %53 = vector.shape_cast %52 : vector<1x4x288xf32> to vector<4x288xf32>
    %c12_61 = arith.constant 12 : index
    %c0_62 = arith.constant 0 : index
    %54 = vector.load %arg12[%c12_61, %c0_62] : memref<36x288xf32, #tpu.memory_space<vmem>>, vector<4x288xf32>
    tpu.vector_store %arg12[%c12_61, %c0_62], %53 {strides = array<i32>} : memref<36x288xf32, #tpu.memory_space<vmem>>, vector<4x288xf32>,
    %c1_63 = arith.constant 1 : index
    %c0_64 = arith.constant 0 : index
    %c128_65 = arith.constant 128 : index
    %55 = vector.load %arg1[%c1_63, %c0_64, %c128_65] : memref<2x4x512xf32, #tpu.memory_space<vmem>>, vector<1x4x288xf32>
    %56 = vector.shape_cast %55 : vector<1x4x288xf32> to vector<4x288xf32>
    %c16_66 = arith.constant 16 : index
    %c0_67 = arith.constant 0 : index
    %57 = vector.load %arg12[%c16_66, %c0_67] : memref<36x288xf32, #tpu.memory_space<vmem>>, vector<4x288xf32>
    tpu.vector_store %arg12[%c16_66, %c0_67], %56 {strides = array<i32>} : memref<36x288xf32, #tpu.memory_space<vmem>>, vector<4x288xf32>,
    %c1_68 = arith.constant 1 : index
    %c0_69 = arith.constant 0 : index
    %c129_70 = arith.constant 129 : index
    %58 = vector.load %arg1[%c1_68, %c0_69, %c129_70] : memref<2x4x512xf32, #tpu.memory_space<vmem>>, vector<1x4x288xf32>
    %59 = vector.shape_cast %58 : vector<1x4x288xf32> to vector<4x288xf32>
    %c20_71 = arith.constant 20 : index
    %c0_72 = arith.constant 0 : index
    %60 = vector.load %arg12[%c20_71, %c0_72] : memref<36x288xf32, #tpu.memory_space<vmem>>, vector<4x288xf32>
    tpu.vector_store %arg12[%c20_71, %c0_72], %59 {strides = array<i32>} : memref<36x288xf32, #tpu.memory_space<vmem>>, vector<4x288xf32>,
    %c1_73 = arith.constant 1 : index
    %c0_74 = arith.constant 0 : index
    %c145_75 = arith.constant 145 : index
    %61 = vector.load %arg1[%c1_73, %c0_74, %c145_75] : memref<2x4x512xf32, #tpu.memory_space<vmem>>, vector<1x4x288xf32>
    %62 = vector.shape_cast %61 : vector<1x4x288xf32> to vector<4x288xf32>
    %c24_76 = arith.constant 24 : index
    %c0_77 = arith.constant 0 : index
    %63 = vector.load %arg12[%c24_76, %c0_77] : memref<36x288xf32, #tpu.memory_space<vmem>>, vector<4x288xf32>
    tpu.vector_store %arg12[%c24_76, %c0_77], %62 {strides = array<i32>} : memref<36x288xf32, #tpu.memory_space<vmem>>, vector<4x288xf32>,
    %c1_78 = arith.constant 1 : index
    %c0_79 = arith.constant 0 : index
    %c146_80 = arith.constant 146 : index
    %64 = vector.load %arg1[%c1_78, %c0_79, %c146_80] : memref<2x4x512xf32, #tpu.memory_space<vmem>>, vector<1x4x288xf32>
    %65 = vector.shape_cast %64 : vector<1x4x288xf32> to vector<4x288xf32>
    %c28_81 = arith.constant 28 : index
    %c0_82 = arith.constant 0 : index
    %66 = vector.load %arg12[%c28_81, %c0_82] : memref<36x288xf32, #tpu.memory_space<vmem>>, vector<4x288xf32>
    tpu.vector_store %arg12[%c28_81, %c0_82], %65 {strides = array<i32>} : memref<36x288xf32, #tpu.memory_space<vmem>>, vector<4x288xf32>,
    %c1_83 = arith.constant 1 : index
    %c0_84 = arith.constant 0 : index
    %c147_85 = arith.constant 147 : index
    %67 = vector.load %arg1[%c1_83, %c0_84, %c147_85] : memref<2x4x512xf32, #tpu.memory_space<vmem>>, vector<1x4x288xf32>
    %68 = vector.shape_cast %67 : vector<1x4x288xf32> to vector<4x288xf32>
    %c32_86 = arith.constant 32 : index
    %c0_87 = arith.constant 0 : index
    %69 = vector.load %arg12[%c32_86, %c0_87] : memref<36x288xf32, #tpu.memory_space<vmem>>, vector<4x288xf32>
    tpu.vector_store %arg12[%c32_86, %c0_87], %68 {strides = array<i32>} : memref<36x288xf32, #tpu.memory_space<vmem>>, vector<4x288xf32>,
    %c0_88 = arith.constant 0 : index
    %c0_89 = arith.constant 0 : index
    %70 = vector.load %arg12[%c0_88, %c0_89] : memref<36x288xf32, #tpu.memory_space<vmem>>, vector<36x288xf32>
    %cst_90 = arith.constant dense<0.000000e+00> : vector<4x288xf32>
    %71 = tpu.matmul %42, %70, %cst_90 {dimension_numbers = #tpu.dot_dimension_numbers<[1], [0], [0], [1], [0, 0, 1, 1], [], []>} : vector<4x36xf32>, vector<36x288xf32>, vector<4x288xf32> -> vector<4x288xf32>
    %c1_91 = arith.constant 1 : index
    %c0_92 = arith.constant 0 : index
    %c0_93 = arith.constant 0 : index
    %72 = vector.load %arg13[%c1_91, %c0_92, %c0_93] : memref<2x4x288xf32, #tpu.memory_space<vmem>>, vector<1x4x288xf32>
    %73 = vector.shape_cast %72 : vector<1x4x288xf32> to vector<4x288xf32>
    %74 = vector.shape_cast %71 : vector<4x288xf32> to vector<1x4x288xf32>
    tpu.vector_store %arg13[%c1_91, %c0_92, %c0_93], %74 {strides = array<i32>} : memref<2x4x288xf32, #tpu.memory_space<vmem>>, vector<1x4x288xf32>,
    %75 = vector.broadcast %0 : vector<1x288xf32> to vector<4x288xf32>
    %76 = arith.mulf %71, %75 : vector<4x288xf32>
    %cst_94 = arith.constant dense<0.000000e+00> : vector<4xf32>
    %77 = vector.multi_reduction <add>, %76, %cst_94 [1] : vector<4x288xf32> to vector<4xf32>
    %78 = vector.shape_cast %77 : vector<4xf32> to vector<4x1xf32>
    %79 = arith.addf %41, %78 : vector<4x1xf32>
    %cst_95 = arith.constant 5.120000e+02 : f32
    %80 = vector.broadcast %cst_95 : f32 to vector<4x1xf32>
    %81 = arith.divf %79, %80 : vector<4x1xf32>
    %cst_96 = arith.constant 0.000000e+00 : f32
    %82 = vector.broadcast %cst_96 : f32 to vector<4x1xf32>
    %c0_97 = arith.constant 0 : index
    %c0_98 = arith.constant 0 : index
    %c0_99 = arith.constant 0 : index
    %83 = vector.load %arg13[%c0_97, %c0_98, %c0_99] : memref<2x4x288xf32, #tpu.memory_space<vmem>>, vector<1x4x288xf32>
    %84 = vector.shape_cast %83 : vector<1x4x288xf32> to vector<4x288xf32>
    %85 = vector.broadcast %81 : vector<4x1xf32> to vector<4x288xf32>
    %86 = arith.subf %84, %85 : vector<4x288xf32>
    %87 = vector.broadcast %0 : vector<1x288xf32> to vector<4x288xf32>
    %88 = arith.mulf %86, %87 : vector<4x288xf32>
    %89 = arith.mulf %88, %88 : vector<4x288xf32>
    %cst_100 = arith.constant dense<0.000000e+00> : vector<4xf32>
    %90 = vector.multi_reduction <add>, %89, %cst_100 [1] : vector<4x288xf32> to vector<4xf32>
    %91 = vector.shape_cast %90 : vector<4xf32> to vector<4x1xf32>
    %92 = arith.addf %82, %91 : vector<4x1xf32>
    %c1_101 = arith.constant 1 : index
    %c0_102 = arith.constant 0 : index
    %c0_103 = arith.constant 0 : index
    %93 = vector.load %arg13[%c1_101, %c0_102, %c0_103] : memref<2x4x288xf32, #tpu.memory_space<vmem>>, vector<1x4x288xf32>
    %94 = vector.shape_cast %93 : vector<1x4x288xf32> to vector<4x288xf32>
    %95 = vector.broadcast %81 : vector<4x1xf32> to vector<4x288xf32>
    %96 = arith.subf %94, %95 : vector<4x288xf32>
    %97 = vector.broadcast %0 : vector<1x288xf32> to vector<4x288xf32>
    %98 = arith.mulf %96, %97 : vector<4x288xf32>
    %99 = arith.mulf %98, %98 : vector<4x288xf32>
    %cst_104 = arith.constant dense<0.000000e+00> : vector<4xf32>
    %100 = vector.multi_reduction <add>, %99, %cst_104 [1] : vector<4x288xf32> to vector<4xf32>
    %101 = vector.shape_cast %100 : vector<4xf32> to vector<4x1xf32>
    %102 = arith.addf %92, %101 : vector<4x1xf32>
    %cst_105 = arith.constant 5.120000e+02 : f32
    %103 = vector.broadcast %cst_105 : f32 to vector<4x1xf32>
    %104 = arith.divf %102, %103 : vector<4x1xf32>
    %cst_106 = arith.constant 9.99999974E-6 : f32
    %105 = vector.broadcast %cst_106 : f32 to vector<4x1xf32>
    %106 = arith.addf %104, %105 : vector<4x1xf32>
    %107 = math.rsqrt %106 : vector<4x1xf32>
    %c0_107 = arith.constant 0 : index
    %c0_108 = arith.constant 0 : index
    %108 = vector.load %arg6[%c0_107, %c0_108] : memref<4x1xf32, #tpu.memory_space<vmem>>, vector<4x1xf32>
    %109 = arith.mulf %107, %108 : vector<4x1xf32>
    %c0_109 = arith.constant 0 : index
    %c0_110 = arith.constant 0 : index
    %c0_111 = arith.constant 0 : index
    %110 = vector.load %arg13[%c0_109, %c0_110, %c0_111] : memref<2x4x288xf32, #tpu.memory_space<vmem>>, vector<1x4x288xf32>
    %111 = vector.shape_cast %110 : vector<1x4x288xf32> to vector<4x288xf32>
    %112 = vector.broadcast %81 : vector<4x1xf32> to vector<4x288xf32>
    %113 = arith.subf %111, %112 : vector<4x288xf32>
    %114 = vector.broadcast %109 : vector<4x1xf32> to vector<4x288xf32>
    %115 = arith.mulf %113, %114 : vector<4x288xf32>
    %c0_112 = arith.constant 0 : index
    %c0_113 = arith.constant 0 : index
    %116 = vector.load %arg7[%c0_112, %c0_113] : memref<4x1xf32, #tpu.memory_space<vmem>>, vector<4x1xf32>
    %117 = vector.broadcast %116 : vector<4x1xf32> to vector<4x288xf32>
    %118 = arith.addf %115, %117 : vector<4x288xf32>
    %cst_114 = arith.constant 0.000000e+00 : f32
    %119 = vector.broadcast %cst_114 : f32 to vector<4x288xf32>
    %120 = arith.cmpf oge, %118, %119 : vector<4x288xf32>
    %cst_115 = arith.constant 0.229166672 : f32
    %121 = vector.broadcast %cst_115 : f32 to vector<4x288xf32>
    %122 = arith.mulf %118, %121 : vector<4x288xf32>
    %123 = arith.select %120, %118, %122 : vector<4x288xi1>, vector<4x288xf32>
    %124 = vector.broadcast %0 : vector<1x288xf32> to vector<4x288xf32>
    %125 = arith.mulf %123, %124 : vector<4x288xf32>
    %c0_116 = arith.constant 0 : index
    %c0_117 = arith.constant 0 : index
    %c128_118 = arith.constant 128 : index
    %126 = vector.load %arg14[%c0_116, %c0_117, %c128_118] : memref<2x4x512xf32, #tpu.memory_space<vmem>>, vector<1x4x288xf32>
    %127 = vector.shape_cast %126 : vector<1x4x288xf32> to vector<4x288xf32>
    %128 = vector.shape_cast %125 : vector<4x288xf32> to vector<1x4x288xf32>
    tpu.vector_store %arg14[%c0_116, %c0_117, %c128_118], %128 {strides = array<i32>} : memref<2x4x512xf32, #tpu.memory_space<vmem>>, vector<1x4x288xf32>,
    %c1_119 = arith.constant 1 : index
    %c0_120 = arith.constant 0 : index
    %c0_121 = arith.constant 0 : index
    %129 = vector.load %arg13[%c1_119, %c0_120, %c0_121] : memref<2x4x288xf32, #tpu.memory_space<vmem>>, vector<1x4x288xf32>
    %130 = vector.shape_cast %129 : vector<1x4x288xf32> to vector<4x288xf32>
    %131 = vector.broadcast %81 : vector<4x1xf32> to vector<4x288xf32>
    %132 = arith.subf %130, %131 : vector<4x288xf32>
    %133 = vector.broadcast %109 : vector<4x1xf32> to vector<4x288xf32>
    %134 = arith.mulf %132, %133 : vector<4x288xf32>
    %c0_122 = arith.constant 0 : index
    %c0_123 = arith.constant 0 : index
    %135 = vector.load %arg7[%c0_122, %c0_123] : memref<4x1xf32, #tpu.memory_space<vmem>>, vector<4x1xf32>
    %136 = vector.broadcast %135 : vector<4x1xf32> to vector<4x288xf32>
    %137 = arith.addf %134, %136 : vector<4x288xf32>
    %cst_124 = arith.constant 0.000000e+00 : f32
    %138 = vector.broadcast %cst_124 : f32 to vector<4x288xf32>
    %139 = arith.cmpf oge, %137, %138 : vector<4x288xf32>
    %cst_125 = arith.constant 0.229166672 : f32
    %140 = vector.broadcast %cst_125 : f32 to vector<4x288xf32>
    %141 = arith.mulf %137, %140 : vector<4x288xf32>
    %142 = arith.select %139, %137, %141 : vector<4x288xi1>, vector<4x288xf32>
    %143 = vector.broadcast %0 : vector<1x288xf32> to vector<4x288xf32>
    %144 = arith.mulf %142, %143 : vector<4x288xf32>
    %c1_126 = arith.constant 1 : index
    %c0_127 = arith.constant 0 : index
    %c128_128 = arith.constant 128 : index
    %145 = vector.load %arg14[%c1_126, %c0_127, %c128_128] : memref<2x4x512xf32, #tpu.memory_space<vmem>>, vector<1x4x288xf32>
    %146 = vector.shape_cast %145 : vector<1x4x288xf32> to vector<4x288xf32>
    %147 = vector.shape_cast %144 : vector<4x288xf32> to vector<1x4x288xf32>
    tpu.vector_store %arg14[%c1_126, %c0_127, %c128_128], %147 {strides = array<i32>} : memref<2x4x512xf32, #tpu.memory_space<vmem>>, vector<1x4x288xf32>,
    %cst_129 = arith.constant 0.000000e+00 : f32
    %148 = vector.broadcast %cst_129 : f32 to vector<8x1xf32>
    %c0_130 = arith.constant 0 : index
    %c0_131 = arith.constant 0 : index
    %c0_132 = arith.constant 0 : index
    %149 = vector.load %arg4[%c0_130, %c0_131, %c0_132] : memref<4x8x16xf32, #tpu.memory_space<vmem>>, vector<1x8x16xf32>
    %150 = vector.shape_cast %149 : vector<1x8x16xf32> to vector<8x16xf32>
    %c0_133 = arith.constant 0 : index
    %c0_134 = arith.constant 0 : index
    %c109_135 = arith.constant 109 : index
    %151 = vector.load %arg14[%c0_133, %c0_134, %c109_135] : memref<2x4x512xf32, #tpu.memory_space<vmem>>, vector<1x4x288xf32>
    %152 = vector.shape_cast %151 : vector<1x4x288xf32> to vector<4x288xf32>
    %c0_136 = arith.constant 0 : index
    %c0_137 = arith.constant 0 : index
    %153 = vector.load %arg12[%c0_136, %c0_137] : memref<36x288xf32, #tpu.memory_space<vmem>>, vector<4x288xf32>
    tpu.vector_store %arg12[%c0_136, %c0_137], %152 {strides = array<i32>} : memref<36x288xf32, #tpu.memory_space<vmem>>, vector<4x288xf32>,
    %c0_138 = arith.constant 0 : index
    %c0_139 = arith.constant 0 : index
    %c110_140 = arith.constant 110 : index
    %154 = vector.load %arg14[%c0_138, %c0_139, %c110_140] : memref<2x4x512xf32, #tpu.memory_space<vmem>>, vector<1x4x288xf32>
    %155 = vector.shape_cast %154 : vector<1x4x288xf32> to vector<4x288xf32>
    %c4_141 = arith.constant 4 : index
    %c0_142 = arith.constant 0 : index
    %156 = vector.load %arg12[%c4_141, %c0_142] : memref<36x288xf32, #tpu.memory_space<vmem>>, vector<4x288xf32>
    tpu.vector_store %arg12[%c4_141, %c0_142], %155 {strides = array<i32>} : memref<36x288xf32, #tpu.memory_space<vmem>>, vector<4x288xf32>,
    %c0_143 = arith.constant 0 : index
    %c0_144 = arith.constant 0 : index
    %c127_145 = arith.constant 127 : index
    %157 = vector.load %arg14[%c0_143, %c0_144, %c127_145] : memref<2x4x512xf32, #tpu.memory_space<vmem>>, vector<1x4x288xf32>
    %158 = vector.shape_cast %157 : vector<1x4x288xf32> to vector<4x288xf32>
    %c8_146 = arith.constant 8 : index
    %c0_147 = arith.constant 0 : index
    %159 = vector.load %arg12[%c8_146, %c0_147] : memref<36x288xf32, #tpu.memory_space<vmem>>, vector<4x288xf32>
    tpu.vector_store %arg12[%c8_146, %c0_147], %158 {strides = array<i32>} : memref<36x288xf32, #tpu.memory_space<vmem>>, vector<4x288xf32>,
    %c0_148 = arith.constant 0 : index
    %c0_149 = arith.constant 0 : index
    %c128_150 = arith.constant 128 : index
    %160 = vector.load %arg14[%c0_148, %c0_149, %c128_150] : memref<2x4x512xf32, #tpu.memory_space<vmem>>, vector<1x4x288xf32>
    %161 = vector.shape_cast %160 : vector<1x4x288xf32> to vector<4x288xf32>
    %c12_151 = arith.constant 12 : index
    %c0_152 = arith.constant 0 : index
    %162 = vector.load %arg12[%c12_151, %c0_152] : memref<36x288xf32, #tpu.memory_space<vmem>>, vector<4x288xf32>
    tpu.vector_store %arg12[%c12_151, %c0_152], %161 {strides = array<i32>} : memref<36x288xf32, #tpu.memory_space<vmem>>, vector<4x288xf32>,
    %c0_153 = arith.constant 0 : index
    %c0_154 = arith.constant 0 : index
    %163 = vector.load %arg12[%c0_153, %c0_154] : memref<36x288xf32, #tpu.memory_space<vmem>>, vector<16x288xf32>
    %cst_155 = arith.constant dense<0.000000e+00> : vector<8x288xf32>
    %164 = tpu.matmul %150, %163, %cst_155 {dimension_numbers = #tpu.dot_dimension_numbers<[1], [0], [0], [1], [0, 0, 1, 1], [], []>} : vector<8x16xf32>, vector<16x288xf32>, vector<8x288xf32> -> vector<8x288xf32>
    %c0_156 = arith.constant 0 : index
    %c0_157 = arith.constant 0 : index
    %c0_158 = arith.constant 0 : index
    %c0_159 = arith.constant 0 : index
    %165 = vector.load %arg15[%c0_156, %c0_157, %c0_158, %c0_159] : memref<2x4x8x288xf32, #tpu.memory_space<vmem>>, vector<1x1x8x288xf32>
    %166 = vector.shape_cast %165 : vector<1x1x8x288xf32> to vector<8x288xf32>
    %167 = vector.shape_cast %164 : vector<8x288xf32> to vector<1x1x8x288xf32>
    tpu.vector_store %arg15[%c0_156, %c0_157, %c0_158, %c0_159], %167 {strides = array<i32>} : memref<2x4x8x288xf32, #tpu.memory_space<vmem>>, vector<1x1x8x288xf32>,
    %168 = vector.broadcast %0 : vector<1x288xf32> to vector<8x288xf32>
    %169 = arith.mulf %164, %168 : vector<8x288xf32>
    %cst_160 = arith.constant dense<0.000000e+00> : vector<8xf32>
    %170 = vector.multi_reduction <add>, %169, %cst_160 [1] : vector<8x288xf32> to vector<8xf32>
    %171 = vector.shape_cast %170 : vector<8xf32> to vector<8x1xf32>
    %172 = arith.addf %148, %171 : vector<8x1xf32>
    %c1_161 = arith.constant 1 : index
    %c0_162 = arith.constant 0 : index
    %c0_163 = arith.constant 0 : index
    %173 = vector.load %arg4[%c1_161, %c0_162, %c0_163] : memref<4x8x16xf32, #tpu.memory_space<vmem>>, vector<1x8x16xf32>
    %174 = vector.shape_cast %173 : vector<1x8x16xf32> to vector<8x16xf32>
    %c0_164 = arith.constant 0 : index
    %c0_165 = arith.constant 0 : index
    %c110_166 = arith.constant 110 : index
    %175 = vector.load %arg14[%c0_164, %c0_165, %c110_166] : memref<2x4x512xf32, #tpu.memory_space<vmem>>, vector<1x4x288xf32>
    %176 = vector.shape_cast %175 : vector<1x4x288xf32> to vector<4x288xf32>
    %c0_167 = arith.constant 0 : index
    %c0_168 = arith.constant 0 : index
    %177 = vector.load %arg12[%c0_167, %c0_168] : memref<36x288xf32, #tpu.memory_space<vmem>>, vector<4x288xf32>
    tpu.vector_store %arg12[%c0_167, %c0_168], %176 {strides = array<i32>} : memref<36x288xf32, #tpu.memory_space<vmem>>, vector<4x288xf32>,
    %c0_169 = arith.constant 0 : index
    %c0_170 = arith.constant 0 : index
    %c111_171 = arith.constant 111 : index
    %178 = vector.load %arg14[%c0_169, %c0_170, %c111_171] : memref<2x4x512xf32, #tpu.memory_space<vmem>>, vector<1x4x288xf32>
    %179 = vector.shape_cast %178 : vector<1x4x288xf32> to vector<4x288xf32>
    %c4_172 = arith.constant 4 : index
    %c0_173 = arith.constant 0 : index
    %180 = vector.load %arg12[%c4_172, %c0_173] : memref<36x288xf32, #tpu.memory_space<vmem>>, vector<4x288xf32>
    tpu.vector_store %arg12[%c4_172, %c0_173], %179 {strides = array<i32>} : memref<36x288xf32, #tpu.memory_space<vmem>>, vector<4x288xf32>,
    %c0_174 = arith.constant 0 : index
    %c0_175 = arith.constant 0 : index
    %c128_176 = arith.constant 128 : index
    %181 = vector.load %arg14[%c0_174, %c0_175, %c128_176] : memref<2x4x512xf32, #tpu.memory_space<vmem>>, vector<1x4x288xf32>
    %182 = vector.shape_cast %181 : vector<1x4x288xf32> to vector<4x288xf32>
    %c8_177 = arith.constant 8 : index
    %c0_178 = arith.constant 0 : index
    %183 = vector.load %arg12[%c8_177, %c0_178] : memref<36x288xf32, #tpu.memory_space<vmem>>, vector<4x288xf32>
    tpu.vector_store %arg12[%c8_177, %c0_178], %182 {strides = array<i32>} : memref<36x288xf32, #tpu.memory_space<vmem>>, vector<4x288xf32>,
    %c0_179 = arith.constant 0 : index
    %c0_180 = arith.constant 0 : index
    %c129_181 = arith.constant 129 : index
    %184 = vector.load %arg14[%c0_179, %c0_180, %c129_181] : memref<2x4x512xf32, #tpu.memory_space<vmem>>, vector<1x4x288xf32>
    %185 = vector.shape_cast %184 : vector<1x4x288xf32> to vector<4x288xf32>
    %c12_182 = arith.constant 12 : index
    %c0_183 = arith.constant 0 : index
    %186 = vector.load %arg12[%c12_182, %c0_183] : memref<36x288xf32, #tpu.memory_space<vmem>>, vector<4x288xf32>
    tpu.vector_store %arg12[%c12_182, %c0_183], %185 {strides = array<i32>} : memref<36x288xf32, #tpu.memory_space<vmem>>, vector<4x288xf32>,
    %c0_184 = arith.constant 0 : index
    %c0_185 = arith.constant 0 : index
    %187 = vector.load %arg12[%c0_184, %c0_185] : memref<36x288xf32, #tpu.memory_space<vmem>>, vector<16x288xf32>
    %cst_186 = arith.constant dense<0.000000e+00> : vector<8x288xf32>
    %188 = tpu.matmul %174, %187, %cst_186 {dimension_numbers = #tpu.dot_dimension_numbers<[1], [0], [0], [1], [0, 0, 1, 1], [], []>} : vector<8x16xf32>, vector<16x288xf32>, vector<8x288xf32> -> vector<8x288xf32>
    %c0_187 = arith.constant 0 : index
    %c1_188 = arith.constant 1 : index
    %c0_189 = arith.constant 0 : index
    %c0_190 = arith.constant 0 : index
    %189 = vector.load %arg15[%c0_187, %c1_188, %c0_189, %c0_190] : memref<2x4x8x288xf32, #tpu.memory_space<vmem>>, vector<1x1x8x288xf32>
    %190 = vector.shape_cast %189 : vector<1x1x8x288xf32> to vector<8x288xf32>
    %191 = vector.shape_cast %188 : vector<8x288xf32> to vector<1x1x8x288xf32>
    tpu.vector_store %arg15[%c0_187, %c1_188, %c0_189, %c0_190], %191 {strides = array<i32>} : memref<2x4x8x288xf32, #tpu.memory_space<vmem>>, vector<1x1x8x288xf32>,
    %192 = vector.broadcast %0 : vector<1x288xf32> to vector<8x288xf32>
    %193 = arith.mulf %188, %192 : vector<8x288xf32>
    %cst_191 = arith.constant dense<0.000000e+00> : vector<8xf32>
    %194 = vector.multi_reduction <add>, %193, %cst_191 [1] : vector<8x288xf32> to vector<8xf32>
    %195 = vector.shape_cast %194 : vector<8xf32> to vector<8x1xf32>
    %196 = arith.addf %172, %195 : vector<8x1xf32>
    %c2 = arith.constant 2 : index
    %c0_192 = arith.constant 0 : index
    %c0_193 = arith.constant 0 : index
    %197 = vector.load %arg4[%c2, %c0_192, %c0_193] : memref<4x8x16xf32, #tpu.memory_space<vmem>>, vector<1x8x16xf32>
    %198 = vector.shape_cast %197 : vector<1x8x16xf32> to vector<8x16xf32>
    %c0_194 = arith.constant 0 : index
    %c0_195 = arith.constant 0 : index
    %c127_196 = arith.constant 127 : index
    %199 = vector.load %arg14[%c0_194, %c0_195, %c127_196] : memref<2x4x512xf32, #tpu.memory_space<vmem>>, vector<1x4x288xf32>
    %200 = vector.shape_cast %199 : vector<1x4x288xf32> to vector<4x288xf32>
    %c0_197 = arith.constant 0 : index
    %c0_198 = arith.constant 0 : index
    %201 = vector.load %arg12[%c0_197, %c0_198] : memref<36x288xf32, #tpu.memory_space<vmem>>, vector<4x288xf32>
    tpu.vector_store %arg12[%c0_197, %c0_198], %200 {strides = array<i32>} : memref<36x288xf32, #tpu.memory_space<vmem>>, vector<4x288xf32>,
    %c0_199 = arith.constant 0 : index
    %c0_200 = arith.constant 0 : index
    %c128_201 = arith.constant 128 : index
    %202 = vector.load %arg14[%c0_199, %c0_200, %c128_201] : memref<2x4x512xf32, #tpu.memory_space<vmem>>, vector<1x4x288xf32>
    %203 = vector.shape_cast %202 : vector<1x4x288xf32> to vector<4x288xf32>
    %c4_202 = arith.constant 4 : index
    %c0_203 = arith.constant 0 : index
    %204 = vector.load %arg12[%c4_202, %c0_203] : memref<36x288xf32, #tpu.memory_space<vmem>>, vector<4x288xf32>
    tpu.vector_store %arg12[%c4_202, %c0_203], %203 {strides = array<i32>} : memref<36x288xf32, #tpu.memory_space<vmem>>, vector<4x288xf32>,
    %c0_204 = arith.constant 0 : index
    %c0_205 = arith.constant 0 : index
    %c145_206 = arith.constant 145 : index
    %205 = vector.load %arg14[%c0_204, %c0_205, %c145_206] : memref<2x4x512xf32, #tpu.memory_space<vmem>>, vector<1x4x288xf32>
    %206 = vector.shape_cast %205 : vector<1x4x288xf32> to vector<4x288xf32>
    %c8_207 = arith.constant 8 : index
    %c0_208 = arith.constant 0 : index
    %207 = vector.load %arg12[%c8_207, %c0_208] : memref<36x288xf32, #tpu.memory_space<vmem>>, vector<4x288xf32>
    tpu.vector_store %arg12[%c8_207, %c0_208], %206 {strides = array<i32>} : memref<36x288xf32, #tpu.memory_space<vmem>>, vector<4x288xf32>,
    %c0_209 = arith.constant 0 : index
    %c0_210 = arith.constant 0 : index
    %c146_211 = arith.constant 146 : index
    %208 = vector.load %arg14[%c0_209, %c0_210, %c146_211] : memref<2x4x512xf32, #tpu.memory_space<vmem>>, vector<1x4x288xf32>
    %209 = vector.shape_cast %208 : vector<1x4x288xf32> to vector<4x288xf32>
    %c12_212 = arith.constant 12 : index
    %c0_213 = arith.constant 0 : index
    %210 = vector.load %arg12[%c12_212, %c0_213] : memref<36x288xf32, #tpu.memory_space<vmem>>, vector<4x288xf32>
    tpu.vector_store %arg12[%c12_212, %c0_213], %209 {strides = array<i32>} : memref<36x288xf32, #tpu.memory_space<vmem>>, vector<4x288xf32>,
    %c0_214 = arith.constant 0 : index
    %c0_215 = arith.constant 0 : index
    %211 = vector.load %arg12[%c0_214, %c0_215] : memref<36x288xf32, #tpu.memory_space<vmem>>, vector<16x288xf32>
    %cst_216 = arith.constant dense<0.000000e+00> : vector<8x288xf32>
    %212 = tpu.matmul %198, %211, %cst_216 {dimension_numbers = #tpu.dot_dimension_numbers<[1], [0], [0], [1], [0, 0, 1, 1], [], []>} : vector<8x16xf32>, vector<16x288xf32>, vector<8x288xf32> -> vector<8x288xf32>
    %c0_217 = arith.constant 0 : index
    %c2_218 = arith.constant 2 : index
    %c0_219 = arith.constant 0 : index
    %c0_220 = arith.constant 0 : index
    %213 = vector.load %arg15[%c0_217, %c2_218, %c0_219, %c0_220] : memref<2x4x8x288xf32, #tpu.memory_space<vmem>>, vector<1x1x8x288xf32>
    %214 = vector.shape_cast %213 : vector<1x1x8x288xf32> to vector<8x288xf32>
    %215 = vector.shape_cast %212 : vector<8x288xf32> to vector<1x1x8x288xf32>
    tpu.vector_store %arg15[%c0_217, %c2_218, %c0_219, %c0_220], %215 {strides = array<i32>} : memref<2x4x8x288xf32, #tpu.memory_space<vmem>>, vector<1x1x8x288xf32>,
    %216 = vector.broadcast %0 : vector<1x288xf32> to vector<8x288xf32>
    %217 = arith.mulf %212, %216 : vector<8x288xf32>
    %cst_221 = arith.constant dense<0.000000e+00> : vector<8xf32>
    %218 = vector.multi_reduction <add>, %217, %cst_221 [1] : vector<8x288xf32> to vector<8xf32>
    %219 = vector.shape_cast %218 : vector<8xf32> to vector<8x1xf32>
    %220 = arith.addf %196, %219 : vector<8x1xf32>
    %c3 = arith.constant 3 : index
    %c0_222 = arith.constant 0 : index
    %c0_223 = arith.constant 0 : index
    %221 = vector.load %arg4[%c3, %c0_222, %c0_223] : memref<4x8x16xf32, #tpu.memory_space<vmem>>, vector<1x8x16xf32>
    %222 = vector.shape_cast %221 : vector<1x8x16xf32> to vector<8x16xf32>
    %c0_224 = arith.constant 0 : index
    %c0_225 = arith.constant 0 : index
    %c128_226 = arith.constant 128 : index
    %223 = vector.load %arg14[%c0_224, %c0_225, %c128_226] : memref<2x4x512xf32, #tpu.memory_space<vmem>>, vector<1x4x288xf32>
    %224 = vector.shape_cast %223 : vector<1x4x288xf32> to vector<4x288xf32>
    %c0_227 = arith.constant 0 : index
    %c0_228 = arith.constant 0 : index
    %225 = vector.load %arg12[%c0_227, %c0_228] : memref<36x288xf32, #tpu.memory_space<vmem>>, vector<4x288xf32>
    tpu.vector_store %arg12[%c0_227, %c0_228], %224 {strides = array<i32>} : memref<36x288xf32, #tpu.memory_space<vmem>>, vector<4x288xf32>,
    %c0_229 = arith.constant 0 : index
    %c0_230 = arith.constant 0 : index
    %c129_231 = arith.constant 129 : index
    %226 = vector.load %arg14[%c0_229, %c0_230, %c129_231] : memref<2x4x512xf32, #tpu.memory_space<vmem>>, vector<1x4x288xf32>
    %227 = vector.shape_cast %226 : vector<1x4x288xf32> to vector<4x288xf32>
    %c4_232 = arith.constant 4 : index
    %c0_233 = arith.constant 0 : index
    %228 = vector.load %arg12[%c4_232, %c0_233] : memref<36x288xf32, #tpu.memory_space<vmem>>, vector<4x288xf32>
    tpu.vector_store %arg12[%c4_232, %c0_233], %227 {strides = array<i32>} : memref<36x288xf32, #tpu.memory_space<vmem>>, vector<4x288xf32>,
    %c0_234 = arith.constant 0 : index
    %c0_235 = arith.constant 0 : index
    %c146_236 = arith.constant 146 : index
    %229 = vector.load %arg14[%c0_234, %c0_235, %c146_236] : memref<2x4x512xf32, #tpu.memory_space<vmem>>, vector<1x4x288xf32>
    %230 = vector.shape_cast %229 : vector<1x4x288xf32> to vector<4x288xf32>
    %c8_237 = arith.constant 8 : index
    %c0_238 = arith.constant 0 : index
    %231 = vector.load %arg12[%c8_237, %c0_238] : memref<36x288xf32, #tpu.memory_space<vmem>>, vector<4x288xf32>
    tpu.vector_store %arg12[%c8_237, %c0_238], %230 {strides = array<i32>} : memref<36x288xf32, #tpu.memory_space<vmem>>, vector<4x288xf32>,
    %c0_239 = arith.constant 0 : index
    %c0_240 = arith.constant 0 : index
    %c147_241 = arith.constant 147 : index
    %232 = vector.load %arg14[%c0_239, %c0_240, %c147_241] : memref<2x4x512xf32, #tpu.memory_space<vmem>>, vector<1x4x288xf32>
    %233 = vector.shape_cast %232 : vector<1x4x288xf32> to vector<4x288xf32>
    %c12_242 = arith.constant 12 : index
    %c0_243 = arith.constant 0 : index
    %234 = vector.load %arg12[%c12_242, %c0_243] : memref<36x288xf32, #tpu.memory_space<vmem>>, vector<4x288xf32>
    tpu.vector_store %arg12[%c12_242, %c0_243], %233 {strides = array<i32>} : memref<36x288xf32, #tpu.memory_space<vmem>>, vector<4x288xf32>,
    %c0_244 = arith.constant 0 : index
    %c0_245 = arith.constant 0 : index
    %235 = vector.load %arg12[%c0_244, %c0_245] : memref<36x288xf32, #tpu.memory_space<vmem>>, vector<16x288xf32>
    %cst_246 = arith.constant dense<0.000000e+00> : vector<8x288xf32>
    %236 = tpu.matmul %222, %235, %cst_246 {dimension_numbers = #tpu.dot_dimension_numbers<[1], [0], [0], [1], [0, 0, 1, 1], [], []>} : vector<8x16xf32>, vector<16x288xf32>, vector<8x288xf32> -> vector<8x288xf32>
    %c0_247 = arith.constant 0 : index
    %c3_248 = arith.constant 3 : index
    %c0_249 = arith.constant 0 : index
    %c0_250 = arith.constant 0 : index
    %237 = vector.load %arg15[%c0_247, %c3_248, %c0_249, %c0_250] : memref<2x4x8x288xf32, #tpu.memory_space<vmem>>, vector<1x1x8x288xf32>
    %238 = vector.shape_cast %237 : vector<1x1x8x288xf32> to vector<8x288xf32>
    %239 = vector.shape_cast %236 : vector<8x288xf32> to vector<1x1x8x288xf32>
    tpu.vector_store %arg15[%c0_247, %c3_248, %c0_249, %c0_250], %239 {strides = array<i32>} : memref<2x4x8x288xf32, #tpu.memory_space<vmem>>, vector<1x1x8x288xf32>,
    %240 = vector.broadcast %0 : vector<1x288xf32> to vector<8x288xf32>
    %241 = arith.mulf %236, %240 : vector<8x288xf32>
    %cst_251 = arith.constant dense<0.000000e+00> : vector<8xf32>
    %242 = vector.multi_reduction <add>, %241, %cst_251 [1] : vector<8x288xf32> to vector<8xf32>
    %243 = vector.shape_cast %242 : vector<8xf32> to vector<8x1xf32>
    %244 = arith.addf %220, %243 : vector<8x1xf32>
    %c0_252 = arith.constant 0 : index
    %c0_253 = arith.constant 0 : index
    %c0_254 = arith.constant 0 : index
    %245 = vector.load %arg4[%c0_252, %c0_253, %c0_254] : memref<4x8x16xf32, #tpu.memory_space<vmem>>, vector<1x8x16xf32>
    %246 = vector.shape_cast %245 : vector<1x8x16xf32> to vector<8x16xf32>
    %c1_255 = arith.constant 1 : index
    %c0_256 = arith.constant 0 : index
    %c109_257 = arith.constant 109 : index
    %247 = vector.load %arg14[%c1_255, %c0_256, %c109_257] : memref<2x4x512xf32, #tpu.memory_space<vmem>>, vector<1x4x288xf32>
    %248 = vector.shape_cast %247 : vector<1x4x288xf32> to vector<4x288xf32>
    %c0_258 = arith.constant 0 : index
    %c0_259 = arith.constant 0 : index
    %249 = vector.load %arg12[%c0_258, %c0_259] : memref<36x288xf32, #tpu.memory_space<vmem>>, vector<4x288xf32>
    tpu.vector_store %arg12[%c0_258, %c0_259], %248 {strides = array<i32>} : memref<36x288xf32, #tpu.memory_space<vmem>>, vector<4x288xf32>,
    %c1_260 = arith.constant 1 : index
    %c0_261 = arith.constant 0 : index
    %c110_262 = arith.constant 110 : index
    %250 = vector.load %arg14[%c1_260, %c0_261, %c110_262] : memref<2x4x512xf32, #tpu.memory_space<vmem>>, vector<1x4x288xf32>
    %251 = vector.shape_cast %250 : vector<1x4x288xf32> to vector<4x288xf32>
    %c4_263 = arith.constant 4 : index
    %c0_264 = arith.constant 0 : index
    %252 = vector.load %arg12[%c4_263, %c0_264] : memref<36x288xf32, #tpu.memory_space<vmem>>, vector<4x288xf32>
    tpu.vector_store %arg12[%c4_263, %c0_264], %251 {strides = array<i32>} : memref<36x288xf32, #tpu.memory_space<vmem>>, vector<4x288xf32>,
    %c1_265 = arith.constant 1 : index
    %c0_266 = arith.constant 0 : index
    %c127_267 = arith.constant 127 : index
    %253 = vector.load %arg14[%c1_265, %c0_266, %c127_267] : memref<2x4x512xf32, #tpu.memory_space<vmem>>, vector<1x4x288xf32>
    %254 = vector.shape_cast %253 : vector<1x4x288xf32> to vector<4x288xf32>
    %c8_268 = arith.constant 8 : index
    %c0_269 = arith.constant 0 : index
    %255 = vector.load %arg12[%c8_268, %c0_269] : memref<36x288xf32, #tpu.memory_space<vmem>>, vector<4x288xf32>
    tpu.vector_store %arg12[%c8_268, %c0_269], %254 {strides = array<i32>} : memref<36x288xf32, #tpu.memory_space<vmem>>, vector<4x288xf32>,
    %c1_270 = arith.constant 1 : index
    %c0_271 = arith.constant 0 : index
    %c128_272 = arith.constant 128 : index
    %256 = vector.load %arg14[%c1_270, %c0_271, %c128_272] : memref<2x4x512xf32, #tpu.memory_space<vmem>>, vector<1x4x288xf32>
    %257 = vector.shape_cast %256 : vector<1x4x288xf32> to vector<4x288xf32>
    %c12_273 = arith.constant 12 : index
    %c0_274 = arith.constant 0 : index
    %258 = vector.load %arg12[%c12_273, %c0_274] : memref<36x288xf32, #tpu.memory_space<vmem>>, vector<4x288xf32>
    tpu.vector_store %arg12[%c12_273, %c0_274], %257 {strides = array<i32>} : memref<36x288xf32, #tpu.memory_space<vmem>>, vector<4x288xf32>,
    %c0_275 = arith.constant 0 : index
    %c0_276 = arith.constant 0 : index
    %259 = vector.load %arg12[%c0_275, %c0_276] : memref<36x288xf32, #tpu.memory_space<vmem>>, vector<16x288xf32>
    %cst_277 = arith.constant dense<0.000000e+00> : vector<8x288xf32>
    %260 = tpu.matmul %246, %259, %cst_277 {dimension_numbers = #tpu.dot_dimension_numbers<[1], [0], [0], [1], [0, 0, 1, 1], [], []>} : vector<8x16xf32>, vector<16x288xf32>, vector<8x288xf32> -> vector<8x288xf32>
    %c1_278 = arith.constant 1 : index
    %c0_279 = arith.constant 0 : index
    %c0_280 = arith.constant 0 : index
    %c0_281 = arith.constant 0 : index
    %261 = vector.load %arg15[%c1_278, %c0_279, %c0_280, %c0_281] : memref<2x4x8x288xf32, #tpu.memory_space<vmem>>, vector<1x1x8x288xf32>
    %262 = vector.shape_cast %261 : vector<1x1x8x288xf32> to vector<8x288xf32>
    %263 = vector.shape_cast %260 : vector<8x288xf32> to vector<1x1x8x288xf32>
    tpu.vector_store %arg15[%c1_278, %c0_279, %c0_280, %c0_281], %263 {strides = array<i32>} : memref<2x4x8x288xf32, #tpu.memory_space<vmem>>, vector<1x1x8x288xf32>,
    %264 = vector.broadcast %0 : vector<1x288xf32> to vector<8x288xf32>
    %265 = arith.mulf %260, %264 : vector<8x288xf32>
    %cst_282 = arith.constant dense<0.000000e+00> : vector<8xf32>
    %266 = vector.multi_reduction <add>, %265, %cst_282 [1] : vector<8x288xf32> to vector<8xf32>
    %267 = vector.shape_cast %266 : vector<8xf32> to vector<8x1xf32>
    %268 = arith.addf %244, %267 : vector<8x1xf32>
    %c1_283 = arith.constant 1 : index
    %c0_284 = arith.constant 0 : index
    %c0_285 = arith.constant 0 : index
    %269 = vector.load %arg4[%c1_283, %c0_284, %c0_285] : memref<4x8x16xf32, #tpu.memory_space<vmem>>, vector<1x8x16xf32>
    %270 = vector.shape_cast %269 : vector<1x8x16xf32> to vector<8x16xf32>
    %c1_286 = arith.constant 1 : index
    %c0_287 = arith.constant 0 : index
    %c110_288 = arith.constant 110 : index
    %271 = vector.load %arg14[%c1_286, %c0_287, %c110_288] : memref<2x4x512xf32, #tpu.memory_space<vmem>>, vector<1x4x288xf32>
    %272 = vector.shape_cast %271 : vector<1x4x288xf32> to vector<4x288xf32>
    %c0_289 = arith.constant 0 : index
    %c0_290 = arith.constant 0 : index
    %273 = vector.load %arg12[%c0_289, %c0_290] : memref<36x288xf32, #tpu.memory_space<vmem>>, vector<4x288xf32>
    tpu.vector_store %arg12[%c0_289, %c0_290], %272 {strides = array<i32>} : memref<36x288xf32, #tpu.memory_space<vmem>>, vector<4x288xf32>,
    %c1_291 = arith.constant 1 : index
    %c0_292 = arith.constant 0 : index
    %c111_293 = arith.constant 111 : index
    %274 = vector.load %arg14[%c1_291, %c0_292, %c111_293] : memref<2x4x512xf32, #tpu.memory_space<vmem>>, vector<1x4x288xf32>
    %275 = vector.shape_cast %274 : vector<1x4x288xf32> to vector<4x288xf32>
    %c4_294 = arith.constant 4 : index
    %c0_295 = arith.constant 0 : index
    %276 = vector.load %arg12[%c4_294, %c0_295] : memref<36x288xf32, #tpu.memory_space<vmem>>, vector<4x288xf32>
    tpu.vector_store %arg12[%c4_294, %c0_295], %275 {strides = array<i32>} : memref<36x288xf32, #tpu.memory_space<vmem>>, vector<4x288xf32>,
    %c1_296 = arith.constant 1 : index
    %c0_297 = arith.constant 0 : index
    %c128_298 = arith.constant 128 : index
    %277 = vector.load %arg14[%c1_296, %c0_297, %c128_298] : memref<2x4x512xf32, #tpu.memory_space<vmem>>, vector<1x4x288xf32>
    %278 = vector.shape_cast %277 : vector<1x4x288xf32> to vector<4x288xf32>
    %c8_299 = arith.constant 8 : index
    %c0_300 = arith.constant 0 : index
    %279 = vector.load %arg12[%c8_299, %c0_300] : memref<36x288xf32, #tpu.memory_space<vmem>>, vector<4x288xf32>
    tpu.vector_store %arg12[%c8_299, %c0_300], %278 {strides = array<i32>} : memref<36x288xf32, #tpu.memory_space<vmem>>, vector<4x288xf32>,
    %c1_301 = arith.constant 1 : index
    %c0_302 = arith.constant 0 : index
    %c129_303 = arith.constant 129 : index
    %280 = vector.load %arg14[%c1_301, %c0_302, %c129_303] : memref<2x4x512xf32, #tpu.memory_space<vmem>>, vector<1x4x288xf32>
    %281 = vector.shape_cast %280 : vector<1x4x288xf32> to vector<4x288xf32>
    %c12_304 = arith.constant 12 : index
    %c0_305 = arith.constant 0 : index
    %282 = vector.load %arg12[%c12_304, %c0_305] : memref<36x288xf32, #tpu.memory_space<vmem>>, vector<4x288xf32>
    tpu.vector_store %arg12[%c12_304, %c0_305], %281 {strides = array<i32>} : memref<36x288xf32, #tpu.memory_space<vmem>>, vector<4x288xf32>,
    %c0_306 = arith.constant 0 : index
    %c0_307 = arith.constant 0 : index
    %283 = vector.load %arg12[%c0_306, %c0_307] : memref<36x288xf32, #tpu.memory_space<vmem>>, vector<16x288xf32>
    %cst_308 = arith.constant dense<0.000000e+00> : vector<8x288xf32>
    %284 = tpu.matmul %270, %283, %cst_308 {dimension_numbers = #tpu.dot_dimension_numbers<[1], [0], [0], [1], [0, 0, 1, 1], [], []>} : vector<8x16xf32>, vector<16x288xf32>, vector<8x288xf32> -> vector<8x288xf32>
    %c1_309 = arith.constant 1 : index
    %c1_310 = arith.constant 1 : index
    %c0_311 = arith.constant 0 : index
    %c0_312 = arith.constant 0 : index
    %285 = vector.load %arg15[%c1_309, %c1_310, %c0_311, %c0_312] : memref<2x4x8x288xf32, #tpu.memory_space<vmem>>, vector<1x1x8x288xf32>
    %286 = vector.shape_cast %285 : vector<1x1x8x288xf32> to vector<8x288xf32>
    %287 = vector.shape_cast %284 : vector<8x288xf32> to vector<1x1x8x288xf32>
    tpu.vector_store %arg15[%c1_309, %c1_310, %c0_311, %c0_312], %287 {strides = array<i32>} : memref<2x4x8x288xf32, #tpu.memory_space<vmem>>, vector<1x1x8x288xf32>,
    %288 = vector.broadcast %0 : vector<1x288xf32> to vector<8x288xf32>
    %289 = arith.mulf %284, %288 : vector<8x288xf32>
    %cst_313 = arith.constant dense<0.000000e+00> : vector<8xf32>
    %290 = vector.multi_reduction <add>, %289, %cst_313 [1] : vector<8x288xf32> to vector<8xf32>
    %291 = vector.shape_cast %290 : vector<8xf32> to vector<8x1xf32>
    %292 = arith.addf %268, %291 : vector<8x1xf32>
    %c2_314 = arith.constant 2 : index
    %c0_315 = arith.constant 0 : index
    %c0_316 = arith.constant 0 : index
    %293 = vector.load %arg4[%c2_314, %c0_315, %c0_316] : memref<4x8x16xf32, #tpu.memory_space<vmem>>, vector<1x8x16xf32>
    %294 = vector.shape_cast %293 : vector<1x8x16xf32> to vector<8x16xf32>
    %c1_317 = arith.constant 1 : index
    %c0_318 = arith.constant 0 : index
    %c127_319 = arith.constant 127 : index
    %295 = vector.load %arg14[%c1_317, %c0_318, %c127_319] : memref<2x4x512xf32, #tpu.memory_space<vmem>>, vector<1x4x288xf32>
    %296 = vector.shape_cast %295 : vector<1x4x288xf32> to vector<4x288xf32>
    %c0_320 = arith.constant 0 : index
    %c0_321 = arith.constant 0 : index
    %297 = vector.load %arg12[%c0_320, %c0_321] : memref<36x288xf32, #tpu.memory_space<vmem>>, vector<4x288xf32>
    tpu.vector_store %arg12[%c0_320, %c0_321], %296 {strides = array<i32>} : memref<36x288xf32, #tpu.memory_space<vmem>>, vector<4x288xf32>,
    %c1_322 = arith.constant 1 : index
    %c0_323 = arith.constant 0 : index
    %c128_324 = arith.constant 128 : index
    %298 = vector.load %arg14[%c1_322, %c0_323, %c128_324] : memref<2x4x512xf32, #tpu.memory_space<vmem>>, vector<1x4x288xf32>
    %299 = vector.shape_cast %298 : vector<1x4x288xf32> to vector<4x288xf32>
    %c4_325 = arith.constant 4 : index
    %c0_326 = arith.constant 0 : index
    %300 = vector.load %arg12[%c4_325, %c0_326] : memref<36x288xf32, #tpu.memory_space<vmem>>, vector<4x288xf32>
    tpu.vector_store %arg12[%c4_325, %c0_326], %299 {strides = array<i32>} : memref<36x288xf32, #tpu.memory_space<vmem>>, vector<4x288xf32>,
    %c1_327 = arith.constant 1 : index
    %c0_328 = arith.constant 0 : index
    %c145_329 = arith.constant 145 : index
    %301 = vector.load %arg14[%c1_327, %c0_328, %c145_329] : memref<2x4x512xf32, #tpu.memory_space<vmem>>, vector<1x4x288xf32>
    %302 = vector.shape_cast %301 : vector<1x4x288xf32> to vector<4x288xf32>
    %c8_330 = arith.constant 8 : index
    %c0_331 = arith.constant 0 : index
    %303 = vector.load %arg12[%c8_330, %c0_331] : memref<36x288xf32, #tpu.memory_space<vmem>>, vector<4x288xf32>
    tpu.vector_store %arg12[%c8_330, %c0_331], %302 {strides = array<i32>} : memref<36x288xf32, #tpu.memory_space<vmem>>, vector<4x288xf32>,
    %c1_332 = arith.constant 1 : index
    %c0_333 = arith.constant 0 : index
    %c146_334 = arith.constant 146 : index
    %304 = vector.load %arg14[%c1_332, %c0_333, %c146_334] : memref<2x4x512xf32, #tpu.memory_space<vmem>>, vector<1x4x288xf32>
    %305 = vector.shape_cast %304 : vector<1x4x288xf32> to vector<4x288xf32>
    %c12_335 = arith.constant 12 : index
    %c0_336 = arith.constant 0 : index
    %306 = vector.load %arg12[%c12_335, %c0_336] : memref<36x288xf32, #tpu.memory_space<vmem>>, vector<4x288xf32>
    tpu.vector_store %arg12[%c12_335, %c0_336], %305 {strides = array<i32>} : memref<36x288xf32, #tpu.memory_space<vmem>>, vector<4x288xf32>,
    %c0_337 = arith.constant 0 : index
    %c0_338 = arith.constant 0 : index
    %307 = vector.load %arg12[%c0_337, %c0_338] : memref<36x288xf32, #tpu.memory_space<vmem>>, vector<16x288xf32>
    %cst_339 = arith.constant dense<0.000000e+00> : vector<8x288xf32>
    %308 = tpu.matmul %294, %307, %cst_339 {dimension_numbers = #tpu.dot_dimension_numbers<[1], [0], [0], [1], [0, 0, 1, 1], [], []>} : vector<8x16xf32>, vector<16x288xf32>, vector<8x288xf32> -> vector<8x288xf32>
    %c1_340 = arith.constant 1 : index
    %c2_341 = arith.constant 2 : index
    %c0_342 = arith.constant 0 : index
    %c0_343 = arith.constant 0 : index
    %309 = vector.load %arg15[%c1_340, %c2_341, %c0_342, %c0_343] : memref<2x4x8x288xf32, #tpu.memory_space<vmem>>, vector<1x1x8x288xf32>
    %310 = vector.shape_cast %309 : vector<1x1x8x288xf32> to vector<8x288xf32>
    %311 = vector.shape_cast %308 : vector<8x288xf32> to vector<1x1x8x288xf32>
    tpu.vector_store %arg15[%c1_340, %c2_341, %c0_342, %c0_343], %311 {strides = array<i32>} : memref<2x4x8x288xf32, #tpu.memory_space<vmem>>, vector<1x1x8x288xf32>,
    %312 = vector.broadcast %0 : vector<1x288xf32> to vector<8x288xf32>
    %313 = arith.mulf %308, %312 : vector<8x288xf32>
    %cst_344 = arith.constant dense<0.000000e+00> : vector<8xf32>
    %314 = vector.multi_reduction <add>, %313, %cst_344 [1] : vector<8x288xf32> to vector<8xf32>
    %315 = vector.shape_cast %314 : vector<8xf32> to vector<8x1xf32>
    %316 = arith.addf %292, %315 : vector<8x1xf32>
    %c3_345 = arith.constant 3 : index
    %c0_346 = arith.constant 0 : index
    %c0_347 = arith.constant 0 : index
    %317 = vector.load %arg4[%c3_345, %c0_346, %c0_347] : memref<4x8x16xf32, #tpu.memory_space<vmem>>, vector<1x8x16xf32>
    %318 = vector.shape_cast %317 : vector<1x8x16xf32> to vector<8x16xf32>
    %c1_348 = arith.constant 1 : index
    %c0_349 = arith.constant 0 : index
    %c128_350 = arith.constant 128 : index
    %319 = vector.load %arg14[%c1_348, %c0_349, %c128_350] : memref<2x4x512xf32, #tpu.memory_space<vmem>>, vector<1x4x288xf32>
    %320 = vector.shape_cast %319 : vector<1x4x288xf32> to vector<4x288xf32>
    %c0_351 = arith.constant 0 : index
    %c0_352 = arith.constant 0 : index
    %321 = vector.load %arg12[%c0_351, %c0_352] : memref<36x288xf32, #tpu.memory_space<vmem>>, vector<4x288xf32>
    tpu.vector_store %arg12[%c0_351, %c0_352], %320 {strides = array<i32>} : memref<36x288xf32, #tpu.memory_space<vmem>>, vector<4x288xf32>,
    %c1_353 = arith.constant 1 : index
    %c0_354 = arith.constant 0 : index
    %c129_355 = arith.constant 129 : index
    %322 = vector.load %arg14[%c1_353, %c0_354, %c129_355] : memref<2x4x512xf32, #tpu.memory_space<vmem>>, vector<1x4x288xf32>
    %323 = vector.shape_cast %322 : vector<1x4x288xf32> to vector<4x288xf32>
    %c4_356 = arith.constant 4 : index
    %c0_357 = arith.constant 0 : index
    %324 = vector.load %arg12[%c4_356, %c0_357] : memref<36x288xf32, #tpu.memory_space<vmem>>, vector<4x288xf32>
    tpu.vector_store %arg12[%c4_356, %c0_357], %323 {strides = array<i32>} : memref<36x288xf32, #tpu.memory_space<vmem>>, vector<4x288xf32>,
    %c1_358 = arith.constant 1 : index
    %c0_359 = arith.constant 0 : index
    %c146_360 = arith.constant 146 : index
    %325 = vector.load %arg14[%c1_358, %c0_359, %c146_360] : memref<2x4x512xf32, #tpu.memory_space<vmem>>, vector<1x4x288xf32>
    %326 = vector.shape_cast %325 : vector<1x4x288xf32> to vector<4x288xf32>
    %c8_361 = arith.constant 8 : index
    %c0_362 = arith.constant 0 : index
    %327 = vector.load %arg12[%c8_361, %c0_362] : memref<36x288xf32, #tpu.memory_space<vmem>>, vector<4x288xf32>
    tpu.vector_store %arg12[%c8_361, %c0_362], %326 {strides = array<i32>} : memref<36x288xf32, #tpu.memory_space<vmem>>, vector<4x288xf32>,
    %c1_363 = arith.constant 1 : index
    %c0_364 = arith.constant 0 : index
    %c147_365 = arith.constant 147 : index
    %328 = vector.load %arg14[%c1_363, %c0_364, %c147_365] : memref<2x4x512xf32, #tpu.memory_space<vmem>>, vector<1x4x288xf32>
    %329 = vector.shape_cast %328 : vector<1x4x288xf32> to vector<4x288xf32>
    %c12_366 = arith.constant 12 : index
    %c0_367 = arith.constant 0 : index
    %330 = vector.load %arg12[%c12_366, %c0_367] : memref<36x288xf32, #tpu.memory_space<vmem>>, vector<4x288xf32>
    tpu.vector_store %arg12[%c12_366, %c0_367], %329 {strides = array<i32>} : memref<36x288xf32, #tpu.memory_space<vmem>>, vector<4x288xf32>,
    %c0_368 = arith.constant 0 : index
    %c0_369 = arith.constant 0 : index
    %331 = vector.load %arg12[%c0_368, %c0_369] : memref<36x288xf32, #tpu.memory_space<vmem>>, vector<16x288xf32>
    %cst_370 = arith.constant dense<0.000000e+00> : vector<8x288xf32>
    %332 = tpu.matmul %318, %331, %cst_370 {dimension_numbers = #tpu.dot_dimension_numbers<[1], [0], [0], [1], [0, 0, 1, 1], [], []>} : vector<8x16xf32>, vector<16x288xf32>, vector<8x288xf32> -> vector<8x288xf32>
    %c1_371 = arith.constant 1 : index
    %c3_372 = arith.constant 3 : index
    %c0_373 = arith.constant 0 : index
    %c0_374 = arith.constant 0 : index
    %333 = vector.load %arg15[%c1_371, %c3_372, %c0_373, %c0_374] : memref<2x4x8x288xf32, #tpu.memory_space<vmem>>, vector<1x1x8x288xf32>
    %334 = vector.shape_cast %333 : vector<1x1x8x288xf32> to vector<8x288xf32>
    %335 = vector.shape_cast %332 : vector<8x288xf32> to vector<1x1x8x288xf32>
    tpu.vector_store %arg15[%c1_371, %c3_372, %c0_373, %c0_374], %335 {strides = array<i32>} : memref<2x4x8x288xf32, #tpu.memory_space<vmem>>, vector<1x1x8x288xf32>,
    %336 = vector.broadcast %0 : vector<1x288xf32> to vector<8x288xf32>
    %337 = arith.mulf %332, %336 : vector<8x288xf32>
    %cst_375 = arith.constant dense<0.000000e+00> : vector<8xf32>
    %338 = vector.multi_reduction <add>, %337, %cst_375 [1] : vector<8x288xf32> to vector<8xf32>
    %339 = vector.shape_cast %338 : vector<8xf32> to vector<8x1xf32>
    %340 = arith.addf %316, %339 : vector<8x1xf32>
    %cst_376 = arith.constant 2.048000e+03 : f32
    %341 = vector.broadcast %cst_376 : f32 to vector<8x1xf32>
    %342 = arith.divf %340, %341 : vector<8x1xf32>
    %cst_377 = arith.constant 0.000000e+00 : f32
    %343 = vector.broadcast %cst_377 : f32 to vector<8x1xf32>
    %c0_378 = arith.constant 0 : index
    %c0_379 = arith.constant 0 : index
    %c0_380 = arith.constant 0 : index
    %c0_381 = arith.constant 0 : index
    %344 = vector.load %arg15[%c0_378, %c0_379, %c0_380, %c0_381] : memref<2x4x8x288xf32, #tpu.memory_space<vmem>>, vector<1x1x8x288xf32>
    %345 = vector.shape_cast %344 : vector<1x1x8x288xf32> to vector<8x288xf32>
    %346 = vector.broadcast %342 : vector<8x1xf32> to vector<8x288xf32>
    %347 = arith.subf %345, %346 : vector<8x288xf32>
    %348 = vector.broadcast %0 : vector<1x288xf32> to vector<8x288xf32>
    %349 = arith.mulf %347, %348 : vector<8x288xf32>
    %350 = arith.mulf %349, %349 : vector<8x288xf32>
    %cst_382 = arith.constant dense<0.000000e+00> : vector<8xf32>
    %351 = vector.multi_reduction <add>, %350, %cst_382 [1] : vector<8x288xf32> to vector<8xf32>
    %352 = vector.shape_cast %351 : vector<8xf32> to vector<8x1xf32>
    %353 = arith.addf %343, %352 : vector<8x1xf32>
    %c0_383 = arith.constant 0 : index
    %c1_384 = arith.constant 1 : index
    %c0_385 = arith.constant 0 : index
    %c0_386 = arith.constant 0 : index
    %354 = vector.load %arg15[%c0_383, %c1_384, %c0_385, %c0_386] : memref<2x4x8x288xf32, #tpu.memory_space<vmem>>, vector<1x1x8x288xf32>
    %355 = vector.shape_cast %354 : vector<1x1x8x288xf32> to vector<8x288xf32>
    %356 = vector.broadcast %342 : vector<8x1xf32> to vector<8x288xf32>
    %357 = arith.subf %355, %356 : vector<8x288xf32>
    %358 = vector.broadcast %0 : vector<1x288xf32> to vector<8x288xf32>
    %359 = arith.mulf %357, %358 : vector<8x288xf32>
    %360 = arith.mulf %359, %359 : vector<8x288xf32>
    %cst_387 = arith.constant dense<0.000000e+00> : vector<8xf32>
    %361 = vector.multi_reduction <add>, %360, %cst_387 [1] : vector<8x288xf32> to vector<8xf32>
    %362 = vector.shape_cast %361 : vector<8xf32> to vector<8x1xf32>
    %363 = arith.addf %353, %362 : vector<8x1xf32>
    %c0_388 = arith.constant 0 : index
    %c2_389 = arith.constant 2 : index
    %c0_390 = arith.constant 0 : index
    %c0_391 = arith.constant 0 : index
    %364 = vector.load %arg15[%c0_388, %c2_389, %c0_390, %c0_391] : memref<2x4x8x288xf32, #tpu.memory_space<vmem>>, vector<1x1x8x288xf32>
    %365 = vector.shape_cast %364 : vector<1x1x8x288xf32> to vector<8x288xf32>
    %366 = vector.broadcast %342 : vector<8x1xf32> to vector<8x288xf32>
    %367 = arith.subf %365, %366 : vector<8x288xf32>
    %368 = vector.broadcast %0 : vector<1x288xf32> to vector<8x288xf32>
    %369 = arith.mulf %367, %368 : vector<8x288xf32>
    %370 = arith.mulf %369, %369 : vector<8x288xf32>
    %cst_392 = arith.constant dense<0.000000e+00> : vector<8xf32>
    %371 = vector.multi_reduction <add>, %370, %cst_392 [1] : vector<8x288xf32> to vector<8xf32>
    %372 = vector.shape_cast %371 : vector<8xf32> to vector<8x1xf32>
    %373 = arith.addf %363, %372 : vector<8x1xf32>
    %c0_393 = arith.constant 0 : index
    %c3_394 = arith.constant 3 : index
    %c0_395 = arith.constant 0 : index
    %c0_396 = arith.constant 0 : index
    %374 = vector.load %arg15[%c0_393, %c3_394, %c0_395, %c0_396] : memref<2x4x8x288xf32, #tpu.memory_space<vmem>>, vector<1x1x8x288xf32>
    %375 = vector.shape_cast %374 : vector<1x1x8x288xf32> to vector<8x288xf32>
    %376 = vector.broadcast %342 : vector<8x1xf32> to vector<8x288xf32>
    %377 = arith.subf %375, %376 : vector<8x288xf32>
    %378 = vector.broadcast %0 : vector<1x288xf32> to vector<8x288xf32>
    %379 = arith.mulf %377, %378 : vector<8x288xf32>
    %380 = arith.mulf %379, %379 : vector<8x288xf32>
    %cst_397 = arith.constant dense<0.000000e+00> : vector<8xf32>
    %381 = vector.multi_reduction <add>, %380, %cst_397 [1] : vector<8x288xf32> to vector<8xf32>
    %382 = vector.shape_cast %381 : vector<8xf32> to vector<8x1xf32>
    %383 = arith.addf %373, %382 : vector<8x1xf32>
    %c1_398 = arith.constant 1 : index
    %c0_399 = arith.constant 0 : index
    %c0_400 = arith.constant 0 : index
    %c0_401 = arith.constant 0 : index
    %384 = vector.load %arg15[%c1_398, %c0_399, %c0_400, %c0_401] : memref<2x4x8x288xf32, #tpu.memory_space<vmem>>, vector<1x1x8x288xf32>
    %385 = vector.shape_cast %384 : vector<1x1x8x288xf32> to vector<8x288xf32>
    %386 = vector.broadcast %342 : vector<8x1xf32> to vector<8x288xf32>
    %387 = arith.subf %385, %386 : vector<8x288xf32>
    %388 = vector.broadcast %0 : vector<1x288xf32> to vector<8x288xf32>
    %389 = arith.mulf %387, %388 : vector<8x288xf32>
    %390 = arith.mulf %389, %389 : vector<8x288xf32>
    %cst_402 = arith.constant dense<0.000000e+00> : vector<8xf32>
    %391 = vector.multi_reduction <add>, %390, %cst_402 [1] : vector<8x288xf32> to vector<8xf32>
    %392 = vector.shape_cast %391 : vector<8xf32> to vector<8x1xf32>
    %393 = arith.addf %383, %392 : vector<8x1xf32>
    %c1_403 = arith.constant 1 : index
    %c1_404 = arith.constant 1 : index
    %c0_405 = arith.constant 0 : index
    %c0_406 = arith.constant 0 : index
    %394 = vector.load %arg15[%c1_403, %c1_404, %c0_405, %c0_406] : memref<2x4x8x288xf32, #tpu.memory_space<vmem>>, vector<1x1x8x288xf32>
    %395 = vector.shape_cast %394 : vector<1x1x8x288xf32> to vector<8x288xf32>
    %396 = vector.broadcast %342 : vector<8x1xf32> to vector<8x288xf32>
    %397 = arith.subf %395, %396 : vector<8x288xf32>
    %398 = vector.broadcast %0 : vector<1x288xf32> to vector<8x288xf32>
    %399 = arith.mulf %397, %398 : vector<8x288xf32>
    %400 = arith.mulf %399, %399 : vector<8x288xf32>
    %cst_407 = arith.constant dense<0.000000e+00> : vector<8xf32>
    %401 = vector.multi_reduction <add>, %400, %cst_407 [1] : vector<8x288xf32> to vector<8xf32>
    %402 = vector.shape_cast %401 : vector<8xf32> to vector<8x1xf32>
    %403 = arith.addf %393, %402 : vector<8x1xf32>
    %c1_408 = arith.constant 1 : index
    %c2_409 = arith.constant 2 : index
    %c0_410 = arith.constant 0 : index
    %c0_411 = arith.constant 0 : index
    %404 = vector.load %arg15[%c1_408, %c2_409, %c0_410, %c0_411] : memref<2x4x8x288xf32, #tpu.memory_space<vmem>>, vector<1x1x8x288xf32>
    %405 = vector.shape_cast %404 : vector<1x1x8x288xf32> to vector<8x288xf32>
    %406 = vector.broadcast %342 : vector<8x1xf32> to vector<8x288xf32>
    %407 = arith.subf %405, %406 : vector<8x288xf32>
    %408 = vector.broadcast %0 : vector<1x288xf32> to vector<8x288xf32>
    %409 = arith.mulf %407, %408 : vector<8x288xf32>
    %410 = arith.mulf %409, %409 : vector<8x288xf32>
    %cst_412 = arith.constant dense<0.000000e+00> : vector<8xf32>
    %411 = vector.multi_reduction <add>, %410, %cst_412 [1] : vector<8x288xf32> to vector<8xf32>
    %412 = vector.shape_cast %411 : vector<8xf32> to vector<8x1xf32>
    %413 = arith.addf %403, %412 : vector<8x1xf32>
    %c1_413 = arith.constant 1 : index
    %c3_414 = arith.constant 3 : index
    %c0_415 = arith.constant 0 : index
    %c0_416 = arith.constant 0 : index
    %414 = vector.load %arg15[%c1_413, %c3_414, %c0_415, %c0_416] : memref<2x4x8x288xf32, #tpu.memory_space<vmem>>, vector<1x1x8x288xf32>
    %415 = vector.shape_cast %414 : vector<1x1x8x288xf32> to vector<8x288xf32>
    %416 = vector.broadcast %342 : vector<8x1xf32> to vector<8x288xf32>
    %417 = arith.subf %415, %416 : vector<8x288xf32>
    %418 = vector.broadcast %0 : vector<1x288xf32> to vector<8x288xf32>
    %419 = arith.mulf %417, %418 : vector<8x288xf32>
    %420 = arith.mulf %419, %419 : vector<8x288xf32>
    %cst_417 = arith.constant dense<0.000000e+00> : vector<8xf32>
    %421 = vector.multi_reduction <add>, %420, %cst_417 [1] : vector<8x288xf32> to vector<8xf32>
    %422 = vector.shape_cast %421 : vector<8xf32> to vector<8x1xf32>
    %423 = arith.addf %413, %422 : vector<8x1xf32>
    %cst_418 = arith.constant 2.048000e+03 : f32
    %424 = vector.broadcast %cst_418 : f32 to vector<8x1xf32>
    %425 = arith.divf %423, %424 : vector<8x1xf32>
    %cst_419 = arith.constant 9.99999974E-6 : f32
    %426 = vector.broadcast %cst_419 : f32 to vector<8x1xf32>
    %427 = arith.addf %425, %426 : vector<8x1xf32>
    %428 = math.rsqrt %427 : vector<8x1xf32>
    %c0_420 = arith.constant 0 : index
    %c0_421 = arith.constant 0 : index
    %429 = vector.load %arg8[%c0_420, %c0_421] : memref<8x1xf32, #tpu.memory_space<vmem>>, vector<8x1xf32>
    %430 = arith.mulf %428, %429 : vector<8x1xf32>
    %c0_422 = arith.constant 0 : index
    %c0_423 = arith.constant 0 : index
    %c0_424 = arith.constant 0 : index
    %431 = vector.load %arg5[%c0_422, %c0_423, %c0_424] : memref<4x8x16xf32, #tpu.memory_space<vmem>>, vector<1x8x16xf32>
    %432 = vector.shape_cast %431 : vector<1x8x16xf32> to vector<8x16xf32>
    %c0_425 = arith.constant 0 : index
    %c0_426 = arith.constant 0 : index
    %c109_427 = arith.constant 109 : index
    %433 = vector.load %arg1[%c0_425, %c0_426, %c109_427] : memref<2x4x512xf32, #tpu.memory_space<vmem>>, vector<1x4x288xf32>
    %434 = vector.shape_cast %433 : vector<1x4x288xf32> to vector<4x288xf32>
    %c0_428 = arith.constant 0 : index
    %c0_429 = arith.constant 0 : index
    %435 = vector.load %arg12[%c0_428, %c0_429] : memref<36x288xf32, #tpu.memory_space<vmem>>, vector<4x288xf32>
    tpu.vector_store %arg12[%c0_428, %c0_429], %434 {strides = array<i32>} : memref<36x288xf32, #tpu.memory_space<vmem>>, vector<4x288xf32>,
    %c0_430 = arith.constant 0 : index
    %c0_431 = arith.constant 0 : index
    %c110_432 = arith.constant 110 : index
    %436 = vector.load %arg1[%c0_430, %c0_431, %c110_432] : memref<2x4x512xf32, #tpu.memory_space<vmem>>, vector<1x4x288xf32>
    %437 = vector.shape_cast %436 : vector<1x4x288xf32> to vector<4x288xf32>
    %c4_433 = arith.constant 4 : index
    %c0_434 = arith.constant 0 : index
    %438 = vector.load %arg12[%c4_433, %c0_434] : memref<36x288xf32, #tpu.memory_space<vmem>>, vector<4x288xf32>
    tpu.vector_store %arg12[%c4_433, %c0_434], %437 {strides = array<i32>} : memref<36x288xf32, #tpu.memory_space<vmem>>, vector<4x288xf32>,
    %c0_435 = arith.constant 0 : index
    %c0_436 = arith.constant 0 : index
    %c127_437 = arith.constant 127 : index
    %439 = vector.load %arg1[%c0_435, %c0_436, %c127_437] : memref<2x4x512xf32, #tpu.memory_space<vmem>>, vector<1x4x288xf32>
    %440 = vector.shape_cast %439 : vector<1x4x288xf32> to vector<4x288xf32>
    %c8_438 = arith.constant 8 : index
    %c0_439 = arith.constant 0 : index
    %441 = vector.load %arg12[%c8_438, %c0_439] : memref<36x288xf32, #tpu.memory_space<vmem>>, vector<4x288xf32>
    tpu.vector_store %arg12[%c8_438, %c0_439], %440 {strides = array<i32>} : memref<36x288xf32, #tpu.memory_space<vmem>>, vector<4x288xf32>,
    %c0_440 = arith.constant 0 : index
    %c0_441 = arith.constant 0 : index
    %c128_442 = arith.constant 128 : index
    %442 = vector.load %arg1[%c0_440, %c0_441, %c128_442] : memref<2x4x512xf32, #tpu.memory_space<vmem>>, vector<1x4x288xf32>
    %443 = vector.shape_cast %442 : vector<1x4x288xf32> to vector<4x288xf32>
    %c12_443 = arith.constant 12 : index
    %c0_444 = arith.constant 0 : index
    %444 = vector.load %arg12[%c12_443, %c0_444] : memref<36x288xf32, #tpu.memory_space<vmem>>, vector<4x288xf32>
    tpu.vector_store %arg12[%c12_443, %c0_444], %443 {strides = array<i32>} : memref<36x288xf32, #tpu.memory_space<vmem>>, vector<4x288xf32>,
    %c0_445 = arith.constant 0 : index
    %c0_446 = arith.constant 0 : index
    %445 = vector.load %arg12[%c0_445, %c0_446] : memref<36x288xf32, #tpu.memory_space<vmem>>, vector<16x288xf32>
    %cst_447 = arith.constant dense<0.000000e+00> : vector<8x288xf32>
    %446 = tpu.matmul %432, %445, %cst_447 {dimension_numbers = #tpu.dot_dimension_numbers<[1], [0], [0], [1], [0, 0, 1, 1], [], []>} : vector<8x16xf32>, vector<16x288xf32>, vector<8x288xf32> -> vector<8x288xf32>
    %c0_448 = arith.constant 0 : index
    %c0_449 = arith.constant 0 : index
    %447 = vector.load %arg10[%c0_448, %c0_449] : memref<8x1xf32, #tpu.memory_space<vmem>>, vector<8x1xf32>
    %448 = vector.broadcast %447 : vector<8x1xf32> to vector<8x288xf32>
    %449 = arith.addf %446, %448 : vector<8x288xf32>
    %c0_450 = arith.constant 0 : index
    %c0_451 = arith.constant 0 : index
    %c0_452 = arith.constant 0 : index
    %c0_453 = arith.constant 0 : index
    %450 = vector.load %arg15[%c0_450, %c0_451, %c0_452, %c0_453] : memref<2x4x8x288xf32, #tpu.memory_space<vmem>>, vector<1x1x8x288xf32>
    %451 = vector.shape_cast %450 : vector<1x1x8x288xf32> to vector<8x288xf32>
    %452 = vector.broadcast %342 : vector<8x1xf32> to vector<8x288xf32>
    %453 = arith.subf %451, %452 : vector<8x288xf32>
    %454 = vector.broadcast %430 : vector<8x1xf32> to vector<8x288xf32>
    %455 = arith.mulf %453, %454 : vector<8x288xf32>
    %c0_454 = arith.constant 0 : index
    %c0_455 = arith.constant 0 : index
    %456 = vector.load %arg9[%c0_454, %c0_455] : memref<8x1xf32, #tpu.memory_space<vmem>>, vector<8x1xf32>
    %457 = vector.broadcast %456 : vector<8x1xf32> to vector<8x288xf32>
    %458 = arith.addf %455, %457 : vector<8x288xf32>
    %459 = arith.addf %458, %449 : vector<8x288xf32>
    %cst_456 = arith.constant 0.000000e+00 : f32
    %460 = vector.broadcast %cst_456 : f32 to vector<8x288xf32>
    %461 = arith.cmpf oge, %459, %460 : vector<8x288xf32>
    %cst_457 = arith.constant 0.229166672 : f32
    %462 = vector.broadcast %cst_457 : f32 to vector<8x288xf32>
    %463 = arith.mulf %459, %462 : vector<8x288xf32>
    %464 = arith.select %461, %459, %463 : vector<8x288xi1>, vector<8x288xf32>
    %c0_458 = arith.constant 0 : index
    %c0_459 = arith.constant 0 : index
    %c0_460 = arith.constant 0 : index
    %c0_461 = arith.constant 0 : index
    %465 = vector.load %arg11[%c0_458, %c0_459, %c0_460, %c0_461] : memref<2x4x8x288xf32, #tpu.memory_space<vmem>>, vector<1x1x8x288xf32>
    %466 = vector.shape_cast %465 : vector<1x1x8x288xf32> to vector<8x288xf32>
    %467 = vector.shape_cast %464 : vector<8x288xf32> to vector<1x1x8x288xf32>
    tpu.vector_store %arg11[%c0_458, %c0_459, %c0_460, %c0_461], %467 {strides = array<i32>} : memref<2x4x8x288xf32, #tpu.memory_space<vmem>>, vector<1x1x8x288xf32>,
    %c1_462 = arith.constant 1 : index
    %c0_463 = arith.constant 0 : index
    %c0_464 = arith.constant 0 : index
    %468 = vector.load %arg5[%c1_462, %c0_463, %c0_464] : memref<4x8x16xf32, #tpu.memory_space<vmem>>, vector<1x8x16xf32>
    %469 = vector.shape_cast %468 : vector<1x8x16xf32> to vector<8x16xf32>
    %c0_465 = arith.constant 0 : index
    %c0_466 = arith.constant 0 : index
    %c110_467 = arith.constant 110 : index
    %470 = vector.load %arg1[%c0_465, %c0_466, %c110_467] : memref<2x4x512xf32, #tpu.memory_space<vmem>>, vector<1x4x288xf32>
    %471 = vector.shape_cast %470 : vector<1x4x288xf32> to vector<4x288xf32>
    %c0_468 = arith.constant 0 : index
    %c0_469 = arith.constant 0 : index
    %472 = vector.load %arg12[%c0_468, %c0_469] : memref<36x288xf32, #tpu.memory_space<vmem>>, vector<4x288xf32>
    tpu.vector_store %arg12[%c0_468, %c0_469], %471 {strides = array<i32>} : memref<36x288xf32, #tpu.memory_space<vmem>>, vector<4x288xf32>,
    %c0_470 = arith.constant 0 : index
    %c0_471 = arith.constant 0 : index
    %c111_472 = arith.constant 111 : index
    %473 = vector.load %arg1[%c0_470, %c0_471, %c111_472] : memref<2x4x512xf32, #tpu.memory_space<vmem>>, vector<1x4x288xf32>
    %474 = vector.shape_cast %473 : vector<1x4x288xf32> to vector<4x288xf32>
    %c4_473 = arith.constant 4 : index
    %c0_474 = arith.constant 0 : index
    %475 = vector.load %arg12[%c4_473, %c0_474] : memref<36x288xf32, #tpu.memory_space<vmem>>, vector<4x288xf32>
    tpu.vector_store %arg12[%c4_473, %c0_474], %474 {strides = array<i32>} : memref<36x288xf32, #tpu.memory_space<vmem>>, vector<4x288xf32>,
    %c0_475 = arith.constant 0 : index
    %c0_476 = arith.constant 0 : index
    %c128_477 = arith.constant 128 : index
    %476 = vector.load %arg1[%c0_475, %c0_476, %c128_477] : memref<2x4x512xf32, #tpu.memory_space<vmem>>, vector<1x4x288xf32>
    %477 = vector.shape_cast %476 : vector<1x4x288xf32> to vector<4x288xf32>
    %c8_478 = arith.constant 8 : index
    %c0_479 = arith.constant 0 : index
    %478 = vector.load %arg12[%c8_478, %c0_479] : memref<36x288xf32, #tpu.memory_space<vmem>>, vector<4x288xf32>
    tpu.vector_store %arg12[%c8_478, %c0_479], %477 {strides = array<i32>} : memref<36x288xf32, #tpu.memory_space<vmem>>, vector<4x288xf32>,
    %c0_480 = arith.constant 0 : index
    %c0_481 = arith.constant 0 : index
    %c129_482 = arith.constant 129 : index
    %479 = vector.load %arg1[%c0_480, %c0_481, %c129_482] : memref<2x4x512xf32, #tpu.memory_space<vmem>>, vector<1x4x288xf32>
    %480 = vector.shape_cast %479 : vector<1x4x288xf32> to vector<4x288xf32>
    %c12_483 = arith.constant 12 : index
    %c0_484 = arith.constant 0 : index
    %481 = vector.load %arg12[%c12_483, %c0_484] : memref<36x288xf32, #tpu.memory_space<vmem>>, vector<4x288xf32>
    tpu.vector_store %arg12[%c12_483, %c0_484], %480 {strides = array<i32>} : memref<36x288xf32, #tpu.memory_space<vmem>>, vector<4x288xf32>,
    %c0_485 = arith.constant 0 : index
    %c0_486 = arith.constant 0 : index
    %482 = vector.load %arg12[%c0_485, %c0_486] : memref<36x288xf32, #tpu.memory_space<vmem>>, vector<16x288xf32>
    %cst_487 = arith.constant dense<0.000000e+00> : vector<8x288xf32>
    %483 = tpu.matmul %469, %482, %cst_487 {dimension_numbers = #tpu.dot_dimension_numbers<[1], [0], [0], [1], [0, 0, 1, 1], [], []>} : vector<8x16xf32>, vector<16x288xf32>, vector<8x288xf32> -> vector<8x288xf32>
    %c0_488 = arith.constant 0 : index
    %c0_489 = arith.constant 0 : index
    %484 = vector.load %arg10[%c0_488, %c0_489] : memref<8x1xf32, #tpu.memory_space<vmem>>, vector<8x1xf32>
    %485 = vector.broadcast %484 : vector<8x1xf32> to vector<8x288xf32>
    %486 = arith.addf %483, %485 : vector<8x288xf32>
    %c0_490 = arith.constant 0 : index
    %c1_491 = arith.constant 1 : index
    %c0_492 = arith.constant 0 : index
    %c0_493 = arith.constant 0 : index
    %487 = vector.load %arg15[%c0_490, %c1_491, %c0_492, %c0_493] : memref<2x4x8x288xf32, #tpu.memory_space<vmem>>, vector<1x1x8x288xf32>
    %488 = vector.shape_cast %487 : vector<1x1x8x288xf32> to vector<8x288xf32>
    %489 = vector.broadcast %342 : vector<8x1xf32> to vector<8x288xf32>
    %490 = arith.subf %488, %489 : vector<8x288xf32>
    %491 = vector.broadcast %430 : vector<8x1xf32> to vector<8x288xf32>
    %492 = arith.mulf %490, %491 : vector<8x288xf32>
    %c0_494 = arith.constant 0 : index
    %c0_495 = arith.constant 0 : index
    %493 = vector.load %arg9[%c0_494, %c0_495] : memref<8x1xf32, #tpu.memory_space<vmem>>, vector<8x1xf32>
    %494 = vector.broadcast %493 : vector<8x1xf32> to vector<8x288xf32>
    %495 = arith.addf %492, %494 : vector<8x288xf32>
    %496 = arith.addf %495, %486 : vector<8x288xf32>
    %cst_496 = arith.constant 0.000000e+00 : f32
    %497 = vector.broadcast %cst_496 : f32 to vector<8x288xf32>
    %498 = arith.cmpf oge, %496, %497 : vector<8x288xf32>
    %cst_497 = arith.constant 0.229166672 : f32
    %499 = vector.broadcast %cst_497 : f32 to vector<8x288xf32>
    %500 = arith.mulf %496, %499 : vector<8x288xf32>
    %501 = arith.select %498, %496, %500 : vector<8x288xi1>, vector<8x288xf32>
    %c0_498 = arith.constant 0 : index
    %c1_499 = arith.constant 1 : index
    %c0_500 = arith.constant 0 : index
    %c0_501 = arith.constant 0 : index
    %502 = vector.load %arg11[%c0_498, %c1_499, %c0_500, %c0_501] : memref<2x4x8x288xf32, #tpu.memory_space<vmem>>, vector<1x1x8x288xf32>
    %503 = vector.shape_cast %502 : vector<1x1x8x288xf32> to vector<8x288xf32>
    %504 = vector.shape_cast %501 : vector<8x288xf32> to vector<1x1x8x288xf32>
    tpu.vector_store %arg11[%c0_498, %c1_499, %c0_500, %c0_501], %504 {strides = array<i32>} : memref<2x4x8x288xf32, #tpu.memory_space<vmem>>, vector<1x1x8x288xf32>,
    %c2_502 = arith.constant 2 : index
    %c0_503 = arith.constant 0 : index
    %c0_504 = arith.constant 0 : index
    %505 = vector.load %arg5[%c2_502, %c0_503, %c0_504] : memref<4x8x16xf32, #tpu.memory_space<vmem>>, vector<1x8x16xf32>
    %506 = vector.shape_cast %505 : vector<1x8x16xf32> to vector<8x16xf32>
    %c0_505 = arith.constant 0 : index
    %c0_506 = arith.constant 0 : index
    %c127_507 = arith.constant 127 : index
    %507 = vector.load %arg1[%c0_505, %c0_506, %c127_507] : memref<2x4x512xf32, #tpu.memory_space<vmem>>, vector<1x4x288xf32>
    %508 = vector.shape_cast %507 : vector<1x4x288xf32> to vector<4x288xf32>
    %c0_508 = arith.constant 0 : index
    %c0_509 = arith.constant 0 : index
    %509 = vector.load %arg12[%c0_508, %c0_509] : memref<36x288xf32, #tpu.memory_space<vmem>>, vector<4x288xf32>
    tpu.vector_store %arg12[%c0_508, %c0_509], %508 {strides = array<i32>} : memref<36x288xf32, #tpu.memory_space<vmem>>, vector<4x288xf32>,
    %c0_510 = arith.constant 0 : index
    %c0_511 = arith.constant 0 : index
    %c128_512 = arith.constant 128 : index
    %510 = vector.load %arg1[%c0_510, %c0_511, %c128_512] : memref<2x4x512xf32, #tpu.memory_space<vmem>>, vector<1x4x288xf32>
    %511 = vector.shape_cast %510 : vector<1x4x288xf32> to vector<4x288xf32>
    %c4_513 = arith.constant 4 : index
    %c0_514 = arith.constant 0 : index
    %512 = vector.load %arg12[%c4_513, %c0_514] : memref<36x288xf32, #tpu.memory_space<vmem>>, vector<4x288xf32>
    tpu.vector_store %arg12[%c4_513, %c0_514], %511 {strides = array<i32>} : memref<36x288xf32, #tpu.memory_space<vmem>>, vector<4x288xf32>,
    %c0_515 = arith.constant 0 : index
    %c0_516 = arith.constant 0 : index
    %c145_517 = arith.constant 145 : index
    %513 = vector.load %arg1[%c0_515, %c0_516, %c145_517] : memref<2x4x512xf32, #tpu.memory_space<vmem>>, vector<1x4x288xf32>
    %514 = vector.shape_cast %513 : vector<1x4x288xf32> to vector<4x288xf32>
    %c8_518 = arith.constant 8 : index
    %c0_519 = arith.constant 0 : index
    %515 = vector.load %arg12[%c8_518, %c0_519] : memref<36x288xf32, #tpu.memory_space<vmem>>, vector<4x288xf32>
    tpu.vector_store %arg12[%c8_518, %c0_519], %514 {strides = array<i32>} : memref<36x288xf32, #tpu.memory_space<vmem>>, vector<4x288xf32>,
    %c0_520 = arith.constant 0 : index
    %c0_521 = arith.constant 0 : index
    %c146_522 = arith.constant 146 : index
    %516 = vector.load %arg1[%c0_520, %c0_521, %c146_522] : memref<2x4x512xf32, #tpu.memory_space<vmem>>, vector<1x4x288xf32>
    %517 = vector.shape_cast %516 : vector<1x4x288xf32> to vector<4x288xf32>
    %c12_523 = arith.constant 12 : index
    %c0_524 = arith.constant 0 : index
    %518 = vector.load %arg12[%c12_523, %c0_524] : memref<36x288xf32, #tpu.memory_space<vmem>>, vector<4x288xf32>
    tpu.vector_store %arg12[%c12_523, %c0_524], %517 {strides = array<i32>} : memref<36x288xf32, #tpu.memory_space<vmem>>, vector<4x288xf32>,
    %c0_525 = arith.constant 0 : index
    %c0_526 = arith.constant 0 : index
    %519 = vector.load %arg12[%c0_525, %c0_526] : memref<36x288xf32, #tpu.memory_space<vmem>>, vector<16x288xf32>
    %cst_527 = arith.constant dense<0.000000e+00> : vector<8x288xf32>
    %520 = tpu.matmul %506, %519, %cst_527 {dimension_numbers = #tpu.dot_dimension_numbers<[1], [0], [0], [1], [0, 0, 1, 1], [], []>} : vector<8x16xf32>, vector<16x288xf32>, vector<8x288xf32> -> vector<8x288xf32>
    %c0_528 = arith.constant 0 : index
    %c0_529 = arith.constant 0 : index
    %521 = vector.load %arg10[%c0_528, %c0_529] : memref<8x1xf32, #tpu.memory_space<vmem>>, vector<8x1xf32>
    %522 = vector.broadcast %521 : vector<8x1xf32> to vector<8x288xf32>
    %523 = arith.addf %520, %522 : vector<8x288xf32>
    %c0_530 = arith.constant 0 : index
    %c2_531 = arith.constant 2 : index
    %c0_532 = arith.constant 0 : index
    %c0_533 = arith.constant 0 : index
    %524 = vector.load %arg15[%c0_530, %c2_531, %c0_532, %c0_533] : memref<2x4x8x288xf32, #tpu.memory_space<vmem>>, vector<1x1x8x288xf32>
    %525 = vector.shape_cast %524 : vector<1x1x8x288xf32> to vector<8x288xf32>
    %526 = vector.broadcast %342 : vector<8x1xf32> to vector<8x288xf32>
    %527 = arith.subf %525, %526 : vector<8x288xf32>
    %528 = vector.broadcast %430 : vector<8x1xf32> to vector<8x288xf32>
    %529 = arith.mulf %527, %528 : vector<8x288xf32>
    %c0_534 = arith.constant 0 : index
    %c0_535 = arith.constant 0 : index
    %530 = vector.load %arg9[%c0_534, %c0_535] : memref<8x1xf32, #tpu.memory_space<vmem>>, vector<8x1xf32>
    %531 = vector.broadcast %530 : vector<8x1xf32> to vector<8x288xf32>
    %532 = arith.addf %529, %531 : vector<8x288xf32>
    %533 = arith.addf %532, %523 : vector<8x288xf32>
    %cst_536 = arith.constant 0.000000e+00 : f32
    %534 = vector.broadcast %cst_536 : f32 to vector<8x288xf32>
    %535 = arith.cmpf oge, %533, %534 : vector<8x288xf32>
    %cst_537 = arith.constant 0.229166672 : f32
    %536 = vector.broadcast %cst_537 : f32 to vector<8x288xf32>
    %537 = arith.mulf %533, %536 : vector<8x288xf32>
    %538 = arith.select %535, %533, %537 : vector<8x288xi1>, vector<8x288xf32>
    %c0_538 = arith.constant 0 : index
    %c2_539 = arith.constant 2 : index
    %c0_540 = arith.constant 0 : index
    %c0_541 = arith.constant 0 : index
    %539 = vector.load %arg11[%c0_538, %c2_539, %c0_540, %c0_541] : memref<2x4x8x288xf32, #tpu.memory_space<vmem>>, vector<1x1x8x288xf32>
    %540 = vector.shape_cast %539 : vector<1x1x8x288xf32> to vector<8x288xf32>
    %541 = vector.shape_cast %538 : vector<8x288xf32> to vector<1x1x8x288xf32>
    tpu.vector_store %arg11[%c0_538, %c2_539, %c0_540, %c0_541], %541 {strides = array<i32>} : memref<2x4x8x288xf32, #tpu.memory_space<vmem>>, vector<1x1x8x288xf32>,
    %c3_542 = arith.constant 3 : index
    %c0_543 = arith.constant 0 : index
    %c0_544 = arith.constant 0 : index
    %542 = vector.load %arg5[%c3_542, %c0_543, %c0_544] : memref<4x8x16xf32, #tpu.memory_space<vmem>>, vector<1x8x16xf32>
    %543 = vector.shape_cast %542 : vector<1x8x16xf32> to vector<8x16xf32>
    %c0_545 = arith.constant 0 : index
    %c0_546 = arith.constant 0 : index
    %c128_547 = arith.constant 128 : index
    %544 = vector.load %arg1[%c0_545, %c0_546, %c128_547] : memref<2x4x512xf32, #tpu.memory_space<vmem>>, vector<1x4x288xf32>
    %545 = vector.shape_cast %544 : vector<1x4x288xf32> to vector<4x288xf32>
    %c0_548 = arith.constant 0 : index
    %c0_549 = arith.constant 0 : index
    %546 = vector.load %arg12[%c0_548, %c0_549] : memref<36x288xf32, #tpu.memory_space<vmem>>, vector<4x288xf32>
    tpu.vector_store %arg12[%c0_548, %c0_549], %545 {strides = array<i32>} : memref<36x288xf32, #tpu.memory_space<vmem>>, vector<4x288xf32>,
    %c0_550 = arith.constant 0 : index
    %c0_551 = arith.constant 0 : index
    %c129_552 = arith.constant 129 : index
    %547 = vector.load %arg1[%c0_550, %c0_551, %c129_552] : memref<2x4x512xf32, #tpu.memory_space<vmem>>, vector<1x4x288xf32>
    %548 = vector.shape_cast %547 : vector<1x4x288xf32> to vector<4x288xf32>
    %c4_553 = arith.constant 4 : index
    %c0_554 = arith.constant 0 : index
    %549 = vector.load %arg12[%c4_553, %c0_554] : memref<36x288xf32, #tpu.memory_space<vmem>>, vector<4x288xf32>
    tpu.vector_store %arg12[%c4_553, %c0_554], %548 {strides = array<i32>} : memref<36x288xf32, #tpu.memory_space<vmem>>, vector<4x288xf32>,
    %c0_555 = arith.constant 0 : index
    %c0_556 = arith.constant 0 : index
    %c146_557 = arith.constant 146 : index
    %550 = vector.load %arg1[%c0_555, %c0_556, %c146_557] : memref<2x4x512xf32, #tpu.memory_space<vmem>>, vector<1x4x288xf32>
    %551 = vector.shape_cast %550 : vector<1x4x288xf32> to vector<4x288xf32>
    %c8_558 = arith.constant 8 : index
    %c0_559 = arith.constant 0 : index
    %552 = vector.load %arg12[%c8_558, %c0_559] : memref<36x288xf32, #tpu.memory_space<vmem>>, vector<4x288xf32>
    tpu.vector_store %arg12[%c8_558, %c0_559], %551 {strides = array<i32>} : memref<36x288xf32, #tpu.memory_space<vmem>>, vector<4x288xf32>,
    %c0_560 = arith.constant 0 : index
    %c0_561 = arith.constant 0 : index
    %c147_562 = arith.constant 147 : index
    %553 = vector.load %arg1[%c0_560, %c0_561, %c147_562] : memref<2x4x512xf32, #tpu.memory_space<vmem>>, vector<1x4x288xf32>
    %554 = vector.shape_cast %553 : vector<1x4x288xf32> to vector<4x288xf32>
    %c12_563 = arith.constant 12 : index
    %c0_564 = arith.constant 0 : index
    %555 = vector.load %arg12[%c12_563, %c0_564] : memref<36x288xf32, #tpu.memory_space<vmem>>, vector<4x288xf32>
    tpu.vector_store %arg12[%c12_563, %c0_564], %554 {strides = array<i32>} : memref<36x288xf32, #tpu.memory_space<vmem>>, vector<4x288xf32>,
    %c0_565 = arith.constant 0 : index
    %c0_566 = arith.constant 0 : index
    %556 = vector.load %arg12[%c0_565, %c0_566] : memref<36x288xf32, #tpu.memory_space<vmem>>, vector<16x288xf32>
    %cst_567 = arith.constant dense<0.000000e+00> : vector<8x288xf32>
    %557 = tpu.matmul %543, %556, %cst_567 {dimension_numbers = #tpu.dot_dimension_numbers<[1], [0], [0], [1], [0, 0, 1, 1], [], []>} : vector<8x16xf32>, vector<16x288xf32>, vector<8x288xf32> -> vector<8x288xf32>
    %c0_568 = arith.constant 0 : index
    %c0_569 = arith.constant 0 : index
    %558 = vector.load %arg10[%c0_568, %c0_569] : memref<8x1xf32, #tpu.memory_space<vmem>>, vector<8x1xf32>
    %559 = vector.broadcast %558 : vector<8x1xf32> to vector<8x288xf32>
    %560 = arith.addf %557, %559 : vector<8x288xf32>
    %c0_570 = arith.constant 0 : index
    %c3_571 = arith.constant 3 : index
    %c0_572 = arith.constant 0 : index
    %c0_573 = arith.constant 0 : index
    %561 = vector.load %arg15[%c0_570, %c3_571, %c0_572, %c0_573] : memref<2x4x8x288xf32, #tpu.memory_space<vmem>>, vector<1x1x8x288xf32>
    %562 = vector.shape_cast %561 : vector<1x1x8x288xf32> to vector<8x288xf32>
    %563 = vector.broadcast %342 : vector<8x1xf32> to vector<8x288xf32>
    %564 = arith.subf %562, %563 : vector<8x288xf32>
    %565 = vector.broadcast %430 : vector<8x1xf32> to vector<8x288xf32>
    %566 = arith.mulf %564, %565 : vector<8x288xf32>
    %c0_574 = arith.constant 0 : index
    %c0_575 = arith.constant 0 : index
    %567 = vector.load %arg9[%c0_574, %c0_575] : memref<8x1xf32, #tpu.memory_space<vmem>>, vector<8x1xf32>
    %568 = vector.broadcast %567 : vector<8x1xf32> to vector<8x288xf32>
    %569 = arith.addf %566, %568 : vector<8x288xf32>
    %570 = arith.addf %569, %560 : vector<8x288xf32>
    %cst_576 = arith.constant 0.000000e+00 : f32
    %571 = vector.broadcast %cst_576 : f32 to vector<8x288xf32>
    %572 = arith.cmpf oge, %570, %571 : vector<8x288xf32>
    %cst_577 = arith.constant 0.229166672 : f32
    %573 = vector.broadcast %cst_577 : f32 to vector<8x288xf32>
    %574 = arith.mulf %570, %573 : vector<8x288xf32>
    %575 = arith.select %572, %570, %574 : vector<8x288xi1>, vector<8x288xf32>
    %c0_578 = arith.constant 0 : index
    %c3_579 = arith.constant 3 : index
    %c0_580 = arith.constant 0 : index
    %c0_581 = arith.constant 0 : index
    %576 = vector.load %arg11[%c0_578, %c3_579, %c0_580, %c0_581] : memref<2x4x8x288xf32, #tpu.memory_space<vmem>>, vector<1x1x8x288xf32>
    %577 = vector.shape_cast %576 : vector<1x1x8x288xf32> to vector<8x288xf32>
    %578 = vector.shape_cast %575 : vector<8x288xf32> to vector<1x1x8x288xf32>
    tpu.vector_store %arg11[%c0_578, %c3_579, %c0_580, %c0_581], %578 {strides = array<i32>} : memref<2x4x8x288xf32, #tpu.memory_space<vmem>>, vector<1x1x8x288xf32>,
    %c0_582 = arith.constant 0 : index
    %c0_583 = arith.constant 0 : index
    %c0_584 = arith.constant 0 : index
    %579 = vector.load %arg5[%c0_582, %c0_583, %c0_584] : memref<4x8x16xf32, #tpu.memory_space<vmem>>, vector<1x8x16xf32>
    %580 = vector.shape_cast %579 : vector<1x8x16xf32> to vector<8x16xf32>
    %c1_585 = arith.constant 1 : index
    %c0_586 = arith.constant 0 : index
    %c109_587 = arith.constant 109 : index
    %581 = vector.load %arg1[%c1_585, %c0_586, %c109_587] : memref<2x4x512xf32, #tpu.memory_space<vmem>>, vector<1x4x288xf32>
    %582 = vector.shape_cast %581 : vector<1x4x288xf32> to vector<4x288xf32>
    %c0_588 = arith.constant 0 : index
    %c0_589 = arith.constant 0 : index
    %583 = vector.load %arg12[%c0_588, %c0_589] : memref<36x288xf32, #tpu.memory_space<vmem>>, vector<4x288xf32>
    tpu.vector_store %arg12[%c0_588, %c0_589], %582 {strides = array<i32>} : memref<36x288xf32, #tpu.memory_space<vmem>>, vector<4x288xf32>,
    %c1_590 = arith.constant 1 : index
    %c0_591 = arith.constant 0 : index
    %c110_592 = arith.constant 110 : index
    %584 = vector.load %arg1[%c1_590, %c0_591, %c110_592] : memref<2x4x512xf32, #tpu.memory_space<vmem>>, vector<1x4x288xf32>
    %585 = vector.shape_cast %584 : vector<1x4x288xf32> to vector<4x288xf32>
    %c4_593 = arith.constant 4 : index
    %c0_594 = arith.constant 0 : index
    %586 = vector.load %arg12[%c4_593, %c0_594] : memref<36x288xf32, #tpu.memory_space<vmem>>, vector<4x288xf32>
    tpu.vector_store %arg12[%c4_593, %c0_594], %585 {strides = array<i32>} : memref<36x288xf32, #tpu.memory_space<vmem>>, vector<4x288xf32>,
    %c1_595 = arith.constant 1 : index
    %c0_596 = arith.constant 0 : index
    %c127_597 = arith.constant 127 : index
    %587 = vector.load %arg1[%c1_595, %c0_596, %c127_597] : memref<2x4x512xf32, #tpu.memory_space<vmem>>, vector<1x4x288xf32>
    %588 = vector.shape_cast %587 : vector<1x4x288xf32> to vector<4x288xf32>
    %c8_598 = arith.constant 8 : index
    %c0_599 = arith.constant 0 : index
    %589 = vector.load %arg12[%c8_598, %c0_599] : memref<36x288xf32, #tpu.memory_space<vmem>>, vector<4x288xf32>
    tpu.vector_store %arg12[%c8_598, %c0_599], %588 {strides = array<i32>} : memref<36x288xf32, #tpu.memory_space<vmem>>, vector<4x288xf32>,
    %c1_600 = arith.constant 1 : index
    %c0_601 = arith.constant 0 : index
    %c128_602 = arith.constant 128 : index
    %590 = vector.load %arg1[%c1_600, %c0_601, %c128_602] : memref<2x4x512xf32, #tpu.memory_space<vmem>>, vector<1x4x288xf32>
    %591 = vector.shape_cast %590 : vector<1x4x288xf32> to vector<4x288xf32>
    %c12_603 = arith.constant 12 : index
    %c0_604 = arith.constant 0 : index
    %592 = vector.load %arg12[%c12_603, %c0_604] : memref<36x288xf32, #tpu.memory_space<vmem>>, vector<4x288xf32>
    tpu.vector_store %arg12[%c12_603, %c0_604], %591 {strides = array<i32>} : memref<36x288xf32, #tpu.memory_space<vmem>>, vector<4x288xf32>,
    %c0_605 = arith.constant 0 : index
    %c0_606 = arith.constant 0 : index
    %593 = vector.load %arg12[%c0_605, %c0_606] : memref<36x288xf32, #tpu.memory_space<vmem>>, vector<16x288xf32>
    %cst_607 = arith.constant dense<0.000000e+00> : vector<8x288xf32>
    %594 = tpu.matmul %580, %593, %cst_607 {dimension_numbers = #tpu.dot_dimension_numbers<[1], [0], [0], [1], [0, 0, 1, 1], [], []>} : vector<8x16xf32>, vector<16x288xf32>, vector<8x288xf32> -> vector<8x288xf32>
    %c0_608 = arith.constant 0 : index
    %c0_609 = arith.constant 0 : index
    %595 = vector.load %arg10[%c0_608, %c0_609] : memref<8x1xf32, #tpu.memory_space<vmem>>, vector<8x1xf32>
    %596 = vector.broadcast %595 : vector<8x1xf32> to vector<8x288xf32>
    %597 = arith.addf %594, %596 : vector<8x288xf32>
    %c1_610 = arith.constant 1 : index
    %c0_611 = arith.constant 0 : index
    %c0_612 = arith.constant 0 : index
    %c0_613 = arith.constant 0 : index
    %598 = vector.load %arg15[%c1_610, %c0_611, %c0_612, %c0_613] : memref<2x4x8x288xf32, #tpu.memory_space<vmem>>, vector<1x1x8x288xf32>
    %599 = vector.shape_cast %598 : vector<1x1x8x288xf32> to vector<8x288xf32>
    %600 = vector.broadcast %342 : vector<8x1xf32> to vector<8x288xf32>
    %601 = arith.subf %599, %600 : vector<8x288xf32>
    %602 = vector.broadcast %430 : vector<8x1xf32> to vector<8x288xf32>
    %603 = arith.mulf %601, %602 : vector<8x288xf32>
    %c0_614 = arith.constant 0 : index
    %c0_615 = arith.constant 0 : index
    %604 = vector.load %arg9[%c0_614, %c0_615] : memref<8x1xf32, #tpu.memory_space<vmem>>, vector<8x1xf32>
    %605 = vector.broadcast %604 : vector<8x1xf32> to vector<8x288xf32>
    %606 = arith.addf %603, %605 : vector<8x288xf32>
    %607 = arith.addf %606, %597 : vector<8x288xf32>
    %cst_616 = arith.constant 0.000000e+00 : f32
    %608 = vector.broadcast %cst_616 : f32 to vector<8x288xf32>
    %609 = arith.cmpf oge, %607, %608 : vector<8x288xf32>
    %cst_617 = arith.constant 0.229166672 : f32
    %610 = vector.broadcast %cst_617 : f32 to vector<8x288xf32>
    %611 = arith.mulf %607, %610 : vector<8x288xf32>
    %612 = arith.select %609, %607, %611 : vector<8x288xi1>, vector<8x288xf32>
    %c1_618 = arith.constant 1 : index
    %c0_619 = arith.constant 0 : index
    %c0_620 = arith.constant 0 : index
    %c0_621 = arith.constant 0 : index
    %613 = vector.load %arg11[%c1_618, %c0_619, %c0_620, %c0_621] : memref<2x4x8x288xf32, #tpu.memory_space<vmem>>, vector<1x1x8x288xf32>
    %614 = vector.shape_cast %613 : vector<1x1x8x288xf32> to vector<8x288xf32>
    %615 = vector.shape_cast %612 : vector<8x288xf32> to vector<1x1x8x288xf32>
    tpu.vector_store %arg11[%c1_618, %c0_619, %c0_620, %c0_621], %615 {strides = array<i32>} : memref<2x4x8x288xf32, #tpu.memory_space<vmem>>, vector<1x1x8x288xf32>,
    %c1_622 = arith.constant 1 : index
    %c0_623 = arith.constant 0 : index
    %c0_624 = arith.constant 0 : index
    %616 = vector.load %arg5[%c1_622, %c0_623, %c0_624] : memref<4x8x16xf32, #tpu.memory_space<vmem>>, vector<1x8x16xf32>
    %617 = vector.shape_cast %616 : vector<1x8x16xf32> to vector<8x16xf32>
    %c1_625 = arith.constant 1 : index
    %c0_626 = arith.constant 0 : index
    %c110_627 = arith.constant 110 : index
    %618 = vector.load %arg1[%c1_625, %c0_626, %c110_627] : memref<2x4x512xf32, #tpu.memory_space<vmem>>, vector<1x4x288xf32>
    %619 = vector.shape_cast %618 : vector<1x4x288xf32> to vector<4x288xf32>
    %c0_628 = arith.constant 0 : index
    %c0_629 = arith.constant 0 : index
    %620 = vector.load %arg12[%c0_628, %c0_629] : memref<36x288xf32, #tpu.memory_space<vmem>>, vector<4x288xf32>
    tpu.vector_store %arg12[%c0_628, %c0_629], %619 {strides = array<i32>} : memref<36x288xf32, #tpu.memory_space<vmem>>, vector<4x288xf32>,
    %c1_630 = arith.constant 1 : index
    %c0_631 = arith.constant 0 : index
    %c111_632 = arith.constant 111 : index
    %621 = vector.load %arg1[%c1_630, %c0_631, %c111_632] : memref<2x4x512xf32, #tpu.memory_space<vmem>>, vector<1x4x288xf32>
    %622 = vector.shape_cast %621 : vector<1x4x288xf32> to vector<4x288xf32>
    %c4_633 = arith.constant 4 : index
    %c0_634 = arith.constant 0 : index
    %623 = vector.load %arg12[%c4_633, %c0_634] : memref<36x288xf32, #tpu.memory_space<vmem>>, vector<4x288xf32>
    tpu.vector_store %arg12[%c4_633, %c0_634], %622 {strides = array<i32>} : memref<36x288xf32, #tpu.memory_space<vmem>>, vector<4x288xf32>,
    %c1_635 = arith.constant 1 : index
    %c0_636 = arith.constant 0 : index
    %c128_637 = arith.constant 128 : index
    %624 = vector.load %arg1[%c1_635, %c0_636, %c128_637] : memref<2x4x512xf32, #tpu.memory_space<vmem>>, vector<1x4x288xf32>
    %625 = vector.shape_cast %624 : vector<1x4x288xf32> to vector<4x288xf32>
    %c8_638 = arith.constant 8 : index
    %c0_639 = arith.constant 0 : index
    %626 = vector.load %arg12[%c8_638, %c0_639] : memref<36x288xf32, #tpu.memory_space<vmem>>, vector<4x288xf32>
    tpu.vector_store %arg12[%c8_638, %c0_639], %625 {strides = array<i32>} : memref<36x288xf32, #tpu.memory_space<vmem>>, vector<4x288xf32>,
    %c1_640 = arith.constant 1 : index
    %c0_641 = arith.constant 0 : index
    %c129_642 = arith.constant 129 : index
    %627 = vector.load %arg1[%c1_640, %c0_641, %c129_642] : memref<2x4x512xf32, #tpu.memory_space<vmem>>, vector<1x4x288xf32>
    %628 = vector.shape_cast %627 : vector<1x4x288xf32> to vector<4x288xf32>
    %c12_643 = arith.constant 12 : index
    %c0_644 = arith.constant 0 : index
    %629 = vector.load %arg12[%c12_643, %c0_644] : memref<36x288xf32, #tpu.memory_space<vmem>>, vector<4x288xf32>
    tpu.vector_store %arg12[%c12_643, %c0_644], %628 {strides = array<i32>} : memref<36x288xf32, #tpu.memory_space<vmem>>, vector<4x288xf32>,
    %c0_645 = arith.constant 0 : index
    %c0_646 = arith.constant 0 : index
    %630 = vector.load %arg12[%c0_645, %c0_646] : memref<36x288xf32, #tpu.memory_space<vmem>>, vector<16x288xf32>
    %cst_647 = arith.constant dense<0.000000e+00> : vector<8x288xf32>
    %631 = tpu.matmul %617, %630, %cst_647 {dimension_numbers = #tpu.dot_dimension_numbers<[1], [0], [0], [1], [0, 0, 1, 1], [], []>} : vector<8x16xf32>, vector<16x288xf32>, vector<8x288xf32> -> vector<8x288xf32>
    %c0_648 = arith.constant 0 : index
    %c0_649 = arith.constant 0 : index
    %632 = vector.load %arg10[%c0_648, %c0_649] : memref<8x1xf32, #tpu.memory_space<vmem>>, vector<8x1xf32>
    %633 = vector.broadcast %632 : vector<8x1xf32> to vector<8x288xf32>
    %634 = arith.addf %631, %633 : vector<8x288xf32>
    %c1_650 = arith.constant 1 : index
    %c1_651 = arith.constant 1 : index
    %c0_652 = arith.constant 0 : index
    %c0_653 = arith.constant 0 : index
    %635 = vector.load %arg15[%c1_650, %c1_651, %c0_652, %c0_653] : memref<2x4x8x288xf32, #tpu.memory_space<vmem>>, vector<1x1x8x288xf32>
    %636 = vector.shape_cast %635 : vector<1x1x8x288xf32> to vector<8x288xf32>
    %637 = vector.broadcast %342 : vector<8x1xf32> to vector<8x288xf32>
    %638 = arith.subf %636, %637 : vector<8x288xf32>
    %639 = vector.broadcast %430 : vector<8x1xf32> to vector<8x288xf32>
    %640 = arith.mulf %638, %639 : vector<8x288xf32>
    %c0_654 = arith.constant 0 : index
    %c0_655 = arith.constant 0 : index
    %641 = vector.load %arg9[%c0_654, %c0_655] : memref<8x1xf32, #tpu.memory_space<vmem>>, vector<8x1xf32>
    %642 = vector.broadcast %641 : vector<8x1xf32> to vector<8x288xf32>
    %643 = arith.addf %640, %642 : vector<8x288xf32>
    %644 = arith.addf %643, %634 : vector<8x288xf32>
    %cst_656 = arith.constant 0.000000e+00 : f32
    %645 = vector.broadcast %cst_656 : f32 to vector<8x288xf32>
    %646 = arith.cmpf oge, %644, %645 : vector<8x288xf32>
    %cst_657 = arith.constant 0.229166672 : f32
    %647 = vector.broadcast %cst_657 : f32 to vector<8x288xf32>
    %648 = arith.mulf %644, %647 : vector<8x288xf32>
    %649 = arith.select %646, %644, %648 : vector<8x288xi1>, vector<8x288xf32>
    %c1_658 = arith.constant 1 : index
    %c1_659 = arith.constant 1 : index
    %c0_660 = arith.constant 0 : index
    %c0_661 = arith.constant 0 : index
    %650 = vector.load %arg11[%c1_658, %c1_659, %c0_660, %c0_661] : memref<2x4x8x288xf32, #tpu.memory_space<vmem>>, vector<1x1x8x288xf32>
    %651 = vector.shape_cast %650 : vector<1x1x8x288xf32> to vector<8x288xf32>
    %652 = vector.shape_cast %649 : vector<8x288xf32> to vector<1x1x8x288xf32>
    tpu.vector_store %arg11[%c1_658, %c1_659, %c0_660, %c0_661], %652 {strides = array<i32>} : memref<2x4x8x288xf32, #tpu.memory_space<vmem>>, vector<1x1x8x288xf32>,
    %c2_662 = arith.constant 2 : index
    %c0_663 = arith.constant 0 : index
    %c0_664 = arith.constant 0 : index
    %653 = vector.load %arg5[%c2_662, %c0_663, %c0_664] : memref<4x8x16xf32, #tpu.memory_space<vmem>>, vector<1x8x16xf32>
    %654 = vector.shape_cast %653 : vector<1x8x16xf32> to vector<8x16xf32>
    %c1_665 = arith.constant 1 : index
    %c0_666 = arith.constant 0 : index
    %c127_667 = arith.constant 127 : index
    %655 = vector.load %arg1[%c1_665, %c0_666, %c127_667] : memref<2x4x512xf32, #tpu.memory_space<vmem>>, vector<1x4x288xf32>
    %656 = vector.shape_cast %655 : vector<1x4x288xf32> to vector<4x288xf32>
    %c0_668 = arith.constant 0 : index
    %c0_669 = arith.constant 0 : index
    %657 = vector.load %arg12[%c0_668, %c0_669] : memref<36x288xf32, #tpu.memory_space<vmem>>, vector<4x288xf32>
    tpu.vector_store %arg12[%c0_668, %c0_669], %656 {strides = array<i32>} : memref<36x288xf32, #tpu.memory_space<vmem>>, vector<4x288xf32>,
    %c1_670 = arith.constant 1 : index
    %c0_671 = arith.constant 0 : index
    %c128_672 = arith.constant 128 : index
    %658 = vector.load %arg1[%c1_670, %c0_671, %c128_672] : memref<2x4x512xf32, #tpu.memory_space<vmem>>, vector<1x4x288xf32>
    %659 = vector.shape_cast %658 : vector<1x4x288xf32> to vector<4x288xf32>
    %c4_673 = arith.constant 4 : index
    %c0_674 = arith.constant 0 : index
    %660 = vector.load %arg12[%c4_673, %c0_674] : memref<36x288xf32, #tpu.memory_space<vmem>>, vector<4x288xf32>
    tpu.vector_store %arg12[%c4_673, %c0_674], %659 {strides = array<i32>} : memref<36x288xf32, #tpu.memory_space<vmem>>, vector<4x288xf32>,
    %c1_675 = arith.constant 1 : index
    %c0_676 = arith.constant 0 : index
    %c145_677 = arith.constant 145 : index
    %661 = vector.load %arg1[%c1_675, %c0_676, %c145_677] : memref<2x4x512xf32, #tpu.memory_space<vmem>>, vector<1x4x288xf32>
    %662 = vector.shape_cast %661 : vector<1x4x288xf32> to vector<4x288xf32>
    %c8_678 = arith.constant 8 : index
    %c0_679 = arith.constant 0 : index
    %663 = vector.load %arg12[%c8_678, %c0_679] : memref<36x288xf32, #tpu.memory_space<vmem>>, vector<4x288xf32>
    tpu.vector_store %arg12[%c8_678, %c0_679], %662 {strides = array<i32>} : memref<36x288xf32, #tpu.memory_space<vmem>>, vector<4x288xf32>,
    %c1_680 = arith.constant 1 : index
    %c0_681 = arith.constant 0 : index
    %c146_682 = arith.constant 146 : index
    %664 = vector.load %arg1[%c1_680, %c0_681, %c146_682] : memref<2x4x512xf32, #tpu.memory_space<vmem>>, vector<1x4x288xf32>
    %665 = vector.shape_cast %664 : vector<1x4x288xf32> to vector<4x288xf32>
    %c12_683 = arith.constant 12 : index
    %c0_684 = arith.constant 0 : index
    %666 = vector.load %arg12[%c12_683, %c0_684] : memref<36x288xf32, #tpu.memory_space<vmem>>, vector<4x288xf32>
    tpu.vector_store %arg12[%c12_683, %c0_684], %665 {strides = array<i32>} : memref<36x288xf32, #tpu.memory_space<vmem>>, vector<4x288xf32>,
    %c0_685 = arith.constant 0 : index
    %c0_686 = arith.constant 0 : index
    %667 = vector.load %arg12[%c0_685, %c0_686] : memref<36x288xf32, #tpu.memory_space<vmem>>, vector<16x288xf32>
    %cst_687 = arith.constant dense<0.000000e+00> : vector<8x288xf32>
    %668 = tpu.matmul %654, %667, %cst_687 {dimension_numbers = #tpu.dot_dimension_numbers<[1], [0], [0], [1], [0, 0, 1, 1], [], []>} : vector<8x16xf32>, vector<16x288xf32>, vector<8x288xf32> -> vector<8x288xf32>
    %c0_688 = arith.constant 0 : index
    %c0_689 = arith.constant 0 : index
    %669 = vector.load %arg10[%c0_688, %c0_689] : memref<8x1xf32, #tpu.memory_space<vmem>>, vector<8x1xf32>
    %670 = vector.broadcast %669 : vector<8x1xf32> to vector<8x288xf32>
    %671 = arith.addf %668, %670 : vector<8x288xf32>
    %c1_690 = arith.constant 1 : index
    %c2_691 = arith.constant 2 : index
    %c0_692 = arith.constant 0 : index
    %c0_693 = arith.constant 0 : index
    %672 = vector.load %arg15[%c1_690, %c2_691, %c0_692, %c0_693] : memref<2x4x8x288xf32, #tpu.memory_space<vmem>>, vector<1x1x8x288xf32>
    %673 = vector.shape_cast %672 : vector<1x1x8x288xf32> to vector<8x288xf32>
    %674 = vector.broadcast %342 : vector<8x1xf32> to vector<8x288xf32>
    %675 = arith.subf %673, %674 : vector<8x288xf32>
    %676 = vector.broadcast %430 : vector<8x1xf32> to vector<8x288xf32>
    %677 = arith.mulf %675, %676 : vector<8x288xf32>
    %c0_694 = arith.constant 0 : index
    %c0_695 = arith.constant 0 : index
    %678 = vector.load %arg9[%c0_694, %c0_695] : memref<8x1xf32, #tpu.memory_space<vmem>>, vector<8x1xf32>
    %679 = vector.broadcast %678 : vector<8x1xf32> to vector<8x288xf32>
    %680 = arith.addf %677, %679 : vector<8x288xf32>
    %681 = arith.addf %680, %671 : vector<8x288xf32>
    %cst_696 = arith.constant 0.000000e+00 : f32
    %682 = vector.broadcast %cst_696 : f32 to vector<8x288xf32>
    %683 = arith.cmpf oge, %681, %682 : vector<8x288xf32>
    %cst_697 = arith.constant 0.229166672 : f32
    %684 = vector.broadcast %cst_697 : f32 to vector<8x288xf32>
    %685 = arith.mulf %681, %684 : vector<8x288xf32>
    %686 = arith.select %683, %681, %685 : vector<8x288xi1>, vector<8x288xf32>
    %c1_698 = arith.constant 1 : index
    %c2_699 = arith.constant 2 : index
    %c0_700 = arith.constant 0 : index
    %c0_701 = arith.constant 0 : index
    %687 = vector.load %arg11[%c1_698, %c2_699, %c0_700, %c0_701] : memref<2x4x8x288xf32, #tpu.memory_space<vmem>>, vector<1x1x8x288xf32>
    %688 = vector.shape_cast %687 : vector<1x1x8x288xf32> to vector<8x288xf32>
    %689 = vector.shape_cast %686 : vector<8x288xf32> to vector<1x1x8x288xf32>
    tpu.vector_store %arg11[%c1_698, %c2_699, %c0_700, %c0_701], %689 {strides = array<i32>} : memref<2x4x8x288xf32, #tpu.memory_space<vmem>>, vector<1x1x8x288xf32>,
    %c3_702 = arith.constant 3 : index
    %c0_703 = arith.constant 0 : index
    %c0_704 = arith.constant 0 : index
    %690 = vector.load %arg5[%c3_702, %c0_703, %c0_704] : memref<4x8x16xf32, #tpu.memory_space<vmem>>, vector<1x8x16xf32>
    %691 = vector.shape_cast %690 : vector<1x8x16xf32> to vector<8x16xf32>
    %c1_705 = arith.constant 1 : index
    %c0_706 = arith.constant 0 : index
    %c128_707 = arith.constant 128 : index
    %692 = vector.load %arg1[%c1_705, %c0_706, %c128_707] : memref<2x4x512xf32, #tpu.memory_space<vmem>>, vector<1x4x288xf32>
    %693 = vector.shape_cast %692 : vector<1x4x288xf32> to vector<4x288xf32>
    %c0_708 = arith.constant 0 : index
    %c0_709 = arith.constant 0 : index
    %694 = vector.load %arg12[%c0_708, %c0_709] : memref<36x288xf32, #tpu.memory_space<vmem>>, vector<4x288xf32>
    tpu.vector_store %arg12[%c0_708, %c0_709], %693 {strides = array<i32>} : memref<36x288xf32, #tpu.memory_space<vmem>>, vector<4x288xf32>,
    %c1_710 = arith.constant 1 : index
    %c0_711 = arith.constant 0 : index
    %c129_712 = arith.constant 129 : index
    %695 = vector.load %arg1[%c1_710, %c0_711, %c129_712] : memref<2x4x512xf32, #tpu.memory_space<vmem>>, vector<1x4x288xf32>
    %696 = vector.shape_cast %695 : vector<1x4x288xf32> to vector<4x288xf32>
    %c4_713 = arith.constant 4 : index
    %c0_714 = arith.constant 0 : index
    %697 = vector.load %arg12[%c4_713, %c0_714] : memref<36x288xf32, #tpu.memory_space<vmem>>, vector<4x288xf32>
    tpu.vector_store %arg12[%c4_713, %c0_714], %696 {strides = array<i32>} : memref<36x288xf32, #tpu.memory_space<vmem>>, vector<4x288xf32>,
    %c1_715 = arith.constant 1 : index
    %c0_716 = arith.constant 0 : index
    %c146_717 = arith.constant 146 : index
    %698 = vector.load %arg1[%c1_715, %c0_716, %c146_717] : memref<2x4x512xf32, #tpu.memory_space<vmem>>, vector<1x4x288xf32>
    %699 = vector.shape_cast %698 : vector<1x4x288xf32> to vector<4x288xf32>
    %c8_718 = arith.constant 8 : index
    %c0_719 = arith.constant 0 : index
    %700 = vector.load %arg12[%c8_718, %c0_719] : memref<36x288xf32, #tpu.memory_space<vmem>>, vector<4x288xf32>
    tpu.vector_store %arg12[%c8_718, %c0_719], %699 {strides = array<i32>} : memref<36x288xf32, #tpu.memory_space<vmem>>, vector<4x288xf32>,
    %c1_720 = arith.constant 1 : index
    %c0_721 = arith.constant 0 : index
    %c147_722 = arith.constant 147 : index
    %701 = vector.load %arg1[%c1_720, %c0_721, %c147_722] : memref<2x4x512xf32, #tpu.memory_space<vmem>>, vector<1x4x288xf32>
    %702 = vector.shape_cast %701 : vector<1x4x288xf32> to vector<4x288xf32>
    %c12_723 = arith.constant 12 : index
    %c0_724 = arith.constant 0 : index
    %703 = vector.load %arg12[%c12_723, %c0_724] : memref<36x288xf32, #tpu.memory_space<vmem>>, vector<4x288xf32>
    tpu.vector_store %arg12[%c12_723, %c0_724], %702 {strides = array<i32>} : memref<36x288xf32, #tpu.memory_space<vmem>>, vector<4x288xf32>,
    %c0_725 = arith.constant 0 : index
    %c0_726 = arith.constant 0 : index
    %704 = vector.load %arg12[%c0_725, %c0_726] : memref<36x288xf32, #tpu.memory_space<vmem>>, vector<16x288xf32>
    %cst_727 = arith.constant dense<0.000000e+00> : vector<8x288xf32>
    %705 = tpu.matmul %691, %704, %cst_727 {dimension_numbers = #tpu.dot_dimension_numbers<[1], [0], [0], [1], [0, 0, 1, 1], [], []>} : vector<8x16xf32>, vector<16x288xf32>, vector<8x288xf32> -> vector<8x288xf32>
    %c0_728 = arith.constant 0 : index
    %c0_729 = arith.constant 0 : index
    %706 = vector.load %arg10[%c0_728, %c0_729] : memref<8x1xf32, #tpu.memory_space<vmem>>, vector<8x1xf32>
    %707 = vector.broadcast %706 : vector<8x1xf32> to vector<8x288xf32>
    %708 = arith.addf %705, %707 : vector<8x288xf32>
    %c1_730 = arith.constant 1 : index
    %c3_731 = arith.constant 3 : index
    %c0_732 = arith.constant 0 : index
    %c0_733 = arith.constant 0 : index
    %709 = vector.load %arg15[%c1_730, %c3_731, %c0_732, %c0_733] : memref<2x4x8x288xf32, #tpu.memory_space<vmem>>, vector<1x1x8x288xf32>
    %710 = vector.shape_cast %709 : vector<1x1x8x288xf32> to vector<8x288xf32>
    %711 = vector.broadcast %342 : vector<8x1xf32> to vector<8x288xf32>
    %712 = arith.subf %710, %711 : vector<8x288xf32>
    %713 = vector.broadcast %430 : vector<8x1xf32> to vector<8x288xf32>
    %714 = arith.mulf %712, %713 : vector<8x288xf32>
    %c0_734 = arith.constant 0 : index
    %c0_735 = arith.constant 0 : index
    %715 = vector.load %arg9[%c0_734, %c0_735] : memref<8x1xf32, #tpu.memory_space<vmem>>, vector<8x1xf32>
    %716 = vector.broadcast %715 : vector<8x1xf32> to vector<8x288xf32>
    %717 = arith.addf %714, %716 : vector<8x288xf32>
    %718 = arith.addf %717, %708 : vector<8x288xf32>
    %cst_736 = arith.constant 0.000000e+00 : f32
    %719 = vector.broadcast %cst_736 : f32 to vector<8x288xf32>
    %720 = arith.cmpf oge, %718, %719 : vector<8x288xf32>
    %cst_737 = arith.constant 0.229166672 : f32
    %721 = vector.broadcast %cst_737 : f32 to vector<8x288xf32>
    %722 = arith.mulf %718, %721 : vector<8x288xf32>
    %723 = arith.select %720, %718, %722 : vector<8x288xi1>, vector<8x288xf32>
    %c1_738 = arith.constant 1 : index
    %c3_739 = arith.constant 3 : index
    %c0_740 = arith.constant 0 : index
    %c0_741 = arith.constant 0 : index
    %724 = vector.load %arg11[%c1_738, %c3_739, %c0_740, %c0_741] : memref<2x4x8x288xf32, #tpu.memory_space<vmem>>, vector<1x1x8x288xf32>
    %725 = vector.shape_cast %724 : vector<1x1x8x288xf32> to vector<8x288xf32>
    %726 = vector.shape_cast %723 : vector<8x288xf32> to vector<1x1x8x288xf32>
    tpu.vector_store %arg11[%c1_738, %c3_739, %c0_740, %c0_741], %726 {strides = array<i32>} : memref<2x4x8x288xf32, #tpu.memory_space<vmem>>, vector<1x1x8x288xf32>,
    return
  }
  func.func @transform_0(%arg0: i32) -> (i32, i32, i32) {
    %c0_i32 = arith.constant 0 : i32
    %c0_i32_0 = arith.constant 0 : i32
    %c0_i32_1 = arith.constant 0 : i32
    %c0_i32_2 = arith.constant 0 : i32
    return %c0_i32, %c0_i32_0, %c0_i32_1 : i32, i32, i32
  }
  func.func @transform_1(%arg0: i32) -> (i32, i32) {
    %c0_i32 = arith.constant 0 : i32
    %c0_i32_0 = arith.constant 0 : i32
    %c0_i32_1 = arith.constant 0 : i32
    return %c0_i32, %c0_i32_0 : i32, i32
  }
  func.func @transform_2(%arg0: i32) -> (i32, i32) {
    %c0_i32 = arith.constant 0 : i32
    %c0_i32_0 = arith.constant 0 : i32
    %c0_i32_1 = arith.constant 0 : i32
    return %c0_i32, %c0_i32_0 : i32, i32
  }
  func.func @transform_3(%arg0: i32) -> (i32, i32, i32) {
    %c0_i32 = arith.constant 0 : i32
    %c0_i32_0 = arith.constant 0 : i32
    %c0_i32_1 = arith.constant 0 : i32
    %c0_i32_2 = arith.constant 0 : i32
    return %c0_i32, %c0_i32_0, %c0_i32_1 : i32, i32, i32
  }
  func.func @transform_4(%arg0: i32) -> (i32, i32, i32) {
    %c0_i32 = arith.constant 0 : i32
    %c0_i32_0 = arith.constant 0 : i32
    %c0_i32_1 = arith.constant 0 : i32
    %c0_i32_2 = arith.constant 0 : i32
    return %c0_i32, %c0_i32_0, %c0_i32_1 : i32, i32, i32
  }
  func.func @transform_5(%arg0: i32) -> (i32, i32) {
    %c0_i32 = arith.constant 0 : i32
    %c0_i32_0 = arith.constant 0 : i32
    %c0_i32_1 = arith.constant 0 : i32
    return %c0_i32, %c0_i32_0 : i32, i32
  }
  func.func @transform_6(%arg0: i32) -> (i32, i32) {
    %c0_i32 = arith.constant 0 : i32
    %c0_i32_0 = arith.constant 0 : i32
    %c0_i32_1 = arith.constant 0 : i32
    return %c0_i32, %c0_i32_0 : i32, i32
  }
  func.func @transform_7(%arg0: i32) -> (i32, i32) {
    %c0_i32 = arith.constant 0 : i32
    %c0_i32_0 = arith.constant 0 : i32
    %c0_i32_1 = arith.constant 0 : i32
    return %c0_i32, %c0_i32_0 : i32, i32
  }
  func.func @transform_8(%arg0: i32) -> (i32, i32) {
    %c0_i32 = arith.constant 0 : i32
    %c0_i32_0 = arith.constant 0 : i32
    %c0_i32_1 = arith.constant 0 : i32
    return %c0_i32, %c0_i32_0 : i32, i32
  }
  func.func @transform_9(%arg0: i32) -> (i32, i32) {
    %c0_i32 = arith.constant 0 : i32
    %c0_i32_0 = arith.constant 0 : i32
    %c0_i32_1 = arith.constant 0 : i32
    return %c0_i32, %c0_i32_0 : i32, i32
  }
  func.func @transform_10(%arg0: i32) -> (i32, i32, i32, i32) {
    %c0_i32 = arith.constant 0 : i32
    %c0_i32_0 = arith.constant 0 : i32
    %c0_i32_1 = arith.constant 0 : i32
    %c0_i32_2 = arith.constant 0 : i32
    %c0_i32_3 = arith.constant 0 : i32
    return %c0_i32, %c0_i32_0, %c0_i32_1, %c0_i32_2 : i32, i32, i32, i32
  }
}

</mosaic_0001>

<llo_original>
// kernel: res_up_forward.1
$region0: #{res_up_forward.1}
  #allocation0 [shape = 'u32[]', space=smem, size = 0x4, offset = 0x4, fixed_abs, tag = 'smem constant byte address 0x4 - core index']
  #allocation1 [shape = 'u32[144,128]{1,0:T(1,128)}', space=vmem, size = 0x12000, scoped, tag = 'internal scratch']
  #allocation2 [shape = 'f32[36,288]{1,0:T(8,128)}', space=vmem, size = 0xf000, scoped, tag = 'scratch operand']
  #allocation3 [shape = 'f32[2,4,288]{2,1,0:T(4,128)}', space=vmem, size = 0x3000, scoped, tag = 'scratch operand']
  #allocation4 [shape = 'f32[2,4,512]{2,1,0:T(4,128)}', space=vmem, size = 0x4000, scoped, tag = 'scratch operand']
  #allocation5 [shape = 'f32[2,4,8,288]{3,2,1,0:T(8,128)}', space=vmem, size = 0x18000, scoped, tag = 'scratch operand']
  %s0 = inlined_call_operand.vmem [shape: f32[2,4,512], index: 0, kind: input, shape index: {}]
  %s1 = inlined_call_operand.vmem [shape: f32[1,288], index: 1, kind: input, shape index: {}]
  %s2 = inlined_call_operand.vmem [shape: f32[4,36], index: 2, kind: input, shape index: {}]
  %s3 = inlined_call_operand.vmem [shape: f32[4,8,16], index: 3, kind: input, shape index: {}]
  %s4 = inlined_call_operand.vmem [shape: f32[4,8,16], index: 4, kind: input, shape index: {}]
  %s5 = inlined_call_operand.vmem [shape: f32[4,1], index: 5, kind: input, shape index: {}]
  %s6 = inlined_call_operand.vmem [shape: f32[4,1], index: 6, kind: input, shape index: {}]
  %s7 = inlined_call_operand.vmem [shape: f32[8,1], index: 7, kind: input, shape index: {}]
  %s8 = inlined_call_operand.vmem [shape: f32[8,1], index: 8, kind: input, shape index: {}]
  %s9 = inlined_call_operand.vmem [shape: f32[8,1], index: 9, kind: input, shape index: {}]
  %s10 = inlined_call_operand.vmem [shape: f32[2,4,8,288], index: 10, kind: output, shape index: {}]
  %s11 = sld [smem:[#allocation0]]
  $region50: #{res_up_forward.1} parent=0
    _
  %s13 = ssub.s32 1, %s11
  %s14 = scalar_select 0, %s13, %s11
  // Predicated region
  $region2: #{res_up_forward.1} parent=0 // pred_check
    _
  $region3: #{res_up_forward.1} parent=0 // pred_check_branch
    %16 = sbr.rel (0) target = $region5
  $region4: #{res_up_forward.1} parent=0 // pred_region
    _
  $region5: #{res_up_forward.1} parent=0 // pred_fallthru
    _
  // Predicated region
  $region6: #{res_up_forward.1} parent=0 // pred_check
    _
  $region7: #{res_up_forward.1} parent=0 // pred_check_branch
    %18 = sbr.rel (0) target = $region9
  $region8: #{res_up_forward.1} parent=0 // pred_region
    _
  $region9: #{res_up_forward.1} parent=0 // pred_fallthru
    _
  // Predicated region
  $region10: #{res_up_forward.1} parent=0 // pred_check
    _
  $region11: #{res_up_forward.1} parent=0 // pred_check_branch
    %20 = sbr.rel (0) target = $region13
  $region12: #{res_up_forward.1} parent=0 // pred_region
    _
  $region13: #{res_up_forward.1} parent=0 // pred_fallthru
    _
  // Predicated region
  $region14: #{res_up_forward.1} parent=0 // pred_check
    _
  $region15: #{res_up_forward.1} parent=0 // pred_check_branch
    %22 = sbr.rel (0) target = $region17
  $region16: #{res_up_forward.1} parent=0 // pred_region
    _
  $region17: #{res_up_forward.1} parent=0 // pred_fallthru
    _
  // Predicated region
  $region18: #{res_up_forward.1} parent=0 // pred_check
    _
  $region19: #{res_up_forward.1} parent=0 // pred_check_branch
    %24 = sbr.rel (0) target = $region21
  $region20: #{res_up_forward.1} parent=0 // pred_region
    _
  $region21: #{res_up_forward.1} parent=0 // pred_fallthru
    _
  // Predicated region
  $region22: #{res_up_forward.1} parent=0 // pred_check
    _
  $region23: #{res_up_forward.1} parent=0 // pred_check_branch
    %26 = sbr.rel (0) target = $region25
  $region24: #{res_up_forward.1} parent=0 // pred_region
    _
  $region25: #{res_up_forward.1} parent=0 // pred_fallthru
    _
  // Predicated region
  $region26: #{res_up_forward.1} parent=0 // pred_check
    _
  $region27: #{res_up_forward.1} parent=0 // pred_check_branch
    %28 = sbr.rel (0) target = $region29
  $region28: #{res_up_forward.1} parent=0 // pred_region
    _
  $region29: #{res_up_forward.1} parent=0 // pred_fallthru
    _
  // Predicated region
  $region30: #{res_up_forward.1} parent=0 // pred_check
    _
  $region31: #{res_up_forward.1} parent=0 // pred_check_branch
    %30 = sbr.rel (0) target = $region33
  $region32: #{res_up_forward.1} parent=0 // pred_region
    _
  $region33: #{res_up_forward.1} parent=0 // pred_fallthru
    _
  // Predicated region
  $region34: #{res_up_forward.1} parent=0 // pred_check
    _
  $region35: #{res_up_forward.1} parent=0 // pred_check_branch
    %32 = sbr.rel (0) target = $region37
  $region36: #{res_up_forward.1} parent=0 // pred_region
    _
  $region37: #{res_up_forward.1} parent=0 // pred_fallthru
    _
  // Predicated region
  $region38: #{res_up_forward.1} parent=0 // pred_check
    _
  $region39: #{res_up_forward.1} parent=0 // pred_check_branch
    %34 = sbr.rel (0) target = $region41
  $region40: #{res_up_forward.1} parent=0 // pred_region
    _
  $region41: #{res_up_forward.1} parent=0 // pred_fallthru
    _
  %v35 = vld [vmem:[%s1] sm:$0x7]
  %36 = vst [vmem:[#allocation4] sm:$0xff] 0.0
  %37 = vst [vmem:[#allocation4 + $0x8] sm:$0xff] 0.0
  %38 = vst [vmem:[#allocation4 + $0x10] sm:$0xff] 0.0
  %39 = vst [vmem:[#allocation4 + $0x18] sm:$0xff] 0.0
  %v40 = vld [vmem:[%s2] sm:$0xf]
  %v41 = vld [vmem:[%s0] sm:$0xff]
  %v42 = vld [vmem:[%s0 + $0x8] sm:$0xff]
  %v45 = vcombine.high %v41, %v41
  %v46 = vcombine.high %v42, %v42
  %47 = vrot.lane.b32.xlu0 %v41, 19
  %v48 = vpop.permute.xlu0 %47
  %49 = vrot.lane.b32.xlu0 %v45, 19
  %v50 = vpop.permute.xlu0 %49
  %51 = vrot.lane.b32.xlu0 %v42, 19
  %v52 = vpop.permute.xlu0 %51
  %53 = vrot.lane.b32.xlu0 %v46, 19
  %v54 = vpop.permute.xlu0 %53
  %vm55 = vcmask 154624
  %v56 = vsel %vm55, %v48, %v50
  %v57 = vsel %vm55, %v50, %v52
  %v58 = vsel %vm55, %v52, %v54
  %62 = vst [vmem:[#allocation2] sm:$0xf] %v56
  %63 = vst [vmem:[#allocation2 + $0x8] sm:$0xf] %v57
  %vm64 = vcmask 257024
  %65 = vst.msk [vmem:[#allocation2 + $0x10] sm:$0xf] %vm64, %v58
  %v66 = vld [vmem:[%s0] sm:$0xff]
  %v67 = vld [vmem:[%s0 + $0x8] sm:$0xff]
  %v70 = vcombine.low %v66, %v66
  %v71 = vcombine.low %v67, %v67
  %72 = vrot.lane.b32.xlu0 %v70, 18
  %v73 = vpop.permute.xlu0 %72
  %74 = vrot.lane.b32.xlu0 %v66, 18
  %v75 = vpop.permute.xlu0 %74
  %76 = vrot.lane.b32.xlu0 %v71, 18
  %v77 = vpop.permute.xlu0 %76
  %78 = vrot.lane.b32.xlu0 %v67, 18
  %v79 = vpop.permute.xlu0 %78
  %vm80 = vcmask 146432
  %v81 = vsel %vm80, %v73, %v75
  %v82 = vsel %vm80, %v75, %v77
  %v83 = vsel %vm80, %v77, %v79
  %87 = vst [vmem:[#allocation2] sm:$0xf0] %v81
  %88 = vst [vmem:[#allocation2 + $0x8] sm:$0xf0] %v82
  %vm89 = vcmask 261124
  %90 = vst.msk [vmem:[#allocation2 + $0x10] sm:$0xf0] %vm89, %v83
  %v91 = vld [vmem:[%s0] sm:$0xff]
  %v92 = vld [vmem:[%s0 + $0x8] sm:$0xff]
  %v95 = vcombine.high %v91, %v91
  %v96 = vcombine.high %v92, %v92
  %97 = vrot.lane.b32.xlu0 %v91, 17
  %v98 = vpop.permute.xlu0 %97
  %99 = vrot.lane.b32.xlu0 %v95, 17
  %v100 = vpop.permute.xlu0 %99
  %101 = vrot.lane.b32.xlu0 %v92, 17
  %v102 = vpop.permute.xlu0 %101
  %103 = vrot.lane.b32.xlu0 %v96, 17
  %v104 = vpop.permute.xlu0 %103
  %vm105 = vcmask 138240
  %v106 = vsel %vm105, %v98, %v100
  %v107 = vsel %vm105, %v100, %v102
  %v108 = vsel %vm105, %v102, %v104
  %112 = vst [vmem:[#allocation2 + $0x18] sm:$0xf] %v106
  %113 = vst [vmem:[#allocation2 + $0x20] sm:$0xf] %v107
  %114 = vst.msk [vmem:[#allocation2 + $0x28] sm:$0xf] %vm64, %v108
  %v115 = vld [vmem:[%s0] sm:$0xff]
  %v116 = vld [vmem:[%s0 + $0x8] sm:$0xff]
  %v119 = vcombine.low %v115, %v115
  %v120 = vcombine.low %v116, %v116
  %121 = vrot.lane.b32.xlu0 %v119, 1
  %v122 = vpop.permute.xlu0 %121
  %123 = vrot.lane.b32.xlu0 %v115, 1
  %v124 = vpop.permute.xlu0 %123
  %125 = vrot.lane.b32.xlu0 %v120, 1
  %v126 = vpop.permute.xlu0 %125
  %127 = vrot.lane.b32.xlu0 %v116, 1
  %v128 = vpop.permute.xlu0 %127
  %vm129 = vcmask 7168
  %v130 = vsel %vm129, %v122, %v124
  %v131 = vsel %vm129, %v124, %v126
  %v132 = vsel %vm129, %v126, %v128
  %136 = vst [vmem:[#allocation2 + $0x18] sm:$0xf0] %v130
  %137 = vst [vmem:[#allocation2 + $0x20] sm:$0xf0] %v131
  %138 = vst.msk [vmem:[#allocation2 + $0x28] sm:$0xf0] %vm89, %v132
  %v139 = vld [vmem:[%s0 + $0x4] sm:$0xff]
  %v140 = vld [vmem:[%s0 + $0xc] sm:$0xf]
  %v142 = vcombine.high %v139, %v139
  %144 = vst [vmem:[#allocation2 + $0x30] sm:$0xf] %v139
  %145 = vst [vmem:[#allocation2 + $0x38] sm:$0xf] %v142
  %146 = vst.msk [vmem:[#allocation2 + $0x40] sm:$0xf] %vm64, %v140
  %v147 = vld [vmem:[%s0 + $0x4] sm:$0xff]
  %v148 = vld [vmem:[%s0 + $0xc] sm:$0xf]
  %v151 = vcombine.low %v147, %v147
  %v152 = vcombine.low %v148, %v148
  %153 = vrot.lane.b32.xlu0 %v151, 127
  %v154 = vpop.permute.xlu0 %153
  %155 = vrot.lane.b32.xlu0 %v147, 127
  %v156 = vpop.permute.xlu0 %155
  %157 = vrot.lane.b32.xlu0 %v152, 127
  %v158 = vpop.permute.xlu0 %157
  %vm159 = vcmask 1039360
  %v160 = vsel %vm159, %v154, %v156
  %v161 = vsel %vm159, %v156, %v158
  %165 = vst [vmem:[#allocation2 + $0x30] sm:$0xf0] %v160
  %166 = vst [vmem:[#allocation2 + $0x38] sm:$0xf0] %v161
  %167 = vst.msk [vmem:[#allocation2 + $0x40] sm:$0xf0] %vm89, %v158
  %v168 = vld [vmem:[%s0 + $0x4] sm:$0xff]
  %v169 = vld [vmem:[%s0 + $0xc] sm:$0xf]
  %v172 = vcombine.high %v168, %v168
  %173 = vrot.lane.b32.xlu0 %v168, 111
  %v174 = vpop.permute.xlu0 %173
  %175 = vrot.lane.b32.xlu0 %v172, 111
  %v176 = vpop.permute.xlu0 %175
  %177 = vrot.lane.b32.xlu0 %v169, 111
  %v178 = vpop.permute.xlu0 %177
  %vm179 = vcmask 908288
  %v180 = vsel %vm179, %v174, %v176
  %v181 = vsel %vm179, %v176, %v178
  %185 = vst [vmem:[#allocation2 + $0x48] sm:$0xf] %v180
  %186 = vst [vmem:[#allocation2 + $0x50] sm:$0xf] %v181
  %187 = vst.msk [vmem:[#allocation2 + $0x58] sm:$0xf] %vm64, %v178
  %v188 = vld [vmem:[%s0 + $0x4] sm:$0xff]
  %v189 = vld [vmem:[%s0 + $0xc] sm:$0xf]
  %v192 = vcombine.low %v188, %v188
  %v193 = vcombine.low %v189, %v189
  %194 = vrot.lane.b32.xlu0 %v192, 110
  %v195 = vpop.permute.xlu0 %194
  %196 = vrot.lane.b32.xlu0 %v188, 110
  %v197 = vpop.permute.xlu0 %196
  %198 = vrot.lane.b32.xlu0 %v193, 110
  %v199 = vpop.permute.xlu0 %198
  %vm200 = vcmask 900096
  %v201 = vsel %vm200, %v195, %v197
  %v202 = vsel %vm200, %v197, %v199
  %206 = vst [vmem:[#allocation2 + $0x48] sm:$0xf0] %v201
  %207 = vst [vmem:[#allocation2 + $0x50] sm:$0xf0] %v202
  %208 = vst.msk [vmem:[#allocation2 + $0x58] sm:$0xf0] %vm89, %v199
  %v209 = vld [vmem:[%s0 + $0x4] sm:$0xff]
  %v210 = vld [vmem:[%s0 + $0xc] sm:$0xf]
  %v213 = vcombine.high %v209, %v209
  %214 = vrot.lane.b32.xlu0 %v209, 109
  %v215 = vpop.permute.xlu0 %214
  %216 = vrot.lane.b32.xlu0 %v213, 109
  %v217 = vpop.permute.xlu0 %216
  %218 = vrot.lane.b32.xlu0 %v210, 109
  %v219 = vpop.permute.xlu0 %218
  %vm220 = vcmask 891904
  %v221 = vsel %vm220, %v215, %v217
  %v222 = vsel %vm220, %v217, %v219
  %226 = vst [vmem:[#allocation2 + $0x60] sm:$0xf] %v221
  %227 = vst [vmem:[#allocation2 + $0x68] sm:$0xf] %v222
  %228 = vst.msk [vmem:[#allocation2 + $0x70] sm:$0xf] %vm64, %v219
  %v229 = vld [vmem:[#allocation2] sm:$0xff]
  %v230 = vld [vmem:[#allocation2 + $0x8] sm:$0xff]
  %v231 = vld [vmem:[#allocation2 + $0x10] sm:$0xff]
  %v232 = vld [vmem:[#allocation2 + $0x18] sm:$0xff]
  %v233 = vld [vmem:[#allocation2 + $0x20] sm:$0xff]
  %v234 = vld [vmem:[#allocation2 + $0x28] sm:$0xff]
  %v235 = vld [vmem:[#allocation2 + $0x30] sm:$0xff]
  %v236 = vld [vmem:[#allocation2 + $0x38] sm:$0xff]
  %v237 = vld [vmem:[#allocation2 + $0x40] sm:$0xff]
  %v238 = vld [vmem:[#allocation2 + $0x48] sm:$0xff]
  %v239 = vld [vmem:[#allocation2 + $0x50] sm:$0xff]
  %v240 = vld [vmem:[#allocation2 + $0x58] sm:$0xff]
  %v241 = vld [vmem:[#allocation2 + $0x60] sm:$0xf]
  %v242 = vld [vmem:[#allocation2 + $0x68] sm:$0xf]
  %v243 = vld [vmem:[#allocation2 + $0x70] sm:$0xf]
  %vm244 = vcmask 293888
  %v246 = vsel %vm244, %v40, 0
  %vm248 = vcmask 1043456
  %v250 = vsel %vm248, %v241, 0
  %v253 = vsel %vm248, %v242, 0
  %v256 = vsel %vm248, %v243, 0
  %258 = vmatprep.subr.mxu0 0.0
  %259 = vmatpush1.msra.mxu0 0.0
  %260 = vmatprep.subr.mxu0 0.0
  %261 = vmatpush1.msra.mxu0 0.0
  %262 = vmatprep.subr.mxu0 0.0
  %263 = vmatpush1.msra.mxu0 0.0
  %264 = vmatprep.subr.mxu0 0.0
  %265 = vmatpush1.msra.mxu0 0.0
  %266 = vmatprep.subr.mxu0 0.0
  %267 = vmatpush1.msra.mxu0 0.0
  %268 = vmatprep.subr.mxu0 0.0
  %269 = vmatpush1.msra.mxu0 0.0
  %270 = vmatprep.subr.mxu0 0.0
  %271 = vmatpush1.msra.mxu0 0.0
  %272 = vmatprep.subr.mxu0 0.0
  %273 = vmatpush1.msra.mxu0 0.0
  %274 = vmatprep.subr.mxu0 0.0
  %275 = vmatpush1.msra.mxu0 0.0
  %276 = vmatprep.subr.mxu0 0.0
  %277 = vmatpush1.msra.mxu0 0.0
  %278 = vmatprep.subr.mxu0 0.0
  %279 = vmatpush1.msra.mxu0 0.0
  %280 = vmatprep.subr.mxu0 %v253
  %281 = vmatpush1.msra.mxu0 %v250
  %282 = vmatprep.subr.mxu0 %v239
  %283 = vmatpush1.msra.mxu0 %v238
  %284 = vmatprep.subr.mxu0 %v236
  %285 = vmatpush1.msra.mxu0 %v235
  %286 = vmatprep.subr.mxu0 %v233
  %287 = vmatpush1.msra.mxu0 %v232
  %288 = vmatprep.subr.mxu0 %v230
  %289 = vmatpush1.msra.mxu0 %v229
  %290 = vmatprep.subr.mxu0 0.0
  %291 = vmatpush2.msra.mxu0 0.0
  %292 = vmatprep.subr.mxu0 0.0
  %293 = vmatpush2.msra.mxu0 0.0
  %294 = vmatprep.subr.mxu0 0.0
  %295 = vmatpush2.msra.mxu0 0.0
  %296 = vmatprep.subr.mxu0 0.0
  %297 = vmatpush2.msra.mxu0 0.0
  %298 = vmatprep.subr.mxu0 0.0
  %299 = vmatpush2.msra.mxu0 0.0
  %300 = vmatprep.subr.mxu0 0.0
  %301 = vmatpush2.msra.mxu0 0.0
  %302 = vmatprep.subr.mxu0 0.0
  %303 = vmatpush2.msra.mxu0 0.0
  %304 = vmatprep.subr.mxu0 0.0
  %305 = vmatpush2.msra.mxu0 0.0
  %306 = vmatprep.subr.mxu0 0.0
  %307 = vmatpush2.msra.mxu0 0.0
  %308 = vmatprep.subr.mxu0 0.0
  %309 = vmatpush2.msra.mxu0 0.0
  %310 = vmatprep.subr.mxu0 0.0
  %311 = vmatpush2.msra.mxu0 0.0
  %312 = vmatprep.subr.mxu0 0.0
  %313 = vmatpush2.msra.mxu0 0.0
  %314 = vmatprep.subr.mxu0 0.0
  %315 = vmatpush2.msra.mxu0 0.0
  %316 = vmatprep.subr.mxu0 0.0
  %317 = vmatpush2.msra.mxu0 0.0
  %318 = vmatprep.subr.mxu0 0.0
  %319 = vmatpush2.msra.mxu0 0.0
  %320 = vmatprep.subr.mxu0 0.0
  %321 = vmatpush2.msra.mxu0 0.0
  %322 = vmatprep.mubr.f32.mxu0 0.0
  %323 = vmatmul.mubr.f32.gmra.mxu0 %v246
  %v324 = vpop.f32.mrf.mxu0
  %v325 = vadd.f32 0.0, %v324
  %v326 = vpop.f32.mrf.mxu0
  %v327 = vadd.f32 0.0, %v326
  %328 = vdwg.mxu0
  %329 = vmatprep.subr.mxu0 0.0
  %330 = vmatpush1.msra.mxu0 0.0
  %331 = vmatprep.subr.mxu0 0.0
  %332 = vmatpush1.msra.mxu0 0.0
  %333 = vmatprep.subr.mxu0 0.0
  %334 = vmatpush1.msra.mxu0 0.0
  %335 = vmatprep.subr.mxu0 0.0
  %336 = vmatpush1.msra.mxu0 0.0
  %337 = vmatprep.subr.mxu0 0.0
  %338 = vmatpush1.msra.mxu0 0.0
  %339 = vmatprep.subr.mxu0 0.0
  %340 = vmatpush1.msra.mxu0 0.0
  %341 = vmatprep.subr.mxu0 0.0
  %342 = vmatpush1.msra.mxu0 0.0
  %343 = vmatprep.subr.mxu0 0.0
  %344 = vmatpush1.msra.mxu0 0.0
  %345 = vmatprep.subr.mxu0 0.0
  %346 = vmatpush1.msra.mxu0 0.0
  %347 = vmatprep.subr.mxu0 0.0
  %348 = vmatpush1.msra.mxu0 0.0
  %349 = vmatprep.subr.mxu0 0.0
  %350 = vmatpush1.msra.mxu0 0.0
  %351 = vmatprep.subr.mxu0 0.0
  %352 = vmatpush1.msra.mxu0 %v256
  %353 = vmatprep.subr.mxu0 0.0
  %354 = vmatpush1.msra.mxu0 %v240
  %355 = vmatprep.subr.mxu0 0.0
  %356 = vmatpush1.msra.mxu0 %v237
  %357 = vmatprep.subr.mxu0 0.0
  %358 = vmatpush1.msra.mxu0 %v234
  %359 = vmatprep.subr.mxu0 0.0
  %360 = vmatpush1.msra.mxu0 %v231
  %361 = vmatprep.subr.mxu0 0.0
  %362 = vmatpush2.msra.mxu0 0.0
  %363 = vmatprep.subr.mxu0 0.0
  %364 = vmatpush2.msra.mxu0 0.0
  %365 = vmatprep.subr.mxu0 0.0
  %366 = vmatpush2.msra.mxu0 0.0
  %367 = vmatprep.subr.mxu0 0.0
  %368 = vmatpush2.msra.mxu0 0.0
  %369 = vmatprep.subr.mxu0 0.0
  %370 = vmatpush2.msra.mxu0 0.0
  %371 = vmatprep.subr.mxu0 0.0
  %372 = vmatpush2.msra.mxu0 0.0
  %373 = vmatprep.subr.mxu0 0.0
  %374 = vmatpush2.msra.mxu0 0.0
  %375 = vmatprep.subr.mxu0 0.0
  %376 = vmatpush2.msra.mxu0 0.0
  %377 = vmatprep.subr.mxu0 0.0
  %378 = vmatpush2.msra.mxu0 0.0
  %379 = vmatprep.subr.mxu0 0.0
  %380 = vmatpush2.msra.mxu0 0.0
  %381 = vmatprep.subr.mxu0 0.0
  %382 = vmatpush2.msra.mxu0 0.0
  %383 = vmatprep.subr.mxu0 0.0
  %384 = vmatpush2.msra.mxu0 0.0
  %385 = vmatprep.subr.mxu0 0.0
  %386 = vmatpush2.msra.mxu0 0.0
  %387 = vmatprep.subr.mxu0 0.0
  %388 = vmatpush2.msra.mxu0 0.0
  %389 = vmatprep.subr.mxu0 0.0
  %390 = vmatpush2.msra.mxu0 0.0
  %391 = vmatprep.subr.mxu0 0.0
  %392 = vmatpush2.msra.mxu0 0.0
  %393 = vmatprep.mubr.f32.mxu0 0.0
  %394 = vmatmul.mubr.f32.gmra.mxu0 %v246
  %v395 = vpop.f32.mrf.mxu0
  %v396 = vadd.f32 0.0, %v395
  %v397 = vpop.f32.mrf.mxu0
  %398 = vdwg.mxu0
  %v401 = vcombine.low %v325, %v327
  %403 = vst [vmem:[#allocation3] sm:$0xff] %v401
  %404 = vst.msk [vmem:[#allocation3 + $0x8] sm:$0xf] %vm64, %v396
  %v406 = vlaneseq
  %v407 = vshrl.u32 %v406, 7
  %v408 = vsub.s32 0, %v407
  %v409 = vrot.slane %v35, %v408
  %v410 = vlaneseq
  %v411 = vshrl.u32 %v410, 7
  %v412 = vsub.s32 1, %v411
  %v413 = vrot.slane %v35, %v412
  %v414 = vlaneseq
  %v415 = vshrl.u32 %v414, 7
  %v416 = vsub.s32 2, %v415
  %v417 = vrot.slane %v35, %v416
  %v421 = vmul.f32 %v325, %v409
  %v422 = vmul.f32 %v327, %v413
  %v423 = vmul.f32 %v396, %v417
  %v424 = vsel %vm248, %v421, 0.0
  %v425 = vsel %vm248, %v422, 0.0
  %v426 = vadd.f32 %v424, %v425
  %v427 = vsel %vm64, %v423, 0.0
  %v428 = vadd.f32 %v426, %v427
  %429 = vadd.xlane.f32.xlu0 %v428
  %v430 = vpop.xlane.xlu0 %429
  %v431 = vadd.f32 %v430, 0.0
  %v432 = vld [vmem:[%s2] sm:$0xf]
  %s433 = scalar_lea.vmem %s0, 16
  %v434 = vld [vmem:[%s433] sm:$0xff]
  %v435 = vld [vmem:[%s433 + $0x8] sm:$0xff]
  %v438 = vcombine.high %v434, %v434
  %v439 = vcombine.high %v435, %v435
  %440 = vrot.lane.b32.xlu0 %v434, 19
  %v441 = vpop.permute.xlu0 %440
  %442 = vrot.lane.b32.xlu0 %v438, 19
  %v443 = vpop.permute.xlu0 %442
  %444 = vrot.lane.b32.xlu0 %v435, 19
  %v445 = vpop.permute.xlu0 %444
  %446 = vrot.lane.b32.xlu0 %v439, 19
  %v447 = vpop.permute.xlu0 %446
  %v448 = vsel %vm55, %v441, %v443
  %v449 = vsel %vm55, %v443, %v445
  %v450 = vsel %vm55, %v445, %v447
  %454 = vst [vmem:[#allocation2] sm:$0xf] %v448
  %455 = vst [vmem:[#allocation2 + $0x8] sm:$0xf] %v449
  %456 = vst.msk [vmem:[#allocation2 + $0x10] sm:$0xf] %vm64, %v450
  %v457 = vld [vmem:[%s433] sm:$0xff]
  %v458 = vld [vmem:[%s433 + $0x8] sm:$0xff]
  %v461 = vcombine.low %v457, %v457
  %v462 = vcombine.low %v458, %v458
  %463 = vrot.lane.b32.xlu0 %v461, 18
  %v464 = vpop.permute.xlu0 %463
  %465 = vrot.lane.b32.xlu0 %v457, 18
  %v466 = vpop.permute.xlu0 %465
  %467 = vrot.lane.b32.xlu0 %v462, 18
  %v468 = vpop.permute.xlu0 %467
  %469 = vrot.lane.b32.xlu0 %v458, 18
  %v470 = vpop.permute.xlu0 %469
  %v471 = vsel %vm80, %v464, %v466
  %v472 = vsel %vm80, %v466, %v468
  %v473 = vsel %vm80, %v468, %v470
  %477 = vst [vmem:[#allocation2] sm:$0xf0] %v471
  %478 = vst [vmem:[#allocation2 + $0x8] sm:$0xf0] %v472
  %479 = vst.msk [vmem:[#allocation2 + $0x10] sm:$0xf0] %vm89, %v473
  %v480 = vld [vmem:[%s433] sm:$0xff]
  %v481 = vld [vmem:[%s433 + $0x8] sm:$0xff]
  %v484 = vcombine.high %v480, %v480
  %v485 = vcombine.high %v481, %v481
  %486 = vrot.lane.b32.xlu0 %v480, 17
  %v487 = vpop.permute.xlu0 %486
  %488 = vrot.lane.b32.xlu0 %v484, 17
  %v489 = vpop.permute.xlu0 %488
  %490 = vrot.lane.b32.xlu0 %v481, 17
  %v491 = vpop.permute.xlu0 %490
  %492 = vrot.lane.b32.xlu0 %v485, 17
  %v493 = vpop.permute.xlu0 %492
  %v494 = vsel %vm105, %v487, %v489
  %v495 = vsel %vm105, %v489, %v491
  %v496 = vsel %vm105, %v491, %v493
  %500 = vst [vmem:[#allocation2 + $0x18] sm:$0xf] %v494
  %501 = vst [vmem:[#allocation2 + $0x20] sm:$0xf] %v495
  %502 = vst.msk [vmem:[#allocation2 + $0x28] sm:$0xf] %vm64, %v496
  %v503 = vld [vmem:[%s433] sm:$0xff]
  %v504 = vld [vmem:[%s433 + $0x8] sm:$0xff]
  %v507 = vcombine.low %v503, %v503
  %v508 = vcombine.low %v504, %v504
  %509 = vrot.lane.b32.xlu0 %v507, 1
  %v510 = vpop.permute.xlu0 %509
  %511 = vrot.lane.b32.xlu0 %v503, 1
  %v512 = vpop.permute.xlu0 %511
  %513 = vrot.lane.b32.xlu0 %v508, 1
  %v514 = vpop.permute.xlu0 %513
  %515 = vrot.lane.b32.xlu0 %v504, 1
  %v516 = vpop.permute.xlu0 %515
  %v517 = vsel %vm129, %v510, %v512
  %v518 = vsel %vm129, %v512, %v514
  %v519 = vsel %vm129, %v514, %v516
  %523 = vst [vmem:[#allocation2 + $0x18] sm:$0xf0] %v517
  %524 = vst [vmem:[#allocation2 + $0x20] sm:$0xf0] %v518
  %525 = vst.msk [vmem:[#allocation2 + $0x28] sm:$0xf0] %vm89, %v519
  %v526 = vld [vmem:[%s433 + $0x4] sm:$0xff]
  %v527 = vld [vmem:[%s433 + $0xc] sm:$0xf]
  %v529 = vcombine.high %v526, %v526
  %531 = vst [vmem:[#allocation2 + $0x30] sm:$0xf] %v526
  %532 = vst [vmem:[#allocation2 + $0x38] sm:$0xf] %v529
  %533 = vst.msk [vmem:[#allocation2 + $0x40] sm:$0xf] %vm64, %v527
  %v534 = vld [vmem:[%s433 + $0x4] sm:$0xff]
  %v535 = vld [vmem:[%s433 + $0xc] sm:$0xf]
  %v538 = vcombine.low %v534, %v534
  %v539 = vcombine.low %v535, %v535
  %540 = vrot.lane.b32.xlu0 %v538, 127
  %v541 = vpop.permute.xlu0 %540
  %542 = vrot.lane.b32.xlu0 %v534, 127
  %v543 = vpop.permute.xlu0 %542
  %544 = vrot.lane.b32.xlu0 %v539, 127
  %v545 = vpop.permute.xlu0 %544
  %v546 = vsel %vm159, %v541, %v543
  %v547 = vsel %vm159, %v543, %v545
  %551 = vst [vmem:[#allocation2 + $0x30] sm:$0xf0] %v546
  %552 = vst [vmem:[#allocation2 + $0x38] sm:$0xf0] %v547
  %553 = vst.msk [vmem:[#allocation2 + $0x40] sm:$0xf0] %vm89, %v545
  %v554 = vld [vmem:[%s433 + $0x4] sm:$0xff]
  %v555 = vld [vmem:[%s433 + $0xc] sm:$0xf]
  %v558 = vcombine.high %v554, %v554
  %559 = vrot.lane.b32.xlu0 %v554, 111
  %v560 = vpop.permute.xlu0 %559
  %561 = vrot.lane.b32.xlu0 %v558, 111
  %v562 = vpop.permute.xlu0 %561
  %563 = vrot.lane.b32.xlu0 %v555, 111
  %v564 = vpop.permute.xlu0 %563
  %v565 = vsel %vm179, %v560, %v562
  %v566 = vsel %vm179, %v562, %v564
  %570 = vst [vmem:[#allocation2 + $0x48] sm:$0xf] %v565
  %571 = vst [vmem:[#allocation2 + $0x50] sm:$0xf] %v566
  %572 = vst.msk [vmem:[#allocation2 + $0x58] sm:$0xf] %vm64, %v564
  %v573 = vld [vmem:[%s433 + $0x4] sm:$0xff]
  %v574 = vld [vmem:[%s433 + $0xc] sm:$0xf]
  %v577 = vcombine.low %v573, %v573
  %v578 = vcombine.low %v574, %v574
  %579 = vrot.lane.b32.xlu0 %v577, 110
  %v580 = vpop.permute.xlu0 %579
  %581 = vrot.lane.b32.xlu0 %v573, 110
  %v582 = vpop.permute.xlu0 %581
  %583 = vrot.lane.b32.xlu0 %v578, 110
  %v584 = vpop.permute.xlu0 %583
  %v585 = vsel %vm200, %v580, %v582
  %v586 = vsel %vm200, %v582, %v584
  %590 = vst [vmem:[#allocation2 + $0x48] sm:$0xf0] %v585
  %591 = vst [vmem:[#allocation2 + $0x50] sm:$0xf0] %v586
  %592 = vst.msk [vmem:[#allocation2 + $0x58] sm:$0xf0] %vm89, %v584
  %v593 = vld [vmem:[%s433 + $0x4] sm:$0xff]
  %v594 = vld [vmem:[%s433 + $0xc] sm:$0xf]
  %v597 = vcombine.high %v593, %v593
  %598 = vrot.lane.b32.xlu0 %v593, 109
  %v599 = vpop.permute.xlu0 %598
  %600 = vrot.lane.b32.xlu0 %v597, 109
  %v601 = vpop.permute.xlu0 %600
  %602 = vrot.lane.b32.xlu0 %v594, 109
  %v603 = vpop.permute.xlu0 %602
  %v604 = vsel %vm220, %v599, %v601
  %v605 = vsel %vm220, %v601, %v603
  %609 = vst [vmem:[#allocation2 + $0x60] sm:$0xf] %v604
  %610 = vst [vmem:[#allocation2 + $0x68] sm:$0xf] %v605
  %611 = vst.msk [vmem:[#allocation2 + $0x70] sm:$0xf] %vm64, %v603
  %v612 = vld [vmem:[#allocation2] sm:$0xff]
  %v613 = vld [vmem:[#allocation2 + $0x8] sm:$0xff]
  %v614 = vld [vmem:[#allocation2 + $0x10] sm:$0xff]
  %v615 = vld [vmem:[#allocation2 + $0x18] sm:$0xff]
  %v616 = vld [vmem:[#allocation2 + $0x20] sm:$0xff]
  %v617 = vld [vmem:[#allocation2 + $0x28] sm:$0xff]
  %v618 = vld [vmem:[#allocation2 + $0x30] sm:$0xff]
  %v619 = vld [vmem:[#allocation2 + $0x38] sm:$0xff]
  %v620 = vld [vmem:[#allocation2 + $0x40] sm:$0xff]
  %v621 = vld [vmem:[#allocation2 + $0x48] sm:$0xff]
  %v622 = vld [vmem:[#allocation2 + $0x50] sm:$0xff]
  %v623 = vld [vmem:[#allocation2 + $0x58] sm:$0xff]
  %v624 = vld [vmem:[#allocation2 + $0x60] sm:$0xf]
  %v625 = vld [vmem:[#allocation2 + $0x68] sm:$0xf]
  %v626 = vld [vmem:[#allocation2 + $0x70] sm:$0xf]
  %v628 = vsel %vm244, %v432, 0
  %v631 = vsel %vm248, %v624, 0
  %v634 = vsel %vm248, %v625, 0
  %v637 = vsel %vm248, %v626, 0
  %639 = vmatprep.subr.mxu0 0.0
  %640 = vmatpush1.msra.mxu0 0.0
  %641 = vmatprep.subr.mxu0 0.0
  %642 = vmatpush1.msra.mxu0 0.0
  %643 = vmatprep.subr.mxu0 0.0
  %644 = vmatpush1.msra.mxu0 0.0
  %645 = vmatprep.subr.mxu0 0.0
  %646 = vmatpush1.msra.mxu0 0.0
  %647 = vmatprep.subr.mxu0 0.0
  %648 = vmatpush1.msra.mxu0 0.0
  %649 = vmatprep.subr.mxu0 0.0
  %650 = vmatpush1.msra.mxu0 0.0
  %651 = vmatprep.subr.mxu0 0.0
  %652 = vmatpush1.msra.mxu0 0.0
  %653 = vmatprep.subr.mxu0 0.0
  %654 = vmatpush1.msra.mxu0 0.0
  %655 = vmatprep.subr.mxu0 0.0
  %656 = vmatpush1.msra.mxu0 0.0
  %657 = vmatprep.subr.mxu0 0.0
  %658 = vmatpush1.msra.mxu0 0.0
  %659 = vmatprep.subr.mxu0 0.0
  %660 = vmatpush1.msra.mxu0 0.0
  %661 = vmatprep.subr.mxu0 %v634
  %662 = vmatpush1.msra.mxu0 %v631
  %663 = vmatprep.subr.mxu0 %v622
  %664 = vmatpush1.msra.mxu0 %v621
  %665 = vmatprep.subr.mxu0 %v619
  %666 = vmatpush1.msra.mxu0 %v618
  %667 = vmatprep.subr.mxu0 %v616
  %668 = vmatpush1.msra.mxu0 %v615
  %669 = vmatprep.subr.mxu0 %v613
  %670 = vmatpush1.msra.mxu0 %v612
  %671 = vmatprep.subr.mxu0 0.0
  %672 = vmatpush2.msra.mxu0 0.0
  %673 = vmatprep.subr.mxu0 0.0
  %674 = vmatpush2.msra.mxu0 0.0
  %675 = vmatprep.subr.mxu0 0.0
  %676 = vmatpush2.msra.mxu0 0.0
  %677 = vmatprep.subr.mxu0 0.0
  %678 = vmatpush2.msra.mxu0 0.0
  %679 = vmatprep.subr.mxu0 0.0
  %680 = vmatpush2.msra.mxu0 0.0
  %681 = vmatprep.subr.mxu0 0.0
  %682 = vmatpush2.msra.mxu0 0.0
  %683 = vmatprep.subr.mxu0 0.0
  %684 = vmatpush2.msra.mxu0 0.0
  %685 = vmatprep.subr.mxu0 0.0
  %686 = vmatpush2.msra.mxu0 0.0
  %687 = vmatprep.subr.mxu0 0.0
  %688 = vmatpush2.msra.mxu0 0.0
  %689 = vmatprep.subr.mxu0 0.0
  %690 = vmatpush2.msra.mxu0 0.0
  %691 = vmatprep.subr.mxu0 0.0
  %692 = vmatpush2.msra.mxu0 0.0
  %693 = vmatprep.subr.mxu0 0.0
  %694 = vmatpush2.msra.mxu0 0.0
  %695 = vmatprep.subr.mxu0 0.0
  %696 = vmatpush2.msra.mxu0 0.0
  %697 = vmatprep.subr.mxu0 0.0
  %698 = vmatpush2.msra.mxu0 0.0
  %699 = vmatprep.subr.mxu0 0.0
  %700 = vmatpush2.msra.mxu0 0.0
  %701 = vmatprep.subr.mxu0 0.0
  %702 = vmatpush2.msra.mxu0 0.0
  %703 = vmatprep.mubr.f32.mxu0 0.0
  %704 = vmatmul.mubr.f32.gmra.mxu0 %v628
  %v705 = vpop.f32.mrf.mxu0
  %v706 = vadd.f32 0.0, %v705
  %v707 = vpop.f32.mrf.mxu0
  %v708 = vadd.f32 0.0, %v707
  %709 = vdwg.mxu0
  %710 = vmatprep.subr.mxu0 0.0
  %711 = vmatpush1.msra.mxu0 0.0
  %712 = vmatprep.subr.mxu0 0.0
  %713 = vmatpush1.msra.mxu0 0.0
  %714 = vmatprep.subr.mxu0 0.0
  %715 = vmatpush1.msra.mxu0 0.0
  %716 = vmatprep.subr.mxu0 0.0
  %717 = vmatpush1.msra.mxu0 0.0
  %718 = vmatprep.subr.mxu0 0.0
  %719 = vmatpush1.msra.mxu0 0.0
  %720 = vmatprep.subr.mxu0 0.0
  %721 = vmatpush1.msra.mxu0 0.0
  %722 = vmatprep.subr.mxu0 0.0
  %723 = vmatpush1.msra.mxu0 0.0
  %724 = vmatprep.subr.mxu0 0.0
  %725 = vmatpush1.msra.mxu0 0.0
  %726 = vmatprep.subr.mxu0 0.0
  %727 = vmatpush1.msra.mxu0 0.0
  %728 = vmatprep.subr.mxu0 0.0
  %729 = vmatpush1.msra.mxu0 0.0
  %730 = vmatprep.subr.mxu0 0.0
  %731 = vmatpush1.msra.mxu0 0.0
  %732 = vmatprep.subr.mxu0 0.0
  %733 = vmatpush1.msra.mxu0 %v637
  %734 = vmatprep.subr.mxu0 0.0
  %735 = vmatpush1.msra.mxu0 %v623
  %736 = vmatprep.subr.mxu0 0.0
  %737 = vmatpush1.msra.mxu0 %v620
  %738 = vmatprep.subr.mxu0 0.0
  %739 = vmatpush1.msra.mxu0 %v617
  %740 = vmatprep.subr.mxu0 0.0
  %741 = vmatpush1.msra.mxu0 %v614
  %742 = vmatprep.subr.mxu0 0.0
  %743 = vmatpush2.msra.mxu0 0.0
  %744 = vmatprep.subr.mxu0 0.0
  %745 = vmatpush2.msra.mxu0 0.0
  %746 = vmatprep.subr.mxu0 0.0
  %747 = vmatpush2.msra.mxu0 0.0
  %748 = vmatprep.subr.mxu0 0.0
  %749 = vmatpush2.msra.mxu0 0.0
  %750 = vmatprep.subr.mxu0 0.0
  %751 = vmatpush2.msra.mxu0 0.0
  %752 = vmatprep.subr.mxu0 0.0
  %753 = vmatpush2.msra.mxu0 0.0
  %754 = vmatprep.subr.mxu0 0.0
  %755 = vmatpush2.msra.mxu0 0.0
  %756 = vmatprep.subr.mxu0 0.0
  %757 = vmatpush2.msra.mxu0 0.0
  %758 = vmatprep.subr.mxu0 0.0
  %759 = vmatpush2.msra.mxu0 0.0
  %760 = vmatprep.subr.mxu0 0.0
  %761 = vmatpush2.msra.mxu0 0.0
  %762 = vmatprep.subr.mxu0 0.0
  %763 = vmatpush2.msra.mxu0 0.0
  %764 = vmatprep.subr.mxu0 0.0
  %765 = vmatpush2.msra.mxu0 0.0
  %766 = vmatprep.subr.mxu0 0.0
  %767 = vmatpush2.msra.mxu0 0.0
  %768 = vmatprep.subr.mxu0 0.0
  %769 = vmatpush2.msra.mxu0 0.0
  %770 = vmatprep.subr.mxu0 0.0
  %771 = vmatpush2.msra.mxu0 0.0
  %772 = vmatprep.subr.mxu0 0.0
  %773 = vmatpush2.msra.mxu0 0.0
  %774 = vmatprep.mubr.f32.mxu0 0.0
  %775 = vmatmul.mubr.f32.gmra.mxu0 %v628
  %v776 = vpop.f32.mrf.mxu0
  %v777 = vadd.f32 0.0, %v776
  %v778 = vpop.f32.mrf.mxu0
  %779 = vdwg.mxu0
  %v782 = vcombine.low %v706, %v708
  %s784 = scalar_lea.vmem [#allocation3], 12
  %785 = vst [vmem:[%s784] sm:$0xff] %v782
  %786 = vst.msk [vmem:[%s784 + $0x8] sm:$0xf] %vm64, %v777
  %v787 = vmul.f32 %v706, %v409
  %v788 = vmul.f32 %v708, %v413
  %v789 = vmul.f32 %v777, %v417
  %v790 = vsel %vm248, %v787, 0.0
  %v791 = vsel %vm248, %v788, 0.0
  %v792 = vadd.f32 %v790, %v791
  %v793 = vsel %vm64, %v789, 0.0
  %v794 = vadd.f32 %v792, %v793
  %795 = vadd.xlane.f32.xlu0 %v794
  %v796 = vpop.xlane.xlu0 %795
  %v797 = vadd.f32 %v431, %v796
  %v798 = vrcp.pop 512.0
  %v799 = vmul.f32 %v797, %v798
  %v800 = vld [vmem:[#allocation3] sm:$0xff]
  %v801 = vld [vmem:[#allocation3 + $0x8] sm:$0xf]
  %v804 = vunpack.c.l.s4 839922192
  %v805 = vunpack.c.0.s8 %v804
  %v806 = vlaneseq
  %v807 = vshrl.u32 %v806, 7
  %v808 = vsub.s32 %v805, %v807
  %v809 = vrot.slane %v799, %v808
  %v811 = vsub.f32 %v800, %v809
  %v812 = vsub.f32 %v801, %v809
  %v813 = vcombine.low %v409, %v413
  %v815 = vmul.f32 %v811, %v813
  %v816 = vmul.f32 %v812, %v417
  %v817 = vmul.f32 %v815, %v815
  %v818 = vmul.f32 %v816, %v816
  %v820 = vcombine.high %v817, %v817
  %v822 = vsel %vm248, %v817, 0.0
  %v823 = vsel %vm248, %v820, 0.0
  %v824 = vadd.f32 %v822, %v823
  %v825 = vsel %vm64, %v818, 0.0
  %v826 = vadd.f32 %v824, %v825
  %827 = vadd.xlane.f32.xlu0 %v826
  %v828 = vpop.xlane.xlu0 %827
  %v829 = vadd.f32 %v828, 0.0
  %v830 = vld [vmem:[%s784] sm:$0xff]
  %v831 = vld [vmem:[%s784 + $0x8] sm:$0xf]
  %v832 = vsub.f32 %v830, %v809
  %v833 = vsub.f32 %v831, %v809
  %v834 = vmul.f32 %v832, %v813
  %v835 = vmul.f32 %v833, %v417
  %v836 = vmul.f32 %v834, %v834
  %v837 = vmul.f32 %v835, %v835
  %v839 = vcombine.high %v836, %v836
  %v841 = vsel %vm248, %v836, 0.0
  %v842 = vsel %vm248, %v839, 0.0
  %v843 = vadd.f32 %v841, %v842
  %v844 = vsel %vm64, %v837, 0.0
  %v845 = vadd.f32 %v843, %v844
  %846 = vadd.xlane.f32.xlu0 %v845
  %v847 = vpop.xlane.xlu0 %846
  %v848 = vadd.f32 %v829, %v847
  %v849 = vmul.f32 %v848, %v798
  %v850 = vadd.f32 %v849, 1e-05
  %v851 = vrsqrt.pop %v850
  %v852 = vld [vmem:[%s5] sm:$0xf]
  %v853 = vmul.f32 %v851, %v852
  %855 = vset.pattern.permute.xlu0 0
  %856 = vperm.xlu0 %855, %v853
  %v857 = vpop.permute.xlu0 %856
  %v859 = vunpack.c.l.s4 839922192
  %v860 = vunpack.c.0.s8 %v859
  %v861 = vlaneseq
  %v862 = vshrl.u32 %v861, 7
  %v863 = vsub.s32 %v860, %v862
  %v864 = vrot.slane %v857, %v863
  %v866 = vmul.f32 %v811, %v864
  %v867 = vmul.f32 %v812, %v864
  %v868 = vld [vmem:[%s6] sm:$0xf]
  %870 = vset.pattern.permute.xlu0 0
  %871 = vperm.xlu0 %870, %v868
  %v872 = vpop.permute.xlu0 %871
  %v874 = vunpack.c.l.s4 839922192
  %v875 = vunpack.c.0.s8 %v874
  %v876 = vlaneseq
  %v877 = vshrl.u32 %v876, 7
  %v878 = vsub.s32 %v875, %v877
  %v879 = vrot.slane %v872, %v878
  %v881 = vadd.f32 %v866, %v879
  %v882 = vadd.f32 %v867, %v879
  %vm883 = vcmp.ge.f32.partialorder %v881, 0.0
  %vm884 = vcmp.ge.f32.partialorder %v882, 0.0
  %v885 = vmul.f32 %v881, 0.22916667
  %v886 = vmul.f32 %v882, 0.22916667
  %v887 = vsel %vm883, %v881, %v885
  %v888 = vsel %vm884, %v882, %v886
  %v889 = vmul.f32 %v887, %v813
  %v890 = vmul.f32 %v888, %v417
  %891 = vst [vmem:[#allocation4 + $0x4] sm:$0xff] %v889
  %892 = vst.msk [vmem:[#allocation4 + $0xc] sm:$0xf] %vm64, %v890
  %v893 = vld [vmem:[%s784] sm:$0xff]
  %v894 = vld [vmem:[%s784 + $0x8] sm:$0xf]
  %v895 = vsub.f32 %v893, %v809
  %v896 = vsub.f32 %v894, %v809
  %v897 = vmul.f32 %v895, %v864
  %v898 = vmul.f32 %v896, %v864
  %v899 = vld [vmem:[%s6] sm:$0xf]
  %901 = vset.pattern.permute.xlu0 0
  %902 = vperm.xlu0 %901, %v899
  %v903 = vpop.permute.xlu0 %902
  %v905 = vunpack.c.l.s4 839922192
  %v906 = vunpack.c.0.s8 %v905
  %v907 = vlaneseq
  %v908 = vshrl.u32 %v907, 7
  %v909 = vsub.s32 %v906, %v908
  %v910 = vrot.slane %v903, %v909
  %v912 = vadd.f32 %v897, %v910
  %v913 = vadd.f32 %v898, %v910
  %vm914 = vcmp.ge.f32.partialorder %v912, 0.0
  %vm915 = vcmp.ge.f32.partialorder %v913, 0.0
  %v916 = vmul.f32 %v912, 0.22916667
  %v917 = vmul.f32 %v913, 0.22916667
  %v918 = vsel %vm914, %v912, %v916
  %v919 = vsel %vm915, %v913, %v917
  %v920 = vmul.f32 %v918, %v813
  %v921 = vmul.f32 %v919, %v417
  %s922 = scalar_lea.vmem [#allocation4], 16
  %923 = vst [vmem:[%s922 + $0x4] sm:$0xff] %v920
  %924 = vst.msk [vmem:[%s922 + $0xc] sm:$0xf] %vm64, %v921
  %v925 = vld [vmem:[%s3] sm:$0xff]
  %v926 = vld [vmem:[#allocation4] sm:$0xff]
  %v927 = vld [vmem:[#allocation4 + $0x8] sm:$0xff]
  %v930 = vcombine.high %v926, %v926
  %v931 = vcombine.high %v927, %v927
  %932 = vrot.lane.b32.xlu0 %v926, 19
  %v933 = vpop.permute.xlu0 %932
  %934 = vrot.lane.b32.xlu0 %v930, 19
  %v935 = vpop.permute.xlu0 %934
  %936 = vrot.lane.b32.xlu0 %v927, 19
  %v937 = vpop.permute.xlu0 %936
  %938 = vrot.lane.b32.xlu0 %v931, 19
  %v939 = vpop.permute.xlu0 %938
  %v940 = vsel %vm55, %v933, %v935
  %v941 = vsel %vm55, %v935, %v937
  %v942 = vsel %vm55, %v937, %v939
  %946 = vst [vmem:[#allocation2] sm:$0xf] %v940
  %947 = vst [vmem:[#allocation2 + $0x8] sm:$0xf] %v941
  %948 = vst.msk [vmem:[#allocation2 + $0x10] sm:$0xf] %vm64, %v942
  %v949 = vld [vmem:[#allocation4] sm:$0xff]
  %v950 = vld [vmem:[#allocation4 + $0x8] sm:$0xff]
  %v953 = vcombine.low %v949, %v949
  %v954 = vcombine.low %v950, %v950
  %955 = vrot.lane.b32.xlu0 %v953, 18
  %v956 = vpop.permute.xlu0 %955
  %957 = vrot.lane.b32.xlu0 %v949, 18
  %v958 = vpop.permute.xlu0 %957
  %959 = vrot.lane.b32.xlu0 %v954, 18
  %v960 = vpop.permute.xlu0 %959
  %961 = vrot.lane.b32.xlu0 %v950, 18
  %v962 = vpop.permute.xlu0 %961
  %v963 = vsel %vm80, %v956, %v958
  %v964 = vsel %vm80, %v958, %v960
  %v965 = vsel %vm80, %v960, %v962
  %969 = vst [vmem:[#allocation2] sm:$0xf0] %v963
  %970 = vst [vmem:[#allocation2 + $0x8] sm:$0xf0] %v964
  %971 = vst.msk [vmem:[#allocation2 + $0x10] sm:$0xf0] %vm89, %v965
  %v972 = vld [vmem:[#allocation4] sm:$0xff]
  %v973 = vld [vmem:[#allocation4 + $0x8] sm:$0xff]
  %v976 = vcombine.high %v972, %v972
  %v977 = vcombine.high %v973, %v973
  %978 = vrot.lane.b32.xlu0 %v972, 1
  %v979 = vpop.permute.xlu0 %978
  %980 = vrot.lane.b32.xlu0 %v976, 1
  %v981 = vpop.permute.xlu0 %980
  %982 = vrot.lane.b32.xlu0 %v973, 1
  %v983 = vpop.permute.xlu0 %982
  %984 = vrot.lane.b32.xlu0 %v977, 1
  %v985 = vpop.permute.xlu0 %984
  %v986 = vsel %vm129, %v979, %v981
  %v987 = vsel %vm129, %v981, %v983
  %v988 = vsel %vm129, %v983, %v985
  %992 = vst [vmem:[#allocation2 + $0x18] sm:$0xf] %v986
  %993 = vst [vmem:[#allocation2 + $0x20] sm:$0xf] %v987
  %994 = vst.msk [vmem:[#allocation2 + $0x28] sm:$0xf] %vm64, %v988
  %v995 = vld [vmem:[#allocation4 + $0x4] sm:$0xff]
  %v996 = vld [vmem:[#allocation4 + $0xc] sm:$0xf]
  %v999 = vcombine.low %v995, %v995
  %v1000 = vcombine.low %v996, %v996
  %1003 = vst [vmem:[#allocation2 + $0x18] sm:$0xf0] %v999
  %1004 = vst [vmem:[#allocation2 + $0x20] sm:$0xf0] %v995
  %1005 = vst.msk [vmem:[#allocation2 + $0x28] sm:$0xf0] %vm89, %v1000
  %v1006 = vld [vmem:[#allocation2] sm:$0xff]
  %v1007 = vld [vmem:[#allocation2 + $0x8] sm:$0xff]
  %v1008 = vld [vmem:[#allocation2 + $0x10] sm:$0xff]
  %v1009 = vld [vmem:[#allocation2 + $0x18] sm:$0xff]
  %v1010 = vld [vmem:[#allocation2 + $0x20] sm:$0xff]
  %v1011 = vld [vmem:[#allocation2 + $0x28] sm:$0xff]
  %vm1012 = vcmask 130048
  %v1014 = vsel %vm1012, %v925, 0
  %1016 = vmatprep.subr.mxu0 0.0
  %1017 = vmatpush1.msra.mxu0 0.0
  %1018 = vmatprep.subr.mxu0 0.0
  %1019 = vmatpush1.msra.mxu0 0.0
  %1020 = vmatprep.subr.mxu0 0.0
  %1021 = vmatpush1.msra.mxu0 0.0
  %1022 = vmatprep.subr.mxu0 0.0
  %1023 = vmatpush1.msra.mxu0 0.0
  %1024 = vmatprep.subr.mxu0 0.0
  %1025 = vmatpush1.msra.mxu0 0.0
  %1026 = vmatprep.subr.mxu0 0.0
  %1027 = vmatpush1.msra.mxu0 0.0
  %1028 = vmatprep.subr.mxu0 0.0
  %1029 = vmatpush1.msra.mxu0 0.0
  %1030 = vmatprep.subr.mxu0 0.0
  %1031 = vmatpush1.msra.mxu0 0.0
  %1032 = vmatprep.subr.mxu0 0.0
  %1033 = vmatpush1.msra.mxu0 0.0
  %1034 = vmatprep.subr.mxu0 0.0
  %1035 = vmatpush1.msra.mxu0 0.0
  %1036 = vmatprep.subr.mxu0 0.0
  %1037 = vmatpush1.msra.mxu0 0.0
  %1038 = vmatprep.subr.mxu0 0.0
  %1039 = vmatpush1.msra.mxu0 0.0
  %1040 = vmatprep.subr.mxu0 0.0
  %1041 = vmatpush1.msra.mxu0 0.0
  %1042 = vmatprep.subr.mxu0 0.0
  %1043 = vmatpush1.msra.mxu0 0.0
  %1044 = vmatprep.subr.mxu0 %v1010
  %1045 = vmatpush1.msra.mxu0 %v1009
  %1046 = vmatprep.subr.mxu0 %v1007
  %1047 = vmatpush1.msra.mxu0 %v1006
  %1048 = vmatprep.subr.mxu0 0.0
  %1049 = vmatpush2.msra.mxu0 0.0
  %1050 = vmatprep.subr.mxu0 0.0
  %1051 = vmatpush2.msra.mxu0 0.0
  %1052 = vmatprep.subr.mxu0 0.0
  %1053 = vmatpush2.msra.mxu0 0.0
  %1054 = vmatprep.subr.mxu0 0.0
  %1055 = vmatpush2.msra.mxu0 0.0
  %1056 = vmatprep.subr.mxu0 0.0
  %1057 = vmatpush2.msra.mxu0 0.0
  %1058 = vmatprep.subr.mxu0 0.0
  %1059 = vmatpush2.msra.mxu0 0.0
  %1060 = vmatprep.subr.mxu0 0.0
  %1061 = vmatpush2.msra.mxu0 0.0
  %1062 = vmatprep.subr.mxu0 0.0
  %1063 = vmatpush2.msra.mxu0 0.0
  %1064 = vmatprep.subr.mxu0 0.0
  %1065 = vmatpush2.msra.mxu0 0.0
  %1066 = vmatprep.subr.mxu0 0.0
  %1067 = vmatpush2.msra.mxu0 0.0
  %1068 = vmatprep.subr.mxu0 0.0
  %1069 = vmatpush2.msra.mxu0 0.0
  %1070 = vmatprep.subr.mxu0 0.0
  %1071 = vmatpush2.msra.mxu0 0.0
  %1072 = vmatprep.subr.mxu0 0.0
  %1073 = vmatpush2.msra.mxu0 0.0
  %1074 = vmatprep.subr.mxu0 0.0
  %1075 = vmatpush2.msra.mxu0 0.0
  %1076 = vmatprep.subr.mxu0 0.0
  %1077 = vmatpush2.msra.mxu0 0.0
  %1078 = vmatprep.subr.mxu0 0.0
  %1079 = vmatpush2.msra.mxu0 0.0
  %1080 = vmatprep.mubr.f32.mxu0 0.0
  %1081 = vmatmul.mubr.f32.gmra.mxu0 %v1014
  %v1082 = vpop.f32.mrf.mxu0
  %v1083 = vadd.f32 0.0, %v1082
  %v1084 = vpop.f32.mrf.mxu0
  %v1085 = vadd.f32 0.0, %v1084
  %1086 = vdwg.mxu0
  %1087 = vmatprep.subr.mxu0 0.0
  %1088 = vmatpush1.msra.mxu0 0.0
  %1089 = vmatprep.subr.mxu0 0.0
  %1090 = vmatpush1.msra.mxu0 0.0
  %1091 = vmatprep.subr.mxu0 0.0
  %1092 = vmatpush1.msra.mxu0 0.0
  %1093 = vmatprep.subr.mxu0 0.0
  %1094 = vmatpush1.msra.mxu0 0.0
  %1095 = vmatprep.subr.mxu0 0.0
  %1096 = vmatpush1.msra.mxu0 0.0
  %1097 = vmatprep.subr.mxu0 0.0
  %1098 = vmatpush1.msra.mxu0 0.0
  %1099 = vmatprep.subr.mxu0 0.0
  %1100 = vmatpush1.msra.mxu0 0.0
  %1101 = vmatprep.subr.mxu0 0.0
  %1102 = vmatpush1.msra.mxu0 0.0
  %1103 = vmatprep.subr.mxu0 0.0
  %1104 = vmatpush1.msra.mxu0 0.0
  %1105 = vmatprep.subr.mxu0 0.0
  %1106 = vmatpush1.msra.mxu0 0.0
  %1107 = vmatprep.subr.mxu0 0.0
  %1108 = vmatpush1.msra.mxu0 0.0
  %1109 = vmatprep.subr.mxu0 0.0
  %1110 = vmatpush1.msra.mxu0 0.0
  %1111 = vmatprep.subr.mxu0 0.0
  %1112 = vmatpush1.msra.mxu0 0.0
  %1113 = vmatprep.subr.mxu0 0.0
  %1114 = vmatpush1.msra.mxu0 0.0
  %1115 = vmatprep.subr.mxu0 0.0
  %1116 = vmatpush1.msra.mxu0 %v1011
  %1117 = vmatprep.subr.mxu0 0.0
  %1118 = vmatpush1.msra.mxu0 %v1008
  %1119 = vmatprep.subr.mxu0 0.0
  %1120 = vmatpush2.msra.mxu0 0.0
  %1121 = vmatprep.subr.mxu0 0.0
  %1122 = vmatpush2.msra.mxu0 0.0
  %1123 = vmatprep.subr.mxu0 0.0
  %1124 = vmatpush2.msra.mxu0 0.0
  %1125 = vmatprep.subr.mxu0 0.0
  %1126 = vmatpush2.msra.mxu0 0.0
  %1127 = vmatprep.subr.mxu0 0.0
  %1128 = vmatpush2.msra.mxu0 0.0
  %1129 = vmatprep.subr.mxu0 0.0
  %1130 = vmatpush2.msra.mxu0 0.0
  %1131 = vmatprep.subr.mxu0 0.0
  %1132 = vmatpush2.msra.mxu0 0.0
  %1133 = vmatprep.subr.mxu0 0.0
  %1134 = vmatpush2.msra.mxu0 0.0
  %1135 = vmatprep.subr.mxu0 0.0
  %1136 = vmatpush2.msra.mxu0 0.0
  %1137 = vmatprep.subr.mxu0 0.0
  %1138 = vmatpush2.msra.mxu0 0.0
  %1139 = vmatprep.subr.mxu0 0.0
  %1140 = vmatpush2.msra.mxu0 0.0
  %1141 = vmatprep.subr.mxu0 0.0
  %1142 = vmatpush2.msra.mxu0 0.0
  %1143 = vmatprep.subr.mxu0 0.0
  %1144 = vmatpush2.msra.mxu0 0.0
  %1145 = vmatprep.subr.mxu0 0.0
  %1146 = vmatpush2.msra.mxu0 0.0
  %1147 = vmatprep.subr.mxu0 0.0
  %1148 = vmatpush2.msra.mxu0 0.0
  %1149 = vmatprep.subr.mxu0 0.0
  %1150 = vmatpush2.msra.mxu0 0.0
  %1151 = vmatprep.mubr.f32.mxu0 0.0
  %1152 = vmatmul.mubr.f32.gmra.mxu0 %v1014
  %v1153 = vpop.f32.mrf.mxu0
  %v1154 = vadd.f32 0.0, %v1153
  %v1155 = vpop.f32.mrf.mxu0
  %1156 = vdwg.mxu0
  %1157 = vst [vmem:[#allocation5] sm:$0xff] %v1083
  %1158 = vst [vmem:[#allocation5 + $0x8] sm:$0xff] %v1085
  %vm1159 = vcmask 261120
  %1160 = vst.msk [vmem:[#allocation5 + $0x10] sm:$0xff] %vm1159, %v1154
  %v1161 = vmul.f32 %v1083, %v409
  %v1162 = vmul.f32 %v1085, %v413
  %v1163 = vmul.f32 %v1154, %v417
  %v1164 = vadd.f32 %v1161, %v1162
  %v1165 = vsel %vm1159, %v1163, 0.0
  %v1166 = vadd.f32 %v1164, %v1165
  %1167 = vadd.xlane.f32.xlu0 %v1166
  %v1168 = vpop.xlane.xlu0 %1167
  %v1169 = vadd.f32 %v1168, 0.0
  %s1170 = scalar_lea.vmem %s3, 8
  %v1171 = vld [vmem:[%s1170] sm:$0xff]
  %v1172 = vld [vmem:[#allocation4] sm:$0xff]
  %v1173 = vld [vmem:[#allocation4 + $0x8] sm:$0xff]
  %v1176 = vcombine.high %v1172, %v1172
  %v1177 = vcombine.high %v1173, %v1173
  %1178 = vrot.lane.b32.xlu0 %v1172, 18
  %v1179 = vpop.permute.xlu0 %1178
  %1180 = vrot.lane.b32.xlu0 %v1176, 18
  %v1181 = vpop.permute.xlu0 %1180
  %1182 = vrot.lane.b32.xlu0 %v1173, 18
  %v1183 = vpop.permute.xlu0 %1182
  %1184 = vrot.lane.b32.xlu0 %v1177, 18
  %v1185 = vpop.permute.xlu0 %1184
  %v1186 = vsel %vm80, %v1179, %v1181
  %v1187 = vsel %vm80, %v1181, %v1183
  %v1188 = vsel %vm80, %v1183, %v1185
  %1192 = vst [vmem:[#allocation2] sm:$0xf] %v1186
  %1193 = vst [vmem:[#allocation2 + $0x8] sm:$0xf] %v1187
  %1194 = vst.msk [vmem:[#allocation2 + $0x10] sm:$0xf] %vm64, %v1188
  %v1195 = vld [vmem:[#allocation4] sm:$0xff]
  %v1196 = vld [vmem:[#allocation4 + $0x8] sm:$0xff]
  %v1199 = vcombine.low %v1195, %v1195
  %v1200 = vcombine.low %v1196, %v1196
  %1201 = vrot.lane.b32.xlu0 %v1199, 17
  %v1202 = vpop.permute.xlu0 %1201
  %1203 = vrot.lane.b32.xlu0 %v1195, 17
  %v1204 = vpop.permute.xlu0 %1203
  %1205 = vrot.lane.b32.xlu0 %v1200, 17
  %v1206 = vpop.permute.xlu0 %1205
  %1207 = vrot.lane.b32.xlu0 %v1196, 17
  %v1208 = vpop.permute.xlu0 %1207
  %v1209 = vsel %vm105, %v1202, %v1204
  %v1210 = vsel %vm105, %v1204, %v1206
  %v1211 = vsel %vm105, %v1206, %v1208
  %1215 = vst [vmem:[#allocation2] sm:$0xf0] %v1209
  %1216 = vst [vmem:[#allocation2 + $0x8] sm:$0xf0] %v1210
  %1217 = vst.msk [vmem:[#allocation2 + $0x10] sm:$0xf0] %vm89, %v1211
  %v1218 = vld [vmem:[#allocation4 + $0x4] sm:$0xff]
  %v1219 = vld [vmem:[#allocation4 + $0xc] sm:$0xf]
  %v1221 = vcombine.high %v1218, %v1218
  %1223 = vst [vmem:[#allocation2 + $0x18] sm:$0xf] %v1218
  %1224 = vst [vmem:[#allocation2 + $0x20] sm:$0xf] %v1221
  %1225 = vst.msk [vmem:[#allocation2 + $0x28] sm:$0xf] %vm64, %v1219
  %v1226 = vld [vmem:[#allocation4 + $0x4] sm:$0xff]
  %v1227 = vld [vmem:[#allocation4 + $0xc] sm:$0xf]
  %v1230 = vcombine.low %v1226, %v1226
  %v1231 = vcombine.low %v1227, %v1227
  %1232 = vrot.lane.b32.xlu0 %v1230, 127
  %v1233 = vpop.permute.xlu0 %1232
  %1234 = vrot.lane.b32.xlu0 %v1226, 127
  %v1235 = vpop.permute.xlu0 %1234
  %1236 = vrot.lane.b32.xlu0 %v1231, 127
  %v1237 = vpop.permute.xlu0 %1236
  %v1238 = vsel %vm159, %v1233, %v1235
  %v1239 = vsel %vm159, %v1235, %v1237
  %1243 = vst [vmem:[#allocation2 + $0x18] sm:$0xf0] %v1238
  %1244 = vst [vmem:[#allocation2 + $0x20] sm:$0xf0] %v1239
  %1245 = vst.msk [vmem:[#allocation2 + $0x28] sm:$0xf0] %vm89, %v1237
  %v1246 = vld [vmem:[#allocation2] sm:$0xff]
  %v1247 = vld [vmem:[#allocation2 + $0x8] sm:$0xff]
  %v1248 = vld [vmem:[#allocation2 + $0x10] sm:$0xff]
  %v1249 = vld [vmem:[#allocation2 + $0x18] sm:$0xff]
  %v1250 = vld [vmem:[#allocation2 + $0x20] sm:$0xff]
  %v1251 = vld [vmem:[#allocation2 + $0x28] sm:$0xff]
  %v1253 = vsel %vm1012, %v1171, 0
  %1255 = vmatprep.subr.mxu0 0.0
  %1256 = vmatpush1.msra.mxu0 0.0
  %1257 = vmatprep.subr.mxu0 0.0
  %1258 = vmatpush1.msra.mxu0 0.0
  %1259 = vmatprep.subr.mxu0 0.0
  %1260 = vmatpush1.msra.mxu0 0.0
  %1261 = vmatprep.subr.mxu0 0.0
  %1262 = vmatpush1.msra.mxu0 0.0
  %1263 = vmatprep.subr.mxu0 0.0
  %1264 = vmatpush1.msra.mxu0 0.0
  %1265 = vmatprep.subr.mxu0 0.0
  %1266 = vmatpush1.msra.mxu0 0.0
  %1267 = vmatprep.subr.mxu0 0.0
  %1268 = vmatpush1.msra.mxu0 0.0
  %1269 = vmatprep.subr.mxu0 0.0
  %1270 = vmatpush1.msra.mxu0 0.0
  %1271 = vmatprep.subr.mxu0 0.0
  %1272 = vmatpush1.msra.mxu0 0.0
  %1273 = vmatprep.subr.mxu0 0.0
  %1274 = vmatpush1.msra.mxu0 0.0
  %1275 = vmatprep.subr.mxu0 0.0
  %1276 = vmatpush1.msra.mxu0 0.0
  %1277 = vmatprep.subr.mxu0 0.0
  %1278 = vmatpush1.msra.mxu0 0.0
  %1279 = vmatprep.subr.mxu0 0.0
  %1280 = vmatpush1.msra.mxu0 0.0
  %1281 = vmatprep.subr.mxu0 0.0
  %1282 = vmatpush1.msra.mxu0 0.0
  %1283 = vmatprep.subr.mxu0 %v1250
  %1284 = vmatpush1.msra.mxu0 %v1249
  %1285 = vmatprep.subr.mxu0 %v1247
  %1286 = vmatpush1.msra.mxu0 %v1246
  %1287 = vmatprep.subr.mxu0 0.0
  %1288 = vmatpush2.msra.mxu0 0.0
  %1289 = vmatprep.subr.mxu0 0.0
  %1290 = vmatpush2.msra.mxu0 0.0
  %1291 = vmatprep.subr.mxu0 0.0
  %1292 = vmatpush2.msra.mxu0 0.0
  %1293 = vmatprep.subr.mxu0 0.0
  %1294 = vmatpush2.msra.mxu0 0.0
  %1295 = vmatprep.subr.mxu0 0.0
  %1296 = vmatpush2.msra.mxu0 0.0
  %1297 = vmatprep.subr.mxu0 0.0
  %1298 = vmatpush2.msra.mxu0 0.0
  %1299 = vmatprep.subr.mxu0 0.0
  %1300 = vmatpush2.msra.mxu0 0.0
  %1301 = vmatprep.subr.mxu0 0.0
  %1302 = vmatpush2.msra.mxu0 0.0
  %1303 = vmatprep.subr.mxu0 0.0
  %1304 = vmatpush2.msra.mxu0 0.0
  %1305 = vmatprep.subr.mxu0 0.0
  %1306 = vmatpush2.msra.mxu0 0.0
  %1307 = vmatprep.subr.mxu0 0.0
  %1308 = vmatpush2.msra.mxu0 0.0
  %1309 = vmatprep.subr.mxu0 0.0
  %1310 = vmatpush2.msra.mxu0 0.0
  %1311 = vmatprep.subr.mxu0 0.0
  %1312 = vmatpush2.msra.mxu0 0.0
  %1313 = vmatprep.subr.mxu0 0.0
  %1314 = vmatpush2.msra.mxu0 0.0
  %1315 = vmatprep.subr.mxu0 0.0
  %1316 = vmatpush2.msra.mxu0 0.0
  %1317 = vmatprep.subr.mxu0 0.0
  %1318 = vmatpush2.msra.mxu0 0.0
  %1319 = vmatprep.mubr.f32.mxu0 0.0
  %1320 = vmatmul.mubr.f32.gmra.mxu0 %v1253
  %v1321 = vpop.f32.mrf.mxu0
  %v1322 = vadd.f32 0.0, %v1321
  %v1323 = vpop.f32.mrf.mxu0
  %v1324 = vadd.f32 0.0, %v1323
  %1325 = vdwg.mxu0
  %1326 = vmatprep.subr.mxu0 0.0
  %1327 = vmatpush1.msra.mxu0 0.0
  %1328 = vmatprep.subr.mxu0 0.0
  %1329 = vmatpush1.msra.mxu0 0.0
  %1330 = vmatprep.subr.mxu0 0.0
  %1331 = vmatpush1.msra.mxu0 0.0
  %1332 = vmatprep.subr.mxu0 0.0
  %1333 = vmatpush1.msra.mxu0 0.0
  %1334 = vmatprep.subr.mxu0 0.0
  %1335 = vmatpush1.msra.mxu0 0.0
  %1336 = vmatprep.subr.mxu0 0.0
  %1337 = vmatpush1.msra.mxu0 0.0
  %1338 = vmatprep.subr.mxu0 0.0
  %1339 = vmatpush1.msra.mxu0 0.0
  %1340 = vmatprep.subr.mxu0 0.0
  %1341 = vmatpush1.msra.mxu0 0.0
  %1342 = vmatprep.subr.mxu0 0.0
  %1343 = vmatpush1.msra.mxu0 0.0
  %1344 = vmatprep.subr.mxu0 0.0
  %1345 = vmatpush1.msra.mxu0 0.0
  %1346 = vmatprep.subr.mxu0 0.0
  %1347 = vmatpush1.msra.mxu0 0.0
  %1348 = vmatprep.subr.mxu0 0.0
  %1349 = vmatpush1.msra.mxu0 0.0
  %1350 = vmatprep.subr.mxu0 0.0
  %1351 = vmatpush1.msra.mxu0 0.0
  %1352 = vmatprep.subr.mxu0 0.0
  %1353 = vmatpush1.msra.mxu0 0.0
  %1354 = vmatprep.subr.mxu0 0.0
  %1355 = vmatpush1.msra.mxu0 %v1251
  %1356 = vmatprep.subr.mxu0 0.0
  %1357 = vmatpush1.msra.mxu0 %v1248
  %1358 = vmatprep.subr.mxu0 0.0
  %1359 = vmatpush2.msra.mxu0 0.0
  %1360 = vmatprep.subr.mxu0 0.0
  %1361 = vmatpush2.msra.mxu0 0.0
  %1362 = vmatprep.subr.mxu0 0.0
  %1363 = vmatpush2.msra.mxu0 0.0
  %1364 = vmatprep.subr.mxu0 0.0
  %1365 = vmatpush2.msra.mxu0 0.0
  %1366 = vmatprep.subr.mxu0 0.0
  %1367 = vmatpush2.msra.mxu0 0.0
  %1368 = vmatprep.subr.mxu0 0.0
  %1369 = vmatpush2.msra.mxu0 0.0
  %1370 = vmatprep.subr.mxu0 0.0
  %1371 = vmatpush2.msra.mxu0 0.0
  %1372 = vmatprep.subr.mxu0 0.0
  %1373 = vmatpush2.msra.mxu0 0.0
  %1374 = vmatprep.subr.mxu0 0.0
  %1375 = vmatpush2.msra.mxu0 0.0
  %1376 = vmatprep.subr.mxu0 0.0
  %1377 = vmatpush2.msra.mxu0 0.0
  %1378 = vmatprep.subr.mxu0 0.0
  %1379 = vmatpush2.msra.mxu0 0.0
  %1380 = vmatprep.subr.mxu0 0.0
  %1381 = vmatpush2.msra.mxu0 0.0
  %1382 = vmatprep.subr.mxu0 0.0
  %1383 = vmatpush2.msra.mxu0 0.0
  %1384 = vmatprep.subr.mxu0 0.0
  %1385 = vmatpush2.msra.mxu0 0.0
  %1386 = vmatprep.subr.mxu0 0.0
  %1387 = vmatpush2.msra.mxu0 0.0
  %1388 = vmatprep.subr.mxu0 0.0
  %1389 = vmatpush2.msra.mxu0 0.0
  %1390 = vmatprep.mubr.f32.mxu0 0.0
  %1391 = vmatmul.mubr.f32.gmra.mxu0 %v1253
  %v1392 = vpop.f32.mrf.mxu0
  %v1393 = vadd.f32 0.0, %v1392
  %v1394 = vpop.f32.mrf.mxu0
  %1395 = vdwg.mxu0
  %s1396 = scalar_lea.vmem [#allocation5], 24
  %1397 = vst [vmem:[%s1396] sm:$0xff] %v1322
  %1398 = vst [vmem:[%s1396 + $0x8] sm:$0xff] %v1324
  %1399 = vst.msk [vmem:[%s1396 + $0x10] sm:$0xff] %vm1159, %v1393
  %v1400 = vmul.f32 %v1322, %v409
  %v1401 = vmul.f32 %v1324, %v413
  %v1402 = vmul.f32 %v1393, %v417
  %v1403 = vadd.f32 %v1400, %v1401
  %v1404 = vsel %vm1159, %v1402, 0.0
  %v1405 = vadd.f32 %v1403, %v1404
  %1406 = vadd.xlane.f32.xlu0 %v1405
  %v1407 = vpop.xlane.xlu0 %1406
  %v1408 = vadd.f32 %v1169, %v1407
  %s1409 = scalar_lea.vmem %s3, 16
  %v1410 = vld [vmem:[%s1409] sm:$0xff]
  %v1411 = vld [vmem:[#allocation4] sm:$0xff]
  %v1412 = vld [vmem:[#allocation4 + $0x8] sm:$0xff]
  %v1415 = vcombine.high %v1411, %v1411
  %v1416 = vcombine.high %v1412, %v1412
  %1417 = vrot.lane.b32.xlu0 %v1411, 1
  %v1418 = vpop.permute.xlu0 %1417
  %1419 = vrot.lane.b32.xlu0 %v1415, 1
  %v1420 = vpop.permute.xlu0 %1419
  %1421 = vrot.lane.b32.xlu0 %v1412, 1
  %v1422 = vpop.permute.xlu0 %1421
  %1423 = vrot.lane.b32.xlu0 %v1416, 1
  %v1424 = vpop.permute.xlu0 %1423
  %v1425 = vsel %vm129, %v1418, %v1420
  %v1426 = vsel %vm129, %v1420, %v1422
  %v1427 = vsel %vm129, %v1422, %v1424
  %1431 = vst [vmem:[#allocation2] sm:$0xf] %v1425
  %1432 = vst [vmem:[#allocation2 + $0x8] sm:$0xf] %v1426
  %1433 = vst.msk [vmem:[#allocation2 + $0x10] sm:$0xf] %vm64, %v1427
  %v1434 = vld [vmem:[#allocation4 + $0x4] sm:$0xff]
  %v1435 = vld [vmem:[#allocation4 + $0xc] sm:$0xf]
  %v1438 = vcombine.low %v1434, %v1434
  %v1439 = vcombine.low %v1435, %v1435
  %1442 = vst [vmem:[#allocation2] sm:$0xf0] %v1438
  %1443 = vst [vmem:[#allocation2 + $0x8] sm:$0xf0] %v1434
  %1444 = vst.msk [vmem:[#allocation2 + $0x10] sm:$0xf0] %vm89, %v1439
  %v1445 = vld [vmem:[#allocation4 + $0x4] sm:$0xff]
  %v1446 = vld [vmem:[#allocation4 + $0xc] sm:$0xf]
  %v1449 = vcombine.high %v1445, %v1445
  %1450 = vrot.lane.b32.xlu0 %v1445, 111
  %v1451 = vpop.permute.xlu0 %1450
  %1452 = vrot.lane.b32.xlu0 %v1449, 111
  %v1453 = vpop.permute.xlu0 %1452
  %1454 = vrot.lane.b32.xlu0 %v1446, 111
  %v1455 = vpop.permute.xlu0 %1454
  %v1456 = vsel %vm179, %v1451, %v1453
  %v1457 = vsel %vm179, %v1453, %v1455
  %1461 = vst [vmem:[#allocation2 + $0x18] sm:$0xf] %v1456
  %1462 = vst [vmem:[#allocation2 + $0x20] sm:$0xf] %v1457
  %1463 = vst.msk [vmem:[#allocation2 + $0x28] sm:$0xf] %vm64, %v1455
  %v1464 = vld [vmem:[#allocation4 + $0x4] sm:$0xff]
  %v1465 = vld [vmem:[#allocation4 + $0xc] sm:$0xf]
  %v1468 = vcombine.low %v1464, %v1464
  %v1469 = vcombine.low %v1465, %v1465
  %1470 = vrot.lane.b32.xlu0 %v1468, 110
  %v1471 = vpop.permute.xlu0 %1470
  %1472 = vrot.lane.b32.xlu0 %v1464, 110
  %v1473 = vpop.permute.xlu0 %1472
  %1474 = vrot.lane.b32.xlu0 %v1469, 110
  %v1475 = vpop.permute.xlu0 %1474
  %v1476 = vsel %vm200, %v1471, %v1473
  %v1477 = vsel %vm200, %v1473, %v1475
  %1481 = vst [vmem:[#allocation2 + $0x18] sm:$0xf0] %v1476
  %1482 = vst [vmem:[#allocation2 + $0x20] sm:$0xf0] %v1477
  %1483 = vst.msk [vmem:[#allocation2 + $0x28] sm:$0xf0] %vm89, %v1475
  %v1484 = vld [vmem:[#allocation2] sm:$0xff]
  %v1485 = vld [vmem:[#allocation2 + $0x8] sm:$0xff]
  %v1486 = vld [vmem:[#allocation2 + $0x10] sm:$0xff]
  %v1487 = vld [vmem:[#allocation2 + $0x18] sm:$0xff]
  %v1488 = vld [vmem:[#allocation2 + $0x20] sm:$0xff]
  %v1489 = vld [vmem:[#allocation2 + $0x28] sm:$0xff]
  %v1491 = vsel %vm1012, %v1410, 0
  %1493 = vmatprep.subr.mxu0 0.0
  %1494 = vmatpush1.msra.mxu0 0.0
  %1495 = vmatprep.subr.mxu0 0.0
  %1496 = vmatpush1.msra.mxu0 0.0
  %1497 = vmatprep.subr.mxu0 0.0
  %1498 = vmatpush1.msra.mxu0 0.0
  %1499 = vmatprep.subr.mxu0 0.0
  %1500 = vmatpush1.msra.mxu0 0.0
  %1501 = vmatprep.subr.mxu0 0.0
  %1502 = vmatpush1.msra.mxu0 0.0
  %1503 = vmatprep.subr.mxu0 0.0
  %1504 = vmatpush1.msra.mxu0 0.0
  %1505 = vmatprep.subr.mxu0 0.0
  %1506 = vmatpush1.msra.mxu0 0.0
  %1507 = vmatprep.subr.mxu0 0.0
  %1508 = vmatpush1.msra.mxu0 0.0
  %1509 = vmatprep.subr.mxu0 0.0
  %1510 = vmatpush1.msra.mxu0 0.0
  %1511 = vmatprep.subr.mxu0 0.0
  %1512 = vmatpush1.msra.mxu0 0.0
  %1513 = vmatprep.subr.mxu0 0.0
  %1514 = vmatpush1.msra.mxu0 0.0
  %1515 = vmatprep.subr.mxu0 0.0
  %1516 = vmatpush1.msra.mxu0 0.0
  %1517 = vmatprep.subr.mxu0 0.0
  %1518 = vmatpush1.msra.mxu0 0.0
  %1519 = vmatprep.subr.mxu0 0.0
  %1520 = vmatpush1.msra.mxu0 0.0
  %1521 = vmatprep.subr.mxu0 %v1488
  %1522 = vmatpush1.msra.mxu0 %v1487
  %1523 = vmatprep.subr.mxu0 %v1485
  %1524 = vmatpush1.msra.mxu0 %v1484
  %1525 = vmatprep.subr.mxu0 0.0
  %1526 = vmatpush2.msra.mxu0 0.0
  %1527 = vmatprep.subr.mxu0 0.0
  %1528 = vmatpush2.msra.mxu0 0.0
  %1529 = vmatprep.subr.mxu0 0.0
  %1530 = vmatpush2.msra.mxu0 0.0
  %1531 = vmatprep.subr.mxu0 0.0
  %1532 = vmatpush2.msra.mxu0 0.0
  %1533 = vmatprep.subr.mxu0 0.0
  %1534 = vmatpush2.msra.mxu0 0.0
  %1535 = vmatprep.subr.mxu0 0.0
  %1536 = vmatpush2.msra.mxu0 0.0
  %1537 = vmatprep.subr.mxu0 0.0
  %1538 = vmatpush2.msra.mxu0 0.0
  %1539 = vmatprep.subr.mxu0 0.0
  %1540 = vmatpush2.msra.mxu0 0.0
  %1541 = vmatprep.subr.mxu0 0.0
  %1542 = vmatpush2.msra.mxu0 0.0
  %1543 = vmatprep.subr.mxu0 0.0
  %1544 = vmatpush2.msra.mxu0 0.0
  %1545 = vmatprep.subr.mxu0 0.0
  %1546 = vmatpush2.msra.mxu0 0.0
  %1547 = vmatprep.subr.mxu0 0.0
  %1548 = vmatpush2.msra.mxu0 0.0
  %1549 = vmatprep.subr.mxu0 0.0
  %1550 = vmatpush2.msra.mxu0 0.0
  %1551 = vmatprep.subr.mxu0 0.0
  %1552 = vmatpush2.msra.mxu0 0.0
  %1553 = vmatprep.subr.mxu0 0.0
  %1554 = vmatpush2.msra.mxu0 0.0
  %1555 = vmatprep.subr.mxu0 0.0
  %1556 = vmatpush2.msra.mxu0 0.0
  %1557 = vmatprep.mubr.f32.mxu0 0.0
  %1558 = vmatmul.mubr.f32.gmra.mxu0 %v1491
  %v1559 = vpop.f32.mrf.mxu0
  %v1560 = vadd.f32 0.0, %v1559
  %v1561 = vpop.f32.mrf.mxu0
  %v1562 = vadd.f32 0.0, %v1561
  %1563 = vdwg.mxu0
  %1564 = vmatprep.subr.mxu0 0.0
  %1565 = vmatpush1.msra.mxu0 0.0
  %1566 = vmatprep.subr.mxu0 0.0
  %1567 = vmatpush1.msra.mxu0 0.0
  %1568 = vmatprep.subr.mxu0 0.0
  %1569 = vmatpush1.msra.mxu0 0.0
  %1570 = vmatprep.subr.mxu0 0.0
  %1571 = vmatpush1.msra.mxu0 0.0
  %1572 = vmatprep.subr.mxu0 0.0
  %1573 = vmatpush1.msra.mxu0 0.0
  %1574 = vmatprep.subr.mxu0 0.0
  %1575 = vmatpush1.msra.mxu0 0.0
  %1576 = vmatprep.subr.mxu0 0.0
  %1577 = vmatpush1.msra.mxu0 0.0
  %1578 = vmatprep.subr.mxu0 0.0
  %1579 = vmatpush1.msra.mxu0 0.0
  %1580 = vmatprep.subr.mxu0 0.0
  %1581 = vmatpush1.msra.mxu0 0.0
  %1582 = vmatprep.subr.mxu0 0.0
  %1583 = vmatpush1.msra.mxu0 0.0
  %1584 = vmatprep.subr.mxu0 0.0
  %1585 = vmatpush1.msra.mxu0 0.0
  %1586 = vmatprep.subr.mxu0 0.0
  %1587 = vmatpush1.msra.mxu0 0.0
  %1588 = vmatprep.subr.mxu0 0.0
  %1589 = vmatpush1.msra.mxu0 0.0
  %1590 = vmatprep.subr.mxu0 0.0
  %1591 = vmatpush1.msra.mxu0 0.0
  %1592 = vmatprep.subr.mxu0 0.0
  %1593 = vmatpush1.msra.mxu0 %v1489
  %1594 = vmatprep.subr.mxu0 0.0
  %1595 = vmatpush1.msra.mxu0 %v1486
  %1596 = vmatprep.subr.mxu0 0.0
  %1597 = vmatpush2.msra.mxu0 0.0
  %1598 = vmatprep.subr.mxu0 0.0
  %1599 = vmatpush2.msra.mxu0 0.0
  %1600 = vmatprep.subr.mxu0 0.0
  %1601 = vmatpush2.msra.mxu0 0.0
  %1602 = vmatprep.subr.mxu0 0.0
  %1603 = vmatpush2.msra.mxu0 0.0
  %1604 = vmatprep.subr.mxu0 0.0
  %1605 = vmatpush2.msra.mxu0 0.0
  %1606 = vmatprep.subr.mxu0 0.0
  %1607 = vmatpush2.msra.mxu0 0.0
  %1608 = vmatprep.subr.mxu0 0.0
  %1609 = vmatpush2.msra.mxu0 0.0
  %1610 = vmatprep.subr.mxu0 0.0
  %1611 = vmatpush2.msra.mxu0 0.0
  %1612 = vmatprep.subr.mxu0 0.0
  %1613 = vmatpush2.msra.mxu0 0.0
  %1614 = vmatprep.subr.mxu0 0.0
  %1615 = vmatpush2.msra.mxu0 0.0
  %1616 = vmatprep.subr.mxu0 0.0
  %1617 = vmatpush2.msra.mxu0 0.0
  %1618 = vmatprep.subr.mxu0 0.0
  %1619 = vmatpush2.msra.mxu0 0.0
  %1620 = vmatprep.subr.mxu0 0.0
  %1621 = vmatpush2.msra.mxu0 0.0
  %1622 = vmatprep.subr.mxu0 0.0
  %1623 = vmatpush2.msra.mxu0 0.0
  %1624 = vmatprep.subr.mxu0 0.0
  %1625 = vmatpush2.msra.mxu0 0.0
  %1626 = vmatprep.subr.mxu0 0.0
  %1627 = vmatpush2.msra.mxu0 0.0
  %1628 = vmatprep.mubr.f32.mxu0 0.0
  %1629 = vmatmul.mubr.f32.gmra.mxu0 %v1491
  %v1630 = vpop.f32.mrf.mxu0
  %v1631 = vadd.f32 0.0, %v1630
  %v1632 = vpop.f32.mrf.mxu0
  %1633 = vdwg.mxu0
  %s1634 = scalar_lea.vmem [#allocation5], 48
  %1635 = vst [vmem:[%s1634] sm:$0xff] %v1560
  %1636 = vst [vmem:[%s1634 + $0x8] sm:$0xff] %v1562
  %1637 = vst.msk [vmem:[%s1634 + $0x10] sm:$0xff] %vm1159, %v1631
  %v1638 = vmul.f32 %v1560, %v409
  %v1639 = vmul.f32 %v1562, %v413
  %v1640 = vmul.f32 %v1631, %v417
  %v1641 = vadd.f32 %v1638, %v1639
  %v1642 = vsel %vm1159, %v1640, 0.0
  %v1643 = vadd.f32 %v1641, %v1642
  %1644 = vadd.xlane.f32.xlu0 %v1643
  %v1645 = vpop.xlane.xlu0 %1644
  %v1646 = vadd.f32 %v1408, %v1645
  %s1647 = scalar_lea.vmem %s3, 24
  %v1648 = vld [vmem:[%s1647] sm:$0xff]
  %v1649 = vld [vmem:[#allocation4 + $0x4] sm:$0xff]
  %v1650 = vld [vmem:[#allocation4 + $0xc] sm:$0xf]
  %v1652 = vcombine.high %v1649, %v1649
  %1654 = vst [vmem:[#allocation2] sm:$0xf] %v1649
  %1655 = vst [vmem:[#allocation2 + $0x8] sm:$0xf] %v1652
  %1656 = vst.msk [vmem:[#allocation2 + $0x10] sm:$0xf] %vm64, %v1650
  %v1657 = vld [vmem:[#allocation4 + $0x4] sm:$0xff]
  %v1658 = vld [vmem:[#allocation4 + $0xc] sm:$0xf]
  %v1661 = vcombine.low %v1657, %v1657
  %v1662 = vcombine.low %v1658, %v1658
  %1663 = vrot.lane.b32.xlu0 %v1661, 127
  %v1664 = vpop.permute.xlu0 %1663
  %1665 = vrot.lane.b32.xlu0 %v1657, 127
  %v1666 = vpop.permute.xlu0 %1665
  %1667 = vrot.lane.b32.xlu0 %v1662, 127
  %v1668 = vpop.permute.xlu0 %1667
  %v1669 = vsel %vm159, %v1664, %v1666
  %v1670 = vsel %vm159, %v1666, %v1668
  %1674 = vst [vmem:[#allocation2] sm:$0xf0] %v1669
  %1675 = vst [vmem:[#allocation2 + $0x8] sm:$0xf0] %v1670
  %1676 = vst.msk [vmem:[#allocation2 + $0x10] sm:$0xf0] %vm89, %v1668
  %v1677 = vld [vmem:[#allocation4 + $0x4] sm:$0xff]
  %v1678 = vld [vmem:[#allocation4 + $0xc] sm:$0xf]
  %v1681 = vcombine.high %v1677, %v1677
  %1682 = vrot.lane.b32.xlu0 %v1677, 110
  %v1683 = vpop.permute.xlu0 %1682
  %1684 = vrot.lane.b32.xlu0 %v1681, 110
  %v1685 = vpop.permute.xlu0 %1684
  %1686 = vrot.lane.b32.xlu0 %v1678, 110
  %v1687 = vpop.permute.xlu0 %1686
  %v1688 = vsel %vm200, %v1683, %v1685
  %v1689 = vsel %vm200, %v1685, %v1687
  %1693 = vst [vmem:[#allocation2 + $0x18] sm:$0xf] %v1688
  %1694 = vst [vmem:[#allocation2 + $0x20] sm:$0xf] %v1689
  %1695 = vst.msk [vmem:[#allocation2 + $0x28] sm:$0xf] %vm64, %v1687
  %v1696 = vld [vmem:[#allocation4 + $0x4] sm:$0xff]
  %v1697 = vld [vmem:[#allocation4 + $0xc] sm:$0xf]
  %v1700 = vcombine.low %v1696, %v1696
  %v1701 = vcombine.low %v1697, %v1697
  %1702 = vrot.lane.b32.xlu0 %v1700, 109
  %v1703 = vpop.permute.xlu0 %1702
  %1704 = vrot.lane.b32.xlu0 %v1696, 109
  %v1705 = vpop.permute.xlu0 %1704
  %1706 = vrot.lane.b32.xlu0 %v1701, 109
  %v1707 = vpop.permute.xlu0 %1706
  %v1708 = vsel %vm220, %v1703, %v1705
  %v1709 = vsel %vm220, %v1705, %v1707
  %1713 = vst [vmem:[#allocation2 + $0x18] sm:$0xf0] %v1708
  %1714 = vst [vmem:[#allocation2 + $0x20] sm:$0xf0] %v1709
  %1715 = vst.msk [vmem:[#allocation2 + $0x28] sm:$0xf0] %vm89, %v1707
  %v1716 = vld [vmem:[#allocation2] sm:$0xff]
  %v1717 = vld [vmem:[#allocation2 + $0x8] sm:$0xff]
  %v1718 = vld [vmem:[#allocation2 + $0x10] sm:$0xff]
  %v1719 = vld [vmem:[#allocation2 + $0x18] sm:$0xff]
  %v1720 = vld [vmem:[#allocation2 + $0x20] sm:$0xff]
  %v1721 = vld [vmem:[#allocation2 + $0x28] sm:$0xff]
  %v1723 = vsel %vm1012, %v1648, 0
  %1725 = vmatprep.subr.mxu0 0.0
  %1726 = vmatpush1.msra.mxu0 0.0
  %1727 = vmatprep.subr.mxu0 0.0
  %1728 = vmatpush1.msra.mxu0 0.0
  %1729 = vmatprep.subr.mxu0 0.0
  %1730 = vmatpush1.msra.mxu0 0.0
  %1731 = vmatprep.subr.mxu0 0.0
  %1732 = vmatpush1.msra.mxu0 0.0
  %1733 = vmatprep.subr.mxu0 0.0
  %1734 = vmatpush1.msra.mxu0 0.0
  %1735 = vmatprep.subr.mxu0 0.0
  %1736 = vmatpush1.msra.mxu0 0.0
  %1737 = vmatprep.subr.mxu0 0.0
  %1738 = vmatpush1.msra.mxu0 0.0
  %1739 = vmatprep.subr.mxu0 0.0
  %1740 = vmatpush1.msra.mxu0 0.0
  %1741 = vmatprep.subr.mxu0 0.0
  %1742 = vmatpush1.msra.mxu0 0.0
  %1743 = vmatprep.subr.mxu0 0.0
  %1744 = vmatpush1.msra.mxu0 0.0
  %1745 = vmatprep.subr.mxu0 0.0
  %1746 = vmatpush1.msra.mxu0 0.0
  %1747 = vmatprep.subr.mxu0 0.0
  %1748 = vmatpush1.msra.mxu0 0.0
  %1749 = vmatprep.subr.mxu0 0.0
  %1750 = vmatpush1.msra.mxu0 0.0
  %1751 = vmatprep.subr.mxu0 0.0
  %1752 = vmatpush1.msra.mxu0 0.0
  %1753 = vmatprep.subr.mxu0 %v1720
  %1754 = vmatpush1.msra.mxu0 %v1719
  %1755 = vmatprep.subr.mxu0 %v1717
  %1756 = vmatpush1.msra.mxu0 %v1716
  %1757 = vmatprep.subr.mxu0 0.0
  %1758 = vmatpush2.msra.mxu0 0.0
  %1759 = vmatprep.subr.mxu0 0.0
  %1760 = vmatpush2.msra.mxu0 0.0
  %1761 = vmatprep.subr.mxu0 0.0
  %1762 = vmatpush2.msra.mxu0 0.0
  %1763 = vmatprep.subr.mxu0 0.0
  %1764 = vmatpush2.msra.mxu0 0.0
  %1765 = vmatprep.subr.mxu0 0.0
  %1766 = vmatpush2.msra.mxu0 0.0
  %1767 = vmatprep.subr.mxu0 0.0
  %1768 = vmatpush2.msra.mxu0 0.0
  %1769 = vmatprep.subr.mxu0 0.0
  %1770 = vmatpush2.msra.mxu0 0.0
  %1771 = vmatprep.subr.mxu0 0.0
  %1772 = vmatpush2.msra.mxu0 0.0
  %1773 = vmatprep.subr.mxu0 0.0
  %1774 = vmatpush2.msra.mxu0 0.0
  %1775 = vmatprep.subr.mxu0 0.0
  %1776 = vmatpush2.msra.mxu0 0.0
  %1777 = vmatprep.subr.mxu0 0.0
  %1778 = vmatpush2.msra.mxu0 0.0
  %1779 = vmatprep.subr.mxu0 0.0
  %1780 = vmatpush2.msra.mxu0 0.0
  %1781 = vmatprep.subr.mxu0 0.0
  %1782 = vmatpush2.msra.mxu0 0.0
  %1783 = vmatprep.subr.mxu0 0.0
  %1784 = vmatpush2.msra.mxu0 0.0
  %1785 = vmatprep.subr.mxu0 0.0
  %1786 = vmatpush2.msra.mxu0 0.0
  %1787 = vmatprep.subr.mxu0 0.0
  %1788 = vmatpush2.msra.mxu0 0.0
  %1789 = vmatprep.mubr.f32.mxu0 0.0
  %1790 = vmatmul.mubr.f32.gmra.mxu0 %v1723
  %v1791 = vpop.f32.mrf.mxu0
  %v1792 = vadd.f32 0.0, %v1791
  %v1793 = vpop.f32.mrf.mxu0
  %v1794 = vadd.f32 0.0, %v1793
  %1795 = vdwg.mxu0
  %1796 = vmatprep.subr.mxu0 0.0
  %1797 = vmatpush1.msra.mxu0 0.0
  %1798 = vmatprep.subr.mxu0 0.0
  %1799 = vmatpush1.msra.mxu0 0.0
  %1800 = vmatprep.subr.mxu0 0.0
  %1801 = vmatpush1.msra.mxu0 0.0
  %1802 = vmatprep.subr.mxu0 0.0
  %1803 = vmatpush1.msra.mxu0 0.0
  %1804 = vmatprep.subr.mxu0 0.0
  %1805 = vmatpush1.msra.mxu0 0.0
  %1806 = vmatprep.subr.mxu0 0.0
  %1807 = vmatpush1.msra.mxu0 0.0
  %1808 = vmatprep.subr.mxu0 0.0
  %1809 = vmatpush1.msra.mxu0 0.0
  %1810 = vmatprep.subr.mxu0 0.0
  %1811 = vmatpush1.msra.mxu0 0.0
  %1812 = vmatprep.subr.mxu0 0.0
  %1813 = vmatpush1.msra.mxu0 0.0
  %1814 = vmatprep.subr.mxu0 0.0
  %1815 = vmatpush1.msra.mxu0 0.0
  %1816 = vmatprep.subr.mxu0 0.0
  %1817 = vmatpush1.msra.mxu0 0.0
  %1818 = vmatprep.subr.mxu0 0.0
  %1819 = vmatpush1.msra.mxu0 0.0
  %1820 = vmatprep.subr.mxu0 0.0
  %1821 = vmatpush1.msra.mxu0 0.0
  %1822 = vmatprep.subr.mxu0 0.0
  %1823 = vmatpush1.msra.mxu0 0.0
  %1824 = vmatprep.subr.mxu0 0.0
  %1825 = vmatpush1.msra.mxu0 %v1721
  %1826 = vmatprep.subr.mxu0 0.0
  %1827 = vmatpush1.msra.mxu0 %v1718
  %1828 = vmatprep.subr.mxu0 0.0
  %1829 = vmatpush2.msra.mxu0 0.0
  %1830 = vmatprep.subr.mxu0 0.0
  %1831 = vmatpush2.msra.mxu0 0.0
  %1832 = vmatprep.subr.mxu0 0.0
  %1833 = vmatpush2.msra.mxu0 0.0
  %1834 = vmatprep.subr.mxu0 0.0
  %1835 = vmatpush2.msra.mxu0 0.0
  %1836 = vmatprep.subr.mxu0 0.0
  %1837 = vmatpush2.msra.mxu0 0.0
  %1838 = vmatprep.subr.mxu0 0.0
  %1839 = vmatpush2.msra.mxu0 0.0
  %1840 = vmatprep.subr.mxu0 0.0
  %1841 = vmatpush2.msra.mxu0 0.0
  %1842 = vmatprep.subr.mxu0 0.0
  %1843 = vmatpush2.msra.mxu0 0.0
  %1844 = vmatprep.subr.mxu0 0.0
  %1845 = vmatpush2.msra.mxu0 0.0
  %1846 = vmatprep.subr.mxu0 0.0
  %1847 = vmatpush2.msra.mxu0 0.0
  %1848 = vmatprep.subr.mxu0 0.0
  %1849 = vmatpush2.msra.mxu0 0.0
  %1850 = vmatprep.subr.mxu0 0.0
  %1851 = vmatpush2.msra.mxu0 0.0
  %1852 = vmatprep.subr.mxu0 0.0
  %1853 = vmatpush2.msra.mxu0 0.0
  %1854 = vmatprep.subr.mxu0 0.0
  %1855 = vmatpush2.msra.mxu0 0.0
  %1856 = vmatprep.subr.mxu0 0.0
  %1857 = vmatpush2.msra.mxu0 0.0
  %1858 = vmatprep.subr.mxu0 0.0
  %1859 = vmatpush2.msra.mxu0 0.0
  %1860 = vmatprep.mubr.f32.mxu0 0.0
  %1861 = vmatmul.mubr.f32.gmra.mxu0 %v1723
  %v1862 = vpop.f32.mrf.mxu0
  %v1863 = vadd.f32 0.0, %v1862
  %v1864 = vpop.f32.mrf.mxu0
  %1865 = vdwg.mxu0
  %s1866 = scalar_lea.vmem [#allocation5], 72
  %1867 = vst [vmem:[%s1866] sm:$0xff] %v1792
  %1868 = vst [vmem:[%s1866 + $0x8] sm:$0xff] %v1794
  %1869 = vst.msk [vmem:[%s1866 + $0x10] sm:$0xff] %vm1159, %v1863
  %v1870 = vmul.f32 %v1792, %v409
  %v1871 = vmul.f32 %v1794, %v413
  %v1872 = vmul.f32 %v1863, %v417
  %v1873 = vadd.f32 %v1870, %v1871
  %v1874 = vsel %vm1159, %v1872, 0.0
  %v1875 = vadd.f32 %v1873, %v1874
  %1876 = vadd.xlane.f32.xlu0 %v1875
  %v1877 = vpop.xlane.xlu0 %1876
  %v1878 = vadd.f32 %v1646, %v1877
  %v1879 = vld [vmem:[%s3] sm:$0xff]
  %v1880 = vld [vmem:[%s922] sm:$0xff]
  %v1881 = vld [vmem:[%s922 + $0x8] sm:$0xff]
  %v1884 = vcombine.high %v1880, %v1880
  %v1885 = vcombine.high %v1881, %v1881
  %1886 = vrot.lane.b32.xlu0 %v1880, 19
  %v1887 = vpop.permute.xlu0 %1886
  %1888 = vrot.lane.b32.xlu0 %v1884, 19
  %v1889 = vpop.permute.xlu0 %1888
  %1890 = vrot.lane.b32.xlu0 %v1881, 19
  %v1891 = vpop.permute.xlu0 %1890
  %1892 = vrot.lane.b32.xlu0 %v1885, 19
  %v1893 = vpop.permute.xlu0 %1892
  %v1894 = vsel %vm55, %v1887, %v1889
  %v1895 = vsel %vm55, %v1889, %v1891
  %v1896 = vsel %vm55, %v1891, %v1893
  %1900 = vst [vmem:[#allocation2] sm:$0xf] %v1894
  %1901 = vst [vmem:[#allocation2 + $0x8] sm:$0xf] %v1895
  %1902 = vst.msk [vmem:[#allocation2 + $0x10] sm:$0xf] %vm64, %v1896
  %v1903 = vld [vmem:[%s922] sm:$0xff]
  %v1904 = vld [vmem:[%s922 + $0x8] sm:$0xff]
  %v1907 = vcombine.low %v1903, %v1903
  %v1908 = vcombine.low %v1904, %v1904
  %1909 = vrot.lane.b32.xlu0 %v1907, 18
  %v1910 = vpop.permute.xlu0 %1909
  %1911 = vrot.lane.b32.xlu0 %v1903, 18
  %v1912 = vpop.permute.xlu0 %1911
  %1913 = vrot.lane.b32.xlu0 %v1908, 18
  %v1914 = vpop.permute.xlu0 %1913
  %1915 = vrot.lane.b32.xlu0 %v1904, 18
  %v1916 = vpop.permute.xlu0 %1915
  %v1917 = vsel %vm80, %v1910, %v1912
  %v1918 = vsel %vm80, %v1912, %v1914
  %v1919 = vsel %vm80, %v1914, %v1916
  %1923 = vst [vmem:[#allocation2] sm:$0xf0] %v1917
  %1924 = vst [vmem:[#allocation2 + $0x8] sm:$0xf0] %v1918
  %1925 = vst.msk [vmem:[#allocation2 + $0x10] sm:$0xf0] %vm89, %v1919
  %v1926 = vld [vmem:[%s922] sm:$0xff]
  %v1927 = vld [vmem:[%s922 + $0x8] sm:$0xff]
  %v1930 = vcombine.high %v1926, %v1926
  %v1931 = vcombine.high %v1927, %v1927
  %1932 = vrot.lane.b32.xlu0 %v1926, 1
  %v1933 = vpop.permute.xlu0 %1932
  %1934 = vrot.lane.b32.xlu0 %v1930, 1
  %v1935 = vpop.permute.xlu0 %1934
  %1936 = vrot.lane.b32.xlu0 %v1927, 1
  %v1937 = vpop.permute.xlu0 %1936
  %1938 = vrot.lane.b32.xlu0 %v1931, 1
  %v1939 = vpop.permute.xlu0 %1938
  %v1940 = vsel %vm129, %v1933, %v1935
  %v1941 = vsel %vm129, %v1935, %v1937
  %v1942 = vsel %vm129, %v1937, %v1939
  %1946 = vst [vmem:[#allocation2 + $0x18] sm:$0xf] %v1940
  %1947 = vst [vmem:[#allocation2 + $0x20] sm:$0xf] %v1941
  %1948 = vst.msk [vmem:[#allocation2 + $0x28] sm:$0xf] %vm64, %v1942
  %v1949 = vld [vmem:[%s922 + $0x4] sm:$0xff]
  %v1950 = vld [vmem:[%s922 + $0xc] sm:$0xf]
  %v1953 = vcombine.low %v1949, %v1949
  %v1954 = vcombine.low %v1950, %v1950
  %1957 = vst [vmem:[#allocation2 + $0x18] sm:$0xf0] %v1953
  %1958 = vst [vmem:[#allocation2 + $0x20] sm:$0xf0] %v1949
  %1959 = vst.msk [vmem:[#allocation2 + $0x28] sm:$0xf0] %vm89, %v1954
  %v1960 = vld [vmem:[#allocation2] sm:$0xff]
  %v1961 = vld [vmem:[#allocation2 + $0x8] sm:$0xff]
  %v1962 = vld [vmem:[#allocation2 + $0x10] sm:$0xff]
  %v1963 = vld [vmem:[#allocation2 + $0x18] sm:$0xff]
  %v1964 = vld [vmem:[#allocation2 + $0x20] sm:$0xff]
  %v1965 = vld [vmem:[#allocation2 + $0x28] sm:$0xff]
  %v1967 = vsel %vm1012, %v1879, 0
  %1969 = vmatprep.subr.mxu0 0.0
  %1970 = vmatpush1.msra.mxu0 0.0
  %1971 = vmatprep.subr.mxu0 0.0
  %1972 = vmatpush1.msra.mxu0 0.0
  %1973 = vmatprep.subr.mxu0 0.0
  %1974 = vmatpush1.msra.mxu0 0.0
  %1975 = vmatprep.subr.mxu0 0.0
  %1976 = vmatpush1.msra.mxu0 0.0
  %1977 = vmatprep.subr.mxu0 0.0
  %1978 = vmatpush1.msra.mxu0 0.0
  %1979 = vmatprep.subr.mxu0 0.0
  %1980 = vmatpush1.msra.mxu0 0.0
  %1981 = vmatprep.subr.mxu0 0.0
  %1982 = vmatpush1.msra.mxu0 0.0
  %1983 = vmatprep.subr.mxu0 0.0
  %1984 = vmatpush1.msra.mxu0 0.0
  %1985 = vmatprep.subr.mxu0 0.0
  %1986 = vmatpush1.msra.mxu0 0.0
  %1987 = vmatprep.subr.mxu0 0.0
  %1988 = vmatpush1.msra.mxu0 0.0
  %1989 = vmatprep.subr.mxu0 0.0
  %1990 = vmatpush1.msra.mxu0 0.0
  %1991 = vmatprep.subr.mxu0 0.0
  %1992 = vmatpush1.msra.mxu0 0.0
  %1993 = vmatprep.subr.mxu0 0.0
  %1994 = vmatpush1.msra.mxu0 0.0
  %1995 = vmatprep.subr.mxu0 0.0
  %1996 = vmatpush1.msra.mxu0 0.0
  %1997 = vmatprep.subr.mxu0 %v1964
  %1998 = vmatpush1.msra.mxu0 %v1963
  %1999 = vmatprep.subr.mxu0 %v1961
  %2000 = vmatpush1.msra.mxu0 %v1960
  %2001 = vmatprep.subr.mxu0 0.0
  %2002 = vmatpush2.msra.mxu0 0.0
  %2003 = vmatprep.subr.mxu0 0.0
  %2004 = vmatpush2.msra.mxu0 0.0
  %2005 = vmatprep.subr.mxu0 0.0
  %2006 = vmatpush2.msra.mxu0 0.0
  %2007 = vmatprep.subr.mxu0 0.0
  %2008 = vmatpush2.msra.mxu0 0.0
  %2009 = vmatprep.subr.mxu0 0.0
  %2010 = vmatpush2.msra.mxu0 0.0
  %2011 = vmatprep.subr.mxu0 0.0
  %2012 = vmatpush2.msra.mxu0 0.0
  %2013 = vmatprep.subr.mxu0 0.0
  %2014 = vmatpush2.msra.mxu0 0.0
  %2015 = vmatprep.subr.mxu0 0.0
  %2016 = vmatpush2.msra.mxu0 0.0
  %2017 = vmatprep.subr.mxu0 0.0
  %2018 = vmatpush2.msra.mxu0 0.0
  %2019 = vmatprep.subr.mxu0 0.0
  %2020 = vmatpush2.msra.mxu0 0.0
  %2021 = vmatprep.subr.mxu0 0.0
  %2022 = vmatpush2.msra.mxu0 0.0
  %2023 = vmatprep.subr.mxu0 0.0
  %2024 = vmatpush2.msra.mxu0 0.0
  %2025 = vmatprep.subr.mxu0 0.0
  %2026 = vmatpush2.msra.mxu0 0.0
  %2027 = vmatprep.subr.mxu0 0.0
  %2028 = vmatpush2.msra.mxu0 0.0
  %2029 = vmatprep.subr.mxu0 0.0
  %2030 = vmatpush2.msra.mxu0 0.0
  %2031 = vmatprep.subr.mxu0 0.0
  %2032 = vmatpush2.msra.mxu0 0.0
  %2033 = vmatprep.mubr.f32.mxu0 0.0
  %2034 = vmatmul.mubr.f32.gmra.mxu0 %v1967
  %v2035 = vpop.f32.mrf.mxu0
  %v2036 = vadd.f32 0.0, %v2035
  %v2037 = vpop.f32.mrf.mxu0
  %v2038 = vadd.f32 0.0, %v2037
  %2039 = vdwg.mxu0
  %2040 = vmatprep.subr.mxu0 0.0
  %2041 = vmatpush1.msra.mxu0 0.0
  %2042 = vmatprep.subr.mxu0 0.0
  %2043 = vmatpush1.msra.mxu0 0.0
  %2044 = vmatprep.subr.mxu0 0.0
  %2045 = vmatpush1.msra.mxu0 0.0
  %2046 = vmatprep.subr.mxu0 0.0
  %2047 = vmatpush1.msra.mxu0 0.0
  %2048 = vmatprep.subr.mxu0 0.0
  %2049 = vmatpush1.msra.mxu0 0.0
  %2050 = vmatprep.subr.mxu0 0.0
  %2051 = vmatpush1.msra.mxu0 0.0
  %2052 = vmatprep.subr.mxu0 0.0
  %2053 = vmatpush1.msra.mxu0 0.0
  %2054 = vmatprep.subr.mxu0 0.0
  %2055 = vmatpush1.msra.mxu0 0.0
  %2056 = vmatprep.subr.mxu0 0.0
  %2057 = vmatpush1.msra.mxu0 0.0
  %2058 = vmatprep.subr.mxu0 0.0
  %2059 = vmatpush1.msra.mxu0 0.0
  %2060 = vmatprep.subr.mxu0 0.0
  %2061 = vmatpush1.msra.mxu0 0.0
  %2062 = vmatprep.subr.mxu0 0.0
  %2063 = vmatpush1.msra.mxu0 0.0
  %2064 = vmatprep.subr.mxu0 0.0
  %2065 = vmatpush1.msra.mxu0 0.0
  %2066 = vmatprep.subr.mxu0 0.0
  %2067 = vmatpush1.msra.mxu0 0.0
  %2068 = vmatprep.subr.mxu0 0.0
  %2069 = vmatpush1.msra.mxu0 %v1965
  %2070 = vmatprep.subr.mxu0 0.0
  %2071 = vmatpush1.msra.mxu0 %v1962
  %2072 = vmatprep.subr.mxu0 0.0
  %2073 = vmatpush2.msra.mxu0 0.0
  %2074 = vmatprep.subr.mxu0 0.0
  %2075 = vmatpush2.msra.mxu0 0.0
  %2076 = vmatprep.subr.mxu0 0.0
  %2077 = vmatpush2.msra.mxu0 0.0
  %2078 = vmatprep.subr.mxu0 0.0
  %2079 = vmatpush2.msra.mxu0 0.0
  %2080 = vmatprep.subr.mxu0 0.0
  %2081 = vmatpush2.msra.mxu0 0.0
  %2082 = vmatprep.subr.mxu0 0.0
  %2083 = vmatpush2.msra.mxu0 0.0
  %2084 = vmatprep.subr.mxu0 0.0
  %2085 = vmatpush2.msra.mxu0 0.0
  %2086 = vmatprep.subr.mxu0 0.0
  %2087 = vmatpush2.msra.mxu0 0.0
  %2088 = vmatprep.subr.mxu0 0.0
  %2089 = vmatpush2.msra.mxu0 0.0
  %2090 = vmatprep.subr.mxu0 0.0
  %2091 = vmatpush2.msra.mxu0 0.0
  %2092 = vmatprep.subr.mxu0 0.0
  %2093 = vmatpush2.msra.mxu0 0.0
  %2094 = vmatprep.subr.mxu0 0.0
  %2095 = vmatpush2.msra.mxu0 0.0
  %2096 = vmatprep.subr.mxu0 0.0
  %2097 = vmatpush2.msra.mxu0 0.0
  %2098 = vmatprep.subr.mxu0 0.0
  %2099 = vmatpush2.msra.mxu0 0.0
  %2100 = vmatprep.subr.mxu0 0.0
  %2101 = vmatpush2.msra.mxu0 0.0
  %2102 = vmatprep.subr.mxu0 0.0
  %2103 = vmatpush2.msra.mxu0 0.0
  %2104 = vmatprep.mubr.f32.mxu0 0.0
  %2105 = vmatmul.mubr.f32.gmra.mxu0 %v1967
  %v2106 = vpop.f32.mrf.mxu0
  %v2107 = vadd.f32 0.0, %v2106
  %v2108 = vpop.f32.mrf.mxu0
  %2109 = vdwg.mxu0
  %s2110 = scalar_lea.vmem [#allocation5], 96
  %2111 = vst [vmem:[%s2110] sm:$0xff] %v2036
  %2112 = vst [vmem:[%s2110 + $0x8] sm:$0xff] %v2038
  %2113 = vst.msk [vmem:[%s2110 + $0x10] sm:$0xff] %vm1159, %v2107
  %v2114 = vmul.f32 %v2036, %v409
  %v2115 = vmul.f32 %v2038, %v413
  %v2116 = vmul.f32 %v2107, %v417
  %v2117 = vadd.f32 %v2114, %v2115
  %v2118 = vsel %vm1159, %v2116, 0.0
  %v2119 = vadd.f32 %v2117, %v2118
  %2120 = vadd.xlane.f32.xlu0 %v2119
  %v2121 = vpop.xlane.xlu0 %2120
  %v2122 = vadd.f32 %v1878, %v2121
  %v2123 = vld [vmem:[%s1170] sm:$0xff]
  %v2124 = vld [vmem:[%s922] sm:$0xff]
  %v2125 = vld [vmem:[%s922 + $0x8] sm:$0xff]
  %v2128 = vcombine.high %v2124, %v2124
  %v2129 = vcombine.high %v2125, %v2125
  %2130 = vrot.lane.b32.xlu0 %v2124, 18
  %v2131 = vpop.permute.xlu0 %2130
  %2132 = vrot.lane.b32.xlu0 %v2128, 18
  %v2133 = vpop.permute.xlu0 %2132
  %2134 = vrot.lane.b32.xlu0 %v2125, 18
  %v2135 = vpop.permute.xlu0 %2134
  %2136 = vrot.lane.b32.xlu0 %v2129, 18
  %v2137 = vpop.permute.xlu0 %2136
  %v2138 = vsel %vm80, %v2131, %v2133
  %v2139 = vsel %vm80, %v2133, %v2135
  %v2140 = vsel %vm80, %v2135, %v2137
  %2144 = vst [vmem:[#allocation2] sm:$0xf] %v2138
  %2145 = vst [vmem:[#allocation2 + $0x8] sm:$0xf] %v2139
  %2146 = vst.msk [vmem:[#allocation2 + $0x10] sm:$0xf] %vm64, %v2140
  %v2147 = vld [vmem:[%s922] sm:$0xff]
  %v2148 = vld [vmem:[%s922 + $0x8] sm:$0xff]
  %v2151 = vcombine.low %v2147, %v2147
  %v2152 = vcombine.low %v2148, %v2148
  %2153 = vrot.lane.b32.xlu0 %v2151, 17
  %v2154 = vpop.permute.xlu0 %2153
  %2155 = vrot.lane.b32.xlu0 %v2147, 17
  %v2156 = vpop.permute.xlu0 %2155
  %2157 = vrot.lane.b32.xlu0 %v2152, 17
  %v2158 = vpop.permute.xlu0 %2157
  %2159 = vrot.lane.b32.xlu0 %v2148, 17
  %v2160 = vpop.permute.xlu0 %2159
  %v2161 = vsel %vm105, %v2154, %v2156
  %v2162 = vsel %vm105, %v2156, %v2158
  %v2163 = vsel %vm105, %v2158, %v2160
  %2167 = vst [vmem:[#allocation2] sm:$0xf0] %v2161
  %2168 = vst [vmem:[#allocation2 + $0x8] sm:$0xf0] %v2162
  %2169 = vst.msk [vmem:[#allocation2 + $0x10] sm:$0xf0] %vm89, %v2163
  %v2170 = vld [vmem:[%s922 + $0x4] sm:$0xff]
  %v2171 = vld [vmem:[%s922 + $0xc] sm:$0xf]
  %v2173 = vcombine.high %v2170, %v2170
  %2175 = vst [vmem:[#allocation2 + $0x18] sm:$0xf] %v2170
  %2176 = vst [vmem:[#allocation2 + $0x20] sm:$0xf] %v2173
  %2177 = vst.msk [vmem:[#allocation2 + $0x28] sm:$0xf] %vm64, %v2171
  %v2178 = vld [vmem:[%s922 + $0x4] sm:$0xff]
  %v2179 = vld [vmem:[%s922 + $0xc] sm:$0xf]
  %v2182 = vcombine.low %v2178, %v2178
  %v2183 = vcombine.low %v2179, %v2179
  %2184 = vrot.lane.b32.xlu0 %v2182, 127
  %v2185 = vpop.permute.xlu0 %2184
  %2186 = vrot.lane.b32.xlu0 %v2178, 127
  %v2187 = vpop.permute.xlu0 %2186
  %2188 = vrot.lane.b32.xlu0 %v2183, 127
  %v2189 = vpop.permute.xlu0 %2188
  %v2190 = vsel %vm159, %v2185, %v2187
  %v2191 = vsel %vm159, %v2187, %v2189
  %2195 = vst [vmem:[#allocation2 + $0x18] sm:$0xf0] %v2190
  %2196 = vst [vmem:[#allocation2 + $0x20] sm:$0xf0] %v2191
  %2197 = vst.msk [vmem:[#allocation2 + $0x28] sm:$0xf0] %vm89, %v2189
  %v2198 = vld [vmem:[#allocation2] sm:$0xff]
  %v2199 = vld [vmem:[#allocation2 + $0x8] sm:$0xff]
  %v2200 = vld [vmem:[#allocation2 + $0x10] sm:$0xff]
  %v2201 = vld [vmem:[#allocation2 + $0x18] sm:$0xff]
  %v2202 = vld [vmem:[#allocation2 + $0x20] sm:$0xff]
  %v2203 = vld [vmem:[#allocation2 + $0x28] sm:$0xff]
  %v2205 = vsel %vm1012, %v2123, 0
  %2207 = vmatprep.subr.mxu0 0.0
  %2208 = vmatpush1.msra.mxu0 0.0
  %2209 = vmatprep.subr.mxu0 0.0
  %2210 = vmatpush1.msra.mxu0 0.0
  %2211 = vmatprep.subr.mxu0 0.0
  %2212 = vmatpush1.msra.mxu0 0.0
  %2213 = vmatprep.subr.mxu0 0.0
  %2214 = vmatpush1.msra.mxu0 0.0
  %2215 = vmatprep.subr.mxu0 0.0
  %2216 = vmatpush1.msra.mxu0 0.0
  %2217 = vmatprep.subr.mxu0 0.0
  %2218 = vmatpush1.msra.mxu0 0.0
  %2219 = vmatprep.subr.mxu0 0.0
  %2220 = vmatpush1.msra.mxu0 0.0
  %2221 = vmatprep.subr.mxu0 0.0
  %2222 = vmatpush1.msra.mxu0 0.0
  %2223 = vmatprep.subr.mxu0 0.0
  %2224 = vmatpush1.msra.mxu0 0.0
  %2225 = vmatprep.subr.mxu0 0.0
  %2226 = vmatpush1.msra.mxu0 0.0
  %2227 = vmatprep.subr.mxu0 0.0
  %2228 = vmatpush1.msra.mxu0 0.0
  %2229 = vmatprep.subr.mxu0 0.0
  %2230 = vmatpush1.msra.mxu0 0.0
  %2231 = vmatprep.subr.mxu0 0.0
  %2232 = vmatpush1.msra.mxu0 0.0
  %2233 = vmatprep.subr.mxu0 0.0
  %2234 = vmatpush1.msra.mxu0 0.0
  %2235 = vmatprep.subr.mxu0 %v2202
  %2236 = vmatpush1.msra.mxu0 %v2201
  %2237 = vmatprep.subr.mxu0 %v2199
  %2238 = vmatpush1.msra.mxu0 %v2198
  %2239 = vmatprep.subr.mxu0 0.0
  %2240 = vmatpush2.msra.mxu0 0.0
  %2241 = vmatprep.subr.mxu0 0.0
  %2242 = vmatpush2.msra.mxu0 0.0
  %2243 = vmatprep.subr.mxu0 0.0
  %2244 = vmatpush2.msra.mxu0 0.0
  %2245 = vmatprep.subr.mxu0 0.0
  %2246 = vmatpush2.msra.mxu0 0.0
  %2247 = vmatprep.subr.mxu0 0.0
  %2248 = vmatpush2.msra.mxu0 0.0
  %2249 = vmatprep.subr.mxu0 0.0
  %2250 = vmatpush2.msra.mxu0 0.0
  %2251 = vmatprep.subr.mxu0 0.0
  %2252 = vmatpush2.msra.mxu0 0.0
  %2253 = vmatprep.subr.mxu0 0.0
  %2254 = vmatpush2.msra.mxu0 0.0
  %2255 = vmatprep.subr.mxu0 0.0
  %2256 = vmatpush2.msra.mxu0 0.0
  %2257 = vmatprep.subr.mxu0 0.0
  %2258 = vmatpush2.msra.mxu0 0.0
  %2259 = vmatprep.subr.mxu0 0.0
  %2260 = vmatpush2.msra.mxu0 0.0
  %2261 = vmatprep.subr.mxu0 0.0
  %2262 = vmatpush2.msra.mxu0 0.0
  %2263 = vmatprep.subr.mxu0 0.0
  %2264 = vmatpush2.msra.mxu0 0.0
  %2265 = vmatprep.subr.mxu0 0.0
  %2266 = vmatpush2.msra.mxu0 0.0
  %2267 = vmatprep.subr.mxu0 0.0
  %2268 = vmatpush2.msra.mxu0 0.0
  %2269 = vmatprep.subr.mxu0 0.0
  %2270 = vmatpush2.msra.mxu0 0.0
  %2271 = vmatprep.mubr.f32.mxu0 0.0
  %2272 = vmatmul.mubr.f32.gmra.mxu0 %v2205
  %v2273 = vpop.f32.mrf.mxu0
  %v2274 = vadd.f32 0.0, %v2273
  %v2275 = vpop.f32.mrf.mxu0
  %v2276 = vadd.f32 0.0, %v2275
  %2277 = vdwg.mxu0
  %2278 = vmatprep.subr.mxu0 0.0
  %2279 = vmatpush1.msra.mxu0 0.0
  %2280 = vmatprep.subr.mxu0 0.0
  %2281 = vmatpush1.msra.mxu0 0.0
  %2282 = vmatprep.subr.mxu0 0.0
  %2283 = vmatpush1.msra.mxu0 0.0
  %2284 = vmatprep.subr.mxu0 0.0
  %2285 = vmatpush1.msra.mxu0 0.0
  %2286 = vmatprep.subr.mxu0 0.0
  %2287 = vmatpush1.msra.mxu0 0.0
  %2288 = vmatprep.subr.mxu0 0.0
  %2289 = vmatpush1.msra.mxu0 0.0
  %2290 = vmatprep.subr.mxu0 0.0
  %2291 = vmatpush1.msra.mxu0 0.0
  %2292 = vmatprep.subr.mxu0 0.0
  %2293 = vmatpush1.msra.mxu0 0.0
  %2294 = vmatprep.subr.mxu0 0.0
  %2295 = vmatpush1.msra.mxu0 0.0
  %2296 = vmatprep.subr.mxu0 0.0
  %2297 = vmatpush1.msra.mxu0 0.0
  %2298 = vmatprep.subr.mxu0 0.0
  %2299 = vmatpush1.msra.mxu0 0.0
  %2300 = vmatprep.subr.mxu0 0.0
  %2301 = vmatpush1.msra.mxu0 0.0
  %2302 = vmatprep.subr.mxu0 0.0
  %2303 = vmatpush1.msra.mxu0 0.0
  %2304 = vmatprep.subr.mxu0 0.0
  %2305 = vmatpush1.msra.mxu0 0.0
  %2306 = vmatprep.subr.mxu0 0.0
  %2307 = vmatpush1.msra.mxu0 %v2203
  %2308 = vmatprep.subr.mxu0 0.0
  %2309 = vmatpush1.msra.mxu0 %v2200
  %2310 = vmatprep.subr.mxu0 0.0
  %2311 = vmatpush2.msra.mxu0 0.0
  %2312 = vmatprep.subr.mxu0 0.0
  %2313 = vmatpush2.msra.mxu0 0.0
  %2314 = vmatprep.subr.mxu0 0.0
  %2315 = vmatpush2.msra.mxu0 0.0
  %2316 = vmatprep.subr.mxu0 0.0
  %2317 = vmatpush2.msra.mxu0 0.0
  %2318 = vmatprep.subr.mxu0 0.0
  %2319 = vmatpush2.msra.mxu0 0.0
  %2320 = vmatprep.subr.mxu0 0.0
  %2321 = vmatpush2.msra.mxu0 0.0
  %2322 = vmatprep.subr.mxu0 0.0
  %2323 = vmatpush2.msra.mxu0 0.0
  %2324 = vmatprep.subr.mxu0 0.0
  %2325 = vmatpush2.msra.mxu0 0.0
  %2326 = vmatprep.subr.mxu0 0.0
  %2327 = vmatpush2.msra.mxu0 0.0
  %2328 = vmatprep.subr.mxu0 0.0
  %2329 = vmatpush2.msra.mxu0 0.0
  %2330 = vmatprep.subr.mxu0 0.0
  %2331 = vmatpush2.msra.mxu0 0.0
  %2332 = vmatprep.subr.mxu0 0.0
  %2333 = vmatpush2.msra.mxu0 0.0
  %2334 = vmatprep.subr.mxu0 0.0
  %2335 = vmatpush2.msra.mxu0 0.0
  %2336 = vmatprep.subr.mxu0 0.0
  %2337 = vmatpush2.msra.mxu0 0.0
  %2338 = vmatprep.subr.mxu0 0.0
  %2339 = vmatpush2.msra.mxu0 0.0
  %2340 = vmatprep.subr.mxu0 0.0
  %2341 = vmatpush2.msra.mxu0 0.0
  %2342 = vmatprep.mubr.f32.mxu0 0.0
  %2343 = vmatmul.mubr.f32.gmra.mxu0 %v2205
  %v2344 = vpop.f32.mrf.mxu0
  %v2345 = vadd.f32 0.0, %v2344
  %v2346 = vpop.f32.mrf.mxu0
  %2347 = vdwg.mxu0
  %s2348 = scalar_lea.vmem [#allocation5], 120
  %2349 = vst [vmem:[%s2348] sm:$0xff] %v2274
  %2350 = vst [vmem:[%s2348 + $0x8] sm:$0xff] %v2276
  %2351 = vst.msk [vmem:[%s2348 + $0x10] sm:$0xff] %vm1159, %v2345
  %v2352 = vmul.f32 %v2274, %v409
  %v2353 = vmul.f32 %v2276, %v413
  %v2354 = vmul.f32 %v2345, %v417
  %v2355 = vadd.f32 %v2352, %v2353
  %v2356 = vsel %vm1159, %v2354, 0.0
  %v2357 = vadd.f32 %v2355, %v2356
  %2358 = vadd.xlane.f32.xlu0 %v2357
  %v2359 = vpop.xlane.xlu0 %2358
  %v2360 = vadd.f32 %v2122, %v2359
  %v2361 = vld [vmem:[%s1409] sm:$0xff]
  %v2362 = vld [vmem:[%s922] sm:$0xff]
  %v2363 = vld [vmem:[%s922 + $0x8] sm:$0xff]
  %v2366 = vcombine.high %v2362, %v2362
  %v2367 = vcombine.high %v2363, %v2363
  %2368 = vrot.lane.b32.xlu0 %v2362, 1
  %v2369 = vpop.permute.xlu0 %2368
  %2370 = vrot.lane.b32.xlu0 %v2366, 1
  %v2371 = vpop.permute.xlu0 %2370
  %2372 = vrot.lane.b32.xlu0 %v2363, 1
  %v2373 = vpop.permute.xlu0 %2372
  %2374 = vrot.lane.b32.xlu0 %v2367, 1
  %v2375 = vpop.permute.xlu0 %2374
  %v2376 = vsel %vm129, %v2369, %v2371
  %v2377 = vsel %vm129, %v2371, %v2373
  %v2378 = vsel %vm129, %v2373, %v2375
  %2382 = vst [vmem:[#allocation2] sm:$0xf] %v2376
  %2383 = vst [vmem:[#allocation2 + $0x8] sm:$0xf] %v2377
  %2384 = vst.msk [vmem:[#allocation2 + $0x10] sm:$0xf] %vm64, %v2378
  %v2385 = vld [vmem:[%s922 + $0x4] sm:$0xff]
  %v2386 = vld [vmem:[%s922 + $0xc] sm:$0xf]
  %v2389 = vcombine.low %v2385, %v2385
  %v2390 = vcombine.low %v2386, %v2386
  %2393 = vst [vmem:[#allocation2] sm:$0xf0] %v2389
  %2394 = vst [vmem:[#allocation2 + $0x8] sm:$0xf0] %v2385
  %2395 = vst.msk [vmem:[#allocation2 + $0x10] sm:$0xf0] %vm89, %v2390
  %v2396 = vld [vmem:[%s922 + $0x4] sm:$0xff]
  %v2397 = vld [vmem:[%s922 + $0xc] sm:$0xf]
  %v2400 = vcombine.high %v2396, %v2396
  %2401 = vrot.lane.b32.xlu0 %v2396, 111
  %v2402 = vpop.permute.xlu0 %2401
  %2403 = vrot.lane.b32.xlu0 %v2400, 111
  %v2404 = vpop.permute.xlu0 %2403
  %2405 = vrot.lane.b32.xlu0 %v2397, 111
  %v2406 = vpop.permute.xlu0 %2405
  %v2407 = vsel %vm179, %v2402, %v2404
  %v2408 = vsel %vm179, %v2404, %v2406
  %2412 = vst [vmem:[#allocation2 + $0x18] sm:$0xf] %v2407
  %2413 = vst [vmem:[#allocation2 + $0x20] sm:$0xf] %v2408
  %2414 = vst.msk [vmem:[#allocation2 + $0x28] sm:$0xf] %vm64, %v2406
  %v2415 = vld [vmem:[%s922 + $0x4] sm:$0xff]
  %v2416 = vld [vmem:[%s922 + $0xc] sm:$0xf]
  %v2419 = vcombine.low %v2415, %v2415
  %v2420 = vcombine.low %v2416, %v2416
  %2421 = vrot.lane.b32.xlu0 %v2419, 110
  %v2422 = vpop.permute.xlu0 %2421
  %2423 = vrot.lane.b32.xlu0 %v2415, 110
  %v2424 = vpop.permute.xlu0 %2423
  %2425 = vrot.lane.b32.xlu0 %v2420, 110
  %v2426 = vpop.permute.xlu0 %2425
  %v2427 = vsel %vm200, %v2422, %v2424
  %v2428 = vsel %vm200, %v2424, %v2426
  %2432 = vst [vmem:[#allocation2 + $0x18] sm:$0xf0] %v2427
  %2433 = vst [vmem:[#allocation2 + $0x20] sm:$0xf0] %v2428
  %2434 = vst.msk [vmem:[#allocation2 + $0x28] sm:$0xf0] %vm89, %v2426
  %v2435 = vld [vmem:[#allocation2] sm:$0xff]
  %v2436 = vld [vmem:[#allocation2 + $0x8] sm:$0xff]
  %v2437 = vld [vmem:[#allocation2 + $0x10] sm:$0xff]
  %v2438 = vld [vmem:[#allocation2 + $0x18] sm:$0xff]
  %v2439 = vld [vmem:[#allocation2 + $0x20] sm:$0xff]
  %v2440 = vld [vmem:[#allocation2 + $0x28] sm:$0xff]
  %v2442 = vsel %vm1012, %v2361, 0
  %2444 = vmatprep.subr.mxu0 0.0
  %2445 = vmatpush1.msra.mxu0 0.0
  %2446 = vmatprep.subr.mxu0 0.0
  %2447 = vmatpush1.msra.mxu0 0.0
  %2448 = vmatprep.subr.mxu0 0.0
  %2449 = vmatpush1.msra.mxu0 0.0
  %2450 = vmatprep.subr.mxu0 0.0
  %2451 = vmatpush1.msra.mxu0 0.0
  %2452 = vmatprep.subr.mxu0 0.0
  %2453 = vmatpush1.msra.mxu0 0.0
  %2454 = vmatprep.subr.mxu0 0.0
  %2455 = vmatpush1.msra.mxu0 0.0
  %2456 = vmatprep.subr.mxu0 0.0
  %2457 = vmatpush1.msra.mxu0 0.0
  %2458 = vmatprep.subr.mxu0 0.0
  %2459 = vmatpush1.msra.mxu0 0.0
  %2460 = vmatprep.subr.mxu0 0.0
  %2461 = vmatpush1.msra.mxu0 0.0
  %2462 = vmatprep.subr.mxu0 0.0
  %2463 = vmatpush1.msra.mxu0 0.0
  %2464 = vmatprep.subr.mxu0 0.0
  %2465 = vmatpush1.msra.mxu0 0.0
  %2466 = vmatprep.subr.mxu0 0.0
  %2467 = vmatpush1.msra.mxu0 0.0
  %2468 = vmatprep.subr.mxu0 0.0
  %2469 = vmatpush1.msra.mxu0 0.0
  %2470 = vmatprep.subr.mxu0 0.0
  %2471 = vmatpush1.msra.mxu0 0.0
  %2472 = vmatprep.subr.mxu0 %v2439
  %2473 = vmatpush1.msra.mxu0 %v2438
  %2474 = vmatprep.subr.mxu0 %v2436
  %2475 = vmatpush1.msra.mxu0 %v2435
  %2476 = vmatprep.subr.mxu0 0.0
  %2477 = vmatpush2.msra.mxu0 0.0
  %2478 = vmatprep.subr.mxu0 0.0
  %2479 = vmatpush2.msra.mxu0 0.0
  %2480 = vmatprep.subr.mxu0 0.0
  %2481 = vmatpush2.msra.mxu0 0.0
  %2482 = vmatprep.subr.mxu0 0.0
  %2483 = vmatpush2.msra.mxu0 0.0
  %2484 = vmatprep.subr.mxu0 0.0
  %2485 = vmatpush2.msra.mxu0 0.0
  %2486 = vmatprep.subr.mxu0 0.0
  %2487 = vmatpush2.msra.mxu0 0.0
  %2488 = vmatprep.subr.mxu0 0.0
  %2489 = vmatpush2.msra.mxu0 0.0
  %2490 = vmatprep.subr.mxu0 0.0
  %2491 = vmatpush2.msra.mxu0 0.0
  %2492 = vmatprep.subr.mxu0 0.0
  %2493 = vmatpush2.msra.mxu0 0.0
  %2494 = vmatprep.subr.mxu0 0.0
  %2495 = vmatpush2.msra.mxu0 0.0
  %2496 = vmatprep.subr.mxu0 0.0
  %2497 = vmatpush2.msra.mxu0 0.0
  %2498 = vmatprep.subr.mxu0 0.0
  %2499 = vmatpush2.msra.mxu0 0.0
  %2500 = vmatprep.subr.mxu0 0.0
  %2501 = vmatpush2.msra.mxu0 0.0
  %2502 = vmatprep.subr.mxu0 0.0
  %2503 = vmatpush2.msra.mxu0 0.0
  %2504 = vmatprep.subr.mxu0 0.0
  %2505 = vmatpush2.msra.mxu0 0.0
  %2506 = vmatprep.subr.mxu0 0.0
  %2507 = vmatpush2.msra.mxu0 0.0
  %2508 = vmatprep.mubr.f32.mxu0 0.0
  %2509 = vmatmul.mubr.f32.gmra.mxu0 %v2442
  %v2510 = vpop.f32.mrf.mxu0
  %v2511 = vadd.f32 0.0, %v2510
  %v2512 = vpop.f32.mrf.mxu0
  %v2513 = vadd.f32 0.0, %v2512
  %2514 = vdwg.mxu0
  %2515 = vmatprep.subr.mxu0 0.0
  %2516 = vmatpush1.msra.mxu0 0.0
  %2517 = vmatprep.subr.mxu0 0.0
  %2518 = vmatpush1.msra.mxu0 0.0
  %2519 = vmatprep.subr.mxu0 0.0
  %2520 = vmatpush1.msra.mxu0 0.0
  %2521 = vmatprep.subr.mxu0 0.0
  %2522 = vmatpush1.msra.mxu0 0.0
  %2523 = vmatprep.subr.mxu0 0.0
  %2524 = vmatpush1.msra.mxu0 0.0
  %2525 = vmatprep.subr.mxu0 0.0
  %2526 = vmatpush1.msra.mxu0 0.0
  %2527 = vmatprep.subr.mxu0 0.0
  %2528 = vmatpush1.msra.mxu0 0.0
  %2529 = vmatprep.subr.mxu0 0.0
  %2530 = vmatpush1.msra.mxu0 0.0
  %2531 = vmatprep.subr.mxu0 0.0
  %2532 = vmatpush1.msra.mxu0 0.0
  %2533 = vmatprep.subr.mxu0 0.0
  %2534 = vmatpush1.msra.mxu0 0.0
  %2535 = vmatprep.subr.mxu0 0.0
  %2536 = vmatpush1.msra.mxu0 0.0
  %2537 = vmatprep.subr.mxu0 0.0
  %2538 = vmatpush1.msra.mxu0 0.0
  %2539 = vmatprep.subr.mxu0 0.0
  %2540 = vmatpush1.msra.mxu0 0.0
  %2541 = vmatprep.subr.mxu0 0.0
  %2542 = vmatpush1.msra.mxu0 0.0
  %2543 = vmatprep.subr.mxu0 0.0
  %2544 = vmatpush1.msra.mxu0 %v2440
  %2545 = vmatprep.subr.mxu0 0.0
  %2546 = vmatpush1.msra.mxu0 %v2437
  %2547 = vmatprep.subr.mxu0 0.0
  %2548 = vmatpush2.msra.mxu0 0.0
  %2549 = vmatprep.subr.mxu0 0.0
  %2550 = vmatpush2.msra.mxu0 0.0
  %2551 = vmatprep.subr.mxu0 0.0
  %2552 = vmatpush2.msra.mxu0 0.0
  %2553 = vmatprep.subr.mxu0 0.0
  %2554 = vmatpush2.msra.mxu0 0.0
  %2555 = vmatprep.subr.mxu0 0.0
  %2556 = vmatpush2.msra.mxu0 0.0
  %2557 = vmatprep.subr.mxu0 0.0
  %2558 = vmatpush2.msra.mxu0 0.0
  %2559 = vmatprep.subr.mxu0 0.0
  %2560 = vmatpush2.msra.mxu0 0.0
  %2561 = vmatprep.subr.mxu0 0.0
  %2562 = vmatpush2.msra.mxu0 0.0
  %2563 = vmatprep.subr.mxu0 0.0
  %2564 = vmatpush2.msra.mxu0 0.0
  %2565 = vmatprep.subr.mxu0 0.0
  %2566 = vmatpush2.msra.mxu0 0.0
  %2567 = vmatprep.subr.mxu0 0.0
  %2568 = vmatpush2.msra.mxu0 0.0
  %2569 = vmatprep.subr.mxu0 0.0
  %2570 = vmatpush2.msra.mxu0 0.0
  %2571 = vmatprep.subr.mxu0 0.0
  %2572 = vmatpush2.msra.mxu0 0.0
  %2573 = vmatprep.subr.mxu0 0.0
  %2574 = vmatpush2.msra.mxu0 0.0
  %2575 = vmatprep.subr.mxu0 0.0
  %2576 = vmatpush2.msra.mxu0 0.0
  %2577 = vmatprep.subr.mxu0 0.0
  %2578 = vmatpush2.msra.mxu0 0.0
  %2579 = vmatprep.mubr.f32.mxu0 0.0
  %2580 = vmatmul.mubr.f32.gmra.mxu0 %v2442
  %v2581 = vpop.f32.mrf.mxu0
  %v2582 = vadd.f32 0.0, %v2581
  %v2583 = vpop.f32.mrf.mxu0
  %2584 = vdwg.mxu0
  %s2585 = scalar_lea.vmem [#allocation5], 144
  %2586 = vst [vmem:[%s2585] sm:$0xff] %v2511
  %2587 = vst [vmem:[%s2585 + $0x8] sm:$0xff] %v2513
  %2588 = vst.msk [vmem:[%s2585 + $0x10] sm:$0xff] %vm1159, %v2582
  %v2589 = vmul.f32 %v2511, %v409
  %v2590 = vmul.f32 %v2513, %v413
  %v2591 = vmul.f32 %v2582, %v417
  %v2592 = vadd.f32 %v2589, %v2590
  %v2593 = vsel %vm1159, %v2591, 0.0
  %v2594 = vadd.f32 %v2592, %v2593
  %2595 = vadd.xlane.f32.xlu0 %v2594
  %v2596 = vpop.xlane.xlu0 %2595
  %v2597 = vadd.f32 %v2360, %v2596
  %v2598 = vld [vmem:[%s1647] sm:$0xff]
  %v2599 = vld [vmem:[%s922 + $0x4] sm:$0xff]
  %v2600 = vld [vmem:[%s922 + $0xc] sm:$0xf]
  %v2602 = vcombine.high %v2599, %v2599
  %2604 = vst [vmem:[#allocation2] sm:$0xf] %v2599
  %2605 = vst [vmem:[#allocation2 + $0x8] sm:$0xf] %v2602
  %2606 = vst.msk [vmem:[#allocation2 + $0x10] sm:$0xf] %vm64, %v2600
  %v2607 = vld [vmem:[%s922 + $0x4] sm:$0xff]
  %v2608 = vld [vmem:[%s922 + $0xc] sm:$0xf]
  %v2611 = vcombine.low %v2607, %v2607
  %v2612 = vcombine.low %v2608, %v2608
  %2613 = vrot.lane.b32.xlu0 %v2611, 127
  %v2614 = vpop.permute.xlu0 %2613
  %2615 = vrot.lane.b32.xlu0 %v2607, 127
  %v2616 = vpop.permute.xlu0 %2615
  %2617 = vrot.lane.b32.xlu0 %v2612, 127
  %v2618 = vpop.permute.xlu0 %2617
  %v2619 = vsel %vm159, %v2614, %v2616
  %v2620 = vsel %vm159, %v2616, %v2618
  %2624 = vst [vmem:[#allocation2] sm:$0xf0] %v2619
  %2625 = vst [vmem:[#allocation2 + $0x8] sm:$0xf0] %v2620
  %2626 = vst.msk [vmem:[#allocation2 + $0x10] sm:$0xf0] %vm89, %v2618
  %v2627 = vld [vmem:[%s922 + $0x4] sm:$0xff]
  %v2628 = vld [vmem:[%s922 + $0xc] sm:$0xf]
  %v2631 = vcombine.high %v2627, %v2627
  %2632 = vrot.lane.b32.xlu0 %v2627, 110
  %v2633 = vpop.permute.xlu0 %2632
  %2634 = vrot.lane.b32.xlu0 %v2631, 110
  %v2635 = vpop.permute.xlu0 %2634
  %2636 = vrot.lane.b32.xlu0 %v2628, 110
  %v2637 = vpop.permute.xlu0 %2636
  %v2638 = vsel %vm200, %v2633, %v2635
  %v2639 = vsel %vm200, %v2635, %v2637
  %2643 = vst [vmem:[#allocation2 + $0x18] sm:$0xf] %v2638
  %2644 = vst [vmem:[#allocation2 + $0x20] sm:$0xf] %v2639
  %2645 = vst.msk [vmem:[#allocation2 + $0x28] sm:$0xf] %vm64, %v2637
  %v2646 = vld [vmem:[%s922 + $0x4] sm:$0xff]
  %v2647 = vld [vmem:[%s922 + $0xc] sm:$0xf]
  %v2650 = vcombine.low %v2646, %v2646
  %v2651 = vcombine.low %v2647, %v2647
  %2652 = vrot.lane.b32.xlu0 %v2650, 109
  %v2653 = vpop.permute.xlu0 %2652
  %2654 = vrot.lane.b32.xlu0 %v2646, 109
  %v2655 = vpop.permute.xlu0 %2654
  %2656 = vrot.lane.b32.xlu0 %v2651, 109
  %v2657 = vpop.permute.xlu0 %2656
  %v2658 = vsel %vm220, %v2653, %v2655
  %v2659 = vsel %vm220, %v2655, %v2657
  %2663 = vst [vmem:[#allocation2 + $0x18] sm:$0xf0] %v2658
  %2664 = vst [vmem:[#allocation2 + $0x20] sm:$0xf0] %v2659
  %2665 = vst.msk [vmem:[#allocation2 + $0x28] sm:$0xf0] %vm89, %v2657
  %v2666 = vld [vmem:[#allocation2] sm:$0xff]
  %v2667 = vld [vmem:[#allocation2 + $0x8] sm:$0xff]
  %v2668 = vld [vmem:[#allocation2 + $0x10] sm:$0xff]
  %v2669 = vld [vmem:[#allocation2 + $0x18] sm:$0xff]
  %v2670 = vld [vmem:[#allocation2 + $0x20] sm:$0xff]
  %v2671 = vld [vmem:[#allocation2 + $0x28] sm:$0xff]
  %v2673 = vsel %vm1012, %v2598, 0
  %2675 = vmatprep.subr.mxu0 0.0
  %2676 = vmatpush1.msra.mxu0 0.0
  %2677 = vmatprep.subr.mxu0 0.0
  %2678 = vmatpush1.msra.mxu0 0.0
  %2679 = vmatprep.subr.mxu0 0.0
  %2680 = vmatpush1.msra.mxu0 0.0
  %2681 = vmatprep.subr.mxu0 0.0
  %2682 = vmatpush1.msra.mxu0 0.0
  %2683 = vmatprep.subr.mxu0 0.0
  %2684 = vmatpush1.msra.mxu0 0.0
  %2685 = vmatprep.subr.mxu0 0.0
  %2686 = vmatpush1.msra.mxu0 0.0
  %2687 = vmatprep.subr.mxu0 0.0
  %2688 = vmatpush1.msra.mxu0 0.0
  %2689 = vmatprep.subr.mxu0 0.0
  %2690 = vmatpush1.msra.mxu0 0.0
  %2691 = vmatprep.subr.mxu0 0.0
  %2692 = vmatpush1.msra.mxu0 0.0
  %2693 = vmatprep.subr.mxu0 0.0
  %2694 = vmatpush1.msra.mxu0 0.0
  %2695 = vmatprep.subr.mxu0 0.0
  %2696 = vmatpush1.msra.mxu0 0.0
  %2697 = vmatprep.subr.mxu0 0.0
  %2698 = vmatpush1.msra.mxu0 0.0
  %2699 = vmatprep.subr.mxu0 0.0
  %2700 = vmatpush1.msra.mxu0 0.0
  %2701 = vmatprep.subr.mxu0 0.0
  %2702 = vmatpush1.msra.mxu0 0.0
  %2703 = vmatprep.subr.mxu0 %v2670
  %2704 = vmatpush1.msra.mxu0 %v2669
  %2705 = vmatprep.subr.mxu0 %v2667
  %2706 = vmatpush1.msra.mxu0 %v2666
  %2707 = vmatprep.subr.mxu0 0.0
  %2708 = vmatpush2.msra.mxu0 0.0
  %2709 = vmatprep.subr.mxu0 0.0
  %2710 = vmatpush2.msra.mxu0 0.0
  %2711 = vmatprep.subr.mxu0 0.0
  %2712 = vmatpush2.msra.mxu0 0.0
  %2713 = vmatprep.subr.mxu0 0.0
  %2714 = vmatpush2.msra.mxu0 0.0
  %2715 = vmatprep.subr.mxu0 0.0
  %2716 = vmatpush2.msra.mxu0 0.0
  %2717 = vmatprep.subr.mxu0 0.0
  %2718 = vmatpush2.msra.mxu0 0.0
  %2719 = vmatprep.subr.mxu0 0.0
  %2720 = vmatpush2.msra.mxu0 0.0
  %2721 = vmatprep.subr.mxu0 0.0
  %2722 = vmatpush2.msra.mxu0 0.0
  %2723 = vmatprep.subr.mxu0 0.0
  %2724 = vmatpush2.msra.mxu0 0.0
  %2725 = vmatprep.subr.mxu0 0.0
  %2726 = vmatpush2.msra.mxu0 0.0
  %2727 = vmatprep.subr.mxu0 0.0
  %2728 = vmatpush2.msra.mxu0 0.0
  %2729 = vmatprep.subr.mxu0 0.0
  %2730 = vmatpush2.msra.mxu0 0.0
  %2731 = vmatprep.subr.mxu0 0.0
  %2732 = vmatpush2.msra.mxu0 0.0
  %2733 = vmatprep.subr.mxu0 0.0
  %2734 = vmatpush2.msra.mxu0 0.0
  %2735 = vmatprep.subr.mxu0 0.0
  %2736 = vmatpush2.msra.mxu0 0.0
  %2737 = vmatprep.subr.mxu0 0.0
  %2738 = vmatpush2.msra.mxu0 0.0
  %2739 = vmatprep.mubr.f32.mxu0 0.0
  %2740 = vmatmul.mubr.f32.gmra.mxu0 %v2673
  %v2741 = vpop.f32.mrf.mxu0
  %v2742 = vadd.f32 0.0, %v2741
  %v2743 = vpop.f32.mrf.mxu0
  %v2744 = vadd.f32 0.0, %v2743
  %2745 = vdwg.mxu0
  %2746 = vmatprep.subr.mxu0 0.0
  %2747 = vmatpush1.msra.mxu0 0.0
  %2748 = vmatprep.subr.mxu0 0.0
  %2749 = vmatpush1.msra.mxu0 0.0
  %2750 = vmatprep.subr.mxu0 0.0
  %2751 = vmatpush1.msra.mxu0 0.0
  %2752 = vmatprep.subr.mxu0 0.0
  %2753 = vmatpush1.msra.mxu0 0.0
  %2754 = vmatprep.subr.mxu0 0.0
  %2755 = vmatpush1.msra.mxu0 0.0
  %2756 = vmatprep.subr.mxu0 0.0
  %2757 = vmatpush1.msra.mxu0 0.0
  %2758 = vmatprep.subr.mxu0 0.0
  %2759 = vmatpush1.msra.mxu0 0.0
  %2760 = vmatprep.subr.mxu0 0.0
  %2761 = vmatpush1.msra.mxu0 0.0
  %2762 = vmatprep.subr.mxu0 0.0
  %2763 = vmatpush1.msra.mxu0 0.0
  %2764 = vmatprep.subr.mxu0 0.0
  %2765 = vmatpush1.msra.mxu0 0.0
  %2766 = vmatprep.subr.mxu0 0.0
  %2767 = vmatpush1.msra.mxu0 0.0
  %2768 = vmatprep.subr.mxu0 0.0
  %2769 = vmatpush1.msra.mxu0 0.0
  %2770 = vmatprep.subr.mxu0 0.0
  %2771 = vmatpush1.msra.mxu0 0.0
  %2772 = vmatprep.subr.mxu0 0.0
  %2773 = vmatpush1.msra.mxu0 0.0
  %2774 = vmatprep.subr.mxu0 0.0
  %2775 = vmatpush1.msra.mxu0 %v2671
  %2776 = vmatprep.subr.mxu0 0.0
  %2777 = vmatpush1.msra.mxu0 %v2668
  %2778 = vmatprep.subr.mxu0 0.0
  %2779 = vmatpush2.msra.mxu0 0.0
  %2780 = vmatprep.subr.mxu0 0.0
  %2781 = vmatpush2.msra.mxu0 0.0
  %2782 = vmatprep.subr.mxu0 0.0
  %2783 = vmatpush2.msra.mxu0 0.0
  %2784 = vmatprep.subr.mxu0 0.0
  %2785 = vmatpush2.msra.mxu0 0.0
  %2786 = vmatprep.subr.mxu0 0.0
  %2787 = vmatpush2.msra.mxu0 0.0
  %2788 = vmatprep.subr.mxu0 0.0
  %2789 = vmatpush2.msra.mxu0 0.0
  %2790 = vmatprep.subr.mxu0 0.0
  %2791 = vmatpush2.msra.mxu0 0.0
  %2792 = vmatprep.subr.mxu0 0.0
  %2793 = vmatpush2.msra.mxu0 0.0
  %2794 = vmatprep.subr.mxu0 0.0
  %2795 = vmatpush2.msra.mxu0 0.0
  %2796 = vmatprep.subr.mxu0 0.0
  %2797 = vmatpush2.msra.mxu0 0.0
  %2798 = vmatprep.subr.mxu0 0.0
  %2799 = vmatpush2.msra.mxu0 0.0
  %2800 = vmatprep.subr.mxu0 0.0
  %2801 = vmatpush2.msra.mxu0 0.0
  %2802 = vmatprep.subr.mxu0 0.0
  %2803 = vmatpush2.msra.mxu0 0.0
  %2804 = vmatprep.subr.mxu0 0.0
  %2805 = vmatpush2.msra.mxu0 0.0
  %2806 = vmatprep.subr.mxu0 0.0
  %2807 = vmatpush2.msra.mxu0 0.0
  %2808 = vmatprep.subr.mxu0 0.0
  %2809 = vmatpush2.msra.mxu0 0.0
  %2810 = vmatprep.mubr.f32.mxu0 0.0
  %2811 = vmatmul.mubr.f32.gmra.mxu0 %v2673
  %v2812 = vpop.f32.mrf.mxu0
  %v2813 = vadd.f32 0.0, %v2812
  %v2814 = vpop.f32.mrf.mxu0
  %2815 = vdwg.mxu0
  %s2816 = scalar_lea.vmem [#allocation5], 168
  %2817 = vst [vmem:[%s2816] sm:$0xff] %v2742
  %2818 = vst [vmem:[%s2816 + $0x8] sm:$0xff] %v2744
  %2819 = vst.msk [vmem:[%s2816 + $0x10] sm:$0xff] %vm1159, %v2813
  %v2820 = vmul.f32 %v2742, %v409
  %v2821 = vmul.f32 %v2744, %v413
  %v2822 = vmul.f32 %v2813, %v417
  %v2823 = vadd.f32 %v2820, %v2821
  %v2824 = vsel %vm1159, %v2822, 0.0
  %v2825 = vadd.f32 %v2823, %v2824
  %2826 = vadd.xlane.f32.xlu0 %v2825
  %v2827 = vpop.xlane.xlu0 %2826
  %v2828 = vadd.f32 %v2597, %v2827
  %v2829 = vrcp.pop 2048.0
  %v2830 = vmul.f32 %v2828, %v2829
  %v2831 = vld [vmem:[#allocation5] sm:$0xff]
  %v2832 = vld [vmem:[#allocation5 + $0x8] sm:$0xff]
  %v2833 = vld [vmem:[#allocation5 + $0x10] sm:$0xff]
  %v2834 = vsub.f32 %v2831, %v2830
  %v2835 = vsub.f32 %v2832, %v2830
  %v2836 = vsub.f32 %v2833, %v2830
  %v2837 = vmul.f32 %v2834, %v409
  %v2838 = vmul.f32 %v2835, %v413
  %v2839 = vmul.f32 %v2836, %v417
  %v2840 = vmul.f32 %v2837, %v2837
  %v2841 = vmul.f32 %v2838, %v2838
  %v2842 = vmul.f32 %v2839, %v2839
  %v2843 = vadd.f32 %v2840, %v2841
  %v2844 = vsel %vm1159, %v2842, 0.0
  %v2845 = vadd.f32 %v2843, %v2844
  %2846 = vadd.xlane.f32.xlu0 %v2845
  %v2847 = vpop.xlane.xlu0 %2846
  %v2848 = vadd.f32 %v2847, 0.0
  %v2849 = vld [vmem:[%s1396] sm:$0xff]
  %v2850 = vld [vmem:[%s1396 + $0x8] sm:$0xff]
  %v2851 = vld [vmem:[%s1396 + $0x10] sm:$0xff]
  %v2852 = vsub.f32 %v2849, %v2830
  %v2853 = vsub.f32 %v2850, %v2830
  %v2854 = vsub.f32 %v2851, %v2830
  %v2855 = vmul.f32 %v2852, %v409
  %v2856 = vmul.f32 %v2853, %v413
  %v2857 = vmul.f32 %v2854, %v417
  %v2858 = vmul.f32 %v2855, %v2855
  %v2859 = vmul.f32 %v2856, %v2856
  %v2860 = vmul.f32 %v2857, %v2857
  %v2861 = vadd.f32 %v2858, %v2859
  %v2862 = vsel %vm1159, %v2860, 0.0
  %v2863 = vadd.f32 %v2861, %v2862
  %2864 = vadd.xlane.f32.xlu0 %v2863
  %v2865 = vpop.xlane.xlu0 %2864
  %v2866 = vadd.f32 %v2848, %v2865
  %v2867 = vld [vmem:[%s1634] sm:$0xff]
  %v2868 = vld [vmem:[%s1634 + $0x8] sm:$0xff]
  %v2869 = vld [vmem:[%s1634 + $0x10] sm:$0xff]
  %v2870 = vsub.f32 %v2867, %v2830
  %v2871 = vsub.f32 %v2868, %v2830
  %v2872 = vsub.f32 %v2869, %v2830
  %v2873 = vmul.f32 %v2870, %v409
  %v2874 = vmul.f32 %v2871, %v413
  %v2875 = vmul.f32 %v2872, %v417
  %v2876 = vmul.f32 %v2873, %v2873
  %v2877 = vmul.f32 %v2874, %v2874
  %v2878 = vmul.f32 %v2875, %v2875
  %v2879 = vadd.f32 %v2876, %v2877
  %v2880 = vsel %vm1159, %v2878, 0.0
  %v2881 = vadd.f32 %v2879, %v2880
  %2882 = vadd.xlane.f32.xlu0 %v2881
  %v2883 = vpop.xlane.xlu0 %2882
  %v2884 = vadd.f32 %v2866, %v2883
  %v2885 = vld [vmem:[%s1866] sm:$0xff]
  %v2886 = vld [vmem:[%s1866 + $0x8] sm:$0xff]
  %v2887 = vld [vmem:[%s1866 + $0x10] sm:$0xff]
  %v2888 = vsub.f32 %v2885, %v2830
  %v2889 = vsub.f32 %v2886, %v2830
  %v2890 = vsub.f32 %v2887, %v2830
  %v2891 = vmul.f32 %v2888, %v409
  %v2892 = vmul.f32 %v2889, %v413
  %v2893 = vmul.f32 %v2890, %v417
  %v2894 = vmul.f32 %v2891, %v2891
  %v2895 = vmul.f32 %v2892, %v2892
  %v2896 = vmul.f32 %v2893, %v2893
  %v2897 = vadd.f32 %v2894, %v2895
  %v2898 = vsel %vm1159, %v2896, 0.0
  %v2899 = vadd.f32 %v2897, %v2898
  %2900 = vadd.xlane.f32.xlu0 %v2899
  %v2901 = vpop.xlane.xlu0 %2900
  %v2902 = vadd.f32 %v2884, %v2901
  %v2903 = vld [vmem:[%s2110] sm:$0xff]
  %v2904 = vld [vmem:[%s2110 + $0x8] sm:$0xff]
  %v2905 = vld [vmem:[%s2110 + $0x10] sm:$0xff]
  %v2906 = vsub.f32 %v2903, %v2830
  %v2907 = vsub.f32 %v2904, %v2830
  %v2908 = vsub.f32 %v2905, %v2830
  %v2909 = vmul.f32 %v2906, %v409
  %v2910 = vmul.f32 %v2907, %v413
  %v2911 = vmul.f32 %v2908, %v417
  %v2912 = vmul.f32 %v2909, %v2909
  %v2913 = vmul.f32 %v2910, %v2910
  %v2914 = vmul.f32 %v2911, %v2911
  %v2915 = vadd.f32 %v2912, %v2913
  %v2916 = vsel %vm1159, %v2914, 0.0
  %v2917 = vadd.f32 %v2915, %v2916
  %2918 = vadd.xlane.f32.xlu0 %v2917
  %v2919 = vpop.xlane.xlu0 %2918
  %v2920 = vadd.f32 %v2902, %v2919
  %v2921 = vld [vmem:[%s2348] sm:$0xff]
  %v2922 = vld [vmem:[%s2348 + $0x8] sm:$0xff]
  %v2923 = vld [vmem:[%s2348 + $0x10] sm:$0xff]
  %v2924 = vsub.f32 %v2921, %v2830
  %v2925 = vsub.f32 %v2922, %v2830
  %v2926 = vsub.f32 %v2923, %v2830
  %v2927 = vmul.f32 %v2924, %v409
  %v2928 = vmul.f32 %v2925, %v413
  %v2929 = vmul.f32 %v2926, %v417
  %v2930 = vmul.f32 %v2927, %v2927
  %v2931 = vmul.f32 %v2928, %v2928
  %v2932 = vmul.f32 %v2929, %v2929
  %v2933 = vadd.f32 %v2930, %v2931
  %v2934 = vsel %vm1159, %v2932, 0.0
  %v2935 = vadd.f32 %v2933, %v2934
  %2936 = vadd.xlane.f32.xlu0 %v2935
  %v2937 = vpop.xlane.xlu0 %2936
  %v2938 = vadd.f32 %v2920, %v2937
  %v2939 = vld [vmem:[%s2585] sm:$0xff]
  %v2940 = vld [vmem:[%s2585 + $0x8] sm:$0xff]
  %v2941 = vld [vmem:[%s2585 + $0x10] sm:$0xff]
  %v2942 = vsub.f32 %v2939, %v2830
  %v2943 = vsub.f32 %v2940, %v2830
  %v2944 = vsub.f32 %v2941, %v2830
  %v2945 = vmul.f32 %v2942, %v409
  %v2946 = vmul.f32 %v2943, %v413
  %v2947 = vmul.f32 %v2944, %v417
  %v2948 = vmul.f32 %v2945, %v2945
  %v2949 = vmul.f32 %v2946, %v2946
  %v2950 = vmul.f32 %v2947, %v2947
  %v2951 = vadd.f32 %v2948, %v2949
  %v2952 = vsel %vm1159, %v2950, 0.0
  %v2953 = vadd.f32 %v2951, %v2952
  %2954 = vadd.xlane.f32.xlu0 %v2953
  %v2955 = vpop.xlane.xlu0 %2954
  %v2956 = vadd.f32 %v2938, %v2955
  %v2957 = vld [vmem:[%s2816] sm:$0xff]
  %v2958 = vld [vmem:[%s2816 + $0x8] sm:$0xff]
  %v2959 = vld [vmem:[%s2816 + $0x10] sm:$0xff]
  %v2960 = vsub.f32 %v2957, %v2830
  %v2961 = vsub.f32 %v2958, %v2830
  %v2962 = vsub.f32 %v2959, %v2830
  %v2963 = vmul.f32 %v2960, %v409
  %v2964 = vmul.f32 %v2961, %v413
  %v2965 = vmul.f32 %v2962, %v417
  %v2966 = vmul.f32 %v2963, %v2963
  %v2967 = vmul.f32 %v2964, %v2964
  %v2968 = vmul.f32 %v2965, %v2965
  %v2969 = vadd.f32 %v2966, %v2967
  %v2970 = vsel %vm1159, %v2968, 0.0
  %v2971 = vadd.f32 %v2969, %v2970
  %2972 = vadd.xlane.f32.xlu0 %v2971
  %v2973 = vpop.xlane.xlu0 %2972
  %v2974 = vadd.f32 %v2956, %v2973
  %v2975 = vmul.f32 %v2974, %v2829
  %v2976 = vadd.f32 %v2975, 1e-05
  %v2977 = vrsqrt.pop %v2976
  %v2978 = vld [vmem:[%s7] sm:$0xff]
  %v2979 = vmul.f32 %v2977, %v2978
  %v2980 = vld [vmem:[%s4] sm:$0xff]
  %v2981 = vld [vmem:[%s0] sm:$0xff]
  %v2982 = vld [vmem:[%s0 + $0x8] sm:$0xff]
  %v2985 = vcombine.high %v2981, %v2981
  %v2986 = vcombine.high %v2982, %v2982
  %2987 = vrot.lane.b32.xlu0 %v2981, 19
  %v2988 = vpop.permute.xlu0 %2987
  %2989 = vrot.lane.b32.xlu0 %v2985, 19
  %v2990 = vpop.permute.xlu0 %2989
  %2991 = vrot.lane.b32.xlu0 %v2982, 19
  %v2992 = vpop.permute.xlu0 %2991
  %2993 = vrot.lane.b32.xlu0 %v2986, 19
  %v2994 = vpop.permute.xlu0 %2993
  %v2995 = vsel %vm55, %v2988, %v2990
  %v2996 = vsel %vm55, %v2990, %v2992
  %v2997 = vsel %vm55, %v2992, %v2994
  %3001 = vst [vmem:[#allocation2] sm:$0xf] %v2995
  %3002 = vst [vmem:[#allocation2 + $0x8] sm:$0xf] %v2996
  %3003 = vst.msk [vmem:[#allocation2 + $0x10] sm:$0xf] %vm64, %v2997
  %v3004 = vld [vmem:[%s0] sm:$0xff]
  %v3005 = vld [vmem:[%s0 + $0x8] sm:$0xff]
  %v3008 = vcombine.low %v3004, %v3004
  %v3009 = vcombine.low %v3005, %v3005
  %3010 = vrot.lane.b32.xlu0 %v3008, 18
  %v3011 = vpop.permute.xlu0 %3010
  %3012 = vrot.lane.b32.xlu0 %v3004, 18
  %v3013 = vpop.permute.xlu0 %3012
  %3014 = vrot.lane.b32.xlu0 %v3009, 18
  %v3015 = vpop.permute.xlu0 %3014
  %3016 = vrot.lane.b32.xlu0 %v3005, 18
  %v3017 = vpop.permute.xlu0 %3016
  %v3018 = vsel %vm80, %v3011, %v3013
  %v3019 = vsel %vm80, %v3013, %v3015
  %v3020 = vsel %vm80, %v3015, %v3017
  %3024 = vst [vmem:[#allocation2] sm:$0xf0] %v3018
  %3025 = vst [vmem:[#allocation2 + $0x8] sm:$0xf0] %v3019
  %3026 = vst.msk [vmem:[#allocation2 + $0x10] sm:$0xf0] %vm89, %v3020
  %v3027 = vld [vmem:[%s0] sm:$0xff]
  %v3028 = vld [vmem:[%s0 + $0x8] sm:$0xff]
  %v3031 = vcombine.high %v3027, %v3027
  %v3032 = vcombine.high %v3028, %v3028
  %3033 = vrot.lane.b32.xlu0 %v3027, 1
  %v3034 = vpop.permute.xlu0 %3033
  %3035 = vrot.lane.b32.xlu0 %v3031, 1
  %v3036 = vpop.permute.xlu0 %3035
  %3037 = vrot.lane.b32.xlu0 %v3028, 1
  %v3038 = vpop.permute.xlu0 %3037
  %3039 = vrot.lane.b32.xlu0 %v3032, 1
  %v3040 = vpop.permute.xlu0 %3039
  %v3041 = vsel %vm129, %v3034, %v3036
  %v3042 = vsel %vm129, %v3036, %v3038
  %v3043 = vsel %vm129, %v3038, %v3040
  %3047 = vst [vmem:[#allocation2 + $0x18] sm:$0xf] %v3041
  %3048 = vst [vmem:[#allocation2 + $0x20] sm:$0xf] %v3042
  %3049 = vst.msk [vmem:[#allocation2 + $0x28] sm:$0xf] %vm64, %v3043
  %v3050 = vld [vmem:[%s0 + $0x4] sm:$0xff]
  %v3051 = vld [vmem:[%s0 + $0xc] sm:$0xf]
  %v3054 = vcombine.low %v3050, %v3050
  %v3055 = vcombine.low %v3051, %v3051
  %3058 = vst [vmem:[#allocation2 + $0x18] sm:$0xf0] %v3054
  %3059 = vst [vmem:[#allocation2 + $0x20] sm:$0xf0] %v3050
  %3060 = vst.msk [vmem:[#allocation2 + $0x28] sm:$0xf0] %vm89, %v3055
  %v3061 = vld [vmem:[#allocation2] sm:$0xff]
  %v3062 = vld [vmem:[#allocation2 + $0x8] sm:$0xff]
  %v3063 = vld [vmem:[#allocation2 + $0x10] sm:$0xff]
  %v3064 = vld [vmem:[#allocation2 + $0x18] sm:$0xff]
  %v3065 = vld [vmem:[#allocation2 + $0x20] sm:$0xff]
  %v3066 = vld [vmem:[#allocation2 + $0x28] sm:$0xff]
  %v3067 = vld [vmem:[%s9] sm:$0xff]
  %3069 = vset.pattern.permute.xlu0 0
  %3070 = vperm.xlu0 %3069, %v3067
  %v3071 = vpop.permute.xlu0 %3070
  %v3074 = vsel %vm1012, %v2980, 0
  %3076 = vmatprep.subr.mxu0 0.0
  %3077 = vmatpush1.msra.mxu0 0.0
  %3078 = vmatprep.subr.mxu0 0.0
  %3079 = vmatpush1.msra.mxu0 0.0
  %3080 = vmatprep.subr.mxu0 0.0
  %3081 = vmatpush1.msra.mxu0 0.0
  %3082 = vmatprep.subr.mxu0 0.0
  %3083 = vmatpush1.msra.mxu0 0.0
  %3084 = vmatprep.subr.mxu0 0.0
  %3085 = vmatpush1.msra.mxu0 0.0
  %3086 = vmatprep.subr.mxu0 0.0
  %3087 = vmatpush1.msra.mxu0 0.0
  %3088 = vmatprep.subr.mxu0 0.0
  %3089 = vmatpush1.msra.mxu0 0.0
  %3090 = vmatprep.subr.mxu0 0.0
  %3091 = vmatpush1.msra.mxu0 0.0
  %3092 = vmatprep.subr.mxu0 0.0
  %3093 = vmatpush1.msra.mxu0 0.0
  %3094 = vmatprep.subr.mxu0 0.0
  %3095 = vmatpush1.msra.mxu0 0.0
  %3096 = vmatprep.subr.mxu0 0.0
  %3097 = vmatpush1.msra.mxu0 0.0
  %3098 = vmatprep.subr.mxu0 0.0
  %3099 = vmatpush1.msra.mxu0 0.0
  %3100 = vmatprep.subr.mxu0 0.0
  %3101 = vmatpush1.msra.mxu0 0.0
  %3102 = vmatprep.subr.mxu0 0.0
  %3103 = vmatpush1.msra.mxu0 0.0
  %3104 = vmatprep.subr.mxu0 %v3065
  %3105 = vmatpush1.msra.mxu0 %v3064
  %3106 = vmatprep.subr.mxu0 %v3062
  %3107 = vmatpush1.msra.mxu0 %v3061
  %3108 = vmatprep.subr.mxu0 0.0
  %3109 = vmatpush2.msra.mxu0 0.0
  %3110 = vmatprep.subr.mxu0 0.0
  %3111 = vmatpush2.msra.mxu0 0.0
  %3112 = vmatprep.subr.mxu0 0.0
  %3113 = vmatpush2.msra.mxu0 0.0
  %3114 = vmatprep.subr.mxu0 0.0
  %3115 = vmatpush2.msra.mxu0 0.0
  %3116 = vmatprep.subr.mxu0 0.0
  %3117 = vmatpush2.msra.mxu0 0.0
  %3118 = vmatprep.subr.mxu0 0.0
  %3119 = vmatpush2.msra.mxu0 0.0
  %3120 = vmatprep.subr.mxu0 0.0
  %3121 = vmatpush2.msra.mxu0 0.0
  %3122 = vmatprep.subr.mxu0 0.0
  %3123 = vmatpush2.msra.mxu0 0.0
  %3124 = vmatprep.subr.mxu0 0.0
  %3125 = vmatpush2.msra.mxu0 0.0
  %3126 = vmatprep.subr.mxu0 0.0
  %3127 = vmatpush2.msra.mxu0 0.0
  %3128 = vmatprep.subr.mxu0 0.0
  %3129 = vmatpush2.msra.mxu0 0.0
  %3130 = vmatprep.subr.mxu0 0.0
  %3131 = vmatpush2.msra.mxu0 0.0
  %3132 = vmatprep.subr.mxu0 0.0
  %3133 = vmatpush2.msra.mxu0 0.0
  %3134 = vmatprep.subr.mxu0 0.0
  %3135 = vmatpush2.msra.mxu0 0.0
  %3136 = vmatprep.subr.mxu0 0.0
  %3137 = vmatpush2.msra.mxu0 0.0
  %3138 = vmatprep.subr.mxu0 0.0
  %3139 = vmatpush2.msra.mxu0 0.0
  %3140 = vmatprep.mubr.f32.mxu0 0.0
  %3141 = vmatmul.mubr.f32.gmra.mxu0 %v3074
  %v3142 = vpop.f32.mrf.mxu0
  %v3143 = vadd.f32 %v3071, %v3142
  %v3144 = vpop.f32.mrf.mxu0
  %v3145 = vadd.f32 %v3071, %v3144
  %3146 = vdwg.mxu0
  %3147 = vmatprep.subr.mxu0 0.0
  %3148 = vmatpush1.msra.mxu0 0.0
  %3149 = vmatprep.subr.mxu0 0.0
  %3150 = vmatpush1.msra.mxu0 0.0
  %3151 = vmatprep.subr.mxu0 0.0
  %3152 = vmatpush1.msra.mxu0 0.0
  %3153 = vmatprep.subr.mxu0 0.0
  %3154 = vmatpush1.msra.mxu0 0.0
  %3155 = vmatprep.subr.mxu0 0.0
  %3156 = vmatpush1.msra.mxu0 0.0
  %3157 = vmatprep.subr.mxu0 0.0
  %3158 = vmatpush1.msra.mxu0 0.0
  %3159 = vmatprep.subr.mxu0 0.0
  %3160 = vmatpush1.msra.mxu0 0.0
  %3161 = vmatprep.subr.mxu0 0.0
  %3162 = vmatpush1.msra.mxu0 0.0
  %3163 = vmatprep.subr.mxu0 0.0
  %3164 = vmatpush1.msra.mxu0 0.0
  %3165 = vmatprep.subr.mxu0 0.0
  %3166 = vmatpush1.msra.mxu0 0.0
  %3167 = vmatprep.subr.mxu0 0.0
  %3168 = vmatpush1.msra.mxu0 0.0
  %3169 = vmatprep.subr.mxu0 0.0
  %3170 = vmatpush1.msra.mxu0 0.0
  %3171 = vmatprep.subr.mxu0 0.0
  %3172 = vmatpush1.msra.mxu0 0.0
  %3173 = vmatprep.subr.mxu0 0.0
  %3174 = vmatpush1.msra.mxu0 0.0
  %3175 = vmatprep.subr.mxu0 0.0
  %3176 = vmatpush1.msra.mxu0 %v3066
  %3177 = vmatprep.subr.mxu0 0.0
  %3178 = vmatpush1.msra.mxu0 %v3063
  %3179 = vmatprep.subr.mxu0 0.0
  %3180 = vmatpush2.msra.mxu0 0.0
  %3181 = vmatprep.subr.mxu0 0.0
  %3182 = vmatpush2.msra.mxu0 0.0
  %3183 = vmatprep.subr.mxu0 0.0
  %3184 = vmatpush2.msra.mxu0 0.0
  %3185 = vmatprep.subr.mxu0 0.0
  %3186 = vmatpush2.msra.mxu0 0.0
  %3187 = vmatprep.subr.mxu0 0.0
  %3188 = vmatpush2.msra.mxu0 0.0
  %3189 = vmatprep.subr.mxu0 0.0
  %3190 = vmatpush2.msra.mxu0 0.0
  %3191 = vmatprep.subr.mxu0 0.0
  %3192 = vmatpush2.msra.mxu0 0.0
  %3193 = vmatprep.subr.mxu0 0.0
  %3194 = vmatpush2.msra.mxu0 0.0
  %3195 = vmatprep.subr.mxu0 0.0
  %3196 = vmatpush2.msra.mxu0 0.0
  %3197 = vmatprep.subr.mxu0 0.0
  %3198 = vmatpush2.msra.mxu0 0.0
  %3199 = vmatprep.subr.mxu0 0.0
  %3200 = vmatpush2.msra.mxu0 0.0
  %3201 = vmatprep.subr.mxu0 0.0
  %3202 = vmatpush2.msra.mxu0 0.0
  %3203 = vmatprep.subr.mxu0 0.0
  %3204 = vmatpush2.msra.mxu0 0.0
  %3205 = vmatprep.subr.mxu0 0.0
  %3206 = vmatpush2.msra.mxu0 0.0
  %3207 = vmatprep.subr.mxu0 0.0
  %3208 = vmatpush2.msra.mxu0 0.0
  %3209 = vmatprep.subr.mxu0 0.0
  %3210 = vmatpush2.msra.mxu0 0.0
  %3211 = vmatprep.mubr.f32.mxu0 0.0
  %3212 = vmatmul.mubr.f32.gmra.mxu0 %v3074
  %v3213 = vpop.f32.mrf.mxu0
  %v3214 = vadd.f32 %v3071, %v3213
  %v3215 = vpop.f32.mrf.mxu0
  %3216 = vdwg.mxu0
  %v3217 = vld [vmem:[#allocation5] sm:$0xff]
  %v3218 = vld [vmem:[#allocation5 + $0x8] sm:$0xff]
  %v3219 = vld [vmem:[#allocation5 + $0x10] sm:$0xff]
  %v3220 = vsub.f32 %v3217, %v2830
  %v3221 = vsub.f32 %v3218, %v2830
  %v3222 = vsub.f32 %v3219, %v2830
  %3224 = vset.pattern.permute.xlu0 0
  %3225 = vperm.xlu0 %3224, %v2979
  %v3226 = vpop.permute.xlu0 %3225
  %v3228 = vmul.f32 %v3220, %v3226
  %v3229 = vmul.f32 %v3221, %v3226
  %v3230 = vmul.f32 %v3222, %v3226
  %v3231 = vld [vmem:[%s8] sm:$0xff]
  %3233 = vset.pattern.permute.xlu0 0
  %3234 = vperm.xlu0 %3233, %v3231
  %v3235 = vpop.permute.xlu0 %3234
  %v3237 = vadd.f32 %v3228, %v3235
  %v3238 = vadd.f32 %v3229, %v3235
  %v3239 = vadd.f32 %v3230, %v3235
  %v3240 = vadd.f32 %v3237, %v3143
  %v3241 = vadd.f32 %v3238, %v3145
  %v3242 = vadd.f32 %v3239, %v3214
  %vm3243 = vcmp.ge.f32.partialorder %v3240, 0.0
  %vm3244 = vcmp.ge.f32.partialorder %v3241, 0.0
  %vm3245 = vcmp.ge.f32.partialorder %v3242, 0.0
  %v3246 = vmul.f32 %v3240, 0.22916667
  %v3247 = vmul.f32 %v3241, 0.22916667
  %v3248 = vmul.f32 %v3242, 0.22916667
  %v3249 = vsel %vm3243, %v3240, %v3246
  %v3250 = vsel %vm3244, %v3241, %v3247
  %v3251 = vsel %vm3245, %v3242, %v3248
  %3252 = vst [vmem:[%s10] sm:$0xff] %v3249
  %3253 = vst [vmem:[%s10 + $0x8] sm:$0xff] %v3250
  %3254 = vst.msk [vmem:[%s10 + $0x10] sm:$0xff] %vm1159, %v3251
  %s3255 = scalar_lea.vmem %s4, 8
  %v3256 = vld [vmem:[%s3255] sm:$0xff]
  %v3257 = vld [vmem:[%s0] sm:$0xff]
  %v3258 = vld [vmem:[%s0 + $0x8] sm:$0xff]
  %v3261 = vcombine.high %v3257, %v3257
  %v3262 = vcombine.high %v3258, %v3258
  %3263 = vrot.lane.b32.xlu0 %v3257, 18
  %v3264 = vpop.permute.xlu0 %3263
  %3265 = vrot.lane.b32.xlu0 %v3261, 18
  %v3266 = vpop.permute.xlu0 %3265
  %3267 = vrot.lane.b32.xlu0 %v3258, 18
  %v3268 = vpop.permute.xlu0 %3267
  %3269 = vrot.lane.b32.xlu0 %v3262, 18
  %v3270 = vpop.permute.xlu0 %3269
  %v3271 = vsel %vm80, %v3264, %v3266
  %v3272 = vsel %vm80, %v3266, %v3268
  %v3273 = vsel %vm80, %v3268, %v3270
  %3277 = vst [vmem:[#allocation2] sm:$0xf] %v3271
  %3278 = vst [vmem:[#allocation2 + $0x8] sm:$0xf] %v3272
  %3279 = vst.msk [vmem:[#allocation2 + $0x10] sm:$0xf] %vm64, %v3273
  %v3280 = vld [vmem:[%s0] sm:$0xff]
  %v3281 = vld [vmem:[%s0 + $0x8] sm:$0xff]
  %v3284 = vcombine.low %v3280, %v3280
  %v3285 = vcombine.low %v3281, %v3281
  %3286 = vrot.lane.b32.xlu0 %v3284, 17
  %v3287 = vpop.permute.xlu0 %3286
  %3288 = vrot.lane.b32.xlu0 %v3280, 17
  %v3289 = vpop.permute.xlu0 %3288
  %3290 = vrot.lane.b32.xlu0 %v3285, 17
  %v3291 = vpop.permute.xlu0 %3290
  %3292 = vrot.lane.b32.xlu0 %v3281, 17
  %v3293 = vpop.permute.xlu0 %3292
  %v3294 = vsel %vm105, %v3287, %v3289
  %v3295 = vsel %vm105, %v3289, %v3291
  %v3296 = vsel %vm105, %v3291, %v3293
  %3300 = vst [vmem:[#allocation2] sm:$0xf0] %v3294
  %3301 = vst [vmem:[#allocation2 + $0x8] sm:$0xf0] %v3295
  %3302 = vst.msk [vmem:[#allocation2 + $0x10] sm:$0xf0] %vm89, %v3296
  %v3303 = vld [vmem:[%s0 + $0x4] sm:$0xff]
  %v3304 = vld [vmem:[%s0 + $0xc] sm:$0xf]
  %v3306 = vcombine.high %v3303, %v3303
  %3308 = vst [vmem:[#allocation2 + $0x18] sm:$0xf] %v3303
  %3309 = vst [vmem:[#allocation2 + $0x20] sm:$0xf] %v3306
  %3310 = vst.msk [vmem:[#allocation2 + $0x28] sm:$0xf] %vm64, %v3304
  %v3311 = vld [vmem:[%s0 + $0x4] sm:$0xff]
  %v3312 = vld [vmem:[%s0 + $0xc] sm:$0xf]
  %v3315 = vcombine.low %v3311, %v3311
  %v3316 = vcombine.low %v3312, %v3312
  %3317 = vrot.lane.b32.xlu0 %v3315, 127
  %v3318 = vpop.permute.xlu0 %3317
  %3319 = vrot.lane.b32.xlu0 %v3311, 127
  %v3320 = vpop.permute.xlu0 %3319
  %3321 = vrot.lane.b32.xlu0 %v3316, 127
  %v3322 = vpop.permute.xlu0 %3321
  %v3323 = vsel %vm159, %v3318, %v3320
  %v3324 = vsel %vm159, %v3320, %v3322
  %3328 = vst [vmem:[#allocation2 + $0x18] sm:$0xf0] %v3323
  %3329 = vst [vmem:[#allocation2 + $0x20] sm:$0xf0] %v3324
  %3330 = vst.msk [vmem:[#allocation2 + $0x28] sm:$0xf0] %vm89, %v3322
  %v3331 = vld [vmem:[#allocation2] sm:$0xff]
  %v3332 = vld [vmem:[#allocation2 + $0x8] sm:$0xff]
  %v3333 = vld [vmem:[#allocation2 + $0x10] sm:$0xff]
  %v3334 = vld [vmem:[#allocation2 + $0x18] sm:$0xff]
  %v3335 = vld [vmem:[#allocation2 + $0x20] sm:$0xff]
  %v3336 = vld [vmem:[#allocation2 + $0x28] sm:$0xff]
  %v3337 = vld [vmem:[%s9] sm:$0xff]
  %3339 = vset.pattern.permute.xlu0 0
  %3340 = vperm.xlu0 %3339, %v3337
  %v3341 = vpop.permute.xlu0 %3340
  %v3344 = vsel %vm1012, %v3256, 0
  %3346 = vmatprep.subr.mxu0 0.0
  %3347 = vmatpush1.msra.mxu0 0.0
  %3348 = vmatprep.subr.mxu0 0.0
  %3349 = vmatpush1.msra.mxu0 0.0
  %3350 = vmatprep.subr.mxu0 0.0
  %3351 = vmatpush1.msra.mxu0 0.0
  %3352 = vmatprep.subr.mxu0 0.0
  %3353 = vmatpush1.msra.mxu0 0.0
  %3354 = vmatprep.subr.mxu0 0.0
  %3355 = vmatpush1.msra.mxu0 0.0
  %3356 = vmatprep.subr.mxu0 0.0
  %3357 = vmatpush1.msra.mxu0 0.0
  %3358 = vmatprep.subr.mxu0 0.0
  %3359 = vmatpush1.msra.mxu0 0.0
  %3360 = vmatprep.subr.mxu0 0.0
  %3361 = vmatpush1.msra.mxu0 0.0
  %3362 = vmatprep.subr.mxu0 0.0
  %3363 = vmatpush1.msra.mxu0 0.0
  %3364 = vmatprep.subr.mxu0 0.0
  %3365 = vmatpush1.msra.mxu0 0.0
  %3366 = vmatprep.subr.mxu0 0.0
  %3367 = vmatpush1.msra.mxu0 0.0
  %3368 = vmatprep.subr.mxu0 0.0
  %3369 = vmatpush1.msra.mxu0 0.0
  %3370 = vmatprep.subr.mxu0 0.0
  %3371 = vmatpush1.msra.mxu0 0.0
  %3372 = vmatprep.subr.mxu0 0.0
  %3373 = vmatpush1.msra.mxu0 0.0
  %3374 = vmatprep.subr.mxu0 %v3335
  %3375 = vmatpush1.msra.mxu0 %v3334
  %3376 = vmatprep.subr.mxu0 %v3332
  %3377 = vmatpush1.msra.mxu0 %v3331
  %3378 = vmatprep.subr.mxu0 0.0
  %3379 = vmatpush2.msra.mxu0 0.0
  %3380 = vmatprep.subr.mxu0 0.0
  %3381 = vmatpush2.msra.mxu0 0.0
  %3382 = vmatprep.subr.mxu0 0.0
  %3383 = vmatpush2.msra.mxu0 0.0
  %3384 = vmatprep.subr.mxu0 0.0
  %3385 = vmatpush2.msra.mxu0 0.0
  %3386 = vmatprep.subr.mxu0 0.0
  %3387 = vmatpush2.msra.mxu0 0.0
  %3388 = vmatprep.subr.mxu0 0.0
  %3389 = vmatpush2.msra.mxu0 0.0
  %3390 = vmatprep.subr.mxu0 0.0
  %3391 = vmatpush2.msra.mxu0 0.0
  %3392 = vmatprep.subr.mxu0 0.0
  %3393 = vmatpush2.msra.mxu0 0.0
  %3394 = vmatprep.subr.mxu0 0.0
  %3395 = vmatpush2.msra.mxu0 0.0
  %3396 = vmatprep.subr.mxu0 0.0
  %3397 = vmatpush2.msra.mxu0 0.0
  %3398 = vmatprep.subr.mxu0 0.0
  %3399 = vmatpush2.msra.mxu0 0.0
  %3400 = vmatprep.subr.mxu0 0.0
  %3401 = vmatpush2.msra.mxu0 0.0
  %3402 = vmatprep.subr.mxu0 0.0
  %3403 = vmatpush2.msra.mxu0 0.0
  %3404 = vmatprep.subr.mxu0 0.0
  %3405 = vmatpush2.msra.mxu0 0.0
  %3406 = vmatprep.subr.mxu0 0.0
  %3407 = vmatpush2.msra.mxu0 0.0
  %3408 = vmatprep.subr.mxu0 0.0
  %3409 = vmatpush2.msra.mxu0 0.0
  %3410 = vmatprep.mubr.f32.mxu0 0.0
  %3411 = vmatmul.mubr.f32.gmra.mxu0 %v3344
  %v3412 = vpop.f32.mrf.mxu0
  %v3413 = vadd.f32 %v3341, %v3412
  %v3414 = vpop.f32.mrf.mxu0
  %v3415 = vadd.f32 %v3341, %v3414
  %3416 = vdwg.mxu0
  %3417 = vmatprep.subr.mxu0 0.0
  %3418 = vmatpush1.msra.mxu0 0.0
  %3419 = vmatprep.subr.mxu0 0.0
  %3420 = vmatpush1.msra.mxu0 0.0
  %3421 = vmatprep.subr.mxu0 0.0
  %3422 = vmatpush1.msra.mxu0 0.0
  %3423 = vmatprep.subr.mxu0 0.0
  %3424 = vmatpush1.msra.mxu0 0.0
  %3425 = vmatprep.subr.mxu0 0.0
  %3426 = vmatpush1.msra.mxu0 0.0
  %3427 = vmatprep.subr.mxu0 0.0
  %3428 = vmatpush1.msra.mxu0 0.0
  %3429 = vmatprep.subr.mxu0 0.0
  %3430 = vmatpush1.msra.mxu0 0.0
  %3431 = vmatprep.subr.mxu0 0.0
  %3432 = vmatpush1.msra.mxu0 0.0
  %3433 = vmatprep.subr.mxu0 0.0
  %3434 = vmatpush1.msra.mxu0 0.0
  %3435 = vmatprep.subr.mxu0 0.0
  %3436 = vmatpush1.msra.mxu0 0.0
  %3437 = vmatprep.subr.mxu0 0.0
  %3438 = vmatpush1.msra.mxu0 0.0
  %3439 = vmatprep.subr.mxu0 0.0
  %3440 = vmatpush1.msra.mxu0 0.0
  %3441 = vmatprep.subr.mxu0 0.0
  %3442 = vmatpush1.msra.mxu0 0.0
  %3443 = vmatprep.subr.mxu0 0.0
  %3444 = vmatpush1.msra.mxu0 0.0
  %3445 = vmatprep.subr.mxu0 0.0
  %3446 = vmatpush1.msra.mxu0 %v3336
  %3447 = vmatprep.subr.mxu0 0.0
  %3448 = vmatpush1.msra.mxu0 %v3333
  %3449 = vmatprep.subr.mxu0 0.0
  %3450 = vmatpush2.msra.mxu0 0.0
  %3451 = vmatprep.subr.mxu0 0.0
  %3452 = vmatpush2.msra.mxu0 0.0
  %3453 = vmatprep.subr.mxu0 0.0
  %3454 = vmatpush2.msra.mxu0 0.0
  %3455 = vmatprep.subr.mxu0 0.0
  %3456 = vmatpush2.msra.mxu0 0.0
  %3457 = vmatprep.subr.mxu0 0.0
  %3458 = vmatpush2.msra.mxu0 0.0
  %3459 = vmatprep.subr.mxu0 0.0
  %3460 = vmatpush2.msra.mxu0 0.0
  %3461 = vmatprep.subr.mxu0 0.0
  %3462 = vmatpush2.msra.mxu0 0.0
  %3463 = vmatprep.subr.mxu0 0.0
  %3464 = vmatpush2.msra.mxu0 0.0
  %3465 = vmatprep.subr.mxu0 0.0
  %3466 = vmatpush2.msra.mxu0 0.0
  %3467 = vmatprep.subr.mxu0 0.0
  %3468 = vmatpush2.msra.mxu0 0.0
  %3469 = vmatprep.subr.mxu0 0.0
  %3470 = vmatpush2.msra.mxu0 0.0
  %3471 = vmatprep.subr.mxu0 0.0
  %3472 = vmatpush2.msra.mxu0 0.0
  %3473 = vmatprep.subr.mxu0 0.0
  %3474 = vmatpush2.msra.mxu0 0.0
  %3475 = vmatprep.subr.mxu0 0.0
  %3476 = vmatpush2.msra.mxu0 0.0
  %3477 = vmatprep.subr.mxu0 0.0
  %3478 = vmatpush2.msra.mxu0 0.0
  %3479 = vmatprep.subr.mxu0 0.0
  %3480 = vmatpush2.msra.mxu0 0.0
  %3481 = vmatprep.mubr.f32.mxu0 0.0
  %3482 = vmatmul.mubr.f32.gmra.mxu0 %v3344
  %v3483 = vpop.f32.mrf.mxu0
  %v3484 = vadd.f32 %v3341, %v3483
  %v3485 = vpop.f32.mrf.mxu0
  %3486 = vdwg.mxu0
  %v3487 = vld [vmem:[%s1396] sm:$0xff]
  %v3488 = vld [vmem:[%s1396 + $0x8] sm:$0xff]
  %v3489 = vld [vmem:[%s1396 + $0x10] sm:$0xff]
  %v3490 = vsub.f32 %v3487, %v2830
  %v3491 = vsub.f32 %v3488, %v2830
  %v3492 = vsub.f32 %v3489, %v2830
  %v3493 = vmul.f32 %v3490, %v3226
  %v3494 = vmul.f32 %v3491, %v3226
  %v3495 = vmul.f32 %v3492, %v3226
  %v3496 = vld [vmem:[%s8] sm:$0xff]
  %3498 = vset.pattern.permute.xlu0 0
  %3499 = vperm.xlu0 %3498, %v3496
  %v3500 = vpop.permute.xlu0 %3499
  %v3502 = vadd.f32 %v3493, %v3500
  %v3503 = vadd.f32 %v3494, %v3500
  %v3504 = vadd.f32 %v3495, %v3500
  %v3505 = vadd.f32 %v3502, %v3413
  %v3506 = vadd.f32 %v3503, %v3415
  %v3507 = vadd.f32 %v3504, %v3484
  %vm3508 = vcmp.ge.f32.partialorder %v3505, 0.0
  %vm3509 = vcmp.ge.f32.partialorder %v3506, 0.0
  %vm3510 = vcmp.ge.f32.partialorder %v3507, 0.0
  %v3511 = vmul.f32 %v3505, 0.22916667
  %v3512 = vmul.f32 %v3506, 0.22916667
  %v3513 = vmul.f32 %v3507, 0.22916667
  %v3514 = vsel %vm3508, %v3505, %v3511
  %v3515 = vsel %vm3509, %v3506, %v3512
  %v3516 = vsel %vm3510, %v3507, %v3513
  %s3517 = scalar_lea.vmem %s10, 24
  %3518 = vst [vmem:[%s3517] sm:$0xff] %v3514
  %3519 = vst [vmem:[%s3517 + $0x8] sm:$0xff] %v3515
  %3520 = vst.msk [vmem:[%s3517 + $0x10] sm:$0xff] %vm1159, %v3516
  %s3521 = scalar_lea.vmem %s4, 16
  %v3522 = vld [vmem:[%s3521] sm:$0xff]
  %v3523 = vld [vmem:[%s0] sm:$0xff]
  %v3524 = vld [vmem:[%s0 + $0x8] sm:$0xff]
  %v3527 = vcombine.high %v3523, %v3523
  %v3528 = vcombine.high %v3524, %v3524
  %3529 = vrot.lane.b32.xlu0 %v3523, 1
  %v3530 = vpop.permute.xlu0 %3529
  %3531 = vrot.lane.b32.xlu0 %v3527, 1
  %v3532 = vpop.permute.xlu0 %3531
  %3533 = vrot.lane.b32.xlu0 %v3524, 1
  %v3534 = vpop.permute.xlu0 %3533
  %3535 = vrot.lane.b32.xlu0 %v3528, 1
  %v3536 = vpop.permute.xlu0 %3535
  %v3537 = vsel %vm129, %v3530, %v3532
  %v3538 = vsel %vm129, %v3532, %v3534
  %v3539 = vsel %vm129, %v3534, %v3536
  %3543 = vst [vmem:[#allocation2] sm:$0xf] %v3537
  %3544 = vst [vmem:[#allocation2 + $0x8] sm:$0xf] %v3538
  %3545 = vst.msk [vmem:[#allocation2 + $0x10] sm:$0xf] %vm64, %v3539
  %v3546 = vld [vmem:[%s0 + $0x4] sm:$0xff]
  %v3547 = vld [vmem:[%s0 + $0xc] sm:$0xf]
  %v3550 = vcombine.low %v3546, %v3546
  %v3551 = vcombine.low %v3547, %v3547
  %3554 = vst [vmem:[#allocation2] sm:$0xf0] %v3550
  %3555 = vst [vmem:[#allocation2 + $0x8] sm:$0xf0] %v3546
  %3556 = vst.msk [vmem:[#allocation2 + $0x10] sm:$0xf0] %vm89, %v3551
  %v3557 = vld [vmem:[%s0 + $0x4] sm:$0xff]
  %v3558 = vld [vmem:[%s0 + $0xc] sm:$0xf]
  %v3561 = vcombine.high %v3557, %v3557
  %3562 = vrot.lane.b32.xlu0 %v3557, 111
  %v3563 = vpop.permute.xlu0 %3562
  %3564 = vrot.lane.b32.xlu0 %v3561, 111
  %v3565 = vpop.permute.xlu0 %3564
  %3566 = vrot.lane.b32.xlu0 %v3558, 111
  %v3567 = vpop.permute.xlu0 %3566
  %v3568 = vsel %vm179, %v3563, %v3565
  %v3569 = vsel %vm179, %v3565, %v3567
  %3573 = vst [vmem:[#allocation2 + $0x18] sm:$0xf] %v3568
  %3574 = vst [vmem:[#allocation2 + $0x20] sm:$0xf] %v3569
  %3575 = vst.msk [vmem:[#allocation2 + $0x28] sm:$0xf] %vm64, %v3567
  %v3576 = vld [vmem:[%s0 + $0x4] sm:$0xff]
  %v3577 = vld [vmem:[%s0 + $0xc] sm:$0xf]
  %v3580 = vcombine.low %v3576, %v3576
  %v3581 = vcombine.low %v3577, %v3577
  %3582 = vrot.lane.b32.xlu0 %v3580, 110
  %v3583 = vpop.permute.xlu0 %3582
  %3584 = vrot.lane.b32.xlu0 %v3576, 110
  %v3585 = vpop.permute.xlu0 %3584
  %3586 = vrot.lane.b32.xlu0 %v3581, 110
  %v3587 = vpop.permute.xlu0 %3586
  %v3588 = vsel %vm200, %v3583, %v3585
  %v3589 = vsel %vm200, %v3585, %v3587
  %3593 = vst [vmem:[#allocation2 + $0x18] sm:$0xf0] %v3588
  %3594 = vst [vmem:[#allocation2 + $0x20] sm:$0xf0] %v3589
  %3595 = vst.msk [vmem:[#allocation2 + $0x28] sm:$0xf0] %vm89, %v3587
  %v3596 = vld [vmem:[#allocation2] sm:$0xff]
  %v3597 = vld [vmem:[#allocation2 + $0x8] sm:$0xff]
  %v3598 = vld [vmem:[#allocation2 + $0x10] sm:$0xff]
  %v3599 = vld [vmem:[#allocation2 + $0x18] sm:$0xff]
  %v3600 = vld [vmem:[#allocation2 + $0x20] sm:$0xff]
  %v3601 = vld [vmem:[#allocation2 + $0x28] sm:$0xff]
  %v3602 = vld [vmem:[%s9] sm:$0xff]
  %3604 = vset.pattern.permute.xlu0 0
  %3605 = vperm.xlu0 %3604, %v3602
  %v3606 = vpop.permute.xlu0 %3605
  %v3609 = vsel %vm1012, %v3522, 0
  %3611 = vmatprep.subr.mxu0 0.0
  %3612 = vmatpush1.msra.mxu0 0.0
  %3613 = vmatprep.subr.mxu0 0.0
  %3614 = vmatpush1.msra.mxu0 0.0
  %3615 = vmatprep.subr.mxu0 0.0
  %3616 = vmatpush1.msra.mxu0 0.0
  %3617 = vmatprep.subr.mxu0 0.0
  %3618 = vmatpush1.msra.mxu0 0.0
  %3619 = vmatprep.subr.mxu0 0.0
  %3620 = vmatpush1.msra.mxu0 0.0
  %3621 = vmatprep.subr.mxu0 0.0
  %3622 = vmatpush1.msra.mxu0 0.0
  %3623 = vmatprep.subr.mxu0 0.0
  %3624 = vmatpush1.msra.mxu0 0.0
  %3625 = vmatprep.subr.mxu0 0.0
  %3626 = vmatpush1.msra.mxu0 0.0
  %3627 = vmatprep.subr.mxu0 0.0
  %3628 = vmatpush1.msra.mxu0 0.0
  %3629 = vmatprep.subr.mxu0 0.0
  %3630 = vmatpush1.msra.mxu0 0.0
  %3631 = vmatprep.subr.mxu0 0.0
  %3632 = vmatpush1.msra.mxu0 0.0
  %3633 = vmatprep.subr.mxu0 0.0
  %3634 = vmatpush1.msra.mxu0 0.0
  %3635 = vmatprep.subr.mxu0 0.0
  %3636 = vmatpush1.msra.mxu0 0.0
  %3637 = vmatprep.subr.mxu0 0.0
  %3638 = vmatpush1.msra.mxu0 0.0
  %3639 = vmatprep.subr.mxu0 %v3600
  %3640 = vmatpush1.msra.mxu0 %v3599
  %3641 = vmatprep.subr.mxu0 %v3597
  %3642 = vmatpush1.msra.mxu0 %v3596
  %3643 = vmatprep.subr.mxu0 0.0
  %3644 = vmatpush2.msra.mxu0 0.0
  %3645 = vmatprep.subr.mxu0 0.0
  %3646 = vmatpush2.msra.mxu0 0.0
  %3647 = vmatprep.subr.mxu0 0.0
  %3648 = vmatpush2.msra.mxu0 0.0
  %3649 = vmatprep.subr.mxu0 0.0
  %3650 = vmatpush2.msra.mxu0 0.0
  %3651 = vmatprep.subr.mxu0 0.0
  %3652 = vmatpush2.msra.mxu0 0.0
  %3653 = vmatprep.subr.mxu0 0.0
  %3654 = vmatpush2.msra.mxu0 0.0
  %3655 = vmatprep.subr.mxu0 0.0
  %3656 = vmatpush2.msra.mxu0 0.0
  %3657 = vmatprep.subr.mxu0 0.0
  %3658 = vmatpush2.msra.mxu0 0.0
  %3659 = vmatprep.subr.mxu0 0.0
  %3660 = vmatpush2.msra.mxu0 0.0
  %3661 = vmatprep.subr.mxu0 0.0
  %3662 = vmatpush2.msra.mxu0 0.0
  %3663 = vmatprep.subr.mxu0 0.0
  %3664 = vmatpush2.msra.mxu0 0.0
  %3665 = vmatprep.subr.mxu0 0.0
  %3666 = vmatpush2.msra.mxu0 0.0
  %3667 = vmatprep.subr.mxu0 0.0
  %3668 = vmatpush2.msra.mxu0 0.0
  %3669 = vmatprep.subr.mxu0 0.0
  %3670 = vmatpush2.msra.mxu0 0.0
  %3671 = vmatprep.subr.mxu0 0.0
  %3672 = vmatpush2.msra.mxu0 0.0
  %3673 = vmatprep.subr.mxu0 0.0
  %3674 = vmatpush2.msra.mxu0 0.0
  %3675 = vmatprep.mubr.f32.mxu0 0.0
  %3676 = vmatmul.mubr.f32.gmra.mxu0 %v3609
  %v3677 = vpop.f32.mrf.mxu0
  %v3678 = vadd.f32 %v3606, %v3677
  %v3679 = vpop.f32.mrf.mxu0
  %v3680 = vadd.f32 %v3606, %v3679
  %3681 = vdwg.mxu0
  %3682 = vmatprep.subr.mxu0 0.0
  %3683 = vmatpush1.msra.mxu0 0.0
  %3684 = vmatprep.subr.mxu0 0.0
  %3685 = vmatpush1.msra.mxu0 0.0
  %3686 = vmatprep.subr.mxu0 0.0
  %3687 = vmatpush1.msra.mxu0 0.0
  %3688 = vmatprep.subr.mxu0 0.0
  %3689 = vmatpush1.msra.mxu0 0.0
  %3690 = vmatprep.subr.mxu0 0.0
  %3691 = vmatpush1.msra.mxu0 0.0
  %3692 = vmatprep.subr.mxu0 0.0
  %3693 = vmatpush1.msra.mxu0 0.0
  %3694 = vmatprep.subr.mxu0 0.0
  %3695 = vmatpush1.msra.mxu0 0.0
  %3696 = vmatprep.subr.mxu0 0.0
  %3697 = vmatpush1.msra.mxu0 0.0
  %3698 = vmatprep.subr.mxu0 0.0
  %3699 = vmatpush1.msra.mxu0 0.0
  %3700 = vmatprep.subr.mxu0 0.0
  %3701 = vmatpush1.msra.mxu0 0.0
  %3702 = vmatprep.subr.mxu0 0.0
  %3703 = vmatpush1.msra.mxu0 0.0
  %3704 = vmatprep.subr.mxu0 0.0
  %3705 = vmatpush1.msra.mxu0 0.0
  %3706 = vmatprep.subr.mxu0 0.0
  %3707 = vmatpush1.msra.mxu0 0.0
  %3708 = vmatprep.subr.mxu0 0.0
  %3709 = vmatpush1.msra.mxu0 0.0
  %3710 = vmatprep.subr.mxu0 0.0
  %3711 = vmatpush1.msra.mxu0 %v3601
  %3712 = vmatprep.subr.mxu0 0.0
  %3713 = vmatpush1.msra.mxu0 %v3598
  %3714 = vmatprep.subr.mxu0 0.0
  %3715 = vmatpush2.msra.mxu0 0.0
  %3716 = vmatprep.subr.mxu0 0.0
  %3717 = vmatpush2.msra.mxu0 0.0
  %3718 = vmatprep.subr.mxu0 0.0
  %3719 = vmatpush2.msra.mxu0 0.0
  %3720 = vmatprep.subr.mxu0 0.0
  %3721 = vmatpush2.msra.mxu0 0.0
  %3722 = vmatprep.subr.mxu0 0.0
  %3723 = vmatpush2.msra.mxu0 0.0
  %3724 = vmatprep.subr.mxu0 0.0
  %3725 = vmatpush2.msra.mxu0 0.0
  %3726 = vmatprep.subr.mxu0 0.0
  %3727 = vmatpush2.msra.mxu0 0.0
  %3728 = vmatprep.subr.mxu0 0.0
  %3729 = vmatpush2.msra.mxu0 0.0
  %3730 = vmatprep.subr.mxu0 0.0
  %3731 = vmatpush2.msra.mxu0 0.0
  %3732 = vmatprep.subr.mxu0 0.0
  %3733 = vmatpush2.msra.mxu0 0.0
  %3734 = vmatprep.subr.mxu0 0.0
  %3735 = vmatpush2.msra.mxu0 0.0
  %3736 = vmatprep.subr.mxu0 0.0
  %3737 = vmatpush2.msra.mxu0 0.0
  %3738 = vmatprep.subr.mxu0 0.0
  %3739 = vmatpush2.msra.mxu0 0.0
  %3740 = vmatprep.subr.mxu0 0.0
  %3741 = vmatpush2.msra.mxu0 0.0
  %3742 = vmatprep.subr.mxu0 0.0
  %3743 = vmatpush2.msra.mxu0 0.0
  %3744 = vmatprep.subr.mxu0 0.0
  %3745 = vmatpush2.msra.mxu0 0.0
  %3746 = vmatprep.mubr.f32.mxu0 0.0
  %3747 = vmatmul.mubr.f32.gmra.mxu0 %v3609
  %v3748 = vpop.f32.mrf.mxu0
  %v3749 = vadd.f32 %v3606, %v3748
  %v3750 = vpop.f32.mrf.mxu0
  %3751 = vdwg.mxu0
  %v3752 = vld [vmem:[%s1634] sm:$0xff]
  %v3753 = vld [vmem:[%s1634 + $0x8] sm:$0xff]
  %v3754 = vld [vmem:[%s1634 + $0x10] sm:$0xff]
  %v3755 = vsub.f32 %v3752, %v2830
  %v3756 = vsub.f32 %v3753, %v2830
  %v3757 = vsub.f32 %v3754, %v2830
  %v3758 = vmul.f32 %v3755, %v3226
  %v3759 = vmul.f32 %v3756, %v3226
  %v3760 = vmul.f32 %v3757, %v3226
  %v3761 = vld [vmem:[%s8] sm:$0xff]
  %3763 = vset.pattern.permute.xlu0 0
  %3764 = vperm.xlu0 %3763, %v3761
  %v3765 = vpop.permute.xlu0 %3764
  %v3767 = vadd.f32 %v3758, %v3765
  %v3768 = vadd.f32 %v3759, %v3765
  %v3769 = vadd.f32 %v3760, %v3765
  %v3770 = vadd.f32 %v3767, %v3678
  %v3771 = vadd.f32 %v3768, %v3680
  %v3772 = vadd.f32 %v3769, %v3749
  %vm3773 = vcmp.ge.f32.partialorder %v3770, 0.0
  %vm3774 = vcmp.ge.f32.partialorder %v3771, 0.0
  %vm3775 = vcmp.ge.f32.partialorder %v3772, 0.0
  %v3776 = vmul.f32 %v3770, 0.22916667
  %v3777 = vmul.f32 %v3771, 0.22916667
  %v3778 = vmul.f32 %v3772, 0.22916667
  %v3779 = vsel %vm3773, %v3770, %v3776
  %v3780 = vsel %vm3774, %v3771, %v3777
  %v3781 = vsel %vm3775, %v3772, %v3778
  %s3782 = scalar_lea.vmem %s10, 48
  %3783 = vst [vmem:[%s3782] sm:$0xff] %v3779
  %3784 = vst [vmem:[%s3782 + $0x8] sm:$0xff] %v3780
  %3785 = vst.msk [vmem:[%s3782 + $0x10] sm:$0xff] %vm1159, %v3781
  %s3786 = scalar_lea.vmem %s4, 24
  %v3787 = vld [vmem:[%s3786] sm:$0xff]
  %v3788 = vld [vmem:[%s0 + $0x4] sm:$0xff]
  %v3789 = vld [vmem:[%s0 + $0xc] sm:$0xf]
  %v3791 = vcombine.high %v3788, %v3788
  %3793 = vst [vmem:[#allocation2] sm:$0xf] %v3788
  %3794 = vst [vmem:[#allocation2 + $0x8] sm:$0xf] %v3791
  %3795 = vst.msk [vmem:[#allocation2 + $0x10] sm:$0xf] %vm64, %v3789
  %v3796 = vld [vmem:[%s0 + $0x4] sm:$0xff]
  %v3797 = vld [vmem:[%s0 + $0xc] sm:$0xf]
  %v3800 = vcombine.low %v3796, %v3796
  %v3801 = vcombine.low %v3797, %v3797
  %3802 = vrot.lane.b32.xlu0 %v3800, 127
  %v3803 = vpop.permute.xlu0 %3802
  %3804 = vrot.lane.b32.xlu0 %v3796, 127
  %v3805 = vpop.permute.xlu0 %3804
  %3806 = vrot.lane.b32.xlu0 %v3801, 127
  %v3807 = vpop.permute.xlu0 %3806
  %v3808 = vsel %vm159, %v3803, %v3805
  %v3809 = vsel %vm159, %v3805, %v3807
  %3813 = vst [vmem:[#allocation2] sm:$0xf0] %v3808
  %3814 = vst [vmem:[#allocation2 + $0x8] sm:$0xf0] %v3809
  %3815 = vst.msk [vmem:[#allocation2 + $0x10] sm:$0xf0] %vm89, %v3807
  %v3816 = vld [vmem:[%s0 + $0x4] sm:$0xff]
  %v3817 = vld [vmem:[%s0 + $0xc] sm:$0xf]
  %v3820 = vcombine.high %v3816, %v3816
  %3821 = vrot.lane.b32.xlu0 %v3816, 110
  %v3822 = vpop.permute.xlu0 %3821
  %3823 = vrot.lane.b32.xlu0 %v3820, 110
  %v3824 = vpop.permute.xlu0 %3823
  %3825 = vrot.lane.b32.xlu0 %v3817, 110
  %v3826 = vpop.permute.xlu0 %3825
  %v3827 = vsel %vm200, %v3822, %v3824
  %v3828 = vsel %vm200, %v3824, %v3826
  %3832 = vst [vmem:[#allocation2 + $0x18] sm:$0xf] %v3827
  %3833 = vst [vmem:[#allocation2 + $0x20] sm:$0xf] %v3828
  %3834 = vst.msk [vmem:[#allocation2 + $0x28] sm:$0xf] %vm64, %v3826
  %v3835 = vld [vmem:[%s0 + $0x4] sm:$0xff]
  %v3836 = vld [vmem:[%s0 + $0xc] sm:$0xf]
  %v3839 = vcombine.low %v3835, %v3835
  %v3840 = vcombine.low %v3836, %v3836
  %3841 = vrot.lane.b32.xlu0 %v3839, 109
  %v3842 = vpop.permute.xlu0 %3841
  %3843 = vrot.lane.b32.xlu0 %v3835, 109
  %v3844 = vpop.permute.xlu0 %3843
  %3845 = vrot.lane.b32.xlu0 %v3840, 109
  %v3846 = vpop.permute.xlu0 %3845
  %v3847 = vsel %vm220, %v3842, %v3844
  %v3848 = vsel %vm220, %v3844, %v3846
  %3852 = vst [vmem:[#allocation2 + $0x18] sm:$0xf0] %v3847
  %3853 = vst [vmem:[#allocation2 + $0x20] sm:$0xf0] %v3848
  %3854 = vst.msk [vmem:[#allocation2 + $0x28] sm:$0xf0] %vm89, %v3846
  %v3855 = vld [vmem:[#allocation2] sm:$0xff]
  %v3856 = vld [vmem:[#allocation2 + $0x8] sm:$0xff]
  %v3857 = vld [vmem:[#allocation2 + $0x10] sm:$0xff]
  %v3858 = vld [vmem:[#allocation2 + $0x18] sm:$0xff]
  %v3859 = vld [vmem:[#allocation2 + $0x20] sm:$0xff]
  %v3860 = vld [vmem:[#allocation2 + $0x28] sm:$0xff]
  %v3861 = vld [vmem:[%s9] sm:$0xff]
  %3863 = vset.pattern.permute.xlu0 0
  %3864 = vperm.xlu0 %3863, %v3861
  %v3865 = vpop.permute.xlu0 %3864
  %v3868 = vsel %vm1012, %v3787, 0
  %3870 = vmatprep.subr.mxu0 0.0
  %3871 = vmatpush1.msra.mxu0 0.0
  %3872 = vmatprep.subr.mxu0 0.0
  %3873 = vmatpush1.msra.mxu0 0.0
  %3874 = vmatprep.subr.mxu0 0.0
  %3875 = vmatpush1.msra.mxu0 0.0
  %3876 = vmatprep.subr.mxu0 0.0
  %3877 = vmatpush1.msra.mxu0 0.0
  %3878 = vmatprep.subr.mxu0 0.0
  %3879 = vmatpush1.msra.mxu0 0.0
  %3880 = vmatprep.subr.mxu0 0.0
  %3881 = vmatpush1.msra.mxu0 0.0
  %3882 = vmatprep.subr.mxu0 0.0
  %3883 = vmatpush1.msra.mxu0 0.0
  %3884 = vmatprep.subr.mxu0 0.0
  %3885 = vmatpush1.msra.mxu0 0.0
  %3886 = vmatprep.subr.mxu0 0.0
  %3887 = vmatpush1.msra.mxu0 0.0
  %3888 = vmatprep.subr.mxu0 0.0
  %3889 = vmatpush1.msra.mxu0 0.0
  %3890 = vmatprep.subr.mxu0 0.0
  %3891 = vmatpush1.msra.mxu0 0.0
  %3892 = vmatprep.subr.mxu0 0.0
  %3893 = vmatpush1.msra.mxu0 0.0
  %3894 = vmatprep.subr.mxu0 0.0
  %3895 = vmatpush1.msra.mxu0 0.0
  %3896 = vmatprep.subr.mxu0 0.0
  %3897 = vmatpush1.msra.mxu0 0.0
  %3898 = vmatprep.subr.mxu0 %v3859
  %3899 = vmatpush1.msra.mxu0 %v3858
  %3900 = vmatprep.subr.mxu0 %v3856
  %3901 = vmatpush1.msra.mxu0 %v3855
  %3902 = vmatprep.subr.mxu0 0.0
  %3903 = vmatpush2.msra.mxu0 0.0
  %3904 = vmatprep.subr.mxu0 0.0
  %3905 = vmatpush2.msra.mxu0 0.0
  %3906 = vmatprep.subr.mxu0 0.0
  %3907 = vmatpush2.msra.mxu0 0.0
  %3908 = vmatprep.subr.mxu0 0.0
  %3909 = vmatpush2.msra.mxu0 0.0
  %3910 = vmatprep.subr.mxu0 0.0
  %3911 = vmatpush2.msra.mxu0 0.0
  %3912 = vmatprep.subr.mxu0 0.0
  %3913 = vmatpush2.msra.mxu0 0.0
  %3914 = vmatprep.subr.mxu0 0.0
  %3915 = vmatpush2.msra.mxu0 0.0
  %3916 = vmatprep.subr.mxu0 0.0
  %3917 = vmatpush2.msra.mxu0 0.0
  %3918 = vmatprep.subr.mxu0 0.0
  %3919 = vmatpush2.msra.mxu0 0.0
  %3920 = vmatprep.subr.mxu0 0.0
  %3921 = vmatpush2.msra.mxu0 0.0
  %3922 = vmatprep.subr.mxu0 0.0
  %3923 = vmatpush2.msra.mxu0 0.0
  %3924 = vmatprep.subr.mxu0 0.0
  %3925 = vmatpush2.msra.mxu0 0.0
  %3926 = vmatprep.subr.mxu0 0.0
  %3927 = vmatpush2.msra.mxu0 0.0
  %3928 = vmatprep.subr.mxu0 0.0
  %3929 = vmatpush2.msra.mxu0 0.0
  %3930 = vmatprep.subr.mxu0 0.0
  %3931 = vmatpush2.msra.mxu0 0.0
  %3932 = vmatprep.subr.mxu0 0.0
  %3933 = vmatpush2.msra.mxu0 0.0
  %3934 = vmatprep.mubr.f32.mxu0 0.0
  %3935 = vmatmul.mubr.f32.gmra.mxu0 %v3868
  %v3936 = vpop.f32.mrf.mxu0
  %v3937 = vadd.f32 %v3865, %v3936
  %v3938 = vpop.f32.mrf.mxu0
  %v3939 = vadd.f32 %v3865, %v3938
  %3940 = vdwg.mxu0
  %3941 = vmatprep.subr.mxu0 0.0
  %3942 = vmatpush1.msra.mxu0 0.0
  %3943 = vmatprep.subr.mxu0 0.0
  %3944 = vmatpush1.msra.mxu0 0.0
  %3945 = vmatprep.subr.mxu0 0.0
  %3946 = vmatpush1.msra.mxu0 0.0
  %3947 = vmatprep.subr.mxu0 0.0
  %3948 = vmatpush1.msra.mxu0 0.0
  %3949 = vmatprep.subr.mxu0 0.0
  %3950 = vmatpush1.msra.mxu0 0.0
  %3951 = vmatprep.subr.mxu0 0.0
  %3952 = vmatpush1.msra.mxu0 0.0
  %3953 = vmatprep.subr.mxu0 0.0
  %3954 = vmatpush1.msra.mxu0 0.0
  %3955 = vmatprep.subr.mxu0 0.0
  %3956 = vmatpush1.msra.mxu0 0.0
  %3957 = vmatprep.subr.mxu0 0.0
  %3958 = vmatpush1.msra.mxu0 0.0
  %3959 = vmatprep.subr.mxu0 0.0
  %3960 = vmatpush1.msra.mxu0 0.0
  %3961 = vmatprep.subr.mxu0 0.0
  %3962 = vmatpush1.msra.mxu0 0.0
  %3963 = vmatprep.subr.mxu0 0.0
  %3964 = vmatpush1.msra.mxu0 0.0
  %3965 = vmatprep.subr.mxu0 0.0
  %3966 = vmatpush1.msra.mxu0 0.0
  %3967 = vmatprep.subr.mxu0 0.0
  %3968 = vmatpush1.msra.mxu0 0.0
  %3969 = vmatprep.subr.mxu0 0.0
  %3970 = vmatpush1.msra.mxu0 %v3860
  %3971 = vmatprep.subr.mxu0 0.0
  %3972 = vmatpush1.msra.mxu0 %v3857
  %3973 = vmatprep.subr.mxu0 0.0
  %3974 = vmatpush2.msra.mxu0 0.0
  %3975 = vmatprep.subr.mxu0 0.0
  %3976 = vmatpush2.msra.mxu0 0.0
  %3977 = vmatprep.subr.mxu0 0.0
  %3978 = vmatpush2.msra.mxu0 0.0
  %3979 = vmatprep.subr.mxu0 0.0
  %3980 = vmatpush2.msra.mxu0 0.0
  %3981 = vmatprep.subr.mxu0 0.0
  %3982 = vmatpush2.msra.mxu0 0.0
  %3983 = vmatprep.subr.mxu0 0.0
  %3984 = vmatpush2.msra.mxu0 0.0
  %3985 = vmatprep.subr.mxu0 0.0
  %3986 = vmatpush2.msra.mxu0 0.0
  %3987 = vmatprep.subr.mxu0 0.0
  %3988 = vmatpush2.msra.mxu0 0.0
  %3989 = vmatprep.subr.mxu0 0.0
  %3990 = vmatpush2.msra.mxu0 0.0
  %3991 = vmatprep.subr.mxu0 0.0
  %3992 = vmatpush2.msra.mxu0 0.0
  %3993 = vmatprep.subr.mxu0 0.0
  %3994 = vmatpush2.msra.mxu0 0.0
  %3995 = vmatprep.subr.mxu0 0.0
  %3996 = vmatpush2.msra.mxu0 0.0
  %3997 = vmatprep.subr.mxu0 0.0
  %3998 = vmatpush2.msra.mxu0 0.0
  %3999 = vmatprep.subr.mxu0 0.0
  %4000 = vmatpush2.msra.mxu0 0.0
  %4001 = vmatprep.subr.mxu0 0.0
  %4002 = vmatpush2.msra.mxu0 0.0
  %4003 = vmatprep.subr.mxu0 0.0
  %4004 = vmatpush2.msra.mxu0 0.0
  %4005 = vmatprep.mubr.f32.mxu0 0.0
  %4006 = vmatmul.mubr.f32.gmra.mxu0 %v3868
  %v4007 = vpop.f32.mrf.mxu0
  %v4008 = vadd.f32 %v3865, %v4007
  %v4009 = vpop.f32.mrf.mxu0
  %4010 = vdwg.mxu0
  %v4011 = vld [vmem:[%s1866] sm:$0xff]
  %v4012 = vld [vmem:[%s1866 + $0x8] sm:$0xff]
  %v4013 = vld [vmem:[%s1866 + $0x10] sm:$0xff]
  %v4014 = vsub.f32 %v4011, %v2830
  %v4015 = vsub.f32 %v4012, %v2830
  %v4016 = vsub.f32 %v4013, %v2830
  %v4017 = vmul.f32 %v4014, %v3226
  %v4018 = vmul.f32 %v4015, %v3226
  %v4019 = vmul.f32 %v4016, %v3226
  %v4020 = vld [vmem:[%s8] sm:$0xff]
  %4022 = vset.pattern.permute.xlu0 0
  %4023 = vperm.xlu0 %4022, %v4020
  %v4024 = vpop.permute.xlu0 %4023
  %v4026 = vadd.f32 %v4017, %v4024
  %v4027 = vadd.f32 %v4018, %v4024
  %v4028 = vadd.f32 %v4019, %v4024
  %v4029 = vadd.f32 %v4026, %v3937
  %v4030 = vadd.f32 %v4027, %v3939
  %v4031 = vadd.f32 %v4028, %v4008
  %vm4032 = vcmp.ge.f32.partialorder %v4029, 0.0
  %vm4033 = vcmp.ge.f32.partialorder %v4030, 0.0
  %vm4034 = vcmp.ge.f32.partialorder %v4031, 0.0
  %v4035 = vmul.f32 %v4029, 0.22916667
  %v4036 = vmul.f32 %v4030, 0.22916667
  %v4037 = vmul.f32 %v4031, 0.22916667
  %v4038 = vsel %vm4032, %v4029, %v4035
  %v4039 = vsel %vm4033, %v4030, %v4036
  %v4040 = vsel %vm4034, %v4031, %v4037
  %s4041 = scalar_lea.vmem %s10, 72
  %4042 = vst [vmem:[%s4041] sm:$0xff] %v4038
  %4043 = vst [vmem:[%s4041 + $0x8] sm:$0xff] %v4039
  %4044 = vst.msk [vmem:[%s4041 + $0x10] sm:$0xff] %vm1159, %v4040
  %v4045 = vld [vmem:[%s4] sm:$0xff]
  %v4046 = vld [vmem:[%s433] sm:$0xff]
  %v4047 = vld [vmem:[%s433 + $0x8] sm:$0xff]
  %v4050 = vcombine.high %v4046, %v4046
  %v4051 = vcombine.high %v4047, %v4047
  %4052 = vrot.lane.b32.xlu0 %v4046, 19
  %v4053 = vpop.permute.xlu0 %4052
  %4054 = vrot.lane.b32.xlu0 %v4050, 19
  %v4055 = vpop.permute.xlu0 %4054
  %4056 = vrot.lane.b32.xlu0 %v4047, 19
  %v4057 = vpop.permute.xlu0 %4056
  %4058 = vrot.lane.b32.xlu0 %v4051, 19
  %v4059 = vpop.permute.xlu0 %4058
  %v4060 = vsel %vm55, %v4053, %v4055
  %v4061 = vsel %vm55, %v4055, %v4057
  %v4062 = vsel %vm55, %v4057, %v4059
  %4066 = vst [vmem:[#allocation2] sm:$0xf] %v4060
  %4067 = vst [vmem:[#allocation2 + $0x8] sm:$0xf] %v4061
  %4068 = vst.msk [vmem:[#allocation2 + $0x10] sm:$0xf] %vm64, %v4062
  %v4069 = vld [vmem:[%s433] sm:$0xff]
  %v4070 = vld [vmem:[%s433 + $0x8] sm:$0xff]
  %v4073 = vcombine.low %v4069, %v4069
  %v4074 = vcombine.low %v4070, %v4070
  %4075 = vrot.lane.b32.xlu0 %v4073, 18
  %v4076 = vpop.permute.xlu0 %4075
  %4077 = vrot.lane.b32.xlu0 %v4069, 18
  %v4078 = vpop.permute.xlu0 %4077
  %4079 = vrot.lane.b32.xlu0 %v4074, 18
  %v4080 = vpop.permute.xlu0 %4079
  %4081 = vrot.lane.b32.xlu0 %v4070, 18
  %v4082 = vpop.permute.xlu0 %4081
  %v4083 = vsel %vm80, %v4076, %v4078
  %v4084 = vsel %vm80, %v4078, %v4080
  %v4085 = vsel %vm80, %v4080, %v4082
  %4089 = vst [vmem:[#allocation2] sm:$0xf0] %v4083
  %4090 = vst [vmem:[#allocation2 + $0x8] sm:$0xf0] %v4084
  %4091 = vst.msk [vmem:[#allocation2 + $0x10] sm:$0xf0] %vm89, %v4085
  %v4092 = vld [vmem:[%s433] sm:$0xff]
  %v4093 = vld [vmem:[%s433 + $0x8] sm:$0xff]
  %v4096 = vcombine.high %v4092, %v4092
  %v4097 = vcombine.high %v4093, %v4093
  %4098 = vrot.lane.b32.xlu0 %v4092, 1
  %v4099 = vpop.permute.xlu0 %4098
  %4100 = vrot.lane.b32.xlu0 %v4096, 1
  %v4101 = vpop.permute.xlu0 %4100
  %4102 = vrot.lane.b32.xlu0 %v4093, 1
  %v4103 = vpop.permute.xlu0 %4102
  %4104 = vrot.lane.b32.xlu0 %v4097, 1
  %v4105 = vpop.permute.xlu0 %4104
  %v4106 = vsel %vm129, %v4099, %v4101
  %v4107 = vsel %vm129, %v4101, %v4103
  %v4108 = vsel %vm129, %v4103, %v4105
  %4112 = vst [vmem:[#allocation2 + $0x18] sm:$0xf] %v4106
  %4113 = vst [vmem:[#allocation2 + $0x20] sm:$0xf] %v4107
  %4114 = vst.msk [vmem:[#allocation2 + $0x28] sm:$0xf] %vm64, %v4108
  %v4115 = vld [vmem:[%s433 + $0x4] sm:$0xff]
  %v4116 = vld [vmem:[%s433 + $0xc] sm:$0xf]
  %v4119 = vcombine.low %v4115, %v4115
  %v4120 = vcombine.low %v4116, %v4116
  %4123 = vst [vmem:[#allocation2 + $0x18] sm:$0xf0] %v4119
  %4124 = vst [vmem:[#allocation2 + $0x20] sm:$0xf0] %v4115
  %4125 = vst.msk [vmem:[#allocation2 + $0x28] sm:$0xf0] %vm89, %v4120
  %v4126 = vld [vmem:[#allocation2] sm:$0xff]
  %v4127 = vld [vmem:[#allocation2 + $0x8] sm:$0xff]
  %v4128 = vld [vmem:[#allocation2 + $0x10] sm:$0xff]
  %v4129 = vld [vmem:[#allocation2 + $0x18] sm:$0xff]
  %v4130 = vld [vmem:[#allocation2 + $0x20] sm:$0xff]
  %v4131 = vld [vmem:[#allocation2 + $0x28] sm:$0xff]
  %v4132 = vld [vmem:[%s9] sm:$0xff]
  %4134 = vset.pattern.permute.xlu0 0
  %4135 = vperm.xlu0 %4134, %v4132
  %v4136 = vpop.permute.xlu0 %4135
  %v4139 = vsel %vm1012, %v4045, 0
  %4141 = vmatprep.subr.mxu0 0.0
  %4142 = vmatpush1.msra.mxu0 0.0
  %4143 = vmatprep.subr.mxu0 0.0
  %4144 = vmatpush1.msra.mxu0 0.0
  %4145 = vmatprep.subr.mxu0 0.0
  %4146 = vmatpush1.msra.mxu0 0.0
  %4147 = vmatprep.subr.mxu0 0.0
  %4148 = vmatpush1.msra.mxu0 0.0
  %4149 = vmatprep.subr.mxu0 0.0
  %4150 = vmatpush1.msra.mxu0 0.0
  %4151 = vmatprep.subr.mxu0 0.0
  %4152 = vmatpush1.msra.mxu0 0.0
  %4153 = vmatprep.subr.mxu0 0.0
  %4154 = vmatpush1.msra.mxu0 0.0
  %4155 = vmatprep.subr.mxu0 0.0
  %4156 = vmatpush1.msra.mxu0 0.0
  %4157 = vmatprep.subr.mxu0 0.0
  %4158 = vmatpush1.msra.mxu0 0.0
  %4159 = vmatprep.subr.mxu0 0.0
  %4160 = vmatpush1.msra.mxu0 0.0
  %4161 = vmatprep.subr.mxu0 0.0
  %4162 = vmatpush1.msra.mxu0 0.0
  %4163 = vmatprep.subr.mxu0 0.0
  %4164 = vmatpush1.msra.mxu0 0.0
  %4165 = vmatprep.subr.mxu0 0.0
  %4166 = vmatpush1.msra.mxu0 0.0
  %4167 = vmatprep.subr.mxu0 0.0
  %4168 = vmatpush1.msra.mxu0 0.0
  %4169 = vmatprep.subr.mxu0 %v4130
  %4170 = vmatpush1.msra.mxu0 %v4129
  %4171 = vmatprep.subr.mxu0 %v4127
  %4172 = vmatpush1.msra.mxu0 %v4126
  %4173 = vmatprep.subr.mxu0 0.0
  %4174 = vmatpush2.msra.mxu0 0.0
  %4175 = vmatprep.subr.mxu0 0.0
  %4176 = vmatpush2.msra.mxu0 0.0
  %4177 = vmatprep.subr.mxu0 0.0
  %4178 = vmatpush2.msra.mxu0 0.0
  %4179 = vmatprep.subr.mxu0 0.0
  %4180 = vmatpush2.msra.mxu0 0.0
  %4181 = vmatprep.subr.mxu0 0.0
  %4182 = vmatpush2.msra.mxu0 0.0
  %4183 = vmatprep.subr.mxu0 0.0
  %4184 = vmatpush2.msra.mxu0 0.0
  %4185 = vmatprep.subr.mxu0 0.0
  %4186 = vmatpush2.msra.mxu0 0.0
  %4187 = vmatprep.subr.mxu0 0.0
  %4188 = vmatpush2.msra.mxu0 0.0
  %4189 = vmatprep.subr.mxu0 0.0
  %4190 = vmatpush2.msra.mxu0 0.0
  %4191 = vmatprep.subr.mxu0 0.0
  %4192 = vmatpush2.msra.mxu0 0.0
  %4193 = vmatprep.subr.mxu0 0.0
  %4194 = vmatpush2.msra.mxu0 0.0
  %4195 = vmatprep.subr.mxu0 0.0
  %4196 = vmatpush2.msra.mxu0 0.0
  %4197 = vmatprep.subr.mxu0 0.0
  %4198 = vmatpush2.msra.mxu0 0.0
  %4199 = vmatprep.subr.mxu0 0.0
  %4200 = vmatpush2.msra.mxu0 0.0
  %4201 = vmatprep.subr.mxu0 0.0
  %4202 = vmatpush2.msra.mxu0 0.0
  %4203 = vmatprep.subr.mxu0 0.0
  %4204 = vmatpush2.msra.mxu0 0.0
  %4205 = vmatprep.mubr.f32.mxu0 0.0
  %4206 = vmatmul.mubr.f32.gmra.mxu0 %v4139
  %v4207 = vpop.f32.mrf.mxu0
  %v4208 = vadd.f32 %v4136, %v4207
  %v4209 = vpop.f32.mrf.mxu0
  %v4210 = vadd.f32 %v4136, %v4209
  %4211 = vdwg.mxu0
  %4212 = vmatprep.subr.mxu0 0.0
  %4213 = vmatpush1.msra.mxu0 0.0
  %4214 = vmatprep.subr.mxu0 0.0
  %4215 = vmatpush1.msra.mxu0 0.0
  %4216 = vmatprep.subr.mxu0 0.0
  %4217 = vmatpush1.msra.mxu0 0.0
  %4218 = vmatprep.subr.mxu0 0.0
  %4219 = vmatpush1.msra.mxu0 0.0
  %4220 = vmatprep.subr.mxu0 0.0
  %4221 = vmatpush1.msra.mxu0 0.0
  %4222 = vmatprep.subr.mxu0 0.0
  %4223 = vmatpush1.msra.mxu0 0.0
  %4224 = vmatprep.subr.mxu0 0.0
  %4225 = vmatpush1.msra.mxu0 0.0
  %4226 = vmatprep.subr.mxu0 0.0
  %4227 = vmatpush1.msra.mxu0 0.0
  %4228 = vmatprep.subr.mxu0 0.0
  %4229 = vmatpush1.msra.mxu0 0.0
  %4230 = vmatprep.subr.mxu0 0.0
  %4231 = vmatpush1.msra.mxu0 0.0
  %4232 = vmatprep.subr.mxu0 0.0
  %4233 = vmatpush1.msra.mxu0 0.0
  %4234 = vmatprep.subr.mxu0 0.0
  %4235 = vmatpush1.msra.mxu0 0.0
  %4236 = vmatprep.subr.mxu0 0.0
  %4237 = vmatpush1.msra.mxu0 0.0
  %4238 = vmatprep.subr.mxu0 0.0
  %4239 = vmatpush1.msra.mxu0 0.0
  %4240 = vmatprep.subr.mxu0 0.0
  %4241 = vmatpush1.msra.mxu0 %v4131
  %4242 = vmatprep.subr.mxu0 0.0
  %4243 = vmatpush1.msra.mxu0 %v4128
  %4244 = vmatprep.subr.mxu0 0.0
  %4245 = vmatpush2.msra.mxu0 0.0
  %4246 = vmatprep.subr.mxu0 0.0
  %4247 = vmatpush2.msra.mxu0 0.0
  %4248 = vmatprep.subr.mxu0 0.0
  %4249 = vmatpush2.msra.mxu0 0.0
  %4250 = vmatprep.subr.mxu0 0.0
  %4251 = vmatpush2.msra.mxu0 0.0
  %4252 = vmatprep.subr.mxu0 0.0
  %4253 = vmatpush2.msra.mxu0 0.0
  %4254 = vmatprep.subr.mxu0 0.0
  %4255 = vmatpush2.msra.mxu0 0.0
  %4256 = vmatprep.subr.mxu0 0.0
  %4257 = vmatpush2.msra.mxu0 0.0
  %4258 = vmatprep.subr.mxu0 0.0
  %4259 = vmatpush2.msra.mxu0 0.0
  %4260 = vmatprep.subr.mxu0 0.0
  %4261 = vmatpush2.msra.mxu0 0.0
  %4262 = vmatprep.subr.mxu0 0.0
  %4263 = vmatpush2.msra.mxu0 0.0
  %4264 = vmatprep.subr.mxu0 0.0
  %4265 = vmatpush2.msra.mxu0 0.0
  %4266 = vmatprep.subr.mxu0 0.0
  %4267 = vmatpush2.msra.mxu0 0.0
  %4268 = vmatprep.subr.mxu0 0.0
  %4269 = vmatpush2.msra.mxu0 0.0
  %4270 = vmatprep.subr.mxu0 0.0
  %4271 = vmatpush2.msra.mxu0 0.0
  %4272 = vmatprep.subr.mxu0 0.0
  %4273 = vmatpush2.msra.mxu0 0.0
  %4274 = vmatprep.subr.mxu0 0.0
  %4275 = vmatpush2.msra.mxu0 0.0
  %4276 = vmatprep.mubr.f32.mxu0 0.0
  %4277 = vmatmul.mubr.f32.gmra.mxu0 %v4139
  %v4278 = vpop.f32.mrf.mxu0
  %v4279 = vadd.f32 %v4136, %v4278
  %v4280 = vpop.f32.mrf.mxu0
  %4281 = vdwg.mxu0
  %v4282 = vld [vmem:[%s2110] sm:$0xff]
  %v4283 = vld [vmem:[%s2110 + $0x8] sm:$0xff]
  %v4284 = vld [vmem:[%s2110 + $0x10] sm:$0xff]
  %v4285 = vsub.f32 %v4282, %v2830
  %v4286 = vsub.f32 %v4283, %v2830
  %v4287 = vsub.f32 %v4284, %v2830
  %v4288 = vmul.f32 %v4285, %v3226
  %v4289 = vmul.f32 %v4286, %v3226
  %v4290 = vmul.f32 %v4287, %v3226
  %v4291 = vld [vmem:[%s8] sm:$0xff]
  %4293 = vset.pattern.permute.xlu0 0
  %4294 = vperm.xlu0 %4293, %v4291
  %v4295 = vpop.permute.xlu0 %4294
  %v4297 = vadd.f32 %v4288, %v4295
  %v4298 = vadd.f32 %v4289, %v4295
  %v4299 = vadd.f32 %v4290, %v4295
  %v4300 = vadd.f32 %v4297, %v4208
  %v4301 = vadd.f32 %v4298, %v4210
  %v4302 = vadd.f32 %v4299, %v4279
  %vm4303 = vcmp.ge.f32.partialorder %v4300, 0.0
  %vm4304 = vcmp.ge.f32.partialorder %v4301, 0.0
  %vm4305 = vcmp.ge.f32.partialorder %v4302, 0.0
  %v4306 = vmul.f32 %v4300, 0.22916667
  %v4307 = vmul.f32 %v4301, 0.22916667
  %v4308 = vmul.f32 %v4302, 0.22916667
  %v4309 = vsel %vm4303, %v4300, %v4306
  %v4310 = vsel %vm4304, %v4301, %v4307
  %v4311 = vsel %vm4305, %v4302, %v4308
  %s4312 = scalar_lea.vmem %s10, 96
  %4313 = vst [vmem:[%s4312] sm:$0xff] %v4309
  %4314 = vst [vmem:[%s4312 + $0x8] sm:$0xff] %v4310
  %4315 = vst.msk [vmem:[%s4312 + $0x10] sm:$0xff] %vm1159, %v4311
  %v4316 = vld [vmem:[%s3255] sm:$0xff]
  %v4317 = vld [vmem:[%s433] sm:$0xff]
  %v4318 = vld [vmem:[%s433 + $0x8] sm:$0xff]
  %v4321 = vcombine.high %v4317, %v4317
  %v4322 = vcombine.high %v4318, %v4318
  %4323 = vrot.lane.b32.xlu0 %v4317, 18
  %v4324 = vpop.permute.xlu0 %4323
  %4325 = vrot.lane.b32.xlu0 %v4321, 18
  %v4326 = vpop.permute.xlu0 %4325
  %4327 = vrot.lane.b32.xlu0 %v4318, 18
  %v4328 = vpop.permute.xlu0 %4327
  %4329 = vrot.lane.b32.xlu0 %v4322, 18
  %v4330 = vpop.permute.xlu0 %4329
  %v4331 = vsel %vm80, %v4324, %v4326
  %v4332 = vsel %vm80, %v4326, %v4328
  %v4333 = vsel %vm80, %v4328, %v4330
  %4337 = vst [vmem:[#allocation2] sm:$0xf] %v4331
  %4338 = vst [vmem:[#allocation2 + $0x8] sm:$0xf] %v4332
  %4339 = vst.msk [vmem:[#allocation2 + $0x10] sm:$0xf] %vm64, %v4333
  %v4340 = vld [vmem:[%s433] sm:$0xff]
  %v4341 = vld [vmem:[%s433 + $0x8] sm:$0xff]
  %v4344 = vcombine.low %v4340, %v4340
  %v4345 = vcombine.low %v4341, %v4341
  %4346 = vrot.lane.b32.xlu0 %v4344, 17
  %v4347 = vpop.permute.xlu0 %4346
  %4348 = vrot.lane.b32.xlu0 %v4340, 17
  %v4349 = vpop.permute.xlu0 %4348
  %4350 = vrot.lane.b32.xlu0 %v4345, 17
  %v4351 = vpop.permute.xlu0 %4350
  %4352 = vrot.lane.b32.xlu0 %v4341, 17
  %v4353 = vpop.permute.xlu0 %4352
  %v4354 = vsel %vm105, %v4347, %v4349
  %v4355 = vsel %vm105, %v4349, %v4351
  %v4356 = vsel %vm105, %v4351, %v4353
  %4360 = vst [vmem:[#allocation2] sm:$0xf0] %v4354
  %4361 = vst [vmem:[#allocation2 + $0x8] sm:$0xf0] %v4355
  %4362 = vst.msk [vmem:[#allocation2 + $0x10] sm:$0xf0] %vm89, %v4356
  %v4363 = vld [vmem:[%s433 + $0x4] sm:$0xff]
  %v4364 = vld [vmem:[%s433 + $0xc] sm:$0xf]
  %v4366 = vcombine.high %v4363, %v4363
  %4368 = vst [vmem:[#allocation2 + $0x18] sm:$0xf] %v4363
  %4369 = vst [vmem:[#allocation2 + $0x20] sm:$0xf] %v4366
  %4370 = vst.msk [vmem:[#allocation2 + $0x28] sm:$0xf] %vm64, %v4364
  %v4371 = vld [vmem:[%s433 + $0x4] sm:$0xff]
  %v4372 = vld [vmem:[%s433 + $0xc] sm:$0xf]
  %v4375 = vcombine.low %v4371, %v4371
  %v4376 = vcombine.low %v4372, %v4372
  %4377 = vrot.lane.b32.xlu0 %v4375, 127
  %v4378 = vpop.permute.xlu0 %4377
  %4379 = vrot.lane.b32.xlu0 %v4371, 127
  %v4380 = vpop.permute.xlu0 %4379
  %4381 = vrot.lane.b32.xlu0 %v4376, 127
  %v4382 = vpop.permute.xlu0 %4381
  %v4383 = vsel %vm159, %v4378, %v4380
  %v4384 = vsel %vm159, %v4380, %v4382
  %4388 = vst [vmem:[#allocation2 + $0x18] sm:$0xf0] %v4383
  %4389 = vst [vmem:[#allocation2 + $0x20] sm:$0xf0] %v4384
  %4390 = vst.msk [vmem:[#allocation2 + $0x28] sm:$0xf0] %vm89, %v4382
  %v4391 = vld [vmem:[#allocation2] sm:$0xff]
  %v4392 = vld [vmem:[#allocation2 + $0x8] sm:$0xff]
  %v4393 = vld [vmem:[#allocation2 + $0x10] sm:$0xff]
  %v4394 = vld [vmem:[#allocation2 + $0x18] sm:$0xff]
  %v4395 = vld [vmem:[#allocation2 + $0x20] sm:$0xff]
  %v4396 = vld [vmem:[#allocation2 + $0x28] sm:$0xff]
  %v4397 = vld [vmem:[%s9] sm:$0xff]
  %4399 = vset.pattern.permute.xlu0 0
  %4400 = vperm.xlu0 %4399, %v4397
  %v4401 = vpop.permute.xlu0 %4400
  %v4404 = vsel %vm1012, %v4316, 0
  %4406 = vmatprep.subr.mxu0 0.0
  %4407 = vmatpush1.msra.mxu0 0.0
  %4408 = vmatprep.subr.mxu0 0.0
  %4409 = vmatpush1.msra.mxu0 0.0
  %4410 = vmatprep.subr.mxu0 0.0
  %4411 = vmatpush1.msra.mxu0 0.0
  %4412 = vmatprep.subr.mxu0 0.0
  %4413 = vmatpush1.msra.mxu0 0.0
  %4414 = vmatprep.subr.mxu0 0.0
  %4415 = vmatpush1.msra.mxu0 0.0
  %4416 = vmatprep.subr.mxu0 0.0
  %4417 = vmatpush1.msra.mxu0 0.0
  %4418 = vmatprep.subr.mxu0 0.0
  %4419 = vmatpush1.msra.mxu0 0.0
  %4420 = vmatprep.subr.mxu0 0.0
  %4421 = vmatpush1.msra.mxu0 0.0
  %4422 = vmatprep.subr.mxu0 0.0
  %4423 = vmatpush1.msra.mxu0 0.0
  %4424 = vmatprep.subr.mxu0 0.0
  %4425 = vmatpush1.msra.mxu0 0.0
  %4426 = vmatprep.subr.mxu0 0.0
  %4427 = vmatpush1.msra.mxu0 0.0
  %4428 = vmatprep.subr.mxu0 0.0
  %4429 = vmatpush1.msra.mxu0 0.0
  %4430 = vmatprep.subr.mxu0 0.0
  %4431 = vmatpush1.msra.mxu0 0.0
  %4432 = vmatprep.subr.mxu0 0.0
  %4433 = vmatpush1.msra.mxu0 0.0
  %4434 = vmatprep.subr.mxu0 %v4395
  %4435 = vmatpush1.msra.mxu0 %v4394
  %4436 = vmatprep.subr.mxu0 %v4392
  %4437 = vmatpush1.msra.mxu0 %v4391
  %4438 = vmatprep.subr.mxu0 0.0
  %4439 = vmatpush2.msra.mxu0 0.0
  %4440 = vmatprep.subr.mxu0 0.0
  %4441 = vmatpush2.msra.mxu0 0.0
  %4442 = vmatprep.subr.mxu0 0.0
  %4443 = vmatpush2.msra.mxu0 0.0
  %4444 = vmatprep.subr.mxu0 0.0
  %4445 = vmatpush2.msra.mxu0 0.0
  %4446 = vmatprep.subr.mxu0 0.0
  %4447 = vmatpush2.msra.mxu0 0.0
  %4448 = vmatprep.subr.mxu0 0.0
  %4449 = vmatpush2.msra.mxu0 0.0
  %4450 = vmatprep.subr.mxu0 0.0
  %4451 = vmatpush2.msra.mxu0 0.0
  %4452 = vmatprep.subr.mxu0 0.0
  %4453 = vmatpush2.msra.mxu0 0.0
  %4454 = vmatprep.subr.mxu0 0.0
  %4455 = vmatpush2.msra.mxu0 0.0
  %4456 = vmatprep.subr.mxu0 0.0
  %4457 = vmatpush2.msra.mxu0 0.0
  %4458 = vmatprep.subr.mxu0 0.0
  %4459 = vmatpush2.msra.mxu0 0.0
  %4460 = vmatprep.subr.mxu0 0.0
  %4461 = vmatpush2.msra.mxu0 0.0
  %4462 = vmatprep.subr.mxu0 0.0
  %4463 = vmatpush2.msra.mxu0 0.0
  %4464 = vmatprep.subr.mxu0 0.0
  %4465 = vmatpush2.msra.mxu0 0.0
  %4466 = vmatprep.subr.mxu0 0.0
  %4467 = vmatpush2.msra.mxu0 0.0
  %4468 = vmatprep.subr.mxu0 0.0
  %4469 = vmatpush2.msra.mxu0 0.0
  %4470 = vmatprep.mubr.f32.mxu0 0.0
  %4471 = vmatmul.mubr.f32.gmra.mxu0 %v4404
  %v4472 = vpop.f32.mrf.mxu0
  %v4473 = vadd.f32 %v4401, %v4472
  %v4474 = vpop.f32.mrf.mxu0
  %v4475 = vadd.f32 %v4401, %v4474
  %4476 = vdwg.mxu0
  %4477 = vmatprep.subr.mxu0 0.0
  %4478 = vmatpush1.msra.mxu0 0.0
  %4479 = vmatprep.subr.mxu0 0.0
  %4480 = vmatpush1.msra.mxu0 0.0
  %4481 = vmatprep.subr.mxu0 0.0
  %4482 = vmatpush1.msra.mxu0 0.0
  %4483 = vmatprep.subr.mxu0 0.0
  %4484 = vmatpush1.msra.mxu0 0.0
  %4485 = vmatprep.subr.mxu0 0.0
  %4486 = vmatpush1.msra.mxu0 0.0
  %4487 = vmatprep.subr.mxu0 0.0
  %4488 = vmatpush1.msra.mxu0 0.0
  %4489 = vmatprep.subr.mxu0 0.0
  %4490 = vmatpush1.msra.mxu0 0.0
  %4491 = vmatprep.subr.mxu0 0.0
  %4492 = vmatpush1.msra.mxu0 0.0
  %4493 = vmatprep.subr.mxu0 0.0
  %4494 = vmatpush1.msra.mxu0 0.0
  %4495 = vmatprep.subr.mxu0 0.0
  %4496 = vmatpush1.msra.mxu0 0.0
  %4497 = vmatprep.subr.mxu0 0.0
  %4498 = vmatpush1.msra.mxu0 0.0
  %4499 = vmatprep.subr.mxu0 0.0
  %4500 = vmatpush1.msra.mxu0 0.0
  %4501 = vmatprep.subr.mxu0 0.0
  %4502 = vmatpush1.msra.mxu0 0.0
  %4503 = vmatprep.subr.mxu0 0.0
  %4504 = vmatpush1.msra.mxu0 0.0
  %4505 = vmatprep.subr.mxu0 0.0
  %4506 = vmatpush1.msra.mxu0 %v4396
  %4507 = vmatprep.subr.mxu0 0.0
  %4508 = vmatpush1.msra.mxu0 %v4393
  %4509 = vmatprep.subr.mxu0 0.0
  %4510 = vmatpush2.msra.mxu0 0.0
  %4511 = vmatprep.subr.mxu0 0.0
  %4512 = vmatpush2.msra.mxu0 0.0
  %4513 = vmatprep.subr.mxu0 0.0
  %4514 = vmatpush2.msra.mxu0 0.0
  %4515 = vmatprep.subr.mxu0 0.0
  %4516 = vmatpush2.msra.mxu0 0.0
  %4517 = vmatprep.subr.mxu0 0.0
  %4518 = vmatpush2.msra.mxu0 0.0
  %4519 = vmatprep.subr.mxu0 0.0
  %4520 = vmatpush2.msra.mxu0 0.0
  %4521 = vmatprep.subr.mxu0 0.0
  %4522 = vmatpush2.msra.mxu0 0.0
  %4523 = vmatprep.subr.mxu0 0.0
  %4524 = vmatpush2.msra.mxu0 0.0
  %4525 = vmatprep.subr.mxu0 0.0
  %4526 = vmatpush2.msra.mxu0 0.0
  %4527 = vmatprep.subr.mxu0 0.0
  %4528 = vmatpush2.msra.mxu0 0.0
  %4529 = vmatprep.subr.mxu0 0.0
  %4530 = vmatpush2.msra.mxu0 0.0
  %4531 = vmatprep.subr.mxu0 0.0
  %4532 = vmatpush2.msra.mxu0 0.0
  %4533 = vmatprep.subr.mxu0 0.0
  %4534 = vmatpush2.msra.mxu0 0.0
  %4535 = vmatprep.subr.mxu0 0.0
  %4536 = vmatpush2.msra.mxu0 0.0
  %4537 = vmatprep.subr.mxu0 0.0
  %4538 = vmatpush2.msra.mxu0 0.0
  %4539 = vmatprep.subr.mxu0 0.0
  %4540 = vmatpush2.msra.mxu0 0.0
  %4541 = vmatprep.mubr.f32.mxu0 0.0
  %4542 = vmatmul.mubr.f32.gmra.mxu0 %v4404
  %v4543 = vpop.f32.mrf.mxu0
  %v4544 = vadd.f32 %v4401, %v4543
  %v4545 = vpop.f32.mrf.mxu0
  %4546 = vdwg.mxu0
  %v4547 = vld [vmem:[%s2348] sm:$0xff]
  %v4548 = vld [vmem:[%s2348 + $0x8] sm:$0xff]
  %v4549 = vld [vmem:[%s2348 + $0x10] sm:$0xff]
  %v4550 = vsub.f32 %v4547, %v2830
  %v4551 = vsub.f32 %v4548, %v2830
  %v4552 = vsub.f32 %v4549, %v2830
  %v4553 = vmul.f32 %v4550, %v3226
  %v4554 = vmul.f32 %v4551, %v3226
  %v4555 = vmul.f32 %v4552, %v3226
  %v4556 = vld [vmem:[%s8] sm:$0xff]
  %4558 = vset.pattern.permute.xlu0 0
  %4559 = vperm.xlu0 %4558, %v4556
  %v4560 = vpop.permute.xlu0 %4559
  %v4562 = vadd.f32 %v4553, %v4560
  %v4563 = vadd.f32 %v4554, %v4560
  %v4564 = vadd.f32 %v4555, %v4560
  %v4565 = vadd.f32 %v4562, %v4473
  %v4566 = vadd.f32 %v4563, %v4475
  %v4567 = vadd.f32 %v4564, %v4544
  %vm4568 = vcmp.ge.f32.partialorder %v4565, 0.0
  %vm4569 = vcmp.ge.f32.partialorder %v4566, 0.0
  %vm4570 = vcmp.ge.f32.partialorder %v4567, 0.0
  %v4571 = vmul.f32 %v4565, 0.22916667
  %v4572 = vmul.f32 %v4566, 0.22916667
  %v4573 = vmul.f32 %v4567, 0.22916667
  %v4574 = vsel %vm4568, %v4565, %v4571
  %v4575 = vsel %vm4569, %v4566, %v4572
  %v4576 = vsel %vm4570, %v4567, %v4573
  %s4577 = scalar_lea.vmem %s10, 120
  %4578 = vst [vmem:[%s4577] sm:$0xff] %v4574
  %4579 = vst [vmem:[%s4577 + $0x8] sm:$0xff] %v4575
  %4580 = vst.msk [vmem:[%s4577 + $0x10] sm:$0xff] %vm1159, %v4576
  %v4581 = vld [vmem:[%s3521] sm:$0xff]
  %v4582 = vld [vmem:[%s433] sm:$0xff]
  %v4583 = vld [vmem:[%s433 + $0x8] sm:$0xff]
  %v4586 = vcombine.high %v4582, %v4582
  %v4587 = vcombine.high %v4583, %v4583
  %4588 = vrot.lane.b32.xlu0 %v4582, 1
  %v4589 = vpop.permute.xlu0 %4588
  %4590 = vrot.lane.b32.xlu0 %v4586, 1
  %v4591 = vpop.permute.xlu0 %4590
  %4592 = vrot.lane.b32.xlu0 %v4583, 1
  %v4593 = vpop.permute.xlu0 %4592
  %4594 = vrot.lane.b32.xlu0 %v4587, 1
  %v4595 = vpop.permute.xlu0 %4594
  %v4596 = vsel %vm129, %v4589, %v4591
  %v4597 = vsel %vm129, %v4591, %v4593
  %v4598 = vsel %vm129, %v4593, %v4595
  %4602 = vst [vmem:[#allocation2] sm:$0xf] %v4596
  %4603 = vst [vmem:[#allocation2 + $0x8] sm:$0xf] %v4597
  %4604 = vst.msk [vmem:[#allocation2 + $0x10] sm:$0xf] %vm64, %v4598
  %v4605 = vld [vmem:[%s433 + $0x4] sm:$0xff]
  %v4606 = vld [vmem:[%s433 + $0xc] sm:$0xf]
  %v4609 = vcombine.low %v4605, %v4605
  %v4610 = vcombine.low %v4606, %v4606
  %4613 = vst [vmem:[#allocation2] sm:$0xf0] %v4609
  %4614 = vst [vmem:[#allocation2 + $0x8] sm:$0xf0] %v4605
  %4615 = vst.msk [vmem:[#allocation2 + $0x10] sm:$0xf0] %vm89, %v4610
  %v4616 = vld [vmem:[%s433 + $0x4] sm:$0xff]
  %v4617 = vld [vmem:[%s433 + $0xc] sm:$0xf]
  %v4620 = vcombine.high %v4616, %v4616
  %4621 = vrot.lane.b32.xlu0 %v4616, 111
  %v4622 = vpop.permute.xlu0 %4621
  %4623 = vrot.lane.b32.xlu0 %v4620, 111
  %v4624 = vpop.permute.xlu0 %4623
  %4625 = vrot.lane.b32.xlu0 %v4617, 111
  %v4626 = vpop.permute.xlu0 %4625
  %v4627 = vsel %vm179, %v4622, %v4624
  %v4628 = vsel %vm179, %v4624, %v4626
  %4632 = vst [vmem:[#allocation2 + $0x18] sm:$0xf] %v4627
  %4633 = vst [vmem:[#allocation2 + $0x20] sm:$0xf] %v4628
  %4634 = vst.msk [vmem:[#allocation2 + $0x28] sm:$0xf] %vm64, %v4626
  %v4635 = vld [vmem:[%s433 + $0x4] sm:$0xff]
  %v4636 = vld [vmem:[%s433 + $0xc] sm:$0xf]
  %v4639 = vcombine.low %v4635, %v4635
  %v4640 = vcombine.low %v4636, %v4636
  %4641 = vrot.lane.b32.xlu0 %v4639, 110
  %v4642 = vpop.permute.xlu0 %4641
  %4643 = vrot.lane.b32.xlu0 %v4635, 110
  %v4644 = vpop.permute.xlu0 %4643
  %4645 = vrot.lane.b32.xlu0 %v4640, 110
  %v4646 = vpop.permute.xlu0 %4645
  %v4647 = vsel %vm200, %v4642, %v4644
  %v4648 = vsel %vm200, %v4644, %v4646
  %4652 = vst [vmem:[#allocation2 + $0x18] sm:$0xf0] %v4647
  %4653 = vst [vmem:[#allocation2 + $0x20] sm:$0xf0] %v4648
  %4654 = vst.msk [vmem:[#allocation2 + $0x28] sm:$0xf0] %vm89, %v4646
  %v4655 = vld [vmem:[#allocation2] sm:$0xff]
  %v4656 = vld [vmem:[#allocation2 + $0x8] sm:$0xff]
  %v4657 = vld [vmem:[#allocation2 + $0x10] sm:$0xff]
  %v4658 = vld [vmem:[#allocation2 + $0x18] sm:$0xff]
  %v4659 = vld [vmem:[#allocation2 + $0x20] sm:$0xff]
  %v4660 = vld [vmem:[#allocation2 + $0x28] sm:$0xff]
  %v4661 = vld [vmem:[%s9] sm:$0xff]
  %4663 = vset.pattern.permute.xlu0 0
  %4664 = vperm.xlu0 %4663, %v4661
  %v4665 = vpop.permute.xlu0 %4664
  %v4668 = vsel %vm1012, %v4581, 0
  %4670 = vmatprep.subr.mxu0 0.0
  %4671 = vmatpush1.msra.mxu0 0.0
  %4672 = vmatprep.subr.mxu0 0.0
  %4673 = vmatpush1.msra.mxu0 0.0
  %4674 = vmatprep.subr.mxu0 0.0
  %4675 = vmatpush1.msra.mxu0 0.0
  %4676 = vmatprep.subr.mxu0 0.0
  %4677 = vmatpush1.msra.mxu0 0.0
  %4678 = vmatprep.subr.mxu0 0.0
  %4679 = vmatpush1.msra.mxu0 0.0
  %4680 = vmatprep.subr.mxu0 0.0
  %4681 = vmatpush1.msra.mxu0 0.0
  %4682 = vmatprep.subr.mxu0 0.0
  %4683 = vmatpush1.msra.mxu0 0.0
  %4684 = vmatprep.subr.mxu0 0.0
  %4685 = vmatpush1.msra.mxu0 0.0
  %4686 = vmatprep.subr.mxu0 0.0
  %4687 = vmatpush1.msra.mxu0 0.0
  %4688 = vmatprep.subr.mxu0 0.0
  %4689 = vmatpush1.msra.mxu0 0.0
  %4690 = vmatprep.subr.mxu0 0.0
  %4691 = vmatpush1.msra.mxu0 0.0
  %4692 = vmatprep.subr.mxu0 0.0
  %4693 = vmatpush1.msra.mxu0 0.0
  %4694 = vmatprep.subr.mxu0 0.0
  %4695 = vmatpush1.msra.mxu0 0.0
  %4696 = vmatprep.subr.mxu0 0.0
  %4697 = vmatpush1.msra.mxu0 0.0
  %4698 = vmatprep.subr.mxu0 %v4659
  %4699 = vmatpush1.msra.mxu0 %v4658
  %4700 = vmatprep.subr.mxu0 %v4656
  %4701 = vmatpush1.msra.mxu0 %v4655
  %4702 = vmatprep.subr.mxu0 0.0
  %4703 = vmatpush2.msra.mxu0 0.0
  %4704 = vmatprep.subr.mxu0 0.0
  %4705 = vmatpush2.msra.mxu0 0.0
  %4706 = vmatprep.subr.mxu0 0.0
  %4707 = vmatpush2.msra.mxu0 0.0
  %4708 = vmatprep.subr.mxu0 0.0
  %4709 = vmatpush2.msra.mxu0 0.0
  %4710 = vmatprep.subr.mxu0 0.0
  %4711 = vmatpush2.msra.mxu0 0.0
  %4712 = vmatprep.subr.mxu0 0.0
  %4713 = vmatpush2.msra.mxu0 0.0
  %4714 = vmatprep.subr.mxu0 0.0
  %4715 = vmatpush2.msra.mxu0 0.0
  %4716 = vmatprep.subr.mxu0 0.0
  %4717 = vmatpush2.msra.mxu0 0.0
  %4718 = vmatprep.subr.mxu0 0.0
  %4719 = vmatpush2.msra.mxu0 0.0
  %4720 = vmatprep.subr.mxu0 0.0
  %4721 = vmatpush2.msra.mxu0 0.0
  %4722 = vmatprep.subr.mxu0 0.0
  %4723 = vmatpush2.msra.mxu0 0.0
  %4724 = vmatprep.subr.mxu0 0.0
  %4725 = vmatpush2.msra.mxu0 0.0
  %4726 = vmatprep.subr.mxu0 0.0
  %4727 = vmatpush2.msra.mxu0 0.0
  %4728 = vmatprep.subr.mxu0 0.0
  %4729 = vmatpush2.msra.mxu0 0.0
  %4730 = vmatprep.subr.mxu0 0.0
  %4731 = vmatpush2.msra.mxu0 0.0
  %4732 = vmatprep.subr.mxu0 0.0
  %4733 = vmatpush2.msra.mxu0 0.0
  %4734 = vmatprep.mubr.f32.mxu0 0.0
  %4735 = vmatmul.mubr.f32.gmra.mxu0 %v4668
  %v4736 = vpop.f32.mrf.mxu0
  %v4737 = vadd.f32 %v4665, %v4736
  %v4738 = vpop.f32.mrf.mxu0
  %v4739 = vadd.f32 %v4665, %v4738
  %4740 = vdwg.mxu0
  %4741 = vmatprep.subr.mxu0 0.0
  %4742 = vmatpush1.msra.mxu0 0.0
  %4743 = vmatprep.subr.mxu0 0.0
  %4744 = vmatpush1.msra.mxu0 0.0
  %4745 = vmatprep.subr.mxu0 0.0
  %4746 = vmatpush1.msra.mxu0 0.0
  %4747 = vmatprep.subr.mxu0 0.0
  %4748 = vmatpush1.msra.mxu0 0.0
  %4749 = vmatprep.subr.mxu0 0.0
  %4750 = vmatpush1.msra.mxu0 0.0
  %4751 = vmatprep.subr.mxu0 0.0
  %4752 = vmatpush1.msra.mxu0 0.0
  %4753 = vmatprep.subr.mxu0 0.0
  %4754 = vmatpush1.msra.mxu0 0.0
  %4755 = vmatprep.subr.mxu0 0.0
  %4756 = vmatpush1.msra.mxu0 0.0
  %4757 = vmatprep.subr.mxu0 0.0
  %4758 = vmatpush1.msra.mxu0 0.0
  %4759 = vmatprep.subr.mxu0 0.0
  %4760 = vmatpush1.msra.mxu0 0.0
  %4761 = vmatprep.subr.mxu0 0.0
  %4762 = vmatpush1.msra.mxu0 0.0
  %4763 = vmatprep.subr.mxu0 0.0
  %4764 = vmatpush1.msra.mxu0 0.0
  %4765 = vmatprep.subr.mxu0 0.0
  %4766 = vmatpush1.msra.mxu0 0.0
  %4767 = vmatprep.subr.mxu0 0.0
  %4768 = vmatpush1.msra.mxu0 0.0
  %4769 = vmatprep.subr.mxu0 0.0
  %4770 = vmatpush1.msra.mxu0 %v4660
  %4771 = vmatprep.subr.mxu0 0.0
  %4772 = vmatpush1.msra.mxu0 %v4657
  %4773 = vmatprep.subr.mxu0 0.0
  %4774 = vmatpush2.msra.mxu0 0.0
  %4775 = vmatprep.subr.mxu0 0.0
  %4776 = vmatpush2.msra.mxu0 0.0
  %4777 = vmatprep.subr.mxu0 0.0
  %4778 = vmatpush2.msra.mxu0 0.0
  %4779 = vmatprep.subr.mxu0 0.0
  %4780 = vmatpush2.msra.mxu0 0.0
  %4781 = vmatprep.subr.mxu0 0.0
  %4782 = vmatpush2.msra.mxu0 0.0
  %4783 = vmatprep.subr.mxu0 0.0
  %4784 = vmatpush2.msra.mxu0 0.0
  %4785 = vmatprep.subr.mxu0 0.0
  %4786 = vmatpush2.msra.mxu0 0.0
  %4787 = vmatprep.subr.mxu0 0.0
  %4788 = vmatpush2.msra.mxu0 0.0
  %4789 = vmatprep.subr.mxu0 0.0
  %4790 = vmatpush2.msra.mxu0 0.0
  %4791 = vmatprep.subr.mxu0 0.0
  %4792 = vmatpush2.msra.mxu0 0.0
  %4793 = vmatprep.subr.mxu0 0.0
  %4794 = vmatpush2.msra.mxu0 0.0
  %4795 = vmatprep.subr.mxu0 0.0
  %4796 = vmatpush2.msra.mxu0 0.0
  %4797 = vmatprep.subr.mxu0 0.0
  %4798 = vmatpush2.msra.mxu0 0.0
  %4799 = vmatprep.subr.mxu0 0.0
  %4800 = vmatpush2.msra.mxu0 0.0
  %4801 = vmatprep.subr.mxu0 0.0
  %4802 = vmatpush2.msra.mxu0 0.0
  %4803 = vmatprep.subr.mxu0 0.0
  %4804 = vmatpush2.msra.mxu0 0.0
  %4805 = vmatprep.mubr.f32.mxu0 0.0
  %4806 = vmatmul.mubr.f32.gmra.mxu0 %v4668
  %v4807 = vpop.f32.mrf.mxu0
  %v4808 = vadd.f32 %v4665, %v4807
  %v4809 = vpop.f32.mrf.mxu0
  %4810 = vdwg.mxu0
  %v4811 = vld [vmem:[%s2585] sm:$0xff]
  %v4812 = vld [vmem:[%s2585 + $0x8] sm:$0xff]
  %v4813 = vld [vmem:[%s2585 + $0x10] sm:$0xff]
  %v4814 = vsub.f32 %v4811, %v2830
  %v4815 = vsub.f32 %v4812, %v2830
  %v4816 = vsub.f32 %v4813, %v2830
  %v4817 = vmul.f32 %v4814, %v3226
  %v4818 = vmul.f32 %v4815, %v3226
  %v4819 = vmul.f32 %v4816, %v3226
  %v4820 = vld [vmem:[%s8] sm:$0xff]
  %4822 = vset.pattern.permute.xlu0 0
  %4823 = vperm.xlu0 %4822, %v4820
  %v4824 = vpop.permute.xlu0 %4823
  %v4826 = vadd.f32 %v4817, %v4824
  %v4827 = vadd.f32 %v4818, %v4824
  %v4828 = vadd.f32 %v4819, %v4824
  %v4829 = vadd.f32 %v4826, %v4737
  %v4830 = vadd.f32 %v4827, %v4739
  %v4831 = vadd.f32 %v4828, %v4808
  %vm4832 = vcmp.ge.f32.partialorder %v4829, 0.0
  %vm4833 = vcmp.ge.f32.partialorder %v4830, 0.0
  %vm4834 = vcmp.ge.f32.partialorder %v4831, 0.0
  %v4835 = vmul.f32 %v4829, 0.22916667
  %v4836 = vmul.f32 %v4830, 0.22916667
  %v4837 = vmul.f32 %v4831, 0.22916667
  %v4838 = vsel %vm4832, %v4829, %v4835
  %v4839 = vsel %vm4833, %v4830, %v4836
  %v4840 = vsel %vm4834, %v4831, %v4837
  %s4841 = scalar_lea.vmem %s10, 144
  %4842 = vst [vmem:[%s4841] sm:$0xff] %v4838
  %4843 = vst [vmem:[%s4841 + $0x8] sm:$0xff] %v4839
  %4844 = vst.msk [vmem:[%s4841 + $0x10] sm:$0xff] %vm1159, %v4840
  %v4845 = vld [vmem:[%s3786] sm:$0xff]
  %v4846 = vld [vmem:[%s433 + $0x4] sm:$0xff]
  %v4847 = vld [vmem:[%s433 + $0xc] sm:$0xf]
  %v4849 = vcombine.high %v4846, %v4846
  %4851 = vst [vmem:[#allocation2] sm:$0xf] %v4846
  %4852 = vst [vmem:[#allocation2 + $0x8] sm:$0xf] %v4849
  %4853 = vst.msk [vmem:[#allocation2 + $0x10] sm:$0xf] %vm64, %v4847
  %v4854 = vld [vmem:[%s433 + $0x4] sm:$0xff]
  %v4855 = vld [vmem:[%s433 + $0xc] sm:$0xf]
  %v4858 = vcombine.low %v4854, %v4854
  %v4859 = vcombine.low %v4855, %v4855
  %4860 = vrot.lane.b32.xlu0 %v4858, 127
  %v4861 = vpop.permute.xlu0 %4860
  %4862 = vrot.lane.b32.xlu0 %v4854, 127
  %v4863 = vpop.permute.xlu0 %4862
  %4864 = vrot.lane.b32.xlu0 %v4859, 127
  %v4865 = vpop.permute.xlu0 %4864
  %v4866 = vsel %vm159, %v4861, %v4863
  %v4867 = vsel %vm159, %v4863, %v4865
  %4871 = vst [vmem:[#allocation2] sm:$0xf0] %v4866
  %4872 = vst [vmem:[#allocation2 + $0x8] sm:$0xf0] %v4867
  %4873 = vst.msk [vmem:[#allocation2 + $0x10] sm:$0xf0] %vm89, %v4865
  %v4874 = vld [vmem:[%s433 + $0x4] sm:$0xff]
  %v4875 = vld [vmem:[%s433 + $0xc] sm:$0xf]
  %v4878 = vcombine.high %v4874, %v4874
  %4879 = vrot.lane.b32.xlu0 %v4874, 110
  %v4880 = vpop.permute.xlu0 %4879
  %4881 = vrot.lane.b32.xlu0 %v4878, 110
  %v4882 = vpop.permute.xlu0 %4881
  %4883 = vrot.lane.b32.xlu0 %v4875, 110
  %v4884 = vpop.permute.xlu0 %4883
  %v4885 = vsel %vm200, %v4880, %v4882
  %v4886 = vsel %vm200, %v4882, %v4884
  %4890 = vst [vmem:[#allocation2 + $0x18] sm:$0xf] %v4885
  %4891 = vst [vmem:[#allocation2 + $0x20] sm:$0xf] %v4886
  %4892 = vst.msk [vmem:[#allocation2 + $0x28] sm:$0xf] %vm64, %v4884
  %v4893 = vld [vmem:[%s433 + $0x4] sm:$0xff]
  %v4894 = vld [vmem:[%s433 + $0xc] sm:$0xf]
  %v4897 = vcombine.low %v4893, %v4893
  %v4898 = vcombine.low %v4894, %v4894
  %4899 = vrot.lane.b32.xlu0 %v4897, 109
  %v4900 = vpop.permute.xlu0 %4899
  %4901 = vrot.lane.b32.xlu0 %v4893, 109
  %v4902 = vpop.permute.xlu0 %4901
  %4903 = vrot.lane.b32.xlu0 %v4898, 109
  %v4904 = vpop.permute.xlu0 %4903
  %v4905 = vsel %vm220, %v4900, %v4902
  %v4906 = vsel %vm220, %v4902, %v4904
  %4910 = vst [vmem:[#allocation2 + $0x18] sm:$0xf0] %v4905
  %4911 = vst [vmem:[#allocation2 + $0x20] sm:$0xf0] %v4906
  %4912 = vst.msk [vmem:[#allocation2 + $0x28] sm:$0xf0] %vm89, %v4904
  %v4913 = vld [vmem:[#allocation2] sm:$0xff]
  %v4914 = vld [vmem:[#allocation2 + $0x8] sm:$0xff]
  %v4915 = vld [vmem:[#allocation2 + $0x10] sm:$0xff]
  %v4916 = vld [vmem:[#allocation2 + $0x18] sm:$0xff]
  %v4917 = vld [vmem:[#allocation2 + $0x20] sm:$0xff]
  %v4918 = vld [vmem:[#allocation2 + $0x28] sm:$0xff]
  %v4919 = vld [vmem:[%s9] sm:$0xff]
  %4921 = vset.pattern.permute.xlu0 0
  %4922 = vperm.xlu0 %4921, %v4919
  %v4923 = vpop.permute.xlu0 %4922
  %v4926 = vsel %vm1012, %v4845, 0
  %4928 = vmatprep.subr.mxu0 0.0
  %4929 = vmatpush1.msra.mxu0 0.0
  %4930 = vmatprep.subr.mxu0 0.0
  %4931 = vmatpush1.msra.mxu0 0.0
  %4932 = vmatprep.subr.mxu0 0.0
  %4933 = vmatpush1.msra.mxu0 0.0
  %4934 = vmatprep.subr.mxu0 0.0
  %4935 = vmatpush1.msra.mxu0 0.0
  %4936 = vmatprep.subr.mxu0 0.0
  %4937 = vmatpush1.msra.mxu0 0.0
  %4938 = vmatprep.subr.mxu0 0.0
  %4939 = vmatpush1.msra.mxu0 0.0
  %4940 = vmatprep.subr.mxu0 0.0
  %4941 = vmatpush1.msra.mxu0 0.0
  %4942 = vmatprep.subr.mxu0 0.0
  %4943 = vmatpush1.msra.mxu0 0.0
  %4944 = vmatprep.subr.mxu0 0.0
  %4945 = vmatpush1.msra.mxu0 0.0
  %4946 = vmatprep.subr.mxu0 0.0
  %4947 = vmatpush1.msra.mxu0 0.0
  %4948 = vmatprep.subr.mxu0 0.0
  %4949 = vmatpush1.msra.mxu0 0.0
  %4950 = vmatprep.subr.mxu0 0.0
  %4951 = vmatpush1.msra.mxu0 0.0
  %4952 = vmatprep.subr.mxu0 0.0
  %4953 = vmatpush1.msra.mxu0 0.0
  %4954 = vmatprep.subr.mxu0 0.0
  %4955 = vmatpush1.msra.mxu0 0.0
  %4956 = vmatprep.subr.mxu0 %v4917
  %4957 = vmatpush1.msra.mxu0 %v4916
  %4958 = vmatprep.subr.mxu0 %v4914
  %4959 = vmatpush1.msra.mxu0 %v4913
  %4960 = vmatprep.subr.mxu0 0.0
  %4961 = vmatpush2.msra.mxu0 0.0
  %4962 = vmatprep.subr.mxu0 0.0
  %4963 = vmatpush2.msra.mxu0 0.0
  %4964 = vmatprep.subr.mxu0 0.0
  %4965 = vmatpush2.msra.mxu0 0.0
  %4966 = vmatprep.subr.mxu0 0.0
  %4967 = vmatpush2.msra.mxu0 0.0
  %4968 = vmatprep.subr.mxu0 0.0
  %4969 = vmatpush2.msra.mxu0 0.0
  %4970 = vmatprep.subr.mxu0 0.0
  %4971 = vmatpush2.msra.mxu0 0.0
  %4972 = vmatprep.subr.mxu0 0.0
  %4973 = vmatpush2.msra.mxu0 0.0
  %4974 = vmatprep.subr.mxu0 0.0
  %4975 = vmatpush2.msra.mxu0 0.0
  %4976 = vmatprep.subr.mxu0 0.0
  %4977 = vmatpush2.msra.mxu0 0.0
  %4978 = vmatprep.subr.mxu0 0.0
  %4979 = vmatpush2.msra.mxu0 0.0
  %4980 = vmatprep.subr.mxu0 0.0
  %4981 = vmatpush2.msra.mxu0 0.0
  %4982 = vmatprep.subr.mxu0 0.0
  %4983 = vmatpush2.msra.mxu0 0.0
  %4984 = vmatprep.subr.mxu0 0.0
  %4985 = vmatpush2.msra.mxu0 0.0
  %4986 = vmatprep.subr.mxu0 0.0
  %4987 = vmatpush2.msra.mxu0 0.0
  %4988 = vmatprep.subr.mxu0 0.0
  %4989 = vmatpush2.msra.mxu0 0.0
  %4990 = vmatprep.subr.mxu0 0.0
  %4991 = vmatpush2.msra.mxu0 0.0
  %4992 = vmatprep.mubr.f32.mxu0 0.0
  %4993 = vmatmul.mubr.f32.gmra.mxu0 %v4926
  %v4994 = vpop.f32.mrf.mxu0
  %v4995 = vadd.f32 %v4923, %v4994
  %v4996 = vpop.f32.mrf.mxu0
  %v4997 = vadd.f32 %v4923, %v4996
  %4998 = vdwg.mxu0
  %4999 = vmatprep.subr.mxu0 0.0
  %5000 = vmatpush1.msra.mxu0 0.0
  %5001 = vmatprep.subr.mxu0 0.0
  %5002 = vmatpush1.msra.mxu0 0.0
  %5003 = vmatprep.subr.mxu0 0.0
  %5004 = vmatpush1.msra.mxu0 0.0
  %5005 = vmatprep.subr.mxu0 0.0
  %5006 = vmatpush1.msra.mxu0 0.0
  %5007 = vmatprep.subr.mxu0 0.0
  %5008 = vmatpush1.msra.mxu0 0.0
  %5009 = vmatprep.subr.mxu0 0.0
  %5010 = vmatpush1.msra.mxu0 0.0
  %5011 = vmatprep.subr.mxu0 0.0
  %5012 = vmatpush1.msra.mxu0 0.0
  %5013 = vmatprep.subr.mxu0 0.0
  %5014 = vmatpush1.msra.mxu0 0.0
  %5015 = vmatprep.subr.mxu0 0.0
  %5016 = vmatpush1.msra.mxu0 0.0
  %5017 = vmatprep.subr.mxu0 0.0
  %5018 = vmatpush1.msra.mxu0 0.0
  %5019 = vmatprep.subr.mxu0 0.0
  %5020 = vmatpush1.msra.mxu0 0.0
  %5021 = vmatprep.subr.mxu0 0.0
  %5022 = vmatpush1.msra.mxu0 0.0
  %5023 = vmatprep.subr.mxu0 0.0
  %5024 = vmatpush1.msra.mxu0 0.0
  %5025 = vmatprep.subr.mxu0 0.0
  %5026 = vmatpush1.msra.mxu0 0.0
  %5027 = vmatprep.subr.mxu0 0.0
  %5028 = vmatpush1.msra.mxu0 %v4918
  %5029 = vmatprep.subr.mxu0 0.0
  %5030 = vmatpush1.msra.mxu0 %v4915
  %5031 = vmatprep.subr.mxu0 0.0
  %5032 = vmatpush2.msra.mxu0 0.0
  %5033 = vmatprep.subr.mxu0 0.0
  %5034 = vmatpush2.msra.mxu0 0.0
  %5035 = vmatprep.subr.mxu0 0.0
  %5036 = vmatpush2.msra.mxu0 0.0
  %5037 = vmatprep.subr.mxu0 0.0
  %5038 = vmatpush2.msra.mxu0 0.0
  %5039 = vmatprep.subr.mxu0 0.0
  %5040 = vmatpush2.msra.mxu0 0.0
  %5041 = vmatprep.subr.mxu0 0.0
  %5042 = vmatpush2.msra.mxu0 0.0
  %5043 = vmatprep.subr.mxu0 0.0
  %5044 = vmatpush2.msra.mxu0 0.0
  %5045 = vmatprep.subr.mxu0 0.0
  %5046 = vmatpush2.msra.mxu0 0.0
  %5047 = vmatprep.subr.mxu0 0.0
  %5048 = vmatpush2.msra.mxu0 0.0
  %5049 = vmatprep.subr.mxu0 0.0
  %5050 = vmatpush2.msra.mxu0 0.0
  %5051 = vmatprep.subr.mxu0 0.0
  %5052 = vmatpush2.msra.mxu0 0.0
  %5053 = vmatprep.subr.mxu0 0.0
  %5054 = vmatpush2.msra.mxu0 0.0
  %5055 = vmatprep.subr.mxu0 0.0
  %5056 = vmatpush2.msra.mxu0 0.0
  %5057 = vmatprep.subr.mxu0 0.0
  %5058 = vmatpush2.msra.mxu0 0.0
  %5059 = vmatprep.subr.mxu0 0.0
  %5060 = vmatpush2.msra.mxu0 0.0
  %5061 = vmatprep.subr.mxu0 0.0
  %5062 = vmatpush2.msra.mxu0 0.0
  %5063 = vmatprep.mubr.f32.mxu0 0.0
  %5064 = vmatmul.mubr.f32.gmra.mxu0 %v4926
  %v5065 = vpop.f32.mrf.mxu0
  %v5066 = vadd.f32 %v4923, %v5065
  %v5067 = vpop.f32.mrf.mxu0
  %5068 = vdwg.mxu0
  %v5069 = vld [vmem:[%s2816] sm:$0xff]
  %v5070 = vld [vmem:[%s2816 + $0x8] sm:$0xff]
  %v5071 = vld [vmem:[%s2816 + $0x10] sm:$0xff]
  %v5072 = vsub.f32 %v5069, %v2830
  %v5073 = vsub.f32 %v5070, %v2830
  %v5074 = vsub.f32 %v5071, %v2830
  %v5075 = vmul.f32 %v5072, %v3226
  %v5076 = vmul.f32 %v5073, %v3226
  %v5077 = vmul.f32 %v5074, %v3226
  %v5078 = vld [vmem:[%s8] sm:$0xff]
  %5080 = vset.pattern.permute.xlu0 0
  %5081 = vperm.xlu0 %5080, %v5078
  %v5082 = vpop.permute.xlu0 %5081
  %v5084 = vadd.f32 %v5075, %v5082
  %v5085 = vadd.f32 %v5076, %v5082
  %v5086 = vadd.f32 %v5077, %v5082
  %v5087 = vadd.f32 %v5084, %v4995
  %v5088 = vadd.f32 %v5085, %v4997
  %v5089 = vadd.f32 %v5086, %v5066
  %vm5090 = vcmp.ge.f32.partialorder %v5087, 0.0
  %vm5091 = vcmp.ge.f32.partialorder %v5088, 0.0
  %vm5092 = vcmp.ge.f32.partialorder %v5089, 0.0
  %v5093 = vmul.f32 %v5087, 0.22916667
  %v5094 = vmul.f32 %v5088, 0.22916667
  %v5095 = vmul.f32 %v5089, 0.22916667
  %v5096 = vsel %vm5090, %v5087, %v5093
  %v5097 = vsel %vm5091, %v5088, %v5094
  %v5098 = vsel %vm5092, %v5089, %v5095
  %s5099 = scalar_lea.vmem %s10, 168
  %5100 = vst [vmem:[%s5099] sm:$0xff] %v5096
  %5101 = vst [vmem:[%s5099 + $0x8] sm:$0xff] %v5097
  %5102 = vst.msk [vmem:[%s5099 + $0x10] sm:$0xff] %vm1159, %v5098
  // Predicated region
  $region42: #{res_up_forward.1} parent=0 // pred_check
    _
  $region43: #{res_up_forward.1} parent=0 // pred_check_branch
    %5104 = sbr.rel (0) target = $region45
  $region44: #{res_up_forward.1} parent=0 // pred_region
    _
  $region45: #{res_up_forward.1} parent=0 // pred_fallthru
    _
  // Predicated region
  $region46: #{res_up_forward.1} parent=0 // pred_check
    _
  $region47: #{res_up_forward.1} parent=0 // pred_check_branch
    %5106 = sbr.rel (0) target = $region49
  $region48: #{res_up_forward.1} parent=0 // pred_region
    _
  $region49: #{res_up_forward.1} parent=0 // pred_fallthru
    _

</llo_original>
